<compile_context>
chip_gen: v7x
topology: tpu7x:2x2x1
jax: 0.10.0
libtpu: 0.0.40
codegen_flags: <defaults>
</compile_context>

<pallas_src>
import functools

import jax
import jax.numpy as jnp
from jax.experimental import pallas as pl
from jax.experimental.pallas import tpu as pltpu

EPS = 1e-5
NEG_BIG = -1e30          # pad value the fused affine+ReLU prologue maps to 0
LANE = 128


def _device_kind():
    try:
        return jax.devices()[0].device_kind.lower()
    except Exception:
        return ""


_KIND = _device_kind()
_IS_V7 = ("v7" in _KIND) or ("7x" in _KIND)
_IS_V6 = "v6" in _KIND
_IS_V5 = "v5" in _KIND
# v6e/v7x MXU contracts over 256 -> pair 128-deep conv2 taps; v5e is 128-wide.
PAIR_TAPS = _IS_V6 or _IS_V7
if _IS_V7:
    VMEM_LIMIT = 48 * 1024 * 1024          # v7x: 64 MiB physical, stay well under
elif _IS_V6 or _IS_V5:
    VMEM_LIMIT = 96 * 1024 * 1024          # 128 MiB physical
else:
    VMEM_LIMIT = 32 * 1024 * 1024          # unknown chip: conservative


# ----------------------------- Pallas kernels ------------------------------ #

def _conv_kernel(x_ref, w_ref, b_ref, scale_ref, shift_ref, y_ref, stats_ref,
                 acc_ref, *, tap_groups, r_out, wg, wo, out_base, pad_output,
                 prologue):
    """One image: y = sum_g concat_lanes(shift(x, s) for s in g) @ w[g] + b.

    x_ref    : [R_in, C_in]       activations (f32/bf16), row-major (h, w) grid
    w_ref    : [G, Kc, CP]  bf16  per-group weights (Kc = len(group) * C_in)
    b_ref    : [1, CP]            conv bias
    scale/shift_ref : [1, CP]     fused BN+ReLU prologue (prologue=True only)
    y_ref    : [R_total, CP] bf16 output (optionally -BIG-bordered layout so the
                                  next conv consumes it directly)
    stats_ref: [2, CP] f32        per-image (sum, sumsq) over valid grid columns
    acc_ref  : [r_out, CP] f32    VMEM accumulator scratch (multi-group only)
    """
    x = x_ref[...]
    if prologue:                               # fused BN+ReLU of the previous conv
        x = jnp.maximum(x.astype(jnp.float32) * scale_ref[...] + shift_ref[...], 0.0)
    xb = x.astype(jnp.bfloat16)                # cast ONCE; all tap slices reuse it

    def operand(group):
        parts = [xb[s:s + r_out, :] for s in group]
        return parts[0] if len(parts) == 1 else jnp.concatenate(parts, axis=-1)

    if len(tap_groups) == 1:                   # conv1 / skip: single deep-K matmul
        acc = jnp.dot(operand(tap_groups[0]), w_ref[0],
                      preferred_element_type=jnp.float32)
    else:                                      # conv2: accumulate in VMEM scratch
        acc_ref[...] = jnp.dot(operand(tap_groups[0]), w_ref[0],
                               preferred_element_type=jnp.float32)
        for g in range(1, len(tap_groups)):
            acc_ref[...] += jnp.dot(operand(tap_groups[g]), w_ref[g],
                                    preferred_element_type=jnp.float32)
        acc = acc_ref[...]
    y = acc + b_ref[...]

    # column-validity mask for the wg-wide row grid, built in-kernel
    col = jax.lax.broadcasted_iota(jnp.int32, (r_out, 1), 0) % wg
    valid = col < wo
    ym = y * valid.astype(jnp.float32)
    stats_ref[0:1, :] = jnp.sum(ym, axis=0, keepdims=True)
    stats_ref[1:2, :] = jnp.sum(ym * y, axis=0, keepdims=True)

    if pad_output:
        cp = y_ref.shape[-1]
        r_total = y_ref.shape[0]
        # borders written once, interior written exactly once
        if out_base > 0:
            y_ref[0:out_base, :] = jnp.full((out_base, cp), NEG_BIG, y_ref.dtype)
        tail = r_total - (out_base + r_out)
        if tail > 0:
            y_ref[out_base + r_out:r_total, :] = jnp.full((tail, cp), NEG_BIG,
                                                          y_ref.dtype)
        y_ref[out_base:out_base + r_out, :] = jnp.where(
            valid, y, NEG_BIG).astype(y_ref.dtype)
    else:
        y_ref[...] = y.astype(y_ref.dtype)


def _residual_relu_kernel(y2_ref, ys_ref, s2_ref, t2_ref, ss_ref, ts_ref, o_ref):
    # relu( bn2(y2) + bn_skip(ys) ), BN expressed as per-channel affine
    y2 = y2_ref[...].astype(jnp.float32)
    ys = ys_ref[...].astype(jnp.float32)
    cp = y2.shape[-1]
    if ys.shape[-1] < cp:                      # identity skip: pad lanes in VMEM
        ys = jnp.pad(ys, ((0, 0), (0, cp - ys.shape[-1])))
    o_ref[...] = jnp.maximum(
        y2 * s2_ref[...] + t2_ref[...] + ys * ss_ref[...] + ts_ref[...], 0.0)


# ------------------------------ kernel wrappers ----------------------------- #

def conv_taps(a, w_groups, bias, scale, shift, *, tap_groups, r_out, rout_total,
              out_base, wg, wo, prologue, out_dtype=jnp.bfloat16):
    """a: [N, R_in, C_in], w_groups: [G, Kc, CP] bf16
       -> (y [N, rout_total, CP] out_dtype, stats [N, 2, CP] f32)."""
    n, r_in, c_in = a.shape
    g, kc, cp = w_groups.shape
    kernel = functools.partial(
        _conv_kernel,
        tap_groups=tuple(tuple(int(s) for s in grp) for grp in tap_groups),
        r_out=r_out, wg=wg, wo=wo, out_base=out_base,
        pad_output=((rout_total != r_out) or (out_base != 0)),
        prologue=prologue)
    return pl.pallas_call(
        kernel,
        out_shape=(jax.ShapeDtypeStruct((n, rout_total, cp), out_dtype),
                   jax.ShapeDtypeStruct((n, 2, cp), jnp.float32)),
        grid=(n,),
        in_specs=[
            pl.BlockSpec((None, r_in, c_in), lambda i: (i, 0, 0)),
            pl.BlockSpec((g, kc, cp), lambda i: (0, 0, 0)),
            pl.BlockSpec((1, cp), lambda i: (0, 0)),
            pl.BlockSpec((1, cp), lambda i: (0, 0)),
            pl.BlockSpec((1, cp), lambda i: (0, 0)),
        ],
        out_specs=(pl.BlockSpec((None, rout_total, cp), lambda i: (i, 0, 0)),
                   pl.BlockSpec((None, 2, cp), lambda i: (i, 0, 0))),
        scratch_shapes=[pltpu.VMEM((r_out, cp), jnp.float32)],
        compiler_params=pltpu.CompilerParams(
            dimension_semantics=("parallel",),
            vmem_limit_bytes=VMEM_LIMIT),
    )(a, w_groups, bias, scale, shift)


def residual_relu(y2, ys, s2, t2, ss, ts):
    """relu( y2*s2 + t2 + pad(ys)*ss + ts ); y2: [N,R,CP], ys: [N,R,Cs]."""
    n, r, cp = y2.shape
    cs = ys.shape[-1]
    return pl.pallas_call(
        _residual_relu_kernel,
        out_shape=jax.ShapeDtypeStruct((n, r, cp), jnp.float32),
        grid=(n,),
        in_specs=[
            pl.BlockSpec((None, r, cp), lambda i: (i, 0, 0)),
            pl.BlockSpec((None, r, cs), lambda i: (i, 0, 0)),
            pl.BlockSpec((1, cp), lambda i: (0, 0)),
            pl.BlockSpec((1, cp), lambda i: (0, 0)),
            pl.BlockSpec((1, cp), lambda i: (0, 0)),
            pl.BlockSpec((1, cp), lambda i: (0, 0)),
        ],
        out_specs=pl.BlockSpec((None, r, cp), lambda i: (i, 0, 0)),
        compiler_params=pltpu.CompilerParams(
            dimension_semantics=("parallel",),
            vmem_limit_bytes=VMEM_LIMIT),
    )(y2, ys, s2, t2, ss, ts)


# ------------------------------- JAX-side glue ------------------------------ #

def _combine_stats(stats, count):
    """stats: [N, 2, CP] per-image (sum, sumsq) -> BN (scale, shift), [1, CP]."""
    tot = jnp.sum(stats, axis=0)
    mean = tot[0] / count
    var = jnp.maximum(tot[1] / count - mean * mean, 0.0)   # biased (training BN)
    scale = jax.lax.rsqrt(var + EPS)
    shift = -mean * scale
    return scale.reshape(1, -1), shift.reshape(1, -1)


def _taps_from_oihw(w_oihw, cp_out, cin_pad=None):
    """torch [O, I, KH, KW] -> [KH*KW, I(pad), CP] bf16 per-tap matrices."""
    o, i, kh, kw = w_oihw.shape
    wt = jnp.transpose(w_oihw, (2, 3, 1, 0)).reshape(kh * kw, i, o)
    ci = i if cin_pad is None else cin_pad
    wt = jnp.pad(wt, ((0, 0), (0, ci - i), (0, cp_out - o)))
    return wt.astype(jnp.bfloat16)


def _flat_from_oihw(w_oihw, cp_out):
    """torch [O, I, KH, KW] -> [1, KH*KW*I, CP] bf16 (taps packed along K)."""
    o, i, kh, kw = w_oihw.shape
    wt = jnp.transpose(w_oihw, (2, 3, 1, 0)).reshape(1, kh * kw * i, o)
    wt = jnp.pad(wt, ((0, 0), (0, 0), (0, cp_out - o)))
    return wt.astype(jnp.bfloat16)


def _pair_tap_weights(w_taps):
    """[T, Kc, CP] -> [ceil(T/2), 2*Kc, CP]; odd tap padded with zeros."""
    t, kc, cp = w_taps.shape
    tp = (t + 1) // 2
    w_taps = jnp.pad(w_taps, ((0, 2 * tp - t), (0, 0), (0, 0)))
    return w_taps.reshape(tp, 2 * kc, cp)


def _pad_last(a, target):
    extra = target - a.shape[-1]
    if extra == 0:
        return a
    return jnp.pad(a, [(0, 0)] * (a.ndim - 1) + [(0, extra)])


class ResBlock:
    """JAX/Pallas port of the PyTorch ResBlock (training-mode BatchNorm)."""

    def __init__(self, c_in, c_out, kernel=3, downsample=1, key=None):
        self.c_in, self.c_out = c_in, c_out
        self.kernel, self.stride = kernel, downsample
        self.pad = (kernel - 1) // 2
        self.identity_skip = (downsample == 1 and c_in == c_out)
        self.cp = ((c_out + LANE - 1) // LANE) * LANE
        # fully fused path (in-kernel taps) for stride-1 odd-kernel convs
        self.fused = (self.stride == 1 and kernel == 2 * self.pad + 1)
        self.pair = PAIR_TAPS and (kernel * kernel > 1)

        key = jax.random.PRNGKey(0) if key is None else key
        k1, k2, k3, k4, k5, k6 = jax.random.split(key, 6)

        def kaiming(k, shape):        # torch kaiming_normal_, fan_out, relu
            fan_out = shape[0] * shape[2] * shape[3]
            return jax.random.normal(k, shape, jnp.float32) * jnp.sqrt(2.0 / fan_out)

        def conv_bias(k, c_o, fan_in):  # torch Conv2d default bias init
            bound = 1.0 / jnp.sqrt(fan_in)
            return jax.random.uniform(k, (c_o,), jnp.float32, -bound, bound)

        kk = kernel
        self.w1_oihw = kaiming(k1, (c_out, c_in, kk, kk))
        self.b1v = conv_bias(k2, c_out, c_in * kk * kk)
        self.w2_oihw = kaiming(k3, (c_out, c_out, kk, kk))
        self.b2v = conv_bias(k4, c_out, c_out * kk * kk)
        if not self.identity_skip:
            self.ws_oihw = kaiming(k5, (c_out, c_in, 1, 1))
            self.bsv = conv_bias(k6, c_out, c_in)

        # kernel-format parameters (bf16, output channels padded to CP)
        cp = self.cp
        # conv1: ONE matmul with K = k*k*c_in (taps packed along the K axis)
        self.w1_k = _flat_from_oihw(self.w1_oihw, cp)                # [1, kk*kk*c_in, cp]
        # conv2: per-tap K=cp matmuls; paired to K=2*cp on v6e/v7x
        w2 = _taps_from_oihw(self.w2_oihw, cp, cin_pad=cp)           # [kk*kk, cp, cp]
        self.w2_k = _pair_tap_weights(w2) if self.pair else w2
        self.b1 = _pad_last(self.b1v, cp).reshape(1, cp)
        self.b2 = _pad_last(self.b2v, cp).reshape(1, cp)
        if not self.identity_skip:
            self.ws_k = _taps_from_oihw(self.ws_oihw, cp)            # [1, c_in, cp]
            self.bs = _pad_last(self.bsv, cp).reshape(1, cp)

    def __call__(self, x_nchw):
        n, c, h, w = x_nchw.shape
        k, s, p, cp = self.kernel, self.stride, self.pad, self.cp
        ho = (h + 2 * p - k) // s + 1
        wo = (w + 2 * p - k) // s + 1
        wg = wo + 2 * p                     # row-grid width (valid + 2p junk cols)
        r = ho * wg                         # rows per image on the output grid
        rpad = (ho + 2 * p + 1) * wg        # conv1 output: conv2's padded layout
        out_base = p * wg + p

        x = jnp.transpose(x_nchw, (0, 2, 3, 1)).astype(jnp.float32)   # NHWC
        # TODO(synk): fold the NCHW<->NHWC transposes and the final crop into the
        # conv1 / residual kernels' BlockSpecs, and add a row-block grid axis
        # (halo + per-block stat partials) so v7x's two cores pipeline and large
        # images fit its 64 MiB VMEM; at the test shape whole-image blocks fit.

        ones = jnp.ones((1, cp), jnp.float32)
        zeros = jnp.zeros((1, cp), jnp.float32)
        count = n * ho * wo
        shifts = tuple(kh * wg + kw for kh in range(k) for kw in range(k))

        # ---- conv1 (+bias): one K=k*k*c_in matmul -> -BIG padded bf16 layout ----
        if self.fused:
            xp = jnp.pad(x, ((0, 0), (p, p + 1), (p, p), (0, 0)))
            a1 = xp.reshape(n, -1, c)
            groups1 = (shifts,)             # all taps concat'd along K in-kernel
        else:
            # TODO(synk): strided / even-kernel convs fall back to a JAX im2col
            # gather feeding the same single-matmul kernel.
            xpp = jnp.pad(x, ((0, 0), (p, p), (p, p), (0, 0)))
            cols = [xpp[:, kh:kh + s * ho:s, kw:kw + s * wo:s, :]
                    for kh in range(k) for kw in range(k)]
            patches = jnp.concatenate(cols, axis=-1)             # [n, ho, wo, k*k*c]
            patches = jnp.pad(patches, ((0, 0), (0, 0), (0, wg - wo), (0, 0)))
            a1 = patches.reshape(n, r, k * k * c)
            groups1 = ((0,),)
        y1p, st1 = conv_taps(a1, self.w1_k, self.b1, ones, zeros,
                             tap_groups=groups1, r_out=r, rout_total=rpad,
                             out_base=out_base, wg=wg, wo=wo, prologue=False)
        s1, t1 = _combine_stats(st1, count)

        # ---- conv2 with fused BN1+ReLU prologue (paired taps on v6e/v7x) -------
        if self.pair:
            groups2 = tuple(
                (shifts[i], shifts[i + 1]) if i + 1 < len(shifts) else (shifts[i], 0)
                for i in range(0, len(shifts), 2))
        else:
            groups2 = tuple((sh,) for sh in shifts)
        y2, st2 = conv_taps(y1p, self.w2_k, self.b2, s1, t1,
                            tap_groups=groups2, r_out=r, rout_total=r,
                            out_base=0, wg=wg, wo=wo, prologue=True)
        s2, t2 = _combine_stats(st2, count)

        # ---- skip path -------------------------------------------------------
        if self.identity_skip:
            # pass lane-narrow [n, r, c]; lane padding happens inside the kernel
            ys = jnp.pad(x, ((0, 0), (0, 0), (0, wg - wo), (0, 0))).reshape(n, r, c)
            ss, ts = ones, zeros
        else:
            if self.fused:
                a_s, groups_s = a1, ((out_base,),)   # reuse conv1's padded input
            else:
                xs = x[:, ::s, ::s, :][:, :ho, :wo, :]
                xs = jnp.pad(xs, ((0, 0), (0, 0), (0, wg - wo), (0, 0)))
                a_s, groups_s = xs.reshape(n, r, c), ((0,),)
            ys, sts = conv_taps(a_s, self.ws_k, self.bs, ones, zeros,
                                tap_groups=groups_s, r_out=r, rout_total=r,
                                out_base=0, wg=wg, wo=wo, prologue=False)
            ss, ts = _combine_stats(sts, count)

        # ---- fused BN2 / BN_skip + residual add + ReLU -----------------------
        out = residual_relu(y2, ys, s2, t2, ss, ts)               # [n, r, cp] f32
        out = out.reshape(n, ho, wg, cp)[:, :, :wo, :self.c_out]
        return jnp.transpose(out, (0, 3, 1, 2))                   # NCHW


# ------------------------------ pure-JAX reference --------------------------- #

def _ref_conv(x, w, b, stride, pad):
    y = jax.lax.conv_general_dilated(
        x, w, window_strides=(stride, stride),
        padding=((pad, pad), (pad, pad)),
        dimension_numbers=("NCHW", "OIHW", "NCHW"),
        precision=jax.lax.Precision.HIGHEST)
    return y + b.reshape(1, -1, 1, 1)


def _ref_bn(y):  # training-mode BN, gamma=1, beta=0
    mean = jnp.mean(y, axis=(0, 2, 3), keepdims=True)
    var = jnp.mean((y - mean) ** 2, axis=(0, 2, 3), keepdims=True)
    return (y - mean) / jnp.sqrt(var + EPS)


def ref_resblock(block, x_nchw):
    h = jax.nn.relu(_ref_bn(_ref_conv(x_nchw, block.w1_oihw, block.b1v,
                                      block.stride, block.pad)))
    main = _ref_bn(_ref_conv(h, block.w2_oihw, block.b2v, 1, block.pad))
    if block.identity_skip:
        skip = x_nchw
    else:
        skip = _ref_bn(_ref_conv(x_nchw, block.ws_oihw, block.bsv, block.stride, 0))
    return jax.nn.relu(main + skip)


# ----------------------------------- main ----------------------------------- #

if __name__ == "__main__":
    key = jax.random.PRNGKey(0)
    kx, kp = jax.random.split(key)

    N, C_IN, H, W = 2, 4, 16, 16
    C_OUT, DOWNSAMPLE = 8, 1

    x = jax.random.normal(kx, (N, C_IN, H, W), jnp.float32)
    block = ResBlock(C_IN, C_OUT, kernel=3, downsample=DOWNSAMPLE, key=kp)

    fwd = jax.jit(lambda inp: block(inp))
    out = jax.block_until_ready(fwd(x))
    assert out.shape == (N, C_OUT, H // DOWNSAMPLE, W // DOWNSAMPLE), out.shape

    ref = jax.block_until_ready(ref_resblock(block, x))
    max_err = float(jnp.max(jnp.abs(out - ref)))
    # MXU operands AND inter-kernel intermediates are bf16 (per perf review)
    # -> relaxed tolerance vs the f32 Precision.HIGHEST reference.
    assert jnp.allclose(out, ref, atol=8e-2, rtol=5e-2), max_err

    print("KERNEL_OK")
</pallas_src>

<mosaic_0001>
module attributes {stable_mosaic.version = 11 : i64} {
  func.func @_conv_kernel(%arg0: i32, %arg1: memref<1x342x4xf32, #tpu.memory_space<vmem>>, %arg2: memref<1x36x128xbf16, #tpu.memory_space<vmem>>, %arg3: memref<1x128xf32, #tpu.memory_space<vmem>>, %arg4: memref<1x128xf32, #tpu.memory_space<vmem>>, %arg5: memref<1x128xf32, #tpu.memory_space<vmem>>, %arg6: memref<1x342x128xbf16, #tpu.memory_space<vmem>>, %arg7: memref<1x2x128xf32, #tpu.memory_space<vmem>>, %arg8: memref<288x128xf32, #tpu.memory_space<vmem>>) attributes {dimension_semantics = [#tpu.dimension_semantics<parallel>], iteration_bounds = array<i64: 2>, scalar_prefetch = 0 : i64, scratch_operands = 1 : i64, tpu.core_type = #tpu.core_type<tc>, window_params = [{transform_indices = @transform_0, window_bounds = array<i64: 1, 342, 4>}, {pipeline_mode = #tpu.pipeline_mode<synchronous>, transform_indices = @transform_1, window_bounds = array<i64: 1, 36, 128>}, {pipeline_mode = #tpu.pipeline_mode<synchronous>, transform_indices = @transform_2, window_bounds = array<i64: 1, 128>}, {pipeline_mode = #tpu.pipeline_mode<synchronous>, transform_indices = @transform_3, window_bounds = array<i64: 1, 128>}, {pipeline_mode = #tpu.pipeline_mode<synchronous>, transform_indices = @transform_4, window_bounds = array<i64: 1, 128>}, {transform_indices = @transform_5, window_bounds = array<i64: 1, 342, 128>}, {transform_indices = @transform_6, window_bounds = array<i64: 1, 2, 128>}]} {
    %c0 = arith.constant 0 : index
    %c0_0 = arith.constant 0 : index
    %c0_1 = arith.constant 0 : index
    %0 = vector.load %arg1[%c0, %c0_0, %c0_1] : memref<1x342x4xf32, #tpu.memory_space<vmem>>, vector<1x342x4xf32>
    %1 = vector.shape_cast %0 : vector<1x342x4xf32> to vector<342x4xf32>
    %2 = arith.truncf %1 : vector<342x4xf32> to vector<342x4xbf16>
    %3 = vector.extract_strided_slice %2 {offsets = [0, 0], sizes = [288, 4], strides = [1, 1]} : vector<342x4xbf16> to vector<288x4xbf16>
    %4 = vector.extract_strided_slice %2 {offsets = [1, 0], sizes = [288, 4], strides = [1, 1]} : vector<342x4xbf16> to vector<288x4xbf16>
    %5 = vector.extract_strided_slice %2 {offsets = [2, 0], sizes = [288, 4], strides = [1, 1]} : vector<342x4xbf16> to vector<288x4xbf16>
    %6 = vector.extract_strided_slice %2 {offsets = [18, 0], sizes = [288, 4], strides = [1, 1]} : vector<342x4xbf16> to vector<288x4xbf16>
    %7 = vector.extract_strided_slice %2 {offsets = [19, 0], sizes = [288, 4], strides = [1, 1]} : vector<342x4xbf16> to vector<288x4xbf16>
    %8 = vector.extract_strided_slice %2 {offsets = [20, 0], sizes = [288, 4], strides = [1, 1]} : vector<342x4xbf16> to vector<288x4xbf16>
    %9 = vector.extract_strided_slice %2 {offsets = [36, 0], sizes = [288, 4], strides = [1, 1]} : vector<342x4xbf16> to vector<288x4xbf16>
    %10 = vector.extract_strided_slice %2 {offsets = [37, 0], sizes = [288, 4], strides = [1, 1]} : vector<342x4xbf16> to vector<288x4xbf16>
    %11 = vector.extract_strided_slice %2 {offsets = [38, 0], sizes = [288, 4], strides = [1, 1]} : vector<342x4xbf16> to vector<288x4xbf16>
    %12 = tpu.concatenate %3, %4, %5, %6, %7, %8, %9, %10, %11 in 1 : vector<288x4xbf16>, vector<288x4xbf16>, vector<288x4xbf16>, vector<288x4xbf16>, vector<288x4xbf16>, vector<288x4xbf16>, vector<288x4xbf16>, vector<288x4xbf16>, vector<288x4xbf16> -> vector<288x36xbf16>
    %c0_2 = arith.constant 0 : index
    %c0_3 = arith.constant 0 : index
    %c0_4 = arith.constant 0 : index
    %13 = vector.load %arg2[%c0_2, %c0_3, %c0_4] : memref<1x36x128xbf16, #tpu.memory_space<vmem>>, vector<1x36x128xbf16>
    %14 = vector.shape_cast %13 : vector<1x36x128xbf16> to vector<36x128xbf16>
    %cst = arith.constant dense<0.000000e+00> : vector<288x128xf32>
    %15 = tpu.matmul %12, %14, %cst {dimension_numbers = #tpu.dot_dimension_numbers<[1], [0], [0], [1], [0, 0, 1, 1], [], []>} : vector<288x36xbf16>, vector<36x128xbf16>, vector<288x128xf32> -> vector<288x128xf32>
    %c0_5 = arith.constant 0 : index
    %c0_6 = arith.constant 0 : index
    %16 = vector.load %arg3[%c0_5, %c0_6] : memref<1x128xf32, #tpu.memory_space<vmem>>, vector<1x128xf32>
    %17 = vector.broadcast %16 : vector<1x128xf32> to vector<288x128xf32>
    %18 = arith.addf %15, %17 : vector<288x128xf32>
    %19 = tpu.iota {dimensions = array<i32: 0>} : vector<288x1xi32>
    %c18_i32 = arith.constant 18 : i32
    %c0_i32 = arith.constant 0 : i32
    %20 = arith.cmpi eq, %c18_i32, %c0_i32 : i32
    %c1_i32 = arith.constant 1 : i32
    %21 = arith.select %20, %c1_i32, %c18_i32 : i32
    %22 = vector.broadcast %21 : i32 to vector<288x1xi32>
    %23 = arith.remsi %19, %22 : vector<288x1xi32>
    %c0_i32_7 = arith.constant 0 : i32
    %24 = vector.broadcast %c0_i32_7 : i32 to vector<288x1xi32>
    %25 = arith.cmpi ne, %23, %24 : vector<288x1xi32>
    %c0_i32_8 = arith.constant 0 : i32
    %26 = vector.broadcast %c0_i32_8 : i32 to vector<288x1xi32>
    %27 = arith.cmpi slt, %23, %26 : vector<288x1xi32>
    %c0_i32_9 = arith.constant 0 : i32
    %28 = arith.cmpi slt, %21, %c0_i32_9 : i32
    %29 = vector.broadcast %28 : i1 to vector<288x1xi1>
    %30 = vector.broadcast %29 : vector<288x1xi1> to vector<288x1xi1>
    %31 = arith.xori %27, %30 : vector<288x1xi1>
    %32 = arith.andi %31, %25 : vector<288x1xi1>
    %33 = vector.broadcast %21 : i32 to vector<288x1xi32>
    %34 = arith.addi %23, %33 : vector<288x1xi32>
    %35 = arith.select %32, %34, %23 : vector<288x1xi1>, vector<288x1xi32>
    %c16_i32 = arith.constant 16 : i32
    %36 = vector.broadcast %c16_i32 : i32 to vector<288x1xi32>
    %37 = arith.cmpi slt, %35, %36 : vector<288x1xi32>
    %38 = arith.extui %37 : vector<288x1xi1> to vector<288x1xi32>
    %39 = arith.sitofp %38 : vector<288x1xi32> to vector<288x1xf32>
    %40 = vector.broadcast %39 : vector<288x1xf32> to vector<288x128xf32>
    %41 = arith.mulf %18, %40 : vector<288x128xf32>
    %cst_10 = arith.constant dense<0.000000e+00> : vector<128xf32>
    %42 = vector.multi_reduction <add>, %41, %cst_10 [0] : vector<288x128xf32> to vector<128xf32>
    %43 = vector.shape_cast %42 : vector<128xf32> to vector<1x128xf32>
    %c0_11 = arith.constant 0 : index
    %c0_12 = arith.constant 0 : index
    %c0_13 = arith.constant 0 : index
    %44 = vector.load %arg7[%c0_11, %c0_12, %c0_13] : memref<1x2x128xf32, #tpu.memory_space<vmem>>, vector<1x1x128xf32>
    %45 = vector.shape_cast %44 : vector<1x1x128xf32> to vector<1x128xf32>
    %46 = vector.shape_cast %43 : vector<1x128xf32> to vector<1x1x128xf32>
    tpu.vector_store %arg7[%c0_11, %c0_12, %c0_13], %46 {strides = array<i32>} : memref<1x2x128xf32, #tpu.memory_space<vmem>>, vector<1x1x128xf32>,
    %47 = arith.mulf %41, %18 : vector<288x128xf32>
    %cst_14 = arith.constant dense<0.000000e+00> : vector<128xf32>
    %48 = vector.multi_reduction <add>, %47, %cst_14 [0] : vector<288x128xf32> to vector<128xf32>
    %49 = vector.shape_cast %48 : vector<128xf32> to vector<1x128xf32>
    %c0_15 = arith.constant 0 : index
    %c1 = arith.constant 1 : index
    %c0_16 = arith.constant 0 : index
    %50 = vector.load %arg7[%c0_15, %c1, %c0_16] : memref<1x2x128xf32, #tpu.memory_space<vmem>>, vector<1x1x128xf32>
    %51 = vector.shape_cast %50 : vector<1x1x128xf32> to vector<1x128xf32>
    %52 = vector.shape_cast %49 : vector<1x128xf32> to vector<1x1x128xf32>
    tpu.vector_store %arg7[%c0_15, %c1, %c0_16], %52 {strides = array<i32>} : memref<1x2x128xf32, #tpu.memory_space<vmem>>, vector<1x1x128xf32>,
    %cst_17 = arith.constant -1.000260e+30 : bf16
    %53 = vector.broadcast %cst_17 : bf16 to vector<19x128xbf16>
    %c0_18 = arith.constant 0 : index
    %c0_19 = arith.constant 0 : index
    %c0_20 = arith.constant 0 : index
    %54 = vector.load %arg6[%c0_18, %c0_19, %c0_20] : memref<1x342x128xbf16, #tpu.memory_space<vmem>>, vector<1x19x128xbf16>
    %55 = vector.shape_cast %54 : vector<1x19x128xbf16> to vector<19x128xbf16>
    %56 = vector.shape_cast %53 : vector<19x128xbf16> to vector<1x19x128xbf16>
    tpu.vector_store %arg6[%c0_18, %c0_19, %c0_20], %56 {strides = array<i32>} : memref<1x342x128xbf16, #tpu.memory_space<vmem>>, vector<1x19x128xbf16>,
    %cst_21 = arith.constant -1.000260e+30 : bf16
    %57 = vector.broadcast %cst_21 : bf16 to vector<35x128xbf16>
    %c0_22 = arith.constant 0 : index
    %c307 = arith.constant 307 : index
    %c0_23 = arith.constant 0 : index
    %58 = vector.load %arg6[%c0_22, %c307, %c0_23] : memref<1x342x128xbf16, #tpu.memory_space<vmem>>, vector<1x35x128xbf16>
    %59 = vector.shape_cast %58 : vector<1x35x128xbf16> to vector<35x128xbf16>
    %60 = vector.shape_cast %57 : vector<35x128xbf16> to vector<1x35x128xbf16>
    tpu.vector_store %arg6[%c0_22, %c307, %c0_23], %60 {strides = array<i32>} : memref<1x342x128xbf16, #tpu.memory_space<vmem>>, vector<1x35x128xbf16>,
    %cst_24 = arith.constant -1.000000e+30 : f32
    %61 = vector.shape_cast %37 : vector<288x1xi1> to vector<288x1xi1>
    %62 = vector.broadcast %61 : vector<288x1xi1> to vector<288x128xi1>
    %63 = vector.broadcast %cst_24 : f32 to vector<288x128xf32>
    %64 = arith.select %62, %18, %63 : vector<288x128xi1>, vector<288x128xf32>
    %65 = arith.truncf %64 : vector<288x128xf32> to vector<288x128xbf16>
    %c0_25 = arith.constant 0 : index
    %c19 = arith.constant 19 : index
    %c0_26 = arith.constant 0 : index
    %66 = vector.load %arg6[%c0_25, %c19, %c0_26] : memref<1x342x128xbf16, #tpu.memory_space<vmem>>, vector<1x288x128xbf16>
    %67 = vector.shape_cast %66 : vector<1x288x128xbf16> to vector<288x128xbf16>
    %68 = vector.shape_cast %65 : vector<288x128xbf16> to vector<1x288x128xbf16>
    tpu.vector_store %arg6[%c0_25, %c19, %c0_26], %68 {strides = array<i32>} : memref<1x342x128xbf16, #tpu.memory_space<vmem>>, vector<1x288x128xbf16>,
    return
  }
  func.func @transform_0(%arg0: i32) -> (i32, i32, i32) {
    %c0_i32 = arith.constant 0 : i32
    %c0_i32_0 = arith.constant 0 : i32
    %c0_i32_1 = arith.constant 0 : i32
    return %arg0, %c0_i32, %c0_i32_0 : i32, i32, i32
  }
  func.func @transform_1(%arg0: i32) -> (i32, i32, i32) {
    %c0_i32 = arith.constant 0 : i32
    %c0_i32_0 = arith.constant 0 : i32
    %c0_i32_1 = arith.constant 0 : i32
    %c0_i32_2 = arith.constant 0 : i32
    return %c0_i32, %c0_i32_0, %c0_i32_1 : i32, i32, i32
  }
  func.func @transform_2(%arg0: i32) -> (i32, i32) {
    %c0_i32 = arith.constant 0 : i32
    %c0_i32_0 = arith.constant 0 : i32
    %c0_i32_1 = arith.constant 0 : i32
    return %c0_i32, %c0_i32_0 : i32, i32
  }
  func.func @transform_3(%arg0: i32) -> (i32, i32) {
    %c0_i32 = arith.constant 0 : i32
    %c0_i32_0 = arith.constant 0 : i32
    %c0_i32_1 = arith.constant 0 : i32
    return %c0_i32, %c0_i32_0 : i32, i32
  }
  func.func @transform_4(%arg0: i32) -> (i32, i32) {
    %c0_i32 = arith.constant 0 : i32
    %c0_i32_0 = arith.constant 0 : i32
    %c0_i32_1 = arith.constant 0 : i32
    return %c0_i32, %c0_i32_0 : i32, i32
  }
  func.func @transform_5(%arg0: i32) -> (i32, i32, i32) {
    %c0_i32 = arith.constant 0 : i32
    %c0_i32_0 = arith.constant 0 : i32
    %c0_i32_1 = arith.constant 0 : i32
    return %arg0, %c0_i32, %c0_i32_0 : i32, i32, i32
  }
  func.func @transform_6(%arg0: i32) -> (i32, i32, i32) {
    %c0_i32 = arith.constant 0 : i32
    %c0_i32_0 = arith.constant 0 : i32
    %c0_i32_1 = arith.constant 0 : i32
    return %arg0, %c0_i32, %c0_i32_0 : i32, i32, i32
  }
}

module attributes {stable_mosaic.version = 11 : i64} {
  func.func @_conv_kernel(%arg0: i32, %arg1: memref<1x342x128xbf16, #tpu.memory_space<vmem>>, %arg2: memref<9x128x128xbf16, #tpu.memory_space<vmem>>, %arg3: memref<1x128xf32, #tpu.memory_space<vmem>>, %arg4: memref<1x128xf32, #tpu.memory_space<vmem>>, %arg5: memref<1x128xf32, #tpu.memory_space<vmem>>, %arg6: memref<1x288x128xbf16, #tpu.memory_space<vmem>>, %arg7: memref<1x2x128xf32, #tpu.memory_space<vmem>>, %arg8: memref<288x128xf32, #tpu.memory_space<vmem>>) attributes {dimension_semantics = [#tpu.dimension_semantics<parallel>], iteration_bounds = array<i64: 2>, scalar_prefetch = 0 : i64, scratch_operands = 1 : i64, tpu.core_type = #tpu.core_type<tc>, window_params = [{transform_indices = @transform_0, window_bounds = array<i64: 1, 342, 128>}, {pipeline_mode = #tpu.pipeline_mode<synchronous>, transform_indices = @transform_1, window_bounds = array<i64: 9, 128, 128>}, {pipeline_mode = #tpu.pipeline_mode<synchronous>, transform_indices = @transform_2, window_bounds = array<i64: 1, 128>}, {pipeline_mode = #tpu.pipeline_mode<synchronous>, transform_indices = @transform_3, window_bounds = array<i64: 1, 128>}, {pipeline_mode = #tpu.pipeline_mode<synchronous>, transform_indices = @transform_4, window_bounds = array<i64: 1, 128>}, {transform_indices = @transform_5, window_bounds = array<i64: 1, 288, 128>}, {transform_indices = @transform_6, window_bounds = array<i64: 1, 2, 128>}]} {
    %c0 = arith.constant 0 : index
    %c0_0 = arith.constant 0 : index
    %c0_1 = arith.constant 0 : index
    %0 = vector.load %arg1[%c0, %c0_0, %c0_1] : memref<1x342x128xbf16, #tpu.memory_space<vmem>>, vector<1x342x128xbf16>
    %1 = vector.shape_cast %0 : vector<1x342x128xbf16> to vector<342x128xbf16>
    %2 = arith.extf %1 : vector<342x128xbf16> to vector<342x128xf32>
    %c0_2 = arith.constant 0 : index
    %c0_3 = arith.constant 0 : index
    %3 = vector.load %arg4[%c0_2, %c0_3] : memref<1x128xf32, #tpu.memory_space<vmem>>, vector<1x128xf32>
    %4 = vector.broadcast %3 : vector<1x128xf32> to vector<342x128xf32>
    %5 = arith.mulf %2, %4 : vector<342x128xf32>
    %c0_4 = arith.constant 0 : index
    %c0_5 = arith.constant 0 : index
    %6 = vector.load %arg5[%c0_4, %c0_5] : memref<1x128xf32, #tpu.memory_space<vmem>>, vector<1x128xf32>
    %7 = vector.broadcast %6 : vector<1x128xf32> to vector<342x128xf32>
    %8 = arith.addf %5, %7 : vector<342x128xf32>
    %cst = arith.constant 0.000000e+00 : f32
    %9 = vector.broadcast %cst : f32 to vector<342x128xf32>
    %10 = arith.maximumf %8, %9 : vector<342x128xf32>
    %11 = arith.truncf %10 : vector<342x128xf32> to vector<342x128xbf16>
    %12 = vector.extract_strided_slice %11 {offsets = [0, 0], sizes = [288, 128], strides = [1, 1]} : vector<342x128xbf16> to vector<288x128xbf16>
    %c0_6 = arith.constant 0 : index
    %c0_7 = arith.constant 0 : index
    %c0_8 = arith.constant 0 : index
    %13 = vector.load %arg2[%c0_6, %c0_7, %c0_8] : memref<9x128x128xbf16, #tpu.memory_space<vmem>>, vector<1x128x128xbf16>
    %14 = vector.shape_cast %13 : vector<1x128x128xbf16> to vector<128x128xbf16>
    %cst_9 = arith.constant dense<0.000000e+00> : vector<288x128xf32>
    %15 = tpu.matmul %12, %14, %cst_9 {dimension_numbers = #tpu.dot_dimension_numbers<[1], [0], [0], [1], [0, 0, 1, 1], [], []>} : vector<288x128xbf16>, vector<128x128xbf16>, vector<288x128xf32> -> vector<288x128xf32>
    %c0_10 = arith.constant 0 : index
    %c0_11 = arith.constant 0 : index
    %16 = vector.load %arg8[%c0_10, %c0_11] : memref<288x128xf32, #tpu.memory_space<vmem>>, vector<288x128xf32>
    tpu.vector_store %arg8[%c0_10, %c0_11], %15 {strides = array<i32>} : memref<288x128xf32, #tpu.memory_space<vmem>>, vector<288x128xf32>,
    %c0_12 = arith.constant 0 : index
    %c0_13 = arith.constant 0 : index
    %17 = vector.load %arg8[%c0_12, %c0_13] : memref<288x128xf32, #tpu.memory_space<vmem>>, vector<288x128xf32>
    %18 = vector.extract_strided_slice %11 {offsets = [1, 0], sizes = [288, 128], strides = [1, 1]} : vector<342x128xbf16> to vector<288x128xbf16>
    %c1 = arith.constant 1 : index
    %c0_14 = arith.constant 0 : index
    %c0_15 = arith.constant 0 : index
    %19 = vector.load %arg2[%c1, %c0_14, %c0_15] : memref<9x128x128xbf16, #tpu.memory_space<vmem>>, vector<1x128x128xbf16>
    %20 = vector.shape_cast %19 : vector<1x128x128xbf16> to vector<128x128xbf16>
    %cst_16 = arith.constant dense<0.000000e+00> : vector<288x128xf32>
    %21 = tpu.matmul %18, %20, %cst_16 {dimension_numbers = #tpu.dot_dimension_numbers<[1], [0], [0], [1], [0, 0, 1, 1], [], []>} : vector<288x128xbf16>, vector<128x128xbf16>, vector<288x128xf32> -> vector<288x128xf32>
    %22 = arith.addf %17, %21 : vector<288x128xf32>
    %c0_17 = arith.constant 0 : index
    %c0_18 = arith.constant 0 : index
    %23 = vector.load %arg8[%c0_17, %c0_18] : memref<288x128xf32, #tpu.memory_space<vmem>>, vector<288x128xf32>
    tpu.vector_store %arg8[%c0_17, %c0_18], %22 {strides = array<i32>} : memref<288x128xf32, #tpu.memory_space<vmem>>, vector<288x128xf32>,
    %c0_19 = arith.constant 0 : index
    %c0_20 = arith.constant 0 : index
    %24 = vector.load %arg8[%c0_19, %c0_20] : memref<288x128xf32, #tpu.memory_space<vmem>>, vector<288x128xf32>
    %25 = vector.extract_strided_slice %11 {offsets = [2, 0], sizes = [288, 128], strides = [1, 1]} : vector<342x128xbf16> to vector<288x128xbf16>
    %c2 = arith.constant 2 : index
    %c0_21 = arith.constant 0 : index
    %c0_22 = arith.constant 0 : index
    %26 = vector.load %arg2[%c2, %c0_21, %c0_22] : memref<9x128x128xbf16, #tpu.memory_space<vmem>>, vector<1x128x128xbf16>
    %27 = vector.shape_cast %26 : vector<1x128x128xbf16> to vector<128x128xbf16>
    %cst_23 = arith.constant dense<0.000000e+00> : vector<288x128xf32>
    %28 = tpu.matmul %25, %27, %cst_23 {dimension_numbers = #tpu.dot_dimension_numbers<[1], [0], [0], [1], [0, 0, 1, 1], [], []>} : vector<288x128xbf16>, vector<128x128xbf16>, vector<288x128xf32> -> vector<288x128xf32>
    %29 = arith.addf %24, %28 : vector<288x128xf32>
    %c0_24 = arith.constant 0 : index
    %c0_25 = arith.constant 0 : index
    %30 = vector.load %arg8[%c0_24, %c0_25] : memref<288x128xf32, #tpu.memory_space<vmem>>, vector<288x128xf32>
    tpu.vector_store %arg8[%c0_24, %c0_25], %29 {strides = array<i32>} : memref<288x128xf32, #tpu.memory_space<vmem>>, vector<288x128xf32>,
    %c0_26 = arith.constant 0 : index
    %c0_27 = arith.constant 0 : index
    %31 = vector.load %arg8[%c0_26, %c0_27] : memref<288x128xf32, #tpu.memory_space<vmem>>, vector<288x128xf32>
    %32 = vector.extract_strided_slice %11 {offsets = [18, 0], sizes = [288, 128], strides = [1, 1]} : vector<342x128xbf16> to vector<288x128xbf16>
    %c3 = arith.constant 3 : index
    %c0_28 = arith.constant 0 : index
    %c0_29 = arith.constant 0 : index
    %33 = vector.load %arg2[%c3, %c0_28, %c0_29] : memref<9x128x128xbf16, #tpu.memory_space<vmem>>, vector<1x128x128xbf16>
    %34 = vector.shape_cast %33 : vector<1x128x128xbf16> to vector<128x128xbf16>
    %cst_30 = arith.constant dense<0.000000e+00> : vector<288x128xf32>
    %35 = tpu.matmul %32, %34, %cst_30 {dimension_numbers = #tpu.dot_dimension_numbers<[1], [0], [0], [1], [0, 0, 1, 1], [], []>} : vector<288x128xbf16>, vector<128x128xbf16>, vector<288x128xf32> -> vector<288x128xf32>
    %36 = arith.addf %31, %35 : vector<288x128xf32>
    %c0_31 = arith.constant 0 : index
    %c0_32 = arith.constant 0 : index
    %37 = vector.load %arg8[%c0_31, %c0_32] : memref<288x128xf32, #tpu.memory_space<vmem>>, vector<288x128xf32>
    tpu.vector_store %arg8[%c0_31, %c0_32], %36 {strides = array<i32>} : memref<288x128xf32, #tpu.memory_space<vmem>>, vector<288x128xf32>,
    %c0_33 = arith.constant 0 : index
    %c0_34 = arith.constant 0 : index
    %38 = vector.load %arg8[%c0_33, %c0_34] : memref<288x128xf32, #tpu.memory_space<vmem>>, vector<288x128xf32>
    %39 = vector.extract_strided_slice %11 {offsets = [19, 0], sizes = [288, 128], strides = [1, 1]} : vector<342x128xbf16> to vector<288x128xbf16>
    %c4 = arith.constant 4 : index
    %c0_35 = arith.constant 0 : index
    %c0_36 = arith.constant 0 : index
    %40 = vector.load %arg2[%c4, %c0_35, %c0_36] : memref<9x128x128xbf16, #tpu.memory_space<vmem>>, vector<1x128x128xbf16>
    %41 = vector.shape_cast %40 : vector<1x128x128xbf16> to vector<128x128xbf16>
    %cst_37 = arith.constant dense<0.000000e+00> : vector<288x128xf32>
    %42 = tpu.matmul %39, %41, %cst_37 {dimension_numbers = #tpu.dot_dimension_numbers<[1], [0], [0], [1], [0, 0, 1, 1], [], []>} : vector<288x128xbf16>, vector<128x128xbf16>, vector<288x128xf32> -> vector<288x128xf32>
    %43 = arith.addf %38, %42 : vector<288x128xf32>
    %c0_38 = arith.constant 0 : index
    %c0_39 = arith.constant 0 : index
    %44 = vector.load %arg8[%c0_38, %c0_39] : memref<288x128xf32, #tpu.memory_space<vmem>>, vector<288x128xf32>
    tpu.vector_store %arg8[%c0_38, %c0_39], %43 {strides = array<i32>} : memref<288x128xf32, #tpu.memory_space<vmem>>, vector<288x128xf32>,
    %c0_40 = arith.constant 0 : index
    %c0_41 = arith.constant 0 : index
    %45 = vector.load %arg8[%c0_40, %c0_41] : memref<288x128xf32, #tpu.memory_space<vmem>>, vector<288x128xf32>
    %46 = vector.extract_strided_slice %11 {offsets = [20, 0], sizes = [288, 128], strides = [1, 1]} : vector<342x128xbf16> to vector<288x128xbf16>
    %c5 = arith.constant 5 : index
    %c0_42 = arith.constant 0 : index
    %c0_43 = arith.constant 0 : index
    %47 = vector.load %arg2[%c5, %c0_42, %c0_43] : memref<9x128x128xbf16, #tpu.memory_space<vmem>>, vector<1x128x128xbf16>
    %48 = vector.shape_cast %47 : vector<1x128x128xbf16> to vector<128x128xbf16>
    %cst_44 = arith.constant dense<0.000000e+00> : vector<288x128xf32>
    %49 = tpu.matmul %46, %48, %cst_44 {dimension_numbers = #tpu.dot_dimension_numbers<[1], [0], [0], [1], [0, 0, 1, 1], [], []>} : vector<288x128xbf16>, vector<128x128xbf16>, vector<288x128xf32> -> vector<288x128xf32>
    %50 = arith.addf %45, %49 : vector<288x128xf32>
    %c0_45 = arith.constant 0 : index
    %c0_46 = arith.constant 0 : index
    %51 = vector.load %arg8[%c0_45, %c0_46] : memref<288x128xf32, #tpu.memory_space<vmem>>, vector<288x128xf32>
    tpu.vector_store %arg8[%c0_45, %c0_46], %50 {strides = array<i32>} : memref<288x128xf32, #tpu.memory_space<vmem>>, vector<288x128xf32>,
    %c0_47 = arith.constant 0 : index
    %c0_48 = arith.constant 0 : index
    %52 = vector.load %arg8[%c0_47, %c0_48] : memref<288x128xf32, #tpu.memory_space<vmem>>, vector<288x128xf32>
    %53 = vector.extract_strided_slice %11 {offsets = [36, 0], sizes = [288, 128], strides = [1, 1]} : vector<342x128xbf16> to vector<288x128xbf16>
    %c6 = arith.constant 6 : index
    %c0_49 = arith.constant 0 : index
    %c0_50 = arith.constant 0 : index
    %54 = vector.load %arg2[%c6, %c0_49, %c0_50] : memref<9x128x128xbf16, #tpu.memory_space<vmem>>, vector<1x128x128xbf16>
    %55 = vector.shape_cast %54 : vector<1x128x128xbf16> to vector<128x128xbf16>
    %cst_51 = arith.constant dense<0.000000e+00> : vector<288x128xf32>
    %56 = tpu.matmul %53, %55, %cst_51 {dimension_numbers = #tpu.dot_dimension_numbers<[1], [0], [0], [1], [0, 0, 1, 1], [], []>} : vector<288x128xbf16>, vector<128x128xbf16>, vector<288x128xf32> -> vector<288x128xf32>
    %57 = arith.addf %52, %56 : vector<288x128xf32>
    %c0_52 = arith.constant 0 : index
    %c0_53 = arith.constant 0 : index
    %58 = vector.load %arg8[%c0_52, %c0_53] : memref<288x128xf32, #tpu.memory_space<vmem>>, vector<288x128xf32>
    tpu.vector_store %arg8[%c0_52, %c0_53], %57 {strides = array<i32>} : memref<288x128xf32, #tpu.memory_space<vmem>>, vector<288x128xf32>,
    %c0_54 = arith.constant 0 : index
    %c0_55 = arith.constant 0 : index
    %59 = vector.load %arg8[%c0_54, %c0_55] : memref<288x128xf32, #tpu.memory_space<vmem>>, vector<288x128xf32>
    %60 = vector.extract_strided_slice %11 {offsets = [37, 0], sizes = [288, 128], strides = [1, 1]} : vector<342x128xbf16> to vector<288x128xbf16>
    %c7 = arith.constant 7 : index
    %c0_56 = arith.constant 0 : index
    %c0_57 = arith.constant 0 : index
    %61 = vector.load %arg2[%c7, %c0_56, %c0_57] : memref<9x128x128xbf16, #tpu.memory_space<vmem>>, vector<1x128x128xbf16>
    %62 = vector.shape_cast %61 : vector<1x128x128xbf16> to vector<128x128xbf16>
    %cst_58 = arith.constant dense<0.000000e+00> : vector<288x128xf32>
    %63 = tpu.matmul %60, %62, %cst_58 {dimension_numbers = #tpu.dot_dimension_numbers<[1], [0], [0], [1], [0, 0, 1, 1], [], []>} : vector<288x128xbf16>, vector<128x128xbf16>, vector<288x128xf32> -> vector<288x128xf32>
    %64 = arith.addf %59, %63 : vector<288x128xf32>
    %c0_59 = arith.constant 0 : index
    %c0_60 = arith.constant 0 : index
    %65 = vector.load %arg8[%c0_59, %c0_60] : memref<288x128xf32, #tpu.memory_space<vmem>>, vector<288x128xf32>
    tpu.vector_store %arg8[%c0_59, %c0_60], %64 {strides = array<i32>} : memref<288x128xf32, #tpu.memory_space<vmem>>, vector<288x128xf32>,
    %c0_61 = arith.constant 0 : index
    %c0_62 = arith.constant 0 : index
    %66 = vector.load %arg8[%c0_61, %c0_62] : memref<288x128xf32, #tpu.memory_space<vmem>>, vector<288x128xf32>
    %67 = vector.extract_strided_slice %11 {offsets = [38, 0], sizes = [288, 128], strides = [1, 1]} : vector<342x128xbf16> to vector<288x128xbf16>
    %c8 = arith.constant 8 : index
    %c0_63 = arith.constant 0 : index
    %c0_64 = arith.constant 0 : index
    %68 = vector.load %arg2[%c8, %c0_63, %c0_64] : memref<9x128x128xbf16, #tpu.memory_space<vmem>>, vector<1x128x128xbf16>
    %69 = vector.shape_cast %68 : vector<1x128x128xbf16> to vector<128x128xbf16>
    %cst_65 = arith.constant dense<0.000000e+00> : vector<288x128xf32>
    %70 = tpu.matmul %67, %69, %cst_65 {dimension_numbers = #tpu.dot_dimension_numbers<[1], [0], [0], [1], [0, 0, 1, 1], [], []>} : vector<288x128xbf16>, vector<128x128xbf16>, vector<288x128xf32> -> vector<288x128xf32>
    %71 = arith.addf %66, %70 : vector<288x128xf32>
    %c0_66 = arith.constant 0 : index
    %c0_67 = arith.constant 0 : index
    %72 = vector.load %arg8[%c0_66, %c0_67] : memref<288x128xf32, #tpu.memory_space<vmem>>, vector<288x128xf32>
    tpu.vector_store %arg8[%c0_66, %c0_67], %71 {strides = array<i32>} : memref<288x128xf32, #tpu.memory_space<vmem>>, vector<288x128xf32>,
    %c0_68 = arith.constant 0 : index
    %c0_69 = arith.constant 0 : index
    %73 = vector.load %arg8[%c0_68, %c0_69] : memref<288x128xf32, #tpu.memory_space<vmem>>, vector<288x128xf32>
    %c0_70 = arith.constant 0 : index
    %c0_71 = arith.constant 0 : index
    %74 = vector.load %arg3[%c0_70, %c0_71] : memref<1x128xf32, #tpu.memory_space<vmem>>, vector<1x128xf32>
    %75 = vector.broadcast %74 : vector<1x128xf32> to vector<288x128xf32>
    %76 = arith.addf %73, %75 : vector<288x128xf32>
    %77 = tpu.iota {dimensions = array<i32: 0>} : vector<288x1xi32>
    %c18_i32 = arith.constant 18 : i32
    %c0_i32 = arith.constant 0 : i32
    %78 = arith.cmpi eq, %c18_i32, %c0_i32 : i32
    %c1_i32 = arith.constant 1 : i32
    %79 = arith.select %78, %c1_i32, %c18_i32 : i32
    %80 = vector.broadcast %79 : i32 to vector<288x1xi32>
    %81 = arith.remsi %77, %80 : vector<288x1xi32>
    %c0_i32_72 = arith.constant 0 : i32
    %82 = vector.broadcast %c0_i32_72 : i32 to vector<288x1xi32>
    %83 = arith.cmpi ne, %81, %82 : vector<288x1xi32>
    %c0_i32_73 = arith.constant 0 : i32
    %84 = vector.broadcast %c0_i32_73 : i32 to vector<288x1xi32>
    %85 = arith.cmpi slt, %81, %84 : vector<288x1xi32>
    %c0_i32_74 = arith.constant 0 : i32
    %86 = arith.cmpi slt, %79, %c0_i32_74 : i32
    %87 = vector.broadcast %86 : i1 to vector<288x1xi1>
    %88 = vector.broadcast %87 : vector<288x1xi1> to vector<288x1xi1>
    %89 = arith.xori %85, %88 : vector<288x1xi1>
    %90 = arith.andi %89, %83 : vector<288x1xi1>
    %91 = vector.broadcast %79 : i32 to vector<288x1xi32>
    %92 = arith.addi %81, %91 : vector<288x1xi32>
    %93 = arith.select %90, %92, %81 : vector<288x1xi1>, vector<288x1xi32>
    %c16_i32 = arith.constant 16 : i32
    %94 = vector.broadcast %c16_i32 : i32 to vector<288x1xi32>
    %95 = arith.cmpi slt, %93, %94 : vector<288x1xi32>
    %96 = arith.extui %95 : vector<288x1xi1> to vector<288x1xi32>
    %97 = arith.sitofp %96 : vector<288x1xi32> to vector<288x1xf32>
    %98 = vector.broadcast %97 : vector<288x1xf32> to vector<288x128xf32>
    %99 = arith.mulf %76, %98 : vector<288x128xf32>
    %cst_75 = arith.constant dense<0.000000e+00> : vector<128xf32>
    %100 = vector.multi_reduction <add>, %99, %cst_75 [0] : vector<288x128xf32> to vector<128xf32>
    %101 = vector.shape_cast %100 : vector<128xf32> to vector<1x128xf32>
    %c0_76 = arith.constant 0 : index
    %c0_77 = arith.constant 0 : index
    %c0_78 = arith.constant 0 : index
    %102 = vector.load %arg7[%c0_76, %c0_77, %c0_78] : memref<1x2x128xf32, #tpu.memory_space<vmem>>, vector<1x1x128xf32>
    %103 = vector.shape_cast %102 : vector<1x1x128xf32> to vector<1x128xf32>
    %104 = vector.shape_cast %101 : vector<1x128xf32> to vector<1x1x128xf32>
    tpu.vector_store %arg7[%c0_76, %c0_77, %c0_78], %104 {strides = array<i32>} : memref<1x2x128xf32, #tpu.memory_space<vmem>>, vector<1x1x128xf32>,
    %105 = arith.mulf %99, %76 : vector<288x128xf32>
    %cst_79 = arith.constant dense<0.000000e+00> : vector<128xf32>
    %106 = vector.multi_reduction <add>, %105, %cst_79 [0] : vector<288x128xf32> to vector<128xf32>
    %107 = vector.shape_cast %106 : vector<128xf32> to vector<1x128xf32>
    %c0_80 = arith.constant 0 : index
    %c1_81 = arith.constant 1 : index
    %c0_82 = arith.constant 0 : index
    %108 = vector.load %arg7[%c0_80, %c1_81, %c0_82] : memref<1x2x128xf32, #tpu.memory_space<vmem>>, vector<1x1x128xf32>
    %109 = vector.shape_cast %108 : vector<1x1x128xf32> to vector<1x128xf32>
    %110 = vector.shape_cast %107 : vector<1x128xf32> to vector<1x1x128xf32>
    tpu.vector_store %arg7[%c0_80, %c1_81, %c0_82], %110 {strides = array<i32>} : memref<1x2x128xf32, #tpu.memory_space<vmem>>, vector<1x1x128xf32>,
    %111 = arith.truncf %76 : vector<288x128xf32> to vector<288x128xbf16>
    %c0_83 = arith.constant 0 : index
    %c0_84 = arith.constant 0 : index
    %c0_85 = arith.constant 0 : index
    %112 = vector.load %arg6[%c0_83, %c0_84, %c0_85] : memref<1x288x128xbf16, #tpu.memory_space<vmem>>, vector<1x288x128xbf16>
    %113 = vector.shape_cast %112 : vector<1x288x128xbf16> to vector<288x128xbf16>
    %114 = vector.shape_cast %111 : vector<288x128xbf16> to vector<1x288x128xbf16>
    tpu.vector_store %arg6[%c0_83, %c0_84, %c0_85], %114 {strides = array<i32>} : memref<1x288x128xbf16, #tpu.memory_space<vmem>>, vector<1x288x128xbf16>,
    return
  }
  func.func @transform_0(%arg0: i32) -> (i32, i32, i32) {
    %c0_i32 = arith.constant 0 : i32
    %c0_i32_0 = arith.constant 0 : i32
    %c0_i32_1 = arith.constant 0 : i32
    return %arg0, %c0_i32, %c0_i32_0 : i32, i32, i32
  }
  func.func @transform_1(%arg0: i32) -> (i32, i32, i32) {
    %c0_i32 = arith.constant 0 : i32
    %c0_i32_0 = arith.constant 0 : i32
    %c0_i32_1 = arith.constant 0 : i32
    %c0_i32_2 = arith.constant 0 : i32
    return %c0_i32, %c0_i32_0, %c0_i32_1 : i32, i32, i32
  }
  func.func @transform_2(%arg0: i32) -> (i32, i32) {
    %c0_i32 = arith.constant 0 : i32
    %c0_i32_0 = arith.constant 0 : i32
    %c0_i32_1 = arith.constant 0 : i32
    return %c0_i32, %c0_i32_0 : i32, i32
  }
  func.func @transform_3(%arg0: i32) -> (i32, i32) {
    %c0_i32 = arith.constant 0 : i32
    %c0_i32_0 = arith.constant 0 : i32
    %c0_i32_1 = arith.constant 0 : i32
    return %c0_i32, %c0_i32_0 : i32, i32
  }
  func.func @transform_4(%arg0: i32) -> (i32, i32) {
    %c0_i32 = arith.constant 0 : i32
    %c0_i32_0 = arith.constant 0 : i32
    %c0_i32_1 = arith.constant 0 : i32
    return %c0_i32, %c0_i32_0 : i32, i32
  }
  func.func @transform_5(%arg0: i32) -> (i32, i32, i32) {
    %c0_i32 = arith.constant 0 : i32
    %c0_i32_0 = arith.constant 0 : i32
    %c0_i32_1 = arith.constant 0 : i32
    return %arg0, %c0_i32, %c0_i32_0 : i32, i32, i32
  }
  func.func @transform_6(%arg0: i32) -> (i32, i32, i32) {
    %c0_i32 = arith.constant 0 : i32
    %c0_i32_0 = arith.constant 0 : i32
    %c0_i32_1 = arith.constant 0 : i32
    return %arg0, %c0_i32, %c0_i32_0 : i32, i32, i32
  }
}

module attributes {stable_mosaic.version = 11 : i64} {
  func.func @_residual_relu_kernel(%arg0: i32, %arg1: memref<1x288x128xbf16, #tpu.memory_space<vmem>>, %arg2: memref<1x288x128xbf16, #tpu.memory_space<vmem>>, %arg3: memref<1x128xf32, #tpu.memory_space<vmem>>, %arg4: memref<1x128xf32, #tpu.memory_space<vmem>>, %arg5: memref<1x128xf32, #tpu.memory_space<vmem>>, %arg6: memref<1x128xf32, #tpu.memory_space<vmem>>, %arg7: memref<1x288x128xf32, #tpu.memory_space<vmem>>) attributes {dimension_semantics = [#tpu.dimension_semantics<parallel>], iteration_bounds = array<i64: 2>, scalar_prefetch = 0 : i64, scratch_operands = 0 : i64, tpu.core_type = #tpu.core_type<tc>, window_params = [{transform_indices = @transform_0, window_bounds = array<i64: 1, 288, 128>}, {transform_indices = @transform_1, window_bounds = array<i64: 1, 288, 128>}, {pipeline_mode = #tpu.pipeline_mode<synchronous>, transform_indices = @transform_2, window_bounds = array<i64: 1, 128>}, {pipeline_mode = #tpu.pipeline_mode<synchronous>, transform_indices = @transform_3, window_bounds = array<i64: 1, 128>}, {pipeline_mode = #tpu.pipeline_mode<synchronous>, transform_indices = @transform_4, window_bounds = array<i64: 1, 128>}, {pipeline_mode = #tpu.pipeline_mode<synchronous>, transform_indices = @transform_5, window_bounds = array<i64: 1, 128>}, {transform_indices = @transform_6, window_bounds = array<i64: 1, 288, 128>}]} {
    %c0 = arith.constant 0 : index
    %c0_0 = arith.constant 0 : index
    %c0_1 = arith.constant 0 : index
    %0 = vector.load %arg1[%c0, %c0_0, %c0_1] : memref<1x288x128xbf16, #tpu.memory_space<vmem>>, vector<1x288x128xbf16>
    %1 = vector.shape_cast %0 : vector<1x288x128xbf16> to vector<288x128xbf16>
    %2 = arith.extf %1 : vector<288x128xbf16> to vector<288x128xf32>
    %c0_2 = arith.constant 0 : index
    %c0_3 = arith.constant 0 : index
    %c0_4 = arith.constant 0 : index
    %3 = vector.load %arg2[%c0_2, %c0_3, %c0_4] : memref<1x288x128xbf16, #tpu.memory_space<vmem>>, vector<1x288x128xbf16>
    %4 = vector.shape_cast %3 : vector<1x288x128xbf16> to vector<288x128xbf16>
    %5 = arith.extf %4 : vector<288x128xbf16> to vector<288x128xf32>
    %c0_5 = arith.constant 0 : index
    %c0_6 = arith.constant 0 : index
    %6 = vector.load %arg3[%c0_5, %c0_6] : memref<1x128xf32, #tpu.memory_space<vmem>>, vector<1x128xf32>
    %7 = vector.broadcast %6 : vector<1x128xf32> to vector<288x128xf32>
    %8 = arith.mulf %2, %7 : vector<288x128xf32>
    %c0_7 = arith.constant 0 : index
    %c0_8 = arith.constant 0 : index
    %9 = vector.load %arg4[%c0_7, %c0_8] : memref<1x128xf32, #tpu.memory_space<vmem>>, vector<1x128xf32>
    %10 = vector.broadcast %9 : vector<1x128xf32> to vector<288x128xf32>
    %11 = arith.addf %8, %10 : vector<288x128xf32>
    %c0_9 = arith.constant 0 : index
    %c0_10 = arith.constant 0 : index
    %12 = vector.load %arg5[%c0_9, %c0_10] : memref<1x128xf32, #tpu.memory_space<vmem>>, vector<1x128xf32>
    %13 = vector.broadcast %12 : vector<1x128xf32> to vector<288x128xf32>
    %14 = arith.mulf %5, %13 : vector<288x128xf32>
    %15 = arith.addf %11, %14 : vector<288x128xf32>
    %c0_11 = arith.constant 0 : index
    %c0_12 = arith.constant 0 : index
    %16 = vector.load %arg6[%c0_11, %c0_12] : memref<1x128xf32, #tpu.memory_space<vmem>>, vector<1x128xf32>
    %17 = vector.broadcast %16 : vector<1x128xf32> to vector<288x128xf32>
    %18 = arith.addf %15, %17 : vector<288x128xf32>
    %cst = arith.constant 0.000000e+00 : f32
    %19 = vector.broadcast %cst : f32 to vector<288x128xf32>
    %20 = arith.maximumf %18, %19 : vector<288x128xf32>
    %c0_13 = arith.constant 0 : index
    %c0_14 = arith.constant 0 : index
    %c0_15 = arith.constant 0 : index
    %21 = vector.load %arg7[%c0_13, %c0_14, %c0_15] : memref<1x288x128xf32, #tpu.memory_space<vmem>>, vector<1x288x128xf32>
    %22 = vector.shape_cast %21 : vector<1x288x128xf32> to vector<288x128xf32>
    %23 = vector.shape_cast %20 : vector<288x128xf32> to vector<1x288x128xf32>
    tpu.vector_store %arg7[%c0_13, %c0_14, %c0_15], %23 {strides = array<i32>} : memref<1x288x128xf32, #tpu.memory_space<vmem>>, vector<1x288x128xf32>,
    return
  }
  func.func @transform_0(%arg0: i32) -> (i32, i32, i32) {
    %c0_i32 = arith.constant 0 : i32
    %c0_i32_0 = arith.constant 0 : i32
    %c0_i32_1 = arith.constant 0 : i32
    return %arg0, %c0_i32, %c0_i32_0 : i32, i32, i32
  }
  func.func @transform_1(%arg0: i32) -> (i32, i32, i32) {
    %c0_i32 = arith.constant 0 : i32
    %c0_i32_0 = arith.constant 0 : i32
    %c0_i32_1 = arith.constant 0 : i32
    return %arg0, %c0_i32, %c0_i32_0 : i32, i32, i32
  }
  func.func @transform_2(%arg0: i32) -> (i32, i32) {
    %c0_i32 = arith.constant 0 : i32
    %c0_i32_0 = arith.constant 0 : i32
    %c0_i32_1 = arith.constant 0 : i32
    return %c0_i32, %c0_i32_0 : i32, i32
  }
  func.func @transform_3(%arg0: i32) -> (i32, i32) {
    %c0_i32 = arith.constant 0 : i32
    %c0_i32_0 = arith.constant 0 : i32
    %c0_i32_1 = arith.constant 0 : i32
    return %c0_i32, %c0_i32_0 : i32, i32
  }
  func.func @transform_4(%arg0: i32) -> (i32, i32) {
    %c0_i32 = arith.constant 0 : i32
    %c0_i32_0 = arith.constant 0 : i32
    %c0_i32_1 = arith.constant 0 : i32
    return %c0_i32, %c0_i32_0 : i32, i32
  }
  func.func @transform_5(%arg0: i32) -> (i32, i32) {
    %c0_i32 = arith.constant 0 : i32
    %c0_i32_0 = arith.constant 0 : i32
    %c0_i32_1 = arith.constant 0 : i32
    return %c0_i32, %c0_i32_0 : i32, i32
  }
  func.func @transform_6(%arg0: i32) -> (i32, i32, i32) {
    %c0_i32 = arith.constant 0 : i32
    %c0_i32_0 = arith.constant 0 : i32
    %c0_i32_1 = arith.constant 0 : i32
    return %arg0, %c0_i32, %c0_i32_0 : i32, i32, i32
  }
}

module attributes {stable_mosaic.version = 11 : i64} {
  func.func @_conv_kernel(%arg0: i32, %arg1: memref<1x342x4xf32, #tpu.memory_space<vmem>>, %arg2: memref<1x4x128xbf16, #tpu.memory_space<vmem>>, %arg3: memref<1x128xf32, #tpu.memory_space<vmem>>, %arg4: memref<1x128xf32, #tpu.memory_space<vmem>>, %arg5: memref<1x128xf32, #tpu.memory_space<vmem>>, %arg6: memref<1x288x128xbf16, #tpu.memory_space<vmem>>, %arg7: memref<1x2x128xf32, #tpu.memory_space<vmem>>, %arg8: memref<288x128xf32, #tpu.memory_space<vmem>>) attributes {dimension_semantics = [#tpu.dimension_semantics<parallel>], iteration_bounds = array<i64: 2>, scalar_prefetch = 0 : i64, scratch_operands = 1 : i64, tpu.core_type = #tpu.core_type<tc>, window_params = [{transform_indices = @transform_0, window_bounds = array<i64: 1, 342, 4>}, {pipeline_mode = #tpu.pipeline_mode<synchronous>, transform_indices = @transform_1, window_bounds = array<i64: 1, 4, 128>}, {pipeline_mode = #tpu.pipeline_mode<synchronous>, transform_indices = @transform_2, window_bounds = array<i64: 1, 128>}, {pipeline_mode = #tpu.pipeline_mode<synchronous>, transform_indices = @transform_3, window_bounds = array<i64: 1, 128>}, {pipeline_mode = #tpu.pipeline_mode<synchronous>, transform_indices = @transform_4, window_bounds = array<i64: 1, 128>}, {transform_indices = @transform_5, window_bounds = array<i64: 1, 288, 128>}, {transform_indices = @transform_6, window_bounds = array<i64: 1, 2, 128>}]} {
    %c0 = arith.constant 0 : index
    %c0_0 = arith.constant 0 : index
    %c0_1 = arith.constant 0 : index
    %0 = vector.load %arg1[%c0, %c0_0, %c0_1] : memref<1x342x4xf32, #tpu.memory_space<vmem>>, vector<1x342x4xf32>
    %1 = vector.shape_cast %0 : vector<1x342x4xf32> to vector<342x4xf32>
    %2 = arith.truncf %1 : vector<342x4xf32> to vector<342x4xbf16>
    %3 = vector.extract_strided_slice %2 {offsets = [19, 0], sizes = [288, 4], strides = [1, 1]} : vector<342x4xbf16> to vector<288x4xbf16>
    %c0_2 = arith.constant 0 : index
    %c0_3 = arith.constant 0 : index
    %c0_4 = arith.constant 0 : index
    %4 = vector.load %arg2[%c0_2, %c0_3, %c0_4] : memref<1x4x128xbf16, #tpu.memory_space<vmem>>, vector<1x4x128xbf16>
    %5 = vector.shape_cast %4 : vector<1x4x128xbf16> to vector<4x128xbf16>
    %cst = arith.constant dense<0.000000e+00> : vector<288x128xf32>
    %6 = tpu.matmul %3, %5, %cst {dimension_numbers = #tpu.dot_dimension_numbers<[1], [0], [0], [1], [0, 0, 1, 1], [], []>} : vector<288x4xbf16>, vector<4x128xbf16>, vector<288x128xf32> -> vector<288x128xf32>
    %c0_5 = arith.constant 0 : index
    %c0_6 = arith.constant 0 : index
    %7 = vector.load %arg3[%c0_5, %c0_6] : memref<1x128xf32, #tpu.memory_space<vmem>>, vector<1x128xf32>
    %8 = vector.broadcast %7 : vector<1x128xf32> to vector<288x128xf32>
    %9 = arith.addf %6, %8 : vector<288x128xf32>
    %10 = tpu.iota {dimensions = array<i32: 0>} : vector<288x1xi32>
    %c18_i32 = arith.constant 18 : i32
    %c0_i32 = arith.constant 0 : i32
    %11 = arith.cmpi eq, %c18_i32, %c0_i32 : i32
    %c1_i32 = arith.constant 1 : i32
    %12 = arith.select %11, %c1_i32, %c18_i32 : i32
    %13 = vector.broadcast %12 : i32 to vector<288x1xi32>
    %14 = arith.remsi %10, %13 : vector<288x1xi32>
    %c0_i32_7 = arith.constant 0 : i32
    %15 = vector.broadcast %c0_i32_7 : i32 to vector<288x1xi32>
    %16 = arith.cmpi ne, %14, %15 : vector<288x1xi32>
    %c0_i32_8 = arith.constant 0 : i32
    %17 = vector.broadcast %c0_i32_8 : i32 to vector<288x1xi32>
    %18 = arith.cmpi slt, %14, %17 : vector<288x1xi32>
    %c0_i32_9 = arith.constant 0 : i32
    %19 = arith.cmpi slt, %12, %c0_i32_9 : i32
    %20 = vector.broadcast %19 : i1 to vector<288x1xi1>
    %21 = vector.broadcast %20 : vector<288x1xi1> to vector<288x1xi1>
    %22 = arith.xori %18, %21 : vector<288x1xi1>
    %23 = arith.andi %22, %16 : vector<288x1xi1>
    %24 = vector.broadcast %12 : i32 to vector<288x1xi32>
    %25 = arith.addi %14, %24 : vector<288x1xi32>
    %26 = arith.select %23, %25, %14 : vector<288x1xi1>, vector<288x1xi32>
    %c16_i32 = arith.constant 16 : i32
    %27 = vector.broadcast %c16_i32 : i32 to vector<288x1xi32>
    %28 = arith.cmpi slt, %26, %27 : vector<288x1xi32>
    %29 = arith.extui %28 : vector<288x1xi1> to vector<288x1xi32>
    %30 = arith.sitofp %29 : vector<288x1xi32> to vector<288x1xf32>
    %31 = vector.broadcast %30 : vector<288x1xf32> to vector<288x128xf32>
    %32 = arith.mulf %9, %31 : vector<288x128xf32>
    %cst_10 = arith.constant dense<0.000000e+00> : vector<128xf32>
    %33 = vector.multi_reduction <add>, %32, %cst_10 [0] : vector<288x128xf32> to vector<128xf32>
    %34 = vector.shape_cast %33 : vector<128xf32> to vector<1x128xf32>
    %c0_11 = arith.constant 0 : index
    %c0_12 = arith.constant 0 : index
    %c0_13 = arith.constant 0 : index
    %35 = vector.load %arg7[%c0_11, %c0_12, %c0_13] : memref<1x2x128xf32, #tpu.memory_space<vmem>>, vector<1x1x128xf32>
    %36 = vector.shape_cast %35 : vector<1x1x128xf32> to vector<1x128xf32>
    %37 = vector.shape_cast %34 : vector<1x128xf32> to vector<1x1x128xf32>
    tpu.vector_store %arg7[%c0_11, %c0_12, %c0_13], %37 {strides = array<i32>} : memref<1x2x128xf32, #tpu.memory_space<vmem>>, vector<1x1x128xf32>,
    %38 = arith.mulf %32, %9 : vector<288x128xf32>
    %cst_14 = arith.constant dense<0.000000e+00> : vector<128xf32>
    %39 = vector.multi_reduction <add>, %38, %cst_14 [0] : vector<288x128xf32> to vector<128xf32>
    %40 = vector.shape_cast %39 : vector<128xf32> to vector<1x128xf32>
    %c0_15 = arith.constant 0 : index
    %c1 = arith.constant 1 : index
    %c0_16 = arith.constant 0 : index
    %41 = vector.load %arg7[%c0_15, %c1, %c0_16] : memref<1x2x128xf32, #tpu.memory_space<vmem>>, vector<1x1x128xf32>
    %42 = vector.shape_cast %41 : vector<1x1x128xf32> to vector<1x128xf32>
    %43 = vector.shape_cast %40 : vector<1x128xf32> to vector<1x1x128xf32>
    tpu.vector_store %arg7[%c0_15, %c1, %c0_16], %43 {strides = array<i32>} : memref<1x2x128xf32, #tpu.memory_space<vmem>>, vector<1x1x128xf32>,
    %44 = arith.truncf %9 : vector<288x128xf32> to vector<288x128xbf16>
    %c0_17 = arith.constant 0 : index
    %c0_18 = arith.constant 0 : index
    %c0_19 = arith.constant 0 : index
    %45 = vector.load %arg6[%c0_17, %c0_18, %c0_19] : memref<1x288x128xbf16, #tpu.memory_space<vmem>>, vector<1x288x128xbf16>
    %46 = vector.shape_cast %45 : vector<1x288x128xbf16> to vector<288x128xbf16>
    %47 = vector.shape_cast %44 : vector<288x128xbf16> to vector<1x288x128xbf16>
    tpu.vector_store %arg6[%c0_17, %c0_18, %c0_19], %47 {strides = array<i32>} : memref<1x288x128xbf16, #tpu.memory_space<vmem>>, vector<1x288x128xbf16>,
    return
  }
  func.func @transform_0(%arg0: i32) -> (i32, i32, i32) {
    %c0_i32 = arith.constant 0 : i32
    %c0_i32_0 = arith.constant 0 : i32
    %c0_i32_1 = arith.constant 0 : i32
    return %arg0, %c0_i32, %c0_i32_0 : i32, i32, i32
  }
  func.func @transform_1(%arg0: i32) -> (i32, i32, i32) {
    %c0_i32 = arith.constant 0 : i32
    %c0_i32_0 = arith.constant 0 : i32
    %c0_i32_1 = arith.constant 0 : i32
    %c0_i32_2 = arith.constant 0 : i32
    return %c0_i32, %c0_i32_0, %c0_i32_1 : i32, i32, i32
  }
  func.func @transform_2(%arg0: i32) -> (i32, i32) {
    %c0_i32 = arith.constant 0 : i32
    %c0_i32_0 = arith.constant 0 : i32
    %c0_i32_1 = arith.constant 0 : i32
    return %c0_i32, %c0_i32_0 : i32, i32
  }
  func.func @transform_3(%arg0: i32) -> (i32, i32) {
    %c0_i32 = arith.constant 0 : i32
    %c0_i32_0 = arith.constant 0 : i32
    %c0_i32_1 = arith.constant 0 : i32
    return %c0_i32, %c0_i32_0 : i32, i32
  }
  func.func @transform_4(%arg0: i32) -> (i32, i32) {
    %c0_i32 = arith.constant 0 : i32
    %c0_i32_0 = arith.constant 0 : i32
    %c0_i32_1 = arith.constant 0 : i32
    return %c0_i32, %c0_i32_0 : i32, i32
  }
  func.func @transform_5(%arg0: i32) -> (i32, i32, i32) {
    %c0_i32 = arith.constant 0 : i32
    %c0_i32_0 = arith.constant 0 : i32
    %c0_i32_1 = arith.constant 0 : i32
    return %arg0, %c0_i32, %c0_i32_0 : i32, i32, i32
  }
  func.func @transform_6(%arg0: i32) -> (i32, i32, i32) {
    %c0_i32 = arith.constant 0 : i32
    %c0_i32_0 = arith.constant 0 : i32
    %c0_i32_1 = arith.constant 0 : i32
    return %arg0, %c0_i32, %c0_i32_0 : i32, i32, i32
  }
}

</mosaic_0001>

<llo_original>
// kernel: _lambda_.7
$region0: #{_lambda_.7}
  #allocation0 [shape = 'u32[]', space=smem, size = 0x4, offset = 0x4, fixed_abs, tag = 'smem constant byte address 0x4 - core index']
  #allocation1 [shape = 'u32[144,128]{1,0:T(1,128)}', space=vmem, size = 0x12000, scoped, tag = 'internal scratch']
  %s0 = inlined_call_operand.vmem [shape: bf16[2,288,128], index: 0, kind: input, shape index: {}]
  %s1 = inlined_call_operand.vmem [shape: bf16[2,288,128], index: 1, kind: input, shape index: {}]
  %s2 = inlined_call_operand.vmem [shape: f32[1,128], index: 2, kind: input, shape index: {}]
  %s3 = inlined_call_operand.vmem [shape: f32[1,128], index: 3, kind: input, shape index: {}]
  %s4 = inlined_call_operand.vmem [shape: f32[1,128], index: 4, kind: input, shape index: {}]
  %s5 = inlined_call_operand.vmem [shape: f32[1,128], index: 5, kind: input, shape index: {}]
  %s6 = inlined_call_operand.vmem [shape: f32[2,288,128], index: 6, kind: output, shape index: {}]
  %s7 = sld [smem:[#allocation0]]
  $region57: #{_lambda_.7} parent=0
    _
  %s9 = ssub.s32 1, %s7
  %s10 = scalar_select 0, %s9, %s7
  loop: start=0, step=1, limit=4
  $region2: #{_lambda_.7} parent=0 // loop_pre_header
    _
  $region3: #{_lambda_.7} parent=0 // loop_header
    %s12 = sphi 0, %s16
    %p13 = scmp.ge.s32.totalorder %s12, 4
    %s22 = sphi 0, %s24
    %s25 = sphi 0, %s22
    %s26 = sphi 0, %s25
    %s42 = sphi 0, %s26
    %s48 = sphi 0, %s50
    %s51 = sphi 0, %s48
    %s52 = sphi 0, %s51
    %s68 = sphi 0, %s52
    %s72 = sphi 0, %s72
    %s74 = sphi 0, %s72
    %s75 = sphi 0, %s74
    %s89 = sphi 0, %s75
    %s93 = sphi 0, %s93
    %s95 = sphi 0, %s93
    %s96 = sphi 0, %s95
    %s110 = sphi 0, %s96
    %s114 = sphi 0, %s114
    %s116 = sphi 0, %s114
    %s117 = sphi 0, %s116
    %s131 = sphi 0, %s117
    %s135 = sphi 0, %s135
    %s137 = sphi 0, %s135
    %s138 = sphi 0, %s137
    %s152 = sphi 0, %s138
    %s158 = sphi 0, %s160
    %s161 = sphi 0, %s158
    %s162 = sphi 0, %s161
    %s178 = sphi 0, %s162
  $region4: #{_lambda_.7} parent=0 // loop_header_branch
    %15 = sbr.rel (%p13) target = $region8
  $region5: #{_lambda_.7} parent=0 // loop_body
    %s17 = ssub.s32 %s12, 1
    %s18 = ssub.s32 %s12, 2
    %s19 = sadd.s32 %s12, 1
    %s20 = ssub.s32 %s12, %s19
    %p21 = scmp.eq.s32.totalorder %s20, 0
    %s23 = sadd.s32 %s22, 1
    %s24 = scalar_select %p21, %s22, %s23
    %p27 = pneg %p21
    %p28 = scmp.eq.s32.totalorder %s12, 1
    %p29 = por %p27, %p28
    %p30 = scmp.ne.s32.totalorder %s22, %s25
    %p31 = scmp.eq.s32.totalorder %s12, 0
    %p32 = por %p30, %p31
    %p33 = scmp.ne.s32.totalorder %s22, %s25
    %p34 = scmp.eq.s32.totalorder %s17, 1
    %p35 = por %p33, %p34
    %p36 = scmp.ne.s32.totalorder %s25, %s26
    %p37 = scmp.eq.s32.totalorder %s17, 0
    %p38 = por %p36, %p37
    %p39 = scmp.ne.s32.totalorder %s25, %s26
    %p40 = scmp.eq.s32.totalorder %s18, 1
    %p41 = por %p39, %p40
    %p43 = scmp.ne.s32.totalorder %s26, %s42
    %p44 = scmp.eq.s32.totalorder %s18, 0
    %p45 = por %p43, %p44
    %s46 = ssub.s32 %s12, %s19
    %p47 = scmp.eq.s32.totalorder %s46, 0
    %s49 = sadd.s32 %s48, 1
    %s50 = scalar_select %p47, %s48, %s49
    %p53 = pneg %p47
    %p54 = scmp.eq.s32.totalorder %s12, 1
    %p55 = por %p53, %p54
    %p56 = scmp.ne.s32.totalorder %s48, %s51
    %p57 = scmp.eq.s32.totalorder %s12, 0
    %p58 = por %p56, %p57
    %p59 = scmp.ne.s32.totalorder %s48, %s51
    %p60 = scmp.eq.s32.totalorder %s17, 1
    %p61 = por %p59, %p60
    %p62 = scmp.ne.s32.totalorder %s51, %s52
    %p63 = scmp.eq.s32.totalorder %s17, 0
    %p64 = por %p62, %p63
    %p65 = scmp.ne.s32.totalorder %s51, %s52
    %p66 = scmp.eq.s32.totalorder %s18, 1
    %p67 = por %p65, %p66
    %p69 = scmp.ne.s32.totalorder %s52, %s68
    %p70 = scmp.eq.s32.totalorder %s18, 0
    %p71 = por %p69, %p70
    %s73 = sadd.s32 %s72, 1
    %p76 = scmp.eq.s32.totalorder %s12, 1
    %p77 = scmp.ne.s32.totalorder %s72, %s74
    %p78 = scmp.eq.s32.totalorder %s12, 0
    %p79 = por %p77, %p78
    %p80 = scmp.ne.s32.totalorder %s72, %s74
    %p81 = scmp.eq.s32.totalorder %s17, 1
    %p82 = por %p80, %p81
    %p83 = scmp.ne.s32.totalorder %s74, %s75
    %p84 = scmp.eq.s32.totalorder %s17, 0
    %p85 = por %p83, %p84
    %p86 = scmp.ne.s32.totalorder %s74, %s75
    %p87 = scmp.eq.s32.totalorder %s18, 1
    %p88 = por %p86, %p87
    %p90 = scmp.ne.s32.totalorder %s75, %s89
    %p91 = scmp.eq.s32.totalorder %s18, 0
    %p92 = por %p90, %p91
    %s94 = sadd.s32 %s93, 1
    %p97 = scmp.eq.s32.totalorder %s12, 1
    %p98 = scmp.ne.s32.totalorder %s93, %s95
    %p99 = scmp.eq.s32.totalorder %s12, 0
    %p100 = por %p98, %p99
    %p101 = scmp.ne.s32.totalorder %s93, %s95
    %p102 = scmp.eq.s32.totalorder %s17, 1
    %p103 = por %p101, %p102
    %p104 = scmp.ne.s32.totalorder %s95, %s96
    %p105 = scmp.eq.s32.totalorder %s17, 0
    %p106 = por %p104, %p105
    %p107 = scmp.ne.s32.totalorder %s95, %s96
    %p108 = scmp.eq.s32.totalorder %s18, 1
    %p109 = por %p107, %p108
    %p111 = scmp.ne.s32.totalorder %s96, %s110
    %p112 = scmp.eq.s32.totalorder %s18, 0
    %p113 = por %p111, %p112
    %s115 = sadd.s32 %s114, 1
    %p118 = scmp.eq.s32.totalorder %s12, 1
    %p119 = scmp.ne.s32.totalorder %s114, %s116
    %p120 = scmp.eq.s32.totalorder %s12, 0
    %p121 = por %p119, %p120
    %p122 = scmp.ne.s32.totalorder %s114, %s116
    %p123 = scmp.eq.s32.totalorder %s17, 1
    %p124 = por %p122, %p123
    %p125 = scmp.ne.s32.totalorder %s116, %s117
    %p126 = scmp.eq.s32.totalorder %s17, 0
    %p127 = por %p125, %p126
    %p128 = scmp.ne.s32.totalorder %s116, %s117
    %p129 = scmp.eq.s32.totalorder %s18, 1
    %p130 = por %p128, %p129
    %p132 = scmp.ne.s32.totalorder %s117, %s131
    %p133 = scmp.eq.s32.totalorder %s18, 0
    %p134 = por %p132, %p133
    %s136 = sadd.s32 %s135, 1
    %p139 = scmp.eq.s32.totalorder %s12, 1
    %p140 = scmp.ne.s32.totalorder %s135, %s137
    %p141 = scmp.eq.s32.totalorder %s12, 0
    %p142 = por %p140, %p141
    %p143 = scmp.ne.s32.totalorder %s135, %s137
    %p144 = scmp.eq.s32.totalorder %s17, 1
    %p145 = por %p143, %p144
    %p146 = scmp.ne.s32.totalorder %s137, %s138
    %p147 = scmp.eq.s32.totalorder %s17, 0
    %p148 = por %p146, %p147
    %p149 = scmp.ne.s32.totalorder %s137, %s138
    %p150 = scmp.eq.s32.totalorder %s18, 1
    %p151 = por %p149, %p150
    %p153 = scmp.ne.s32.totalorder %s138, %s152
    %p154 = scmp.eq.s32.totalorder %s18, 0
    %p155 = por %p153, %p154
    %s156 = ssub.s32 %s12, %s19
    %p157 = scmp.eq.s32.totalorder %s156, 0
    %s159 = sadd.s32 %s158, 1
    %s160 = scalar_select %p157, %s158, %s159
    %p163 = pneg %p157
    %p164 = scmp.eq.s32.totalorder %s12, 1
    %p165 = por %p163, %p164
    %p166 = scmp.ne.s32.totalorder %s158, %s161
    %p167 = scmp.eq.s32.totalorder %s12, 0
    %p168 = por %p166, %p167
    %p169 = scmp.ne.s32.totalorder %s158, %s161
    %p170 = scmp.eq.s32.totalorder %s17, 1
    %p171 = por %p169, %p170
    %p172 = scmp.ne.s32.totalorder %s161, %s162
    %p173 = scmp.eq.s32.totalorder %s17, 0
    %p174 = por %p172, %p173
    %p175 = scmp.ne.s32.totalorder %s161, %s162
    %p176 = scmp.eq.s32.totalorder %s18, 1
    %p177 = por %p175, %p176
    %p179 = scmp.ne.s32.totalorder %s162, %s178
    %p180 = scmp.eq.s32.totalorder %s18, 0
    %p181 = por %p179, %p180
    %p182 = scmp.le.s32.totalorder 1, %s12
    %p183 = scmp.lt.s32.totalorder %s12, 3
    %p184 = pnand %p182, %p183
    %p185 = pneg %p184
    // Predicated region
    $region9: #{_lambda_.7} parent=5 // pred_check
      _
    $region10: #{_lambda_.7} parent=5 // pred_check_branch
      %187 = sbr.rel (%p184) target = $region12
    $region11: #{_lambda_.7} parent=5 // pred_region
      %s188 = ssub.s32 %s12, 1
      // Predicated region
      $region13: #{_lambda_.7} parent=11 // pred_check
        %p189 = pneg %p85
      $region14: #{_lambda_.7} parent=11 // pred_check_branch
        %191 = sbr.rel (%p189) target = $region16
      $region15: #{_lambda_.7} parent=11 // pred_region
        _
      $region16: #{_lambda_.7} parent=11 // pred_fallthru
        _
      // Predicated region
      $region17: #{_lambda_.7} parent=11 // pred_check
        %p192 = pneg %p106
      $region18: #{_lambda_.7} parent=11 // pred_check_branch
        %194 = sbr.rel (%p192) target = $region20
      $region19: #{_lambda_.7} parent=11 // pred_region
        _
      $region20: #{_lambda_.7} parent=11 // pred_fallthru
        _
      // Predicated region
      $region21: #{_lambda_.7} parent=11 // pred_check
        %p195 = pneg %p127
      $region22: #{_lambda_.7} parent=11 // pred_check_branch
        %197 = sbr.rel (%p195) target = $region24
      $region23: #{_lambda_.7} parent=11 // pred_region
        _
      $region24: #{_lambda_.7} parent=11 // pred_fallthru
        _
      // Predicated region
      $region25: #{_lambda_.7} parent=11 // pred_check
        %p198 = pneg %p148
      $region26: #{_lambda_.7} parent=11 // pred_check_branch
        %200 = sbr.rel (%p198) target = $region28
      $region27: #{_lambda_.7} parent=11 // pred_region
        _
      $region28: #{_lambda_.7} parent=11 // pred_fallthru
        _
    $region12: #{_lambda_.7} parent=5 // pred_fallthru
      _
    %p201 = scmp.lt.s32.totalorder %s12, 2
    // Predicated region
    $region29: #{_lambda_.7} parent=5 // pred_check
      %p202 = pneg %p201
    $region30: #{_lambda_.7} parent=5 // pred_check_branch
      %204 = sbr.rel (%p202) target = $region32
    $region31: #{_lambda_.7} parent=5 // pred_region
      // Predicated region
      $region33: #{_lambda_.7} parent=31 // pred_check
        %p205 = pneg %p32
      $region34: #{_lambda_.7} parent=31 // pred_check_branch
        %207 = sbr.rel (%p205) target = $region36
      $region35: #{_lambda_.7} parent=31 // pred_region
        %p208 = scmp.lt.s32.totalorder %s12, 1
        %s209 = scalar_select %p208, %s12, 1
        %s210 = smul.addr %s209, 36
        %s211 = smul.addr %s210, 4
        %s212 = scalar_lea.vmem %s0, %s211
      $region36: #{_lambda_.7} parent=31 // pred_fallthru
        _
      // Predicated region
      $region37: #{_lambda_.7} parent=31 // pred_check
        %p213 = pneg %p58
      $region38: #{_lambda_.7} parent=31 // pred_check_branch
        %215 = sbr.rel (%p213) target = $region40
      $region39: #{_lambda_.7} parent=31 // pred_region
        %p216 = scmp.lt.s32.totalorder %s12, 1
        %s217 = scalar_select %p216, %s12, 1
        %s218 = smul.addr %s217, 36
        %s219 = smul.addr %s218, 4
        %s220 = scalar_lea.vmem %s1, %s219
      $region40: #{_lambda_.7} parent=31 // pred_fallthru
        _
    $region32: #{_lambda_.7} parent=5 // pred_fallthru
      _
    %p221 = scmp.le.s32.totalorder 1, %s12
    %p222 = scmp.lt.s32.totalorder %s12, 3
    %p223 = pnand %p221, %p222
    %p224 = pneg %p223
    // Predicated region
    $region41: #{_lambda_.7} parent=5 // pred_check
      _
    $region42: #{_lambda_.7} parent=5 // pred_check_branch
      %226 = sbr.rel (%p223) target = $region44
    $region43: #{_lambda_.7} parent=5 // pred_region
      %s227 = ssub.s32 %s12, 1
      %p228 = scmp.lt.s32.totalorder %s17, 1
      %s229 = scalar_select %p228, %s17, 1
      %s230 = smul.addr %s229, 36
      %s231 = smul.addr %s230, 4
      %s232 = scalar_lea.vmem %s0, %s231
      %p233 = pneg %p38
      %p234 = pneg %p35
      %p235 = scmp.lt.s32.totalorder %s17, 1
      %s236 = scalar_select %p235, %s17, 1
      %s237 = smul.addr %s236, 36
      %s238 = smul.addr %s237, 4
      %s239 = scalar_lea.vmem %s1, %s238
      %p240 = pneg %p64
      %p241 = pneg %p61
      %p242 = pneg %p85
      %p243 = pneg %p82
      %p244 = pneg %p106
      %p245 = pneg %p103
      %p246 = pneg %p127
      %p247 = pneg %p124
      %p248 = pneg %p148
      %p249 = pneg %p145
      %p250 = pneg %p174
      %p251 = pneg %p171
      %p252 = scmp.lt.s32.totalorder %s17, 1
      %s253 = scalar_select %p252, %s17, 1
      %s254 = smul.addr %s253, 36
      %s255 = smul.addr %s254, 8
      %s256 = scalar_lea.vmem %s6, %s255
      %p257 = scmp.lt.s32.totalorder %s17, 1
      %s258 = scalar_select %p257, %s17, 1
      %s259 = smul.addr %s258, 36
      %s260 = smul.addr %s259, 4
      %s261 = scalar_lea.vmem %s0, %s260
      %p262 = scmp.lt.s32.totalorder %s17, 1
      %s263 = scalar_select %p262, %s17, 1
      %s264 = smul.addr %s263, 36
      %s265 = smul.addr %s264, 4
      %s266 = scalar_lea.vmem %s1, %s265
      %p267 = scmp.lt.s32.totalorder %s17, 1
      %s268 = scalar_select %p267, %s17, 1
      %s269 = smul.addr %s268, 36
      %s270 = smul.addr %s269, 8
      %s271 = scalar_lea.vmem %s6, %s270
      %v272 = vld [vmem:[%s261] sm:$0xf]
      %v273 = vld [vmem:[%s261 + $0x4] sm:$0xf]
      %v274 = vld [vmem:[%s261 + $0x8] sm:$0xf]
      %v275 = vld [vmem:[%s261 + $0xc] sm:$0xf]
      %v276 = vld [vmem:[%s261 + $0x10] sm:$0xf]
      %v277 = vld [vmem:[%s261 + $0x14] sm:$0xf]
      %v278 = vld [vmem:[%s261 + $0x18] sm:$0xf]
      %v279 = vld [vmem:[%s261 + $0x1c] sm:$0xf]
      %v280 = vld [vmem:[%s261 + $0x20] sm:$0xf]
      %v281 = vld [vmem:[%s261 + $0x24] sm:$0xf]
      %v282 = vld [vmem:[%s261 + $0x28] sm:$0xf]
      %v283 = vld [vmem:[%s261 + $0x2c] sm:$0xf]
      %v284 = vld [vmem:[%s261 + $0x30] sm:$0xf]
      %v285 = vld [vmem:[%s261 + $0x34] sm:$0xf]
      %v286 = vld [vmem:[%s261 + $0x38] sm:$0xf]
      %v287 = vld [vmem:[%s261 + $0x3c] sm:$0xf]
      %v288 = vld [vmem:[%s261 + $0x40] sm:$0xf]
      %v289 = vld [vmem:[%s261 + $0x44] sm:$0xf]
      %v290 = vld [vmem:[%s261 + $0x48] sm:$0xf]
      %v291 = vld [vmem:[%s261 + $0x4c] sm:$0xf]
      %v292 = vld [vmem:[%s261 + $0x50] sm:$0xf]
      %v293 = vld [vmem:[%s261 + $0x54] sm:$0xf]
      %v294 = vld [vmem:[%s261 + $0x58] sm:$0xf]
      %v295 = vld [vmem:[%s261 + $0x5c] sm:$0xf]
      %v296 = vld [vmem:[%s261 + $0x60] sm:$0xf]
      %v297 = vld [vmem:[%s261 + $0x64] sm:$0xf]
      %v298 = vld [vmem:[%s261 + $0x68] sm:$0xf]
      %v299 = vld [vmem:[%s261 + $0x6c] sm:$0xf]
      %v300 = vld [vmem:[%s261 + $0x70] sm:$0xf]
      %v301 = vld [vmem:[%s261 + $0x74] sm:$0xf]
      %v302 = vld [vmem:[%s261 + $0x78] sm:$0xf]
      %v303 = vld [vmem:[%s261 + $0x7c] sm:$0xf]
      %v304 = vld [vmem:[%s261 + $0x80] sm:$0xf]
      %v305 = vld [vmem:[%s261 + $0x84] sm:$0xf]
      %v306 = vld [vmem:[%s261 + $0x88] sm:$0xf]
      %v307 = vld [vmem:[%s261 + $0x8c] sm:$0xf]
      %v308 = vunpack.c.l.bf16 %v272
      %v309 = vunpack.c.l.bf16 %v273
      %v310 = vunpack.c.l.bf16 %v274
      %v311 = vunpack.c.l.bf16 %v275
      %v312 = vunpack.c.l.bf16 %v276
      %v313 = vunpack.c.l.bf16 %v277
      %v314 = vunpack.c.l.bf16 %v278
      %v315 = vunpack.c.l.bf16 %v279
      %v316 = vunpack.c.l.bf16 %v280
      %v317 = vunpack.c.l.bf16 %v281
      %v318 = vunpack.c.l.bf16 %v282
      %v319 = vunpack.c.l.bf16 %v283
      %v320 = vunpack.c.l.bf16 %v284
      %v321 = vunpack.c.l.bf16 %v285
      %v322 = vunpack.c.l.bf16 %v286
      %v323 = vunpack.c.l.bf16 %v287
      %v324 = vunpack.c.l.bf16 %v288
      %v325 = vunpack.c.l.bf16 %v289
      %v326 = vunpack.c.l.bf16 %v290
      %v327 = vunpack.c.l.bf16 %v291
      %v328 = vunpack.c.l.bf16 %v292
      %v329 = vunpack.c.l.bf16 %v293
      %v330 = vunpack.c.l.bf16 %v294
      %v331 = vunpack.c.l.bf16 %v295
      %v332 = vunpack.c.l.bf16 %v296
      %v333 = vunpack.c.l.bf16 %v297
      %v334 = vunpack.c.l.bf16 %v298
      %v335 = vunpack.c.l.bf16 %v299
      %v336 = vunpack.c.l.bf16 %v300
      %v337 = vunpack.c.l.bf16 %v301
      %v338 = vunpack.c.l.bf16 %v302
      %v339 = vunpack.c.l.bf16 %v303
      %v340 = vunpack.c.l.bf16 %v304
      %v341 = vunpack.c.l.bf16 %v305
      %v342 = vunpack.c.l.bf16 %v306
      %v343 = vunpack.c.l.bf16 %v307
      %v344 = vld [vmem:[%s266] sm:$0xf]
      %v345 = vld [vmem:[%s266 + $0x4] sm:$0xf]
      %v346 = vld [vmem:[%s266 + $0x8] sm:$0xf]
      %v347 = vld [vmem:[%s266 + $0xc] sm:$0xf]
      %v348 = vld [vmem:[%s266 + $0x10] sm:$0xf]
      %v349 = vld [vmem:[%s266 + $0x14] sm:$0xf]
      %v350 = vld [vmem:[%s266 + $0x18] sm:$0xf]
      %v351 = vld [vmem:[%s266 + $0x1c] sm:$0xf]
      %v352 = vld [vmem:[%s266 + $0x20] sm:$0xf]
      %v353 = vld [vmem:[%s266 + $0x24] sm:$0xf]
      %v354 = vld [vmem:[%s266 + $0x28] sm:$0xf]
      %v355 = vld [vmem:[%s266 + $0x2c] sm:$0xf]
      %v356 = vld [vmem:[%s266 + $0x30] sm:$0xf]
      %v357 = vld [vmem:[%s266 + $0x34] sm:$0xf]
      %v358 = vld [vmem:[%s266 + $0x38] sm:$0xf]
      %v359 = vld [vmem:[%s266 + $0x3c] sm:$0xf]
      %v360 = vld [vmem:[%s266 + $0x40] sm:$0xf]
      %v361 = vld [vmem:[%s266 + $0x44] sm:$0xf]
      %v362 = vld [vmem:[%s266 + $0x48] sm:$0xf]
      %v363 = vld [vmem:[%s266 + $0x4c] sm:$0xf]
      %v364 = vld [vmem:[%s266 + $0x50] sm:$0xf]
      %v365 = vld [vmem:[%s266 + $0x54] sm:$0xf]
      %v366 = vld [vmem:[%s266 + $0x58] sm:$0xf]
      %v367 = vld [vmem:[%s266 + $0x5c] sm:$0xf]
      %v368 = vld [vmem:[%s266 + $0x60] sm:$0xf]
      %v369 = vld [vmem:[%s266 + $0x64] sm:$0xf]
      %v370 = vld [vmem:[%s266 + $0x68] sm:$0xf]
      %v371 = vld [vmem:[%s266 + $0x6c] sm:$0xf]
      %v372 = vld [vmem:[%s266 + $0x70] sm:$0xf]
      %v373 = vld [vmem:[%s266 + $0x74] sm:$0xf]
      %v374 = vld [vmem:[%s266 + $0x78] sm:$0xf]
      %v375 = vld [vmem:[%s266 + $0x7c] sm:$0xf]
      %v376 = vld [vmem:[%s266 + $0x80] sm:$0xf]
      %v377 = vld [vmem:[%s266 + $0x84] sm:$0xf]
      %v378 = vld [vmem:[%s266 + $0x88] sm:$0xf]
      %v379 = vld [vmem:[%s266 + $0x8c] sm:$0xf]
      %v380 = vunpack.c.l.bf16 %v344
      %v381 = vunpack.c.l.bf16 %v345
      %v382 = vunpack.c.l.bf16 %v346
      %v383 = vunpack.c.l.bf16 %v347
      %v384 = vunpack.c.l.bf16 %v348
      %v385 = vunpack.c.l.bf16 %v349
      %v386 = vunpack.c.l.bf16 %v350
      %v387 = vunpack.c.l.bf16 %v351
      %v388 = vunpack.c.l.bf16 %v352
      %v389 = vunpack.c.l.bf16 %v353
      %v390 = vunpack.c.l.bf16 %v354
      %v391 = vunpack.c.l.bf16 %v355
      %v392 = vunpack.c.l.bf16 %v356
      %v393 = vunpack.c.l.bf16 %v357
      %v394 = vunpack.c.l.bf16 %v358
      %v395 = vunpack.c.l.bf16 %v359
      %v396 = vunpack.c.l.bf16 %v360
      %v397 = vunpack.c.l.bf16 %v361
      %v398 = vunpack.c.l.bf16 %v362
      %v399 = vunpack.c.l.bf16 %v363
      %v400 = vunpack.c.l.bf16 %v364
      %v401 = vunpack.c.l.bf16 %v365
      %v402 = vunpack.c.l.bf16 %v366
      %v403 = vunpack.c.l.bf16 %v367
      %v404 = vunpack.c.l.bf16 %v368
      %v405 = vunpack.c.l.bf16 %v369
      %v406 = vunpack.c.l.bf16 %v370
      %v407 = vunpack.c.l.bf16 %v371
      %v408 = vunpack.c.l.bf16 %v372
      %v409 = vunpack.c.l.bf16 %v373
      %v410 = vunpack.c.l.bf16 %v374
      %v411 = vunpack.c.l.bf16 %v375
      %v412 = vunpack.c.l.bf16 %v376
      %v413 = vunpack.c.l.bf16 %v377
      %v414 = vunpack.c.l.bf16 %v378
      %v415 = vunpack.c.l.bf16 %v379
      %v416 = vld [vmem:[%s2] sm:$0x1]
      %v418 = vlaneseq
      %v419 = vshrl.u32 %v418, 7
      %v420 = vsub.s32 0, %v419
      %v421 = vrot.slane %v416, %v420
      %v423 = vmul.f32 %v308, %v421
      %v424 = vmul.f32 %v309, %v421
      %v425 = vmul.f32 %v310, %v421
      %v426 = vmul.f32 %v311, %v421
      %v427 = vmul.f32 %v312, %v421
      %v428 = vmul.f32 %v313, %v421
      %v429 = vmul.f32 %v314, %v421
      %v430 = vmul.f32 %v315, %v421
      %v431 = vmul.f32 %v316, %v421
      %v432 = vmul.f32 %v317, %v421
      %v433 = vmul.f32 %v318, %v421
      %v434 = vmul.f32 %v319, %v421
      %v435 = vmul.f32 %v320, %v421
      %v436 = vmul.f32 %v321, %v421
      %v437 = vmul.f32 %v322, %v421
      %v438 = vmul.f32 %v323, %v421
      %v439 = vmul.f32 %v324, %v421
      %v440 = vmul.f32 %v325, %v421
      %v441 = vmul.f32 %v326, %v421
      %v442 = vmul.f32 %v327, %v421
      %v443 = vmul.f32 %v328, %v421
      %v444 = vmul.f32 %v329, %v421
      %v445 = vmul.f32 %v330, %v421
      %v446 = vmul.f32 %v331, %v421
      %v447 = vmul.f32 %v332, %v421
      %v448 = vmul.f32 %v333, %v421
      %v449 = vmul.f32 %v334, %v421
      %v450 = vmul.f32 %v335, %v421
      %v451 = vmul.f32 %v336, %v421
      %v452 = vmul.f32 %v337, %v421
      %v453 = vmul.f32 %v338, %v421
      %v454 = vmul.f32 %v339, %v421
      %v455 = vmul.f32 %v340, %v421
      %v456 = vmul.f32 %v341, %v421
      %v457 = vmul.f32 %v342, %v421
      %v458 = vmul.f32 %v343, %v421
      %v459 = vld [vmem:[%s3] sm:$0x1]
      %v461 = vlaneseq
      %v462 = vshrl.u32 %v461, 7
      %v463 = vsub.s32 0, %v462
      %v464 = vrot.slane %v459, %v463
      %v466 = vadd.f32 %v423, %v464
      %v467 = vadd.f32 %v424, %v464
      %v468 = vadd.f32 %v425, %v464
      %v469 = vadd.f32 %v426, %v464
      %v470 = vadd.f32 %v427, %v464
      %v471 = vadd.f32 %v428, %v464
      %v472 = vadd.f32 %v429, %v464
      %v473 = vadd.f32 %v430, %v464
      %v474 = vadd.f32 %v431, %v464
      %v475 = vadd.f32 %v432, %v464
      %v476 = vadd.f32 %v433, %v464
      %v477 = vadd.f32 %v434, %v464
      %v478 = vadd.f32 %v435, %v464
      %v479 = vadd.f32 %v436, %v464
      %v480 = vadd.f32 %v437, %v464
      %v481 = vadd.f32 %v438, %v464
      %v482 = vadd.f32 %v439, %v464
      %v483 = vadd.f32 %v440, %v464
      %v484 = vadd.f32 %v441, %v464
      %v485 = vadd.f32 %v442, %v464
      %v486 = vadd.f32 %v443, %v464
      %v487 = vadd.f32 %v444, %v464
      %v488 = vadd.f32 %v445, %v464
      %v489 = vadd.f32 %v446, %v464
      %v490 = vadd.f32 %v447, %v464
      %v491 = vadd.f32 %v448, %v464
      %v492 = vadd.f32 %v449, %v464
      %v493 = vadd.f32 %v450, %v464
      %v494 = vadd.f32 %v451, %v464
      %v495 = vadd.f32 %v452, %v464
      %v496 = vadd.f32 %v453, %v464
      %v497 = vadd.f32 %v454, %v464
      %v498 = vadd.f32 %v455, %v464
      %v499 = vadd.f32 %v456, %v464
      %v500 = vadd.f32 %v457, %v464
      %v501 = vadd.f32 %v458, %v464
      %v502 = vld [vmem:[%s4] sm:$0x1]
      %v504 = vlaneseq
      %v505 = vshrl.u32 %v504, 7
      %v506 = vsub.s32 0, %v505
      %v507 = vrot.slane %v502, %v506
      %v509 = vmul.f32 %v380, %v507
      %v510 = vmul.f32 %v381, %v507
      %v511 = vmul.f32 %v382, %v507
      %v512 = vmul.f32 %v383, %v507
      %v513 = vmul.f32 %v384, %v507
      %v514 = vmul.f32 %v385, %v507
      %v515 = vmul.f32 %v386, %v507
      %v516 = vmul.f32 %v387, %v507
      %v517 = vmul.f32 %v388, %v507
      %v518 = vmul.f32 %v389, %v507
      %v519 = vmul.f32 %v390, %v507
      %v520 = vmul.f32 %v391, %v507
      %v521 = vmul.f32 %v392, %v507
      %v522 = vmul.f32 %v393, %v507
      %v523 = vmul.f32 %v394, %v507
      %v524 = vmul.f32 %v395, %v507
      %v525 = vmul.f32 %v396, %v507
      %v526 = vmul.f32 %v397, %v507
      %v527 = vmul.f32 %v398, %v507
      %v528 = vmul.f32 %v399, %v507
      %v529 = vmul.f32 %v400, %v507
      %v530 = vmul.f32 %v401, %v507
      %v531 = vmul.f32 %v402, %v507
      %v532 = vmul.f32 %v403, %v507
      %v533 = vmul.f32 %v404, %v507
      %v534 = vmul.f32 %v405, %v507
      %v535 = vmul.f32 %v406, %v507
      %v536 = vmul.f32 %v407, %v507
      %v537 = vmul.f32 %v408, %v507
      %v538 = vmul.f32 %v409, %v507
      %v539 = vmul.f32 %v410, %v507
      %v540 = vmul.f32 %v411, %v507
      %v541 = vmul.f32 %v412, %v507
      %v542 = vmul.f32 %v413, %v507
      %v543 = vmul.f32 %v414, %v507
      %v544 = vmul.f32 %v415, %v507
      %v545 = vadd.f32 %v466, %v509
      %v546 = vadd.f32 %v467, %v510
      %v547 = vadd.f32 %v468, %v511
      %v548 = vadd.f32 %v469, %v512
      %v549 = vadd.f32 %v470, %v513
      %v550 = vadd.f32 %v471, %v514
      %v551 = vadd.f32 %v472, %v515
      %v552 = vadd.f32 %v473, %v516
      %v553 = vadd.f32 %v474, %v517
      %v554 = vadd.f32 %v475, %v518
      %v555 = vadd.f32 %v476, %v519
      %v556 = vadd.f32 %v477, %v520
      %v557 = vadd.f32 %v478, %v521
      %v558 = vadd.f32 %v479, %v522
      %v559 = vadd.f32 %v480, %v523
      %v560 = vadd.f32 %v481, %v524
      %v561 = vadd.f32 %v482, %v525
      %v562 = vadd.f32 %v483, %v526
      %v563 = vadd.f32 %v484, %v527
      %v564 = vadd.f32 %v485, %v528
      %v565 = vadd.f32 %v486, %v529
      %v566 = vadd.f32 %v487, %v530
      %v567 = vadd.f32 %v488, %v531
      %v568 = vadd.f32 %v489, %v532
      %v569 = vadd.f32 %v490, %v533
      %v570 = vadd.f32 %v491, %v534
      %v571 = vadd.f32 %v492, %v535
      %v572 = vadd.f32 %v493, %v536
      %v573 = vadd.f32 %v494, %v537
      %v574 = vadd.f32 %v495, %v538
      %v575 = vadd.f32 %v496, %v539
      %v576 = vadd.f32 %v497, %v540
      %v577 = vadd.f32 %v498, %v541
      %v578 = vadd.f32 %v499, %v542
      %v579 = vadd.f32 %v500, %v543
      %v580 = vadd.f32 %v501, %v544
      %v581 = vld [vmem:[%s5] sm:$0x1]
      %v583 = vlaneseq
      %v584 = vshrl.u32 %v583, 7
      %v585 = vsub.s32 0, %v584
      %v586 = vrot.slane %v581, %v585
      %v588 = vadd.f32 %v545, %v586
      %v589 = vadd.f32 %v546, %v586
      %v590 = vadd.f32 %v547, %v586
      %v591 = vadd.f32 %v548, %v586
      %v592 = vadd.f32 %v549, %v586
      %v593 = vadd.f32 %v550, %v586
      %v594 = vadd.f32 %v551, %v586
      %v595 = vadd.f32 %v552, %v586
      %v596 = vadd.f32 %v553, %v586
      %v597 = vadd.f32 %v554, %v586
      %v598 = vadd.f32 %v555, %v586
      %v599 = vadd.f32 %v556, %v586
      %v600 = vadd.f32 %v557, %v586
      %v601 = vadd.f32 %v558, %v586
      %v602 = vadd.f32 %v559, %v586
      %v603 = vadd.f32 %v560, %v586
      %v604 = vadd.f32 %v561, %v586
      %v605 = vadd.f32 %v562, %v586
      %v606 = vadd.f32 %v563, %v586
      %v607 = vadd.f32 %v564, %v586
      %v608 = vadd.f32 %v565, %v586
      %v609 = vadd.f32 %v566, %v586
      %v610 = vadd.f32 %v567, %v586
      %v611 = vadd.f32 %v568, %v586
      %v612 = vadd.f32 %v569, %v586
      %v613 = vadd.f32 %v570, %v586
      %v614 = vadd.f32 %v571, %v586
      %v615 = vadd.f32 %v572, %v586
      %v616 = vadd.f32 %v573, %v586
      %v617 = vadd.f32 %v574, %v586
      %v618 = vadd.f32 %v575, %v586
      %v619 = vadd.f32 %v576, %v586
      %v620 = vadd.f32 %v577, %v586
      %v621 = vadd.f32 %v578, %v586
      %v622 = vadd.f32 %v579, %v586
      %v623 = vadd.f32 %v580, %v586
      %v624 = vmax.f32 %v588, 0.0
      %v625 = vmax.f32 %v589, 0.0
      %v626 = vmax.f32 %v590, 0.0
      %v627 = vmax.f32 %v591, 0.0
      %v628 = vmax.f32 %v592, 0.0
      %v629 = vmax.f32 %v593, 0.0
      %v630 = vmax.f32 %v594, 0.0
      %v631 = vmax.f32 %v595, 0.0
      %v632 = vmax.f32 %v596, 0.0
      %v633 = vmax.f32 %v597, 0.0
      %v634 = vmax.f32 %v598, 0.0
      %v635 = vmax.f32 %v599, 0.0
      %v636 = vmax.f32 %v600, 0.0
      %v637 = vmax.f32 %v601, 0.0
      %v638 = vmax.f32 %v602, 0.0
      %v639 = vmax.f32 %v603, 0.0
      %v640 = vmax.f32 %v604, 0.0
      %v641 = vmax.f32 %v605, 0.0
      %v642 = vmax.f32 %v606, 0.0
      %v643 = vmax.f32 %v607, 0.0
      %v644 = vmax.f32 %v608, 0.0
      %v645 = vmax.f32 %v609, 0.0
      %v646 = vmax.f32 %v610, 0.0
      %v647 = vmax.f32 %v611, 0.0
      %v648 = vmax.f32 %v612, 0.0
      %v649 = vmax.f32 %v613, 0.0
      %v650 = vmax.f32 %v614, 0.0
      %v651 = vmax.f32 %v615, 0.0
      %v652 = vmax.f32 %v616, 0.0
      %v653 = vmax.f32 %v617, 0.0
      %v654 = vmax.f32 %v618, 0.0
      %v655 = vmax.f32 %v619, 0.0
      %v656 = vmax.f32 %v620, 0.0
      %v657 = vmax.f32 %v621, 0.0
      %v658 = vmax.f32 %v622, 0.0
      %v659 = vmax.f32 %v623, 0.0
      %660 = vst [vmem:[%s271] sm:$0xff] %v624
      %661 = vst [vmem:[%s271 + $0x8] sm:$0xff] %v625
      %662 = vst [vmem:[%s271 + $0x10] sm:$0xff] %v626
      %663 = vst [vmem:[%s271 + $0x18] sm:$0xff] %v627
      %664 = vst [vmem:[%s271 + $0x20] sm:$0xff] %v628
      %665 = vst [vmem:[%s271 + $0x28] sm:$0xff] %v629
      %666 = vst [vmem:[%s271 + $0x30] sm:$0xff] %v630
      %667 = vst [vmem:[%s271 + $0x38] sm:$0xff] %v631
      %668 = vst [vmem:[%s271 + $0x40] sm:$0xff] %v632
      %669 = vst [vmem:[%s271 + $0x48] sm:$0xff] %v633
      %670 = vst [vmem:[%s271 + $0x50] sm:$0xff] %v634
      %671 = vst [vmem:[%s271 + $0x58] sm:$0xff] %v635
      %672 = vst [vmem:[%s271 + $0x60] sm:$0xff] %v636
      %673 = vst [vmem:[%s271 + $0x68] sm:$0xff] %v637
      %674 = vst [vmem:[%s271 + $0x70] sm:$0xff] %v638
      %675 = vst [vmem:[%s271 + $0x78] sm:$0xff] %v639
      %676 = vst [vmem:[%s271 + $0x80] sm:$0xff] %v640
      %677 = vst [vmem:[%s271 + $0x88] sm:$0xff] %v641
      %678 = vst [vmem:[%s271 + $0x90] sm:$0xff] %v642
      %679 = vst [vmem:[%s271 + $0x98] sm:$0xff] %v643
      %680 = vst [vmem:[%s271 + $0xa0] sm:$0xff] %v644
      %681 = vst [vmem:[%s271 + $0xa8] sm:$0xff] %v645
      %682 = vst [vmem:[%s271 + $0xb0] sm:$0xff] %v646
      %683 = vst [vmem:[%s271 + $0xb8] sm:$0xff] %v647
      %684 = vst [vmem:[%s271 + $0xc0] sm:$0xff] %v648
      %685 = vst [vmem:[%s271 + $0xc8] sm:$0xff] %v649
      %686 = vst [vmem:[%s271 + $0xd0] sm:$0xff] %v650
      %687 = vst [vmem:[%s271 + $0xd8] sm:$0xff] %v651
      %688 = vst [vmem:[%s271 + $0xe0] sm:$0xff] %v652
      %689 = vst [vmem:[%s271 + $0xe8] sm:$0xff] %v653
      %690 = vst [vmem:[%s271 + $0xf0] sm:$0xff] %v654
      %691 = vst [vmem:[%s271 + $0xf8] sm:$0xff] %v655
      %692 = vst [vmem:[%s271 + $0x100] sm:$0xff] %v656
      %693 = vst [vmem:[%s271 + $0x108] sm:$0xff] %v657
      %694 = vst [vmem:[%s271 + $0x110] sm:$0xff] %v658
      %695 = vst [vmem:[%s271 + $0x118] sm:$0xff] %v659
      %p696 = scmp.lt.s32.totalorder %s17, 1
      %s697 = scalar_select %p696, %s17, 1
      %s698 = smul.addr %s697, 36
      %s699 = smul.addr %s698, 8
      %s700 = scalar_lea.vmem %s6, %s699
      // Predicated region
      $region45: #{_lambda_.7} parent=43 // pred_check
        %p701 = pneg %p171
      $region46: #{_lambda_.7} parent=43 // pred_check_branch
        %703 = sbr.rel (%p701) target = $region48
      $region47: #{_lambda_.7} parent=43 // pred_region
        _
      $region48: #{_lambda_.7} parent=43 // pred_fallthru
        _
    $region44: #{_lambda_.7} parent=5 // pred_fallthru
      _
    %p704 = scmp.le.s32.totalorder 2, %s12
    // Predicated region
    $region49: #{_lambda_.7} parent=5 // pred_check
      %p705 = pneg %p704
    $region50: #{_lambda_.7} parent=5 // pred_check_branch
      %707 = sbr.rel (%p705) target = $region52
    $region51: #{_lambda_.7} parent=5 // pred_region
      %s708 = ssub.s32 %s12, 2
      // Predicated region
      $region53: #{_lambda_.7} parent=51 // pred_check
        %p709 = pneg %p177
      $region54: #{_lambda_.7} parent=51 // pred_check_branch
        %711 = sbr.rel (%p709) target = $region56
      $region55: #{_lambda_.7} parent=51 // pred_region
        %p712 = scmp.lt.s32.totalorder %s18, 1
        %s713 = scalar_select %p712, %s18, 1
        %s714 = smul.addr %s713, 36
        %s715 = smul.addr %s714, 8
        %s716 = scalar_lea.vmem %s6, %s715
      $region56: #{_lambda_.7} parent=51 // pred_fallthru
        _
    $region52: #{_lambda_.7} parent=5 // pred_fallthru
      _
  $region6: #{_lambda_.7} parent=0 // loop_footer
    %s16 = sadd.s32 1, %s12
  $region7: #{_lambda_.7} parent=0 // loop_footer_branch
    %11 = sbr.rel target = $region3
  $region8: #{_lambda_.7} parent=0 // loop_exit
    _

// kernel: _lambda_.6
$region0: #{_lambda_.6}
  #allocation0 [shape = 'u32[]', space=smem, size = 0x4, offset = 0x4, fixed_abs, tag = 'smem constant byte address 0x4 - core index']
  #allocation1 [shape = 'u32[144,128]{1,0:T(1,128)}', space=vmem, size = 0x12000, scoped, tag = 'internal scratch']
  #allocation2 [shape = 'f32[288,128]{1,0:T(8,128)}', space=vmem, size = 0x24000, scoped, tag = 'scratch operand']
  %s0 = inlined_call_operand.vmem [shape: f32[2,342,4], index: 0, kind: input, shape index: {}]
  %s1 = inlined_call_operand.vmem [shape: bf16[1,4,128], index: 1, kind: input, shape index: {}]
  %s2 = inlined_call_operand.vmem [shape: f32[1,128], index: 2, kind: input, shape index: {}]
  %s3 = inlined_call_operand.vmem [shape: f32[1,128], index: 3, kind: input, shape index: {}]
  %s4 = inlined_call_operand.vmem [shape: f32[1,128], index: 4, kind: input, shape index: {}]
  %s5 = inlined_call_operand.vmem [shape: bf16[2,288,128], index: 5, kind: output, shape index: {0}]
  %s6 = inlined_call_operand.vmem [shape: f32[2,2,128], index: 6, kind: output, shape index: {1}]
  %7 = xla_tuple %s5, %s6
  %s8 = sld [smem:[#allocation0]]
  $region61: #{_lambda_.6} parent=0
    _
  %s10 = ssub.s32 1, %s8
  %s11 = scalar_select 0, %s10, %s8
  loop: start=0, step=1, limit=4
  $region2: #{_lambda_.6} parent=0 // loop_pre_header
    _
  $region3: #{_lambda_.6} parent=0 // loop_header
    %s13 = sphi 0, %s17
    %p14 = scmp.ge.s32.totalorder %s13, 4
    %s23 = sphi 0, %s25
    %s26 = sphi 0, %s23
    %s27 = sphi 0, %s26
    %s43 = sphi 0, %s27
    %s47 = sphi 0, %s47
    %s49 = sphi 0, %s47
    %s50 = sphi 0, %s49
    %s64 = sphi 0, %s50
    %s68 = sphi 0, %s68
    %s70 = sphi 0, %s68
    %s71 = sphi 0, %s70
    %s85 = sphi 0, %s71
    %s89 = sphi 0, %s89
    %s91 = sphi 0, %s89
    %s92 = sphi 0, %s91
    %s106 = sphi 0, %s92
    %s110 = sphi 0, %s110
    %s112 = sphi 0, %s110
    %s113 = sphi 0, %s112
    %s127 = sphi 0, %s113
    %s133 = sphi 0, %s135
    %s136 = sphi 0, %s133
    %s137 = sphi 0, %s136
    %s153 = sphi 0, %s137
    %s159 = sphi 0, %s161
    %s162 = sphi 0, %s159
    %s163 = sphi 0, %s162
    %s179 = sphi 0, %s163
  $region4: #{_lambda_.6} parent=0 // loop_header_branch
    %16 = sbr.rel (%p14) target = $region8
  $region5: #{_lambda_.6} parent=0 // loop_body
    %s18 = ssub.s32 %s13, 1
    %s19 = ssub.s32 %s13, 2
    %s20 = sadd.s32 %s13, 1
    %s21 = ssub.s32 %s13, %s20
    %p22 = scmp.eq.s32.totalorder %s21, 0
    %s24 = sadd.s32 %s23, 1
    %s25 = scalar_select %p22, %s23, %s24
    %p28 = pneg %p22
    %p29 = scmp.eq.s32.totalorder %s13, 1
    %p30 = por %p28, %p29
    %p31 = scmp.ne.s32.totalorder %s23, %s26
    %p32 = scmp.eq.s32.totalorder %s13, 0
    %p33 = por %p31, %p32
    %p34 = scmp.ne.s32.totalorder %s23, %s26
    %p35 = scmp.eq.s32.totalorder %s18, 1
    %p36 = por %p34, %p35
    %p37 = scmp.ne.s32.totalorder %s26, %s27
    %p38 = scmp.eq.s32.totalorder %s18, 0
    %p39 = por %p37, %p38
    %p40 = scmp.ne.s32.totalorder %s26, %s27
    %p41 = scmp.eq.s32.totalorder %s19, 1
    %p42 = por %p40, %p41
    %p44 = scmp.ne.s32.totalorder %s27, %s43
    %p45 = scmp.eq.s32.totalorder %s19, 0
    %p46 = por %p44, %p45
    %s48 = sadd.s32 %s47, 1
    %p51 = scmp.eq.s32.totalorder %s13, 1
    %p52 = scmp.ne.s32.totalorder %s47, %s49
    %p53 = scmp.eq.s32.totalorder %s13, 0
    %p54 = por %p52, %p53
    %p55 = scmp.ne.s32.totalorder %s47, %s49
    %p56 = scmp.eq.s32.totalorder %s18, 1
    %p57 = por %p55, %p56
    %p58 = scmp.ne.s32.totalorder %s49, %s50
    %p59 = scmp.eq.s32.totalorder %s18, 0
    %p60 = por %p58, %p59
    %p61 = scmp.ne.s32.totalorder %s49, %s50
    %p62 = scmp.eq.s32.totalorder %s19, 1
    %p63 = por %p61, %p62
    %p65 = scmp.ne.s32.totalorder %s50, %s64
    %p66 = scmp.eq.s32.totalorder %s19, 0
    %p67 = por %p65, %p66
    %s69 = sadd.s32 %s68, 1
    %p72 = scmp.eq.s32.totalorder %s13, 1
    %p73 = scmp.ne.s32.totalorder %s68, %s70
    %p74 = scmp.eq.s32.totalorder %s13, 0
    %p75 = por %p73, %p74
    %p76 = scmp.ne.s32.totalorder %s68, %s70
    %p77 = scmp.eq.s32.totalorder %s18, 1
    %p78 = por %p76, %p77
    %p79 = scmp.ne.s32.totalorder %s70, %s71
    %p80 = scmp.eq.s32.totalorder %s18, 0
    %p81 = por %p79, %p80
    %p82 = scmp.ne.s32.totalorder %s70, %s71
    %p83 = scmp.eq.s32.totalorder %s19, 1
    %p84 = por %p82, %p83
    %p86 = scmp.ne.s32.totalorder %s71, %s85
    %p87 = scmp.eq.s32.totalorder %s19, 0
    %p88 = por %p86, %p87
    %s90 = sadd.s32 %s89, 1
    %p93 = scmp.eq.s32.totalorder %s13, 1
    %p94 = scmp.ne.s32.totalorder %s89, %s91
    %p95 = scmp.eq.s32.totalorder %s13, 0
    %p96 = por %p94, %p95
    %p97 = scmp.ne.s32.totalorder %s89, %s91
    %p98 = scmp.eq.s32.totalorder %s18, 1
    %p99 = por %p97, %p98
    %p100 = scmp.ne.s32.totalorder %s91, %s92
    %p101 = scmp.eq.s32.totalorder %s18, 0
    %p102 = por %p100, %p101
    %p103 = scmp.ne.s32.totalorder %s91, %s92
    %p104 = scmp.eq.s32.totalorder %s19, 1
    %p105 = por %p103, %p104
    %p107 = scmp.ne.s32.totalorder %s92, %s106
    %p108 = scmp.eq.s32.totalorder %s19, 0
    %p109 = por %p107, %p108
    %s111 = sadd.s32 %s110, 1
    %p114 = scmp.eq.s32.totalorder %s13, 1
    %p115 = scmp.ne.s32.totalorder %s110, %s112
    %p116 = scmp.eq.s32.totalorder %s13, 0
    %p117 = por %p115, %p116
    %p118 = scmp.ne.s32.totalorder %s110, %s112
    %p119 = scmp.eq.s32.totalorder %s18, 1
    %p120 = por %p118, %p119
    %p121 = scmp.ne.s32.totalorder %s112, %s113
    %p122 = scmp.eq.s32.totalorder %s18, 0
    %p123 = por %p121, %p122
    %p124 = scmp.ne.s32.totalorder %s112, %s113
    %p125 = scmp.eq.s32.totalorder %s19, 1
    %p126 = por %p124, %p125
    %p128 = scmp.ne.s32.totalorder %s113, %s127
    %p129 = scmp.eq.s32.totalorder %s19, 0
    %p130 = por %p128, %p129
    %s131 = ssub.s32 %s13, %s20
    %p132 = scmp.eq.s32.totalorder %s131, 0
    %s134 = sadd.s32 %s133, 1
    %s135 = scalar_select %p132, %s133, %s134
    %p138 = pneg %p132
    %p139 = scmp.eq.s32.totalorder %s13, 1
    %p140 = por %p138, %p139
    %p141 = scmp.ne.s32.totalorder %s133, %s136
    %p142 = scmp.eq.s32.totalorder %s13, 0
    %p143 = por %p141, %p142
    %p144 = scmp.ne.s32.totalorder %s133, %s136
    %p145 = scmp.eq.s32.totalorder %s18, 1
    %p146 = por %p144, %p145
    %p147 = scmp.ne.s32.totalorder %s136, %s137
    %p148 = scmp.eq.s32.totalorder %s18, 0
    %p149 = por %p147, %p148
    %p150 = scmp.ne.s32.totalorder %s136, %s137
    %p151 = scmp.eq.s32.totalorder %s19, 1
    %p152 = por %p150, %p151
    %p154 = scmp.ne.s32.totalorder %s137, %s153
    %p155 = scmp.eq.s32.totalorder %s19, 0
    %p156 = por %p154, %p155
    %s157 = ssub.s32 %s13, %s20
    %p158 = scmp.eq.s32.totalorder %s157, 0
    %s160 = sadd.s32 %s159, 1
    %s161 = scalar_select %p158, %s159, %s160
    %p164 = pneg %p158
    %p165 = scmp.eq.s32.totalorder %s13, 1
    %p166 = por %p164, %p165
    %p167 = scmp.ne.s32.totalorder %s159, %s162
    %p168 = scmp.eq.s32.totalorder %s13, 0
    %p169 = por %p167, %p168
    %p170 = scmp.ne.s32.totalorder %s159, %s162
    %p171 = scmp.eq.s32.totalorder %s18, 1
    %p172 = por %p170, %p171
    %p173 = scmp.ne.s32.totalorder %s162, %s163
    %p174 = scmp.eq.s32.totalorder %s18, 0
    %p175 = por %p173, %p174
    %p176 = scmp.ne.s32.totalorder %s162, %s163
    %p177 = scmp.eq.s32.totalorder %s19, 1
    %p178 = por %p176, %p177
    %p180 = scmp.ne.s32.totalorder %s163, %s179
    %p181 = scmp.eq.s32.totalorder %s19, 0
    %p182 = por %p180, %p181
    %p183 = scmp.le.s32.totalorder 1, %s13
    %p184 = scmp.lt.s32.totalorder %s13, 3
    %p185 = pnand %p183, %p184
    %p186 = pneg %p185
    // Predicated region
    $region9: #{_lambda_.6} parent=5 // pred_check
      _
    $region10: #{_lambda_.6} parent=5 // pred_check_branch
      %188 = sbr.rel (%p185) target = $region12
    $region11: #{_lambda_.6} parent=5 // pred_region
      %s189 = ssub.s32 %s13, 1
      // Predicated region
      $region13: #{_lambda_.6} parent=11 // pred_check
        %p190 = pneg %p60
      $region14: #{_lambda_.6} parent=11 // pred_check_branch
        %192 = sbr.rel (%p190) target = $region16
      $region15: #{_lambda_.6} parent=11 // pred_region
        _
      $region16: #{_lambda_.6} parent=11 // pred_fallthru
        _
      // Predicated region
      $region17: #{_lambda_.6} parent=11 // pred_check
        %p193 = pneg %p81
      $region18: #{_lambda_.6} parent=11 // pred_check_branch
        %195 = sbr.rel (%p193) target = $region20
      $region19: #{_lambda_.6} parent=11 // pred_region
        _
      $region20: #{_lambda_.6} parent=11 // pred_fallthru
        _
      // Predicated region
      $region21: #{_lambda_.6} parent=11 // pred_check
        %p196 = pneg %p102
      $region22: #{_lambda_.6} parent=11 // pred_check_branch
        %198 = sbr.rel (%p196) target = $region24
      $region23: #{_lambda_.6} parent=11 // pred_region
        _
      $region24: #{_lambda_.6} parent=11 // pred_fallthru
        _
      // Predicated region
      $region25: #{_lambda_.6} parent=11 // pred_check
        %p199 = pneg %p123
      $region26: #{_lambda_.6} parent=11 // pred_check_branch
        %201 = sbr.rel (%p199) target = $region28
      $region27: #{_lambda_.6} parent=11 // pred_region
        _
      $region28: #{_lambda_.6} parent=11 // pred_fallthru
        _
    $region12: #{_lambda_.6} parent=5 // pred_fallthru
      _
    %p202 = scmp.lt.s32.totalorder %s13, 2
    // Predicated region
    $region29: #{_lambda_.6} parent=5 // pred_check
      %p203 = pneg %p202
    $region30: #{_lambda_.6} parent=5 // pred_check_branch
      %205 = sbr.rel (%p203) target = $region32
    $region31: #{_lambda_.6} parent=5 // pred_region
      // Predicated region
      $region33: #{_lambda_.6} parent=31 // pred_check
        %p206 = pneg %p33
      $region34: #{_lambda_.6} parent=31 // pred_check_branch
        %208 = sbr.rel (%p206) target = $region36
      $region35: #{_lambda_.6} parent=31 // pred_region
        %p209 = scmp.lt.s32.totalorder %s13, 1
        %s210 = scalar_select %p209, %s13, 1
        %s211 = smul.addr %s210, 43
        %s212 = smul.addr %s211, 8
        %s213 = scalar_lea.vmem %s0, %s212
      $region36: #{_lambda_.6} parent=31 // pred_fallthru
        _
    $region32: #{_lambda_.6} parent=5 // pred_fallthru
      _
    %p214 = scmp.le.s32.totalorder 1, %s13
    %p215 = scmp.lt.s32.totalorder %s13, 3
    %p216 = pnand %p214, %p215
    %p217 = pneg %p216
    // Predicated region
    $region37: #{_lambda_.6} parent=5 // pred_check
      _
    $region38: #{_lambda_.6} parent=5 // pred_check_branch
      %219 = sbr.rel (%p216) target = $region40
    $region39: #{_lambda_.6} parent=5 // pred_region
      %s220 = ssub.s32 %s13, 1
      %p221 = scmp.lt.s32.totalorder %s18, 1
      %s222 = scalar_select %p221, %s18, 1
      %s223 = smul.addr %s222, 43
      %s224 = smul.addr %s223, 8
      %s225 = scalar_lea.vmem %s0, %s224
      %p226 = pneg %p39
      %p227 = pneg %p36
      %p228 = pneg %p60
      %p229 = pneg %p57
      %p230 = pneg %p81
      %p231 = pneg %p78
      %p232 = pneg %p102
      %p233 = pneg %p99
      %p234 = pneg %p123
      %p235 = pneg %p120
      %p236 = pneg %p149
      %p237 = pneg %p146
      %p238 = scmp.lt.s32.totalorder %s18, 1
      %s239 = scalar_select %p238, %s18, 1
      %s240 = smul.addr %s239, 36
      %s241 = smul.addr %s240, 4
      %s242 = scalar_lea.vmem %s5, %s241
      %p243 = pneg %p175
      %p244 = pneg %p172
      %p245 = scmp.lt.s32.totalorder %s18, 1
      %s246 = scalar_select %p245, %s18, 1
      %s247 = smul.addr %s246, 2
      %s248 = scalar_lea.vmem %s6, %s247
      %p249 = scmp.lt.s32.totalorder %s18, 1
      %s250 = scalar_select %p249, %s18, 1
      %s251 = smul.addr %s250, 43
      %s252 = smul.addr %s251, 8
      %s253 = scalar_lea.vmem %s0, %s252
      %p254 = scmp.lt.s32.totalorder %s18, 1
      %s255 = scalar_select %p254, %s18, 1
      %s256 = smul.addr %s255, 36
      %s257 = smul.addr %s256, 4
      %s258 = scalar_lea.vmem %s5, %s257
      %p259 = scmp.lt.s32.totalorder %s18, 1
      %s260 = scalar_select %p259, %s18, 1
      %s261 = smul.addr %s260, 2
      %s262 = scalar_lea.vmem %s6, %s261
      %v264 = vld [vmem:[%s253 + $0x10] sm:$0xff]
      %v265 = vld [vmem:[%s253 + $0x18] sm:$0xff]
      %v266 = vld [vmem:[%s253 + $0x20] sm:$0xff]
      %v267 = vld [vmem:[%s253 + $0x28] sm:$0xff]
      %v268 = vld [vmem:[%s253 + $0x30] sm:$0xff]
      %v269 = vld [vmem:[%s253 + $0x38] sm:$0xff]
      %v270 = vld [vmem:[%s253 + $0x40] sm:$0xff]
      %v271 = vld [vmem:[%s253 + $0x48] sm:$0xff]
      %v272 = vld [vmem:[%s253 + $0x50] sm:$0xff]
      %v273 = vld [vmem:[%s253 + $0x58] sm:$0xff]
      %v274 = vld [vmem:[%s253 + $0x60] sm:$0xff]
      %v275 = vld [vmem:[%s253 + $0x68] sm:$0xff]
      %v276 = vld [vmem:[%s253 + $0x70] sm:$0xff]
      %v277 = vld [vmem:[%s253 + $0x78] sm:$0xff]
      %v278 = vld [vmem:[%s253 + $0x80] sm:$0xff]
      %v279 = vld [vmem:[%s253 + $0x88] sm:$0xff]
      %v280 = vld [vmem:[%s253 + $0x90] sm:$0xff]
      %v281 = vld [vmem:[%s253 + $0x98] sm:$0xff]
      %v282 = vld [vmem:[%s253 + $0xa0] sm:$0xff]
      %v283 = vld [vmem:[%s253 + $0xa8] sm:$0xff]
      %v284 = vld [vmem:[%s253 + $0xb0] sm:$0xff]
      %v285 = vld [vmem:[%s253 + $0xb8] sm:$0xff]
      %v286 = vld [vmem:[%s253 + $0xc0] sm:$0xff]
      %v287 = vld [vmem:[%s253 + $0xc8] sm:$0xff]
      %v288 = vld [vmem:[%s253 + $0xd0] sm:$0xff]
      %v289 = vld [vmem:[%s253 + $0xd8] sm:$0xff]
      %v290 = vld [vmem:[%s253 + $0xe0] sm:$0xff]
      %v291 = vld [vmem:[%s253 + $0xe8] sm:$0xff]
      %v292 = vld [vmem:[%s253 + $0xf0] sm:$0xff]
      %v293 = vld [vmem:[%s253 + $0xf8] sm:$0xff]
      %v294 = vld [vmem:[%s253 + $0x100] sm:$0xff]
      %v295 = vld [vmem:[%s253 + $0x108] sm:$0xff]
      %v296 = vld [vmem:[%s253 + $0x110] sm:$0xff]
      %v297 = vld [vmem:[%s253 + $0x118] sm:$0xff]
      %v298 = vld [vmem:[%s253 + $0x120] sm:$0xff]
      %v299 = vld [vmem:[%s253 + $0x128] sm:$0xff]
      %v300 = vld [vmem:[%s253 + $0x130] sm:$0xff]
      %v301 = vld [vmem:[%s253 + $0x138] sm:$0xff]
      %v302 = vpack.c.bf16 %v265, %v264
      %v303 = vpack.c.bf16 %v267, %v266
      %v304 = vpack.c.bf16 %v269, %v268
      %v305 = vpack.c.bf16 %v271, %v270
      %v306 = vpack.c.bf16 %v273, %v272
      %v307 = vpack.c.bf16 %v275, %v274
      %v308 = vpack.c.bf16 %v277, %v276
      %v309 = vpack.c.bf16 %v279, %v278
      %v310 = vpack.c.bf16 %v281, %v280
      %v311 = vpack.c.bf16 %v283, %v282
      %v312 = vpack.c.bf16 %v285, %v284
      %v313 = vpack.c.bf16 %v287, %v286
      %v314 = vpack.c.bf16 %v289, %v288
      %v315 = vpack.c.bf16 %v291, %v290
      %v316 = vpack.c.bf16 %v293, %v292
      %v317 = vpack.c.bf16 %v295, %v294
      %v318 = vpack.c.bf16 %v297, %v296
      %v319 = vpack.c.bf16 %v299, %v298
      %v320 = vpack.c.bf16 %v301, %v300
      %v321 = vld [vmem:[%s1] sm:$0x3]
      %v322 = vld [vmem:[%s2] sm:$0x1]
      %v324 = vlaneseq
      %v325 = vshrl.u32 %v324, 7
      %v326 = vsub.s32 0, %v325
      %v327 = vrot.slane %v322, %v326
      %vm329 = vsmask.f32 6400
      %v331 = vshrl.u32 %v302, 16
      %v333 = vrot.slane %v331, 1
      %v334 = vshll.u32 %v302, 16
      %v336 = vrot.slane %v334, 2
      %v337 = vor.u32 %v333, %v336
      %v339 = vshrl.u32 %v303, 16
      %v341 = vrot.slane %v339, 1
      %v342 = vshll.u32 %v303, 16
      %v344 = vrot.slane %v342, 2
      %v345 = vor.u32 %v341, %v344
      %v346 = vsel %vm329, %v337, %v345
      %v348 = vshrl.u32 %v304, 16
      %v350 = vrot.slane %v348, 1
      %v351 = vshll.u32 %v304, 16
      %v353 = vrot.slane %v351, 2
      %v354 = vor.u32 %v350, %v353
      %v355 = vsel %vm329, %v345, %v354
      %v357 = vshrl.u32 %v305, 16
      %v359 = vrot.slane %v357, 1
      %v360 = vshll.u32 %v305, 16
      %v362 = vrot.slane %v360, 2
      %v363 = vor.u32 %v359, %v362
      %v364 = vsel %vm329, %v354, %v363
      %v366 = vshrl.u32 %v306, 16
      %v368 = vrot.slane %v366, 1
      %v369 = vshll.u32 %v306, 16
      %v371 = vrot.slane %v369, 2
      %v372 = vor.u32 %v368, %v371
      %v373 = vsel %vm329, %v363, %v372
      %v375 = vshrl.u32 %v307, 16
      %v377 = vrot.slane %v375, 1
      %v378 = vshll.u32 %v307, 16
      %v380 = vrot.slane %v378, 2
      %v381 = vor.u32 %v377, %v380
      %v382 = vsel %vm329, %v372, %v381
      %v384 = vshrl.u32 %v308, 16
      %v386 = vrot.slane %v384, 1
      %v387 = vshll.u32 %v308, 16
      %v389 = vrot.slane %v387, 2
      %v390 = vor.u32 %v386, %v389
      %v391 = vsel %vm329, %v381, %v390
      %v393 = vshrl.u32 %v309, 16
      %v395 = vrot.slane %v393, 1
      %v396 = vshll.u32 %v309, 16
      %v398 = vrot.slane %v396, 2
      %v399 = vor.u32 %v395, %v398
      %v400 = vsel %vm329, %v390, %v399
      %v402 = vshrl.u32 %v310, 16
      %v404 = vrot.slane %v402, 1
      %v405 = vshll.u32 %v310, 16
      %v407 = vrot.slane %v405, 2
      %v408 = vor.u32 %v404, %v407
      %v409 = vsel %vm329, %v399, %v408
      %v411 = vshrl.u32 %v311, 16
      %v413 = vrot.slane %v411, 1
      %v414 = vshll.u32 %v311, 16
      %v416 = vrot.slane %v414, 2
      %v417 = vor.u32 %v413, %v416
      %v418 = vsel %vm329, %v408, %v417
      %v420 = vshrl.u32 %v312, 16
      %v422 = vrot.slane %v420, 1
      %v423 = vshll.u32 %v312, 16
      %v425 = vrot.slane %v423, 2
      %v426 = vor.u32 %v422, %v425
      %v427 = vsel %vm329, %v417, %v426
      %v429 = vshrl.u32 %v313, 16
      %v431 = vrot.slane %v429, 1
      %v432 = vshll.u32 %v313, 16
      %v434 = vrot.slane %v432, 2
      %v435 = vor.u32 %v431, %v434
      %v436 = vsel %vm329, %v426, %v435
      %v438 = vshrl.u32 %v314, 16
      %v440 = vrot.slane %v438, 1
      %v441 = vshll.u32 %v314, 16
      %v443 = vrot.slane %v441, 2
      %v444 = vor.u32 %v440, %v443
      %v445 = vsel %vm329, %v435, %v444
      %v447 = vshrl.u32 %v315, 16
      %v449 = vrot.slane %v447, 1
      %v450 = vshll.u32 %v315, 16
      %v452 = vrot.slane %v450, 2
      %v453 = vor.u32 %v449, %v452
      %v454 = vsel %vm329, %v444, %v453
      %v456 = vshrl.u32 %v316, 16
      %v458 = vrot.slane %v456, 1
      %v459 = vshll.u32 %v316, 16
      %v461 = vrot.slane %v459, 2
      %v462 = vor.u32 %v458, %v461
      %v463 = vsel %vm329, %v453, %v462
      %v465 = vshrl.u32 %v317, 16
      %v467 = vrot.slane %v465, 1
      %v468 = vshll.u32 %v317, 16
      %v470 = vrot.slane %v468, 2
      %v471 = vor.u32 %v467, %v470
      %v472 = vsel %vm329, %v462, %v471
      %v474 = vshrl.u32 %v318, 16
      %v476 = vrot.slane %v474, 1
      %v477 = vshll.u32 %v318, 16
      %v479 = vrot.slane %v477, 2
      %v480 = vor.u32 %v476, %v479
      %v481 = vsel %vm329, %v471, %v480
      %v483 = vshrl.u32 %v319, 16
      %v485 = vrot.slane %v483, 1
      %v486 = vshll.u32 %v319, 16
      %v488 = vrot.slane %v486, 2
      %v489 = vor.u32 %v485, %v488
      %v490 = vsel %vm329, %v480, %v489
      %v492 = vshrl.u32 %v320, 16
      %v494 = vrot.slane %v492, 1
      %v495 = vshll.u32 %v320, 16
      %v497 = vrot.slane %v495, 2
      %v498 = vor.u32 %v494, %v497
      %v499 = vsel %vm329, %v489, %v498
      %vm500 = vcmask 31744
      %v502 = vsel %vm500, %v346, 0
      %v505 = vsel %vm500, %v355, 0
      %v508 = vsel %vm500, %v364, 0
      %v511 = vsel %vm500, %v373, 0
      %v514 = vsel %vm500, %v382, 0
      %v517 = vsel %vm500, %v391, 0
      %v520 = vsel %vm500, %v400, 0
      %v523 = vsel %vm500, %v409, 0
      %v526 = vsel %vm500, %v418, 0
      %v529 = vsel %vm500, %v427, 0
      %v532 = vsel %vm500, %v436, 0
      %v535 = vsel %vm500, %v445, 0
      %v538 = vsel %vm500, %v454, 0
      %v541 = vsel %vm500, %v463, 0
      %v544 = vsel %vm500, %v472, 0
      %v547 = vsel %vm500, %v481, 0
      %v550 = vsel %vm500, %v490, 0
      %v553 = vsel %vm500, %v499, 0
      %vm555 = vcmask 1041408
      %v557 = vsel %vm555, %v321, 0
      %559 = vmatprep.subr.bf16.mxu0 0
      %560 = vmatpush1.bf16.msra.mxu0 %v557
      %561 = vmatprep.subr.bf16.mxu0 0
      %562 = vmatpush1.bf16.msra.mxu0 0
      %563 = vmatprep.subr.bf16.mxu0 0
      %564 = vmatpush1.bf16.msra.mxu0 0
      %565 = vmatprep.subr.bf16.mxu0 0
      %566 = vmatpush1.bf16.msra.mxu0 0
      %567 = vmatprep.subr.bf16.mxu0 0
      %568 = vmatpush1.bf16.msra.mxu0 0
      %569 = vmatprep.subr.bf16.mxu0 0
      %570 = vmatpush1.bf16.msra.mxu0 0
      %571 = vmatprep.subr.bf16.mxu0 0
      %572 = vmatpush1.bf16.msra.mxu0 0
      %573 = vmatprep.subr.bf16.mxu0 0
      %574 = vmatpush1.bf16.msra.mxu0 0
      %575 = vmatprep.subr.bf16.mxu0 0
      %576 = vmatpush1.bf16.msra.mxu0 0
      %577 = vmatprep.subr.bf16.mxu0 0
      %578 = vmatpush1.bf16.msra.mxu0 0
      %579 = vmatprep.subr.bf16.mxu0 0
      %580 = vmatpush1.bf16.msra.mxu0 0
      %581 = vmatprep.subr.bf16.mxu0 0
      %582 = vmatpush1.bf16.msra.mxu0 0
      %583 = vmatprep.subr.bf16.mxu0 0
      %584 = vmatpush1.bf16.msra.mxu0 0
      %585 = vmatprep.subr.bf16.mxu0 0
      %586 = vmatpush1.bf16.msra.mxu0 0
      %587 = vmatprep.subr.bf16.mxu0 0
      %588 = vmatpush1.bf16.msra.mxu0 0
      %589 = vmatprep.subr.bf16.mxu0 0
      %590 = vmatpush1.bf16.msra.mxu0 0
      %591 = vmatprep.mubr.bf16.mxu0 0
      %592 = vmatmul.mubr.bf16.gmra.mrb[0].mxu0 %v502
      %v593 = vpop.f32.mrb[0].mxu0
      %v594 = vadd.f32 %v327, %v593
      %v595 = vpop.f32.mrb[0].mxu0
      %v596 = vpop.f32.mrb[0].mxu0
      %v597 = vadd.f32 %v327, %v596
      %v598 = vpop.f32.mrb[0].mxu0
      %599 = vmatprep.mubr.bf16.mxu0 0
      %600 = vmatmul.mubr.bf16.gmra.mrb[0].mxu0 %v505
      %v601 = vpop.f32.mrb[0].mxu0
      %v602 = vadd.f32 %v327, %v601
      %v603 = vpop.f32.mrb[0].mxu0
      %v604 = vpop.f32.mrb[0].mxu0
      %v605 = vadd.f32 %v327, %v604
      %v606 = vpop.f32.mrb[0].mxu0
      %607 = vmatprep.mubr.bf16.mxu0 0
      %608 = vmatmul.mubr.bf16.gmra.mrb[0].mxu0 %v508
      %v609 = vpop.f32.mrb[0].mxu0
      %v610 = vadd.f32 %v327, %v609
      %v611 = vpop.f32.mrb[0].mxu0
      %v612 = vpop.f32.mrb[0].mxu0
      %v613 = vadd.f32 %v327, %v612
      %v614 = vpop.f32.mrb[0].mxu0
      %615 = vmatprep.mubr.bf16.mxu0 0
      %616 = vmatmul.mubr.bf16.gmra.mrb[0].mxu0 %v511
      %v617 = vpop.f32.mrb[0].mxu0
      %v618 = vadd.f32 %v327, %v617
      %v619 = vpop.f32.mrb[0].mxu0
      %v620 = vpop.f32.mrb[0].mxu0
      %v621 = vadd.f32 %v327, %v620
      %v622 = vpop.f32.mrb[0].mxu0
      %623 = vmatprep.mubr.bf16.mxu0 0
      %624 = vmatmul.mubr.bf16.gmra.mrb[0].mxu0 %v514
      %v625 = vpop.f32.mrb[0].mxu0
      %v626 = vadd.f32 %v327, %v625
      %v627 = vpop.f32.mrb[0].mxu0
      %v628 = vpop.f32.mrb[0].mxu0
      %v629 = vadd.f32 %v327, %v628
      %v630 = vpop.f32.mrb[0].mxu0
      %631 = vmatprep.mubr.bf16.mxu0 0
      %632 = vmatmul.mubr.bf16.gmra.mrb[0].mxu0 %v517
      %v633 = vpop.f32.mrb[0].mxu0
      %v634 = vadd.f32 %v327, %v633
      %v635 = vpop.f32.mrb[0].mxu0
      %v636 = vpop.f32.mrb[0].mxu0
      %v637 = vadd.f32 %v327, %v636
      %v638 = vpop.f32.mrb[0].mxu0
      %639 = vmatprep.mubr.bf16.mxu0 0
      %640 = vmatmul.mubr.bf16.gmra.mrb[0].mxu0 %v520
      %v641 = vpop.f32.mrb[0].mxu0
      %v642 = vadd.f32 %v327, %v641
      %v643 = vpop.f32.mrb[0].mxu0
      %v644 = vpop.f32.mrb[0].mxu0
      %v645 = vadd.f32 %v327, %v644
      %v646 = vpop.f32.mrb[0].mxu0
      %647 = vmatprep.mubr.bf16.mxu0 0
      %648 = vmatmul.mubr.bf16.gmra.mrb[0].mxu0 %v523
      %v649 = vpop.f32.mrb[0].mxu0
      %v650 = vadd.f32 %v327, %v649
      %v651 = vpop.f32.mrb[0].mxu0
      %v652 = vpop.f32.mrb[0].mxu0
      %v653 = vadd.f32 %v327, %v652
      %v654 = vpop.f32.mrb[0].mxu0
      %655 = vmatprep.mubr.bf16.mxu0 0
      %656 = vmatmul.mubr.bf16.gmra.mrb[0].mxu0 %v526
      %v657 = vpop.f32.mrb[0].mxu0
      %v658 = vadd.f32 %v327, %v657
      %v659 = vpop.f32.mrb[0].mxu0
      %v660 = vpop.f32.mrb[0].mxu0
      %v661 = vadd.f32 %v327, %v660
      %v662 = vpop.f32.mrb[0].mxu0
      %663 = vmatprep.mubr.bf16.mxu0 0
      %664 = vmatmul.mubr.bf16.gmra.mrb[0].mxu0 %v529
      %v665 = vpop.f32.mrb[0].mxu0
      %v666 = vadd.f32 %v327, %v665
      %v667 = vpop.f32.mrb[0].mxu0
      %v668 = vpop.f32.mrb[0].mxu0
      %v669 = vadd.f32 %v327, %v668
      %v670 = vpop.f32.mrb[0].mxu0
      %671 = vmatprep.mubr.bf16.mxu0 0
      %672 = vmatmul.mubr.bf16.gmra.mrb[0].mxu0 %v532
      %v673 = vpop.f32.mrb[0].mxu0
      %v674 = vadd.f32 %v327, %v673
      %v675 = vpop.f32.mrb[0].mxu0
      %v676 = vpop.f32.mrb[0].mxu0
      %v677 = vadd.f32 %v327, %v676
      %v678 = vpop.f32.mrb[0].mxu0
      %679 = vmatprep.mubr.bf16.mxu0 0
      %680 = vmatmul.mubr.bf16.gmra.mrb[0].mxu0 %v535
      %v681 = vpop.f32.mrb[0].mxu0
      %v682 = vadd.f32 %v327, %v681
      %v683 = vpop.f32.mrb[0].mxu0
      %v684 = vpop.f32.mrb[0].mxu0
      %v685 = vadd.f32 %v327, %v684
      %v686 = vpop.f32.mrb[0].mxu0
      %687 = vmatprep.mubr.bf16.mxu0 0
      %688 = vmatmul.mubr.bf16.gmra.mrb[0].mxu0 %v538
      %v689 = vpop.f32.mrb[0].mxu0
      %v690 = vadd.f32 %v327, %v689
      %v691 = vpop.f32.mrb[0].mxu0
      %v692 = vpop.f32.mrb[0].mxu0
      %v693 = vadd.f32 %v327, %v692
      %v694 = vpop.f32.mrb[0].mxu0
      %695 = vmatprep.mubr.bf16.mxu0 0
      %696 = vmatmul.mubr.bf16.gmra.mrb[0].mxu0 %v541
      %v697 = vpop.f32.mrb[0].mxu0
      %v698 = vadd.f32 %v327, %v697
      %v699 = vpop.f32.mrb[0].mxu0
      %v700 = vpop.f32.mrb[0].mxu0
      %v701 = vadd.f32 %v327, %v700
      %v702 = vpop.f32.mrb[0].mxu0
      %703 = vmatprep.mubr.bf16.mxu0 0
      %704 = vmatmul.mubr.bf16.gmra.mrb[0].mxu0 %v544
      %v705 = vpop.f32.mrb[0].mxu0
      %v706 = vadd.f32 %v327, %v705
      %v707 = vpop.f32.mrb[0].mxu0
      %v708 = vpop.f32.mrb[0].mxu0
      %v709 = vadd.f32 %v327, %v708
      %v710 = vpop.f32.mrb[0].mxu0
      %711 = vmatprep.mubr.bf16.mxu0 0
      %712 = vmatmul.mubr.bf16.gmra.mrb[0].mxu0 %v547
      %v713 = vpop.f32.mrb[0].mxu0
      %v714 = vadd.f32 %v327, %v713
      %v715 = vpop.f32.mrb[0].mxu0
      %v716 = vpop.f32.mrb[0].mxu0
      %v717 = vadd.f32 %v327, %v716
      %v718 = vpop.f32.mrb[0].mxu0
      %719 = vmatprep.mubr.bf16.mxu0 0
      %720 = vmatmul.mubr.bf16.gmra.mrb[0].mxu0 %v550
      %v721 = vpop.f32.mrb[0].mxu0
      %v722 = vadd.f32 %v327, %v721
      %v723 = vpop.f32.mrb[0].mxu0
      %v724 = vpop.f32.mrb[0].mxu0
      %v725 = vadd.f32 %v327, %v724
      %v726 = vpop.f32.mrb[0].mxu0
      %727 = vmatprep.mubr.bf16.mxu0 0
      %728 = vmatmul.mubr.bf16.gmra.mrb[0].mxu0 %v553
      %v729 = vpop.f32.mrb[0].mxu0
      %v730 = vadd.f32 %v327, %v729
      %v731 = vpop.f32.mrb[0].mxu0
      %v732 = vpop.f32.mrb[0].mxu0
      %v733 = vadd.f32 %v327, %v732
      %v734 = vpop.f32.mrb[0].mxu0
      %735 = vdwg.mxu0
      %v736 = vlaneseq
      %v737 = vshrl.u32 %v736, 7
      %v738 = vadd.s32 %v737, 8
      %v739 = vadd.s32 %v737, 16
      %v740 = vadd.s32 %v737, 24
      %v741 = vadd.s32 %v737, 32
      %v742 = vadd.s32 %v737, 40
      %v743 = vadd.s32 %v737, 48
      %v744 = vadd.s32 %v737, 56
      %v745 = vadd.s32 %v737, 64
      %v746 = vadd.s32 %v737, 72
      %v747 = vadd.s32 %v737, 80
      %v748 = vadd.s32 %v737, 88
      %v749 = vadd.s32 %v737, 96
      %v750 = vadd.s32 %v737, 104
      %v751 = vadd.s32 %v737, 112
      %v752 = vadd.s32 %v737, 120
      %v753 = vadd.s32 %v737, 128
      %v754 = vadd.s32 %v737, 136
      %v755 = vadd.s32 %v737, 144
      %v756 = vadd.s32 %v737, 152
      %v757 = vadd.s32 %v737, 160
      %v758 = vadd.s32 %v737, 168
      %v759 = vadd.s32 %v737, 176
      %v760 = vadd.s32 %v737, 184
      %v761 = vadd.s32 %v737, 192
      %v762 = vadd.s32 %v737, 200
      %v763 = vadd.s32 %v737, 208
      %v764 = vadd.s32 %v737, 216
      %v765 = vadd.s32 %v737, 224
      %v766 = vadd.s32 %v737, 232
      %v767 = vadd.s32 %v737, 240
      %v768 = vadd.s32 %v737, 248
      %v769 = vadd.s32 %v737, 256
      %v770 = vadd.s32 %v737, 264
      %v771 = vadd.s32 %v737, 272
      %v772 = vadd.s32 %v737, 280
      %vm773 = vcmp.lt.s32.totalorder %v737, 0
      %v774 = vsub.s32 0, %v737
      %v775 = vsel %vm773, %v774, %v737
      %v776 = vmul.u32.u64.compose %v775, 3817748708
      %v777 = vextract.low.u32 %v776
      %v778 = vextract.high.u32 %v776
      %v779 = vshrl.u32 %v778, 4
      %v780 = vmul.u32 %v779, 18
      %v781 = vsub.s32 %v775, %v780
      %v782 = vsub.s32 0, %v781
      %v783 = vsel %vm773, %v782, %v781
      %vm784 = vcmp.lt.s32.totalorder %v738, 0
      %v785 = vsub.s32 0, %v738
      %v786 = vsel %vm784, %v785, %v738
      %v787 = vmul.u32.u64.compose %v786, 3817748708
      %v788 = vextract.low.u32 %v787
      %v789 = vextract.high.u32 %v787
      %v790 = vshrl.u32 %v789, 4
      %v791 = vmul.u32 %v790, 18
      %v792 = vsub.s32 %v786, %v791
      %v793 = vsub.s32 0, %v792
      %v794 = vsel %vm784, %v793, %v792
      %vm795 = vcmp.lt.s32.totalorder %v739, 0
      %v796 = vsub.s32 0, %v739
      %v797 = vsel %vm795, %v796, %v739
      %v798 = vmul.u32.u64.compose %v797, 3817748708
      %v799 = vextract.low.u32 %v798
      %v800 = vextract.high.u32 %v798
      %v801 = vshrl.u32 %v800, 4
      %v802 = vmul.u32 %v801, 18
      %v803 = vsub.s32 %v797, %v802
      %v804 = vsub.s32 0, %v803
      %v805 = vsel %vm795, %v804, %v803
      %vm806 = vcmp.lt.s32.totalorder %v740, 0
      %v807 = vsub.s32 0, %v740
      %v808 = vsel %vm806, %v807, %v740
      %v809 = vmul.u32.u64.compose %v808, 3817748708
      %v810 = vextract.low.u32 %v809
      %v811 = vextract.high.u32 %v809
      %v812 = vshrl.u32 %v811, 4
      %v813 = vmul.u32 %v812, 18
      %v814 = vsub.s32 %v808, %v813
      %v815 = vsub.s32 0, %v814
      %v816 = vsel %vm806, %v815, %v814
      %vm817 = vcmp.lt.s32.totalorder %v741, 0
      %v818 = vsub.s32 0, %v741
      %v819 = vsel %vm817, %v818, %v741
      %v820 = vmul.u32.u64.compose %v819, 3817748708
      %v821 = vextract.low.u32 %v820
      %v822 = vextract.high.u32 %v820
      %v823 = vshrl.u32 %v822, 4
      %v824 = vmul.u32 %v823, 18
      %v825 = vsub.s32 %v819, %v824
      %v826 = vsub.s32 0, %v825
      %v827 = vsel %vm817, %v826, %v825
      %vm828 = vcmp.lt.s32.totalorder %v742, 0
      %v829 = vsub.s32 0, %v742
      %v830 = vsel %vm828, %v829, %v742
      %v831 = vmul.u32.u64.compose %v830, 3817748708
      %v832 = vextract.low.u32 %v831
      %v833 = vextract.high.u32 %v831
      %v834 = vshrl.u32 %v833, 4
      %v835 = vmul.u32 %v834, 18
      %v836 = vsub.s32 %v830, %v835
      %v837 = vsub.s32 0, %v836
      %v838 = vsel %vm828, %v837, %v836
      %vm839 = vcmp.lt.s32.totalorder %v743, 0
      %v840 = vsub.s32 0, %v743
      %v841 = vsel %vm839, %v840, %v743
      %v842 = vmul.u32.u64.compose %v841, 3817748708
      %v843 = vextract.low.u32 %v842
      %v844 = vextract.high.u32 %v842
      %v845 = vshrl.u32 %v844, 4
      %v846 = vmul.u32 %v845, 18
      %v847 = vsub.s32 %v841, %v846
      %v848 = vsub.s32 0, %v847
      %v849 = vsel %vm839, %v848, %v847
      %vm850 = vcmp.lt.s32.totalorder %v744, 0
      %v851 = vsub.s32 0, %v744
      %v852 = vsel %vm850, %v851, %v744
      %v853 = vmul.u32.u64.compose %v852, 3817748708
      %v854 = vextract.low.u32 %v853
      %v855 = vextract.high.u32 %v853
      %v856 = vshrl.u32 %v855, 4
      %v857 = vmul.u32 %v856, 18
      %v858 = vsub.s32 %v852, %v857
      %v859 = vsub.s32 0, %v858
      %v860 = vsel %vm850, %v859, %v858
      %vm861 = vcmp.lt.s32.totalorder %v745, 0
      %v862 = vsub.s32 0, %v745
      %v863 = vsel %vm861, %v862, %v745
      %v864 = vmul.u32.u64.compose %v863, 3817748708
      %v865 = vextract.low.u32 %v864
      %v866 = vextract.high.u32 %v864
      %v867 = vshrl.u32 %v866, 4
      %v868 = vmul.u32 %v867, 18
      %v869 = vsub.s32 %v863, %v868
      %v870 = vsub.s32 0, %v869
      %v871 = vsel %vm861, %v870, %v869
      %vm872 = vcmp.lt.s32.totalorder %v746, 0
      %v873 = vsub.s32 0, %v746
      %v874 = vsel %vm872, %v873, %v746
      %v875 = vmul.u32.u64.compose %v874, 3817748708
      %v876 = vextract.low.u32 %v875
      %v877 = vextract.high.u32 %v875
      %v878 = vshrl.u32 %v877, 4
      %v879 = vmul.u32 %v878, 18
      %v880 = vsub.s32 %v874, %v879
      %v881 = vsub.s32 0, %v880
      %v882 = vsel %vm872, %v881, %v880
      %vm883 = vcmp.lt.s32.totalorder %v747, 0
      %v884 = vsub.s32 0, %v747
      %v885 = vsel %vm883, %v884, %v747
      %v886 = vmul.u32.u64.compose %v885, 3817748708
      %v887 = vextract.low.u32 %v886
      %v888 = vextract.high.u32 %v886
      %v889 = vshrl.u32 %v888, 4
      %v890 = vmul.u32 %v889, 18
      %v891 = vsub.s32 %v885, %v890
      %v892 = vsub.s32 0, %v891
      %v893 = vsel %vm883, %v892, %v891
      %vm894 = vcmp.lt.s32.totalorder %v748, 0
      %v895 = vsub.s32 0, %v748
      %v896 = vsel %vm894, %v895, %v748
      %v897 = vmul.u32.u64.compose %v896, 3817748708
      %v898 = vextract.low.u32 %v897
      %v899 = vextract.high.u32 %v897
      %v900 = vshrl.u32 %v899, 4
      %v901 = vmul.u32 %v900, 18
      %v902 = vsub.s32 %v896, %v901
      %v903 = vsub.s32 0, %v902
      %v904 = vsel %vm894, %v903, %v902
      %vm905 = vcmp.lt.s32.totalorder %v749, 0
      %v906 = vsub.s32 0, %v749
      %v907 = vsel %vm905, %v906, %v749
      %v908 = vmul.u32.u64.compose %v907, 3817748708
      %v909 = vextract.low.u32 %v908
      %v910 = vextract.high.u32 %v908
      %v911 = vshrl.u32 %v910, 4
      %v912 = vmul.u32 %v911, 18
      %v913 = vsub.s32 %v907, %v912
      %v914 = vsub.s32 0, %v913
      %v915 = vsel %vm905, %v914, %v913
      %vm916 = vcmp.lt.s32.totalorder %v750, 0
      %v917 = vsub.s32 0, %v750
      %v918 = vsel %vm916, %v917, %v750
      %v919 = vmul.u32.u64.compose %v918, 3817748708
      %v920 = vextract.low.u32 %v919
      %v921 = vextract.high.u32 %v919
      %v922 = vshrl.u32 %v921, 4
      %v923 = vmul.u32 %v922, 18
      %v924 = vsub.s32 %v918, %v923
      %v925 = vsub.s32 0, %v924
      %v926 = vsel %vm916, %v925, %v924
      %vm927 = vcmp.lt.s32.totalorder %v751, 0
      %v928 = vsub.s32 0, %v751
      %v929 = vsel %vm927, %v928, %v751
      %v930 = vmul.u32.u64.compose %v929, 3817748708
      %v931 = vextract.low.u32 %v930
      %v932 = vextract.high.u32 %v930
      %v933 = vshrl.u32 %v932, 4
      %v934 = vmul.u32 %v933, 18
      %v935 = vsub.s32 %v929, %v934
      %v936 = vsub.s32 0, %v935
      %v937 = vsel %vm927, %v936, %v935
      %vm938 = vcmp.lt.s32.totalorder %v752, 0
      %v939 = vsub.s32 0, %v752
      %v940 = vsel %vm938, %v939, %v752
      %v941 = vmul.u32.u64.compose %v940, 3817748708
      %v942 = vextract.low.u32 %v941
      %v943 = vextract.high.u32 %v941
      %v944 = vshrl.u32 %v943, 4
      %v945 = vmul.u32 %v944, 18
      %v946 = vsub.s32 %v940, %v945
      %v947 = vsub.s32 0, %v946
      %v948 = vsel %vm938, %v947, %v946
      %vm949 = vcmp.lt.s32.totalorder %v753, 0
      %v950 = vsub.s32 0, %v753
      %v951 = vsel %vm949, %v950, %v753
      %v952 = vmul.u32.u64.compose %v951, 3817748708
      %v953 = vextract.low.u32 %v952
      %v954 = vextract.high.u32 %v952
      %v955 = vshrl.u32 %v954, 4
      %v956 = vmul.u32 %v955, 18
      %v957 = vsub.s32 %v951, %v956
      %v958 = vsub.s32 0, %v957
      %v959 = vsel %vm949, %v958, %v957
      %vm960 = vcmp.lt.s32.totalorder %v754, 0
      %v961 = vsub.s32 0, %v754
      %v962 = vsel %vm960, %v961, %v754
      %v963 = vmul.u32.u64.compose %v962, 3817748708
      %v964 = vextract.low.u32 %v963
      %v965 = vextract.high.u32 %v963
      %v966 = vshrl.u32 %v965, 4
      %v967 = vmul.u32 %v966, 18
      %v968 = vsub.s32 %v962, %v967
      %v969 = vsub.s32 0, %v968
      %v970 = vsel %vm960, %v969, %v968
      %vm971 = vcmp.lt.s32.totalorder %v755, 0
      %v972 = vsub.s32 0, %v755
      %v973 = vsel %vm971, %v972, %v755
      %v974 = vmul.u32.u64.compose %v973, 3817748708
      %v975 = vextract.low.u32 %v974
      %v976 = vextract.high.u32 %v974
      %v977 = vshrl.u32 %v976, 4
      %v978 = vmul.u32 %v977, 18
      %v979 = vsub.s32 %v973, %v978
      %v980 = vsub.s32 0, %v979
      %v981 = vsel %vm971, %v980, %v979
      %vm982 = vcmp.lt.s32.totalorder %v756, 0
      %v983 = vsub.s32 0, %v756
      %v984 = vsel %vm982, %v983, %v756
      %v985 = vmul.u32.u64.compose %v984, 3817748708
      %v986 = vextract.low.u32 %v985
      %v987 = vextract.high.u32 %v985
      %v988 = vshrl.u32 %v987, 4
      %v989 = vmul.u32 %v988, 18
      %v990 = vsub.s32 %v984, %v989
      %v991 = vsub.s32 0, %v990
      %v992 = vsel %vm982, %v991, %v990
      %vm993 = vcmp.lt.s32.totalorder %v757, 0
      %v994 = vsub.s32 0, %v757
      %v995 = vsel %vm993, %v994, %v757
      %v996 = vmul.u32.u64.compose %v995, 3817748708
      %v997 = vextract.low.u32 %v996
      %v998 = vextract.high.u32 %v996
      %v999 = vshrl.u32 %v998, 4
      %v1000 = vmul.u32 %v999, 18
      %v1001 = vsub.s32 %v995, %v1000
      %v1002 = vsub.s32 0, %v1001
      %v1003 = vsel %vm993, %v1002, %v1001
      %vm1004 = vcmp.lt.s32.totalorder %v758, 0
      %v1005 = vsub.s32 0, %v758
      %v1006 = vsel %vm1004, %v1005, %v758
      %v1007 = vmul.u32.u64.compose %v1006, 3817748708
      %v1008 = vextract.low.u32 %v1007
      %v1009 = vextract.high.u32 %v1007
      %v1010 = vshrl.u32 %v1009, 4
      %v1011 = vmul.u32 %v1010, 18
      %v1012 = vsub.s32 %v1006, %v1011
      %v1013 = vsub.s32 0, %v1012
      %v1014 = vsel %vm1004, %v1013, %v1012
      %vm1015 = vcmp.lt.s32.totalorder %v759, 0
      %v1016 = vsub.s32 0, %v759
      %v1017 = vsel %vm1015, %v1016, %v759
      %v1018 = vmul.u32.u64.compose %v1017, 3817748708
      %v1019 = vextract.low.u32 %v1018
      %v1020 = vextract.high.u32 %v1018
      %v1021 = vshrl.u32 %v1020, 4
      %v1022 = vmul.u32 %v1021, 18
      %v1023 = vsub.s32 %v1017, %v1022
      %v1024 = vsub.s32 0, %v1023
      %v1025 = vsel %vm1015, %v1024, %v1023
      %vm1026 = vcmp.lt.s32.totalorder %v760, 0
      %v1027 = vsub.s32 0, %v760
      %v1028 = vsel %vm1026, %v1027, %v760
      %v1029 = vmul.u32.u64.compose %v1028, 3817748708
      %v1030 = vextract.low.u32 %v1029
      %v1031 = vextract.high.u32 %v1029
      %v1032 = vshrl.u32 %v1031, 4
      %v1033 = vmul.u32 %v1032, 18
      %v1034 = vsub.s32 %v1028, %v1033
      %v1035 = vsub.s32 0, %v1034
      %v1036 = vsel %vm1026, %v1035, %v1034
      %vm1037 = vcmp.lt.s32.totalorder %v761, 0
      %v1038 = vsub.s32 0, %v761
      %v1039 = vsel %vm1037, %v1038, %v761
      %v1040 = vmul.u32.u64.compose %v1039, 3817748708
      %v1041 = vextract.low.u32 %v1040
      %v1042 = vextract.high.u32 %v1040
      %v1043 = vshrl.u32 %v1042, 4
      %v1044 = vmul.u32 %v1043, 18
      %v1045 = vsub.s32 %v1039, %v1044
      %v1046 = vsub.s32 0, %v1045
      %v1047 = vsel %vm1037, %v1046, %v1045
      %vm1048 = vcmp.lt.s32.totalorder %v762, 0
      %v1049 = vsub.s32 0, %v762
      %v1050 = vsel %vm1048, %v1049, %v762
      %v1051 = vmul.u32.u64.compose %v1050, 3817748708
      %v1052 = vextract.low.u32 %v1051
      %v1053 = vextract.high.u32 %v1051
      %v1054 = vshrl.u32 %v1053, 4
      %v1055 = vmul.u32 %v1054, 18
      %v1056 = vsub.s32 %v1050, %v1055
      %v1057 = vsub.s32 0, %v1056
      %v1058 = vsel %vm1048, %v1057, %v1056
      %vm1059 = vcmp.lt.s32.totalorder %v763, 0
      %v1060 = vsub.s32 0, %v763
      %v1061 = vsel %vm1059, %v1060, %v763
      %v1062 = vmul.u32.u64.compose %v1061, 3817748708
      %v1063 = vextract.low.u32 %v1062
      %v1064 = vextract.high.u32 %v1062
      %v1065 = vshrl.u32 %v1064, 4
      %v1066 = vmul.u32 %v1065, 18
      %v1067 = vsub.s32 %v1061, %v1066
      %v1068 = vsub.s32 0, %v1067
      %v1069 = vsel %vm1059, %v1068, %v1067
      %vm1070 = vcmp.lt.s32.totalorder %v764, 0
      %v1071 = vsub.s32 0, %v764
      %v1072 = vsel %vm1070, %v1071, %v764
      %v1073 = vmul.u32.u64.compose %v1072, 3817748708
      %v1074 = vextract.low.u32 %v1073
      %v1075 = vextract.high.u32 %v1073
      %v1076 = vshrl.u32 %v1075, 4
      %v1077 = vmul.u32 %v1076, 18
      %v1078 = vsub.s32 %v1072, %v1077
      %v1079 = vsub.s32 0, %v1078
      %v1080 = vsel %vm1070, %v1079, %v1078
      %vm1081 = vcmp.lt.s32.totalorder %v765, 0
      %v1082 = vsub.s32 0, %v765
      %v1083 = vsel %vm1081, %v1082, %v765
      %v1084 = vmul.u32.u64.compose %v1083, 3817748708
      %v1085 = vextract.low.u32 %v1084
      %v1086 = vextract.high.u32 %v1084
      %v1087 = vshrl.u32 %v1086, 4
      %v1088 = vmul.u32 %v1087, 18
      %v1089 = vsub.s32 %v1083, %v1088
      %v1090 = vsub.s32 0, %v1089
      %v1091 = vsel %vm1081, %v1090, %v1089
      %vm1092 = vcmp.lt.s32.totalorder %v766, 0
      %v1093 = vsub.s32 0, %v766
      %v1094 = vsel %vm1092, %v1093, %v766
      %v1095 = vmul.u32.u64.compose %v1094, 3817748708
      %v1096 = vextract.low.u32 %v1095
      %v1097 = vextract.high.u32 %v1095
      %v1098 = vshrl.u32 %v1097, 4
      %v1099 = vmul.u32 %v1098, 18
      %v1100 = vsub.s32 %v1094, %v1099
      %v1101 = vsub.s32 0, %v1100
      %v1102 = vsel %vm1092, %v1101, %v1100
      %vm1103 = vcmp.lt.s32.totalorder %v767, 0
      %v1104 = vsub.s32 0, %v767
      %v1105 = vsel %vm1103, %v1104, %v767
      %v1106 = vmul.u32.u64.compose %v1105, 3817748708
      %v1107 = vextract.low.u32 %v1106
      %v1108 = vextract.high.u32 %v1106
      %v1109 = vshrl.u32 %v1108, 4
      %v1110 = vmul.u32 %v1109, 18
      %v1111 = vsub.s32 %v1105, %v1110
      %v1112 = vsub.s32 0, %v1111
      %v1113 = vsel %vm1103, %v1112, %v1111
      %vm1114 = vcmp.lt.s32.totalorder %v768, 0
      %v1115 = vsub.s32 0, %v768
      %v1116 = vsel %vm1114, %v1115, %v768
      %v1117 = vmul.u32.u64.compose %v1116, 3817748708
      %v1118 = vextract.low.u32 %v1117
      %v1119 = vextract.high.u32 %v1117
      %v1120 = vshrl.u32 %v1119, 4
      %v1121 = vmul.u32 %v1120, 18
      %v1122 = vsub.s32 %v1116, %v1121
      %v1123 = vsub.s32 0, %v1122
      %v1124 = vsel %vm1114, %v1123, %v1122
      %vm1125 = vcmp.lt.s32.totalorder %v769, 0
      %v1126 = vsub.s32 0, %v769
      %v1127 = vsel %vm1125, %v1126, %v769
      %v1128 = vmul.u32.u64.compose %v1127, 3817748708
      %v1129 = vextract.low.u32 %v1128
      %v1130 = vextract.high.u32 %v1128
      %v1131 = vshrl.u32 %v1130, 4
      %v1132 = vmul.u32 %v1131, 18
      %v1133 = vsub.s32 %v1127, %v1132
      %v1134 = vsub.s32 0, %v1133
      %v1135 = vsel %vm1125, %v1134, %v1133
      %vm1136 = vcmp.lt.s32.totalorder %v770, 0
      %v1137 = vsub.s32 0, %v770
      %v1138 = vsel %vm1136, %v1137, %v770
      %v1139 = vmul.u32.u64.compose %v1138, 3817748708
      %v1140 = vextract.low.u32 %v1139
      %v1141 = vextract.high.u32 %v1139
      %v1142 = vshrl.u32 %v1141, 4
      %v1143 = vmul.u32 %v1142, 18
      %v1144 = vsub.s32 %v1138, %v1143
      %v1145 = vsub.s32 0, %v1144
      %v1146 = vsel %vm1136, %v1145, %v1144
      %vm1147 = vcmp.lt.s32.totalorder %v771, 0
      %v1148 = vsub.s32 0, %v771
      %v1149 = vsel %vm1147, %v1148, %v771
      %v1150 = vmul.u32.u64.compose %v1149, 3817748708
      %v1151 = vextract.low.u32 %v1150
      %v1152 = vextract.high.u32 %v1150
      %v1153 = vshrl.u32 %v1152, 4
      %v1154 = vmul.u32 %v1153, 18
      %v1155 = vsub.s32 %v1149, %v1154
      %v1156 = vsub.s32 0, %v1155
      %v1157 = vsel %vm1147, %v1156, %v1155
      %vm1158 = vcmp.lt.s32.totalorder %v772, 0
      %v1159 = vsub.s32 0, %v772
      %v1160 = vsel %vm1158, %v1159, %v772
      %v1161 = vmul.u32.u64.compose %v1160, 3817748708
      %v1162 = vextract.low.u32 %v1161
      %v1163 = vextract.high.u32 %v1161
      %v1164 = vshrl.u32 %v1163, 4
      %v1165 = vmul.u32 %v1164, 18
      %v1166 = vsub.s32 %v1160, %v1165
      %v1167 = vsub.s32 0, %v1166
      %v1168 = vsel %vm1158, %v1167, %v1166
      %vm1169 = vcmp.ne.s32.totalorder %v783, 0
      %vm1170 = vcmp.ne.s32.totalorder %v794, 0
      %vm1171 = vcmp.ne.s32.totalorder %v805, 0
      %vm1172 = vcmp.ne.s32.totalorder %v816, 0
      %vm1173 = vcmp.ne.s32.totalorder %v827, 0
      %vm1174 = vcmp.ne.s32.totalorder %v838, 0
      %vm1175 = vcmp.ne.s32.totalorder %v849, 0
      %vm1176 = vcmp.ne.s32.totalorder %v860, 0
      %vm1177 = vcmp.ne.s32.totalorder %v871, 0
      %vm1178 = vcmp.ne.s32.totalorder %v882, 0
      %vm1179 = vcmp.ne.s32.totalorder %v893, 0
      %vm1180 = vcmp.ne.s32.totalorder %v904, 0
      %vm1181 = vcmp.ne.s32.totalorder %v915, 0
      %vm1182 = vcmp.ne.s32.totalorder %v926, 0
      %vm1183 = vcmp.ne.s32.totalorder %v937, 0
      %vm1184 = vcmp.ne.s32.totalorder %v948, 0
      %vm1185 = vcmp.ne.s32.totalorder %v959, 0
      %vm1186 = vcmp.ne.s32.totalorder %v970, 0
      %vm1187 = vcmp.ne.s32.totalorder %v981, 0
      %vm1188 = vcmp.ne.s32.totalorder %v992, 0
      %vm1189 = vcmp.ne.s32.totalorder %v1003, 0
      %vm1190 = vcmp.ne.s32.totalorder %v1014, 0
      %vm1191 = vcmp.ne.s32.totalorder %v1025, 0
      %vm1192 = vcmp.ne.s32.totalorder %v1036, 0
      %vm1193 = vcmp.ne.s32.totalorder %v1047, 0
      %vm1194 = vcmp.ne.s32.totalorder %v1058, 0
      %vm1195 = vcmp.ne.s32.totalorder %v1069, 0
      %vm1196 = vcmp.ne.s32.totalorder %v1080, 0
      %vm1197 = vcmp.ne.s32.totalorder %v1091, 0
      %vm1198 = vcmp.ne.s32.totalorder %v1102, 0
      %vm1199 = vcmp.ne.s32.totalorder %v1113, 0
      %vm1200 = vcmp.ne.s32.totalorder %v1124, 0
      %vm1201 = vcmp.ne.s32.totalorder %v1135, 0
      %vm1202 = vcmp.ne.s32.totalorder %v1146, 0
      %vm1203 = vcmp.ne.s32.totalorder %v1157, 0
      %vm1204 = vcmp.ne.s32.totalorder %v1168, 0
      %vm1205 = vcmp.lt.s32.totalorder %v783, 0
      %vm1206 = vcmp.lt.s32.totalorder %v794, 0
      %vm1207 = vcmp.lt.s32.totalorder %v805, 0
      %vm1208 = vcmp.lt.s32.totalorder %v816, 0
      %vm1209 = vcmp.lt.s32.totalorder %v827, 0
      %vm1210 = vcmp.lt.s32.totalorder %v838, 0
      %vm1211 = vcmp.lt.s32.totalorder %v849, 0
      %vm1212 = vcmp.lt.s32.totalorder %v860, 0
      %vm1213 = vcmp.lt.s32.totalorder %v871, 0
      %vm1214 = vcmp.lt.s32.totalorder %v882, 0
      %vm1215 = vcmp.lt.s32.totalorder %v893, 0
      %vm1216 = vcmp.lt.s32.totalorder %v904, 0
      %vm1217 = vcmp.lt.s32.totalorder %v915, 0
      %vm1218 = vcmp.lt.s32.totalorder %v926, 0
      %vm1219 = vcmp.lt.s32.totalorder %v937, 0
      %vm1220 = vcmp.lt.s32.totalorder %v948, 0
      %vm1221 = vcmp.lt.s32.totalorder %v959, 0
      %vm1222 = vcmp.lt.s32.totalorder %v970, 0
      %vm1223 = vcmp.lt.s32.totalorder %v981, 0
      %vm1224 = vcmp.lt.s32.totalorder %v992, 0
      %vm1225 = vcmp.lt.s32.totalorder %v1003, 0
      %vm1226 = vcmp.lt.s32.totalorder %v1014, 0
      %vm1227 = vcmp.lt.s32.totalorder %v1025, 0
      %vm1228 = vcmp.lt.s32.totalorder %v1036, 0
      %vm1229 = vcmp.lt.s32.totalorder %v1047, 0
      %vm1230 = vcmp.lt.s32.totalorder %v1058, 0
      %vm1231 = vcmp.lt.s32.totalorder %v1069, 0
      %vm1232 = vcmp.lt.s32.totalorder %v1080, 0
      %vm1233 = vcmp.lt.s32.totalorder %v1091, 0
      %vm1234 = vcmp.lt.s32.totalorder %v1102, 0
      %vm1235 = vcmp.lt.s32.totalorder %v1113, 0
      %vm1236 = vcmp.lt.s32.totalorder %v1124, 0
      %vm1237 = vcmp.lt.s32.totalorder %v1135, 0
      %vm1238 = vcmp.lt.s32.totalorder %v1146, 0
      %vm1239 = vcmp.lt.s32.totalorder %v1157, 0
      %vm1240 = vcmp.lt.s32.totalorder %v1168, 0
      %vm1241 = vmand %vm1205, %vm1169
      %vm1242 = vmand %vm1206, %vm1170
      %vm1243 = vmand %vm1207, %vm1171
      %vm1244 = vmand %vm1208, %vm1172
      %vm1245 = vmand %vm1209, %vm1173
      %vm1246 = vmand %vm1210, %vm1174
      %vm1247 = vmand %vm1211, %vm1175
      %vm1248 = vmand %vm1212, %vm1176
      %vm1249 = vmand %vm1213, %vm1177
      %vm1250 = vmand %vm1214, %vm1178
      %vm1251 = vmand %vm1215, %vm1179
      %vm1252 = vmand %vm1216, %vm1180
      %vm1253 = vmand %vm1217, %vm1181
      %vm1254 = vmand %vm1218, %vm1182
      %vm1255 = vmand %vm1219, %vm1183
      %vm1256 = vmand %vm1220, %vm1184
      %vm1257 = vmand %vm1221, %vm1185
      %vm1258 = vmand %vm1222, %vm1186
      %vm1259 = vmand %vm1223, %vm1187
      %vm1260 = vmand %vm1224, %vm1188
      %vm1261 = vmand %vm1225, %vm1189
      %vm1262 = vmand %vm1226, %vm1190
      %vm1263 = vmand %vm1227, %vm1191
      %vm1264 = vmand %vm1228, %vm1192
      %vm1265 = vmand %vm1229, %vm1193
      %vm1266 = vmand %vm1230, %vm1194
      %vm1267 = vmand %vm1231, %vm1195
      %vm1268 = vmand %vm1232, %vm1196
      %vm1269 = vmand %vm1233, %vm1197
      %vm1270 = vmand %vm1234, %vm1198
      %vm1271 = vmand %vm1235, %vm1199
      %vm1272 = vmand %vm1236, %vm1200
      %vm1273 = vmand %vm1237, %vm1201
      %vm1274 = vmand %vm1238, %vm1202
      %vm1275 = vmand %vm1239, %vm1203
      %vm1276 = vmand %vm1240, %vm1204
      %v1277 = vadd.s32 %v783, 18
      %v1278 = vadd.s32 %v794, 18
      %v1279 = vadd.s32 %v805, 18
      %v1280 = vadd.s32 %v816, 18
      %v1281 = vadd.s32 %v827, 18
      %v1282 = vadd.s32 %v838, 18
      %v1283 = vadd.s32 %v849, 18
      %v1284 = vadd.s32 %v860, 18
      %v1285 = vadd.s32 %v871, 18
      %v1286 = vadd.s32 %v882, 18
      %v1287 = vadd.s32 %v893, 18
      %v1288 = vadd.s32 %v904, 18
      %v1289 = vadd.s32 %v915, 18
      %v1290 = vadd.s32 %v926, 18
      %v1291 = vadd.s32 %v937, 18
      %v1292 = vadd.s32 %v948, 18
      %v1293 = vadd.s32 %v959, 18
      %v1294 = vadd.s32 %v970, 18
      %v1295 = vadd.s32 %v981, 18
      %v1296 = vadd.s32 %v992, 18
      %v1297 = vadd.s32 %v1003, 18
      %v1298 = vadd.s32 %v1014, 18
      %v1299 = vadd.s32 %v1025, 18
      %v1300 = vadd.s32 %v1036, 18
      %v1301 = vadd.s32 %v1047, 18
      %v1302 = vadd.s32 %v1058, 18
      %v1303 = vadd.s32 %v1069, 18
      %v1304 = vadd.s32 %v1080, 18
      %v1305 = vadd.s32 %v1091, 18
      %v1306 = vadd.s32 %v1102, 18
      %v1307 = vadd.s32 %v1113, 18
      %v1308 = vadd.s32 %v1124, 18
      %v1309 = vadd.s32 %v1135, 18
      %v1310 = vadd.s32 %v1146, 18
      %v1311 = vadd.s32 %v1157, 18
      %v1312 = vadd.s32 %v1168, 18
      %v1313 = vsel %vm1241, %v1277, %v783
      %v1314 = vsel %vm1242, %v1278, %v794
      %v1315 = vsel %vm1243, %v1279, %v805
      %v1316 = vsel %vm1244, %v1280, %v816
      %v1317 = vsel %vm1245, %v1281, %v827
      %v1318 = vsel %vm1246, %v1282, %v838
      %v1319 = vsel %vm1247, %v1283, %v849
      %v1320 = vsel %vm1248, %v1284, %v860
      %v1321 = vsel %vm1249, %v1285, %v871
      %v1322 = vsel %vm1250, %v1286, %v882
      %v1323 = vsel %vm1251, %v1287, %v893
      %v1324 = vsel %vm1252, %v1288, %v904
      %v1325 = vsel %vm1253, %v1289, %v915
      %v1326 = vsel %vm1254, %v1290, %v926
      %v1327 = vsel %vm1255, %v1291, %v937
      %v1328 = vsel %vm1256, %v1292, %v948
      %v1329 = vsel %vm1257, %v1293, %v959
      %v1330 = vsel %vm1258, %v1294, %v970
      %v1331 = vsel %vm1259, %v1295, %v981
      %v1332 = vsel %vm1260, %v1296, %v992
      %v1333 = vsel %vm1261, %v1297, %v1003
      %v1334 = vsel %vm1262, %v1298, %v1014
      %v1335 = vsel %vm1263, %v1299, %v1025
      %v1336 = vsel %vm1264, %v1300, %v1036
      %v1337 = vsel %vm1265, %v1301, %v1047
      %v1338 = vsel %vm1266, %v1302, %v1058
      %v1339 = vsel %vm1267, %v1303, %v1069
      %v1340 = vsel %vm1268, %v1304, %v1080
      %v1341 = vsel %vm1269, %v1305, %v1091
      %v1342 = vsel %vm1270, %v1306, %v1102
      %v1343 = vsel %vm1271, %v1307, %v1113
      %v1344 = vsel %vm1272, %v1308, %v1124
      %v1345 = vsel %vm1273, %v1309, %v1135
      %v1346 = vsel %vm1274, %v1310, %v1146
      %v1347 = vsel %vm1275, %v1311, %v1157
      %v1348 = vsel %vm1276, %v1312, %v1168
      %vm1349 = vcmp.lt.s32.totalorder %v1313, 16
      %vm1350 = vcmp.lt.s32.totalorder %v1314, 16
      %vm1351 = vcmp.lt.s32.totalorder %v1315, 16
      %vm1352 = vcmp.lt.s32.totalorder %v1316, 16
      %vm1353 = vcmp.lt.s32.totalorder %v1317, 16
      %vm1354 = vcmp.lt.s32.totalorder %v1318, 16
      %vm1355 = vcmp.lt.s32.totalorder %v1319, 16
      %vm1356 = vcmp.lt.s32.totalorder %v1320, 16
      %vm1357 = vcmp.lt.s32.totalorder %v1321, 16
      %vm1358 = vcmp.lt.s32.totalorder %v1322, 16
      %vm1359 = vcmp.lt.s32.totalorder %v1323, 16
      %vm1360 = vcmp.lt.s32.totalorder %v1324, 16
      %vm1361 = vcmp.lt.s32.totalorder %v1325, 16
      %vm1362 = vcmp.lt.s32.totalorder %v1326, 16
      %vm1363 = vcmp.lt.s32.totalorder %v1327, 16
      %vm1364 = vcmp.lt.s32.totalorder %v1328, 16
      %vm1365 = vcmp.lt.s32.totalorder %v1329, 16
      %vm1366 = vcmp.lt.s32.totalorder %v1330, 16
      %vm1367 = vcmp.lt.s32.totalorder %v1331, 16
      %vm1368 = vcmp.lt.s32.totalorder %v1332, 16
      %vm1369 = vcmp.lt.s32.totalorder %v1333, 16
      %vm1370 = vcmp.lt.s32.totalorder %v1334, 16
      %vm1371 = vcmp.lt.s32.totalorder %v1335, 16
      %vm1372 = vcmp.lt.s32.totalorder %v1336, 16
      %vm1373 = vcmp.lt.s32.totalorder %v1337, 16
      %vm1374 = vcmp.lt.s32.totalorder %v1338, 16
      %vm1375 = vcmp.lt.s32.totalorder %v1339, 16
      %vm1376 = vcmp.lt.s32.totalorder %v1340, 16
      %vm1377 = vcmp.lt.s32.totalorder %v1341, 16
      %vm1378 = vcmp.lt.s32.totalorder %v1342, 16
      %vm1379 = vcmp.lt.s32.totalorder %v1343, 16
      %vm1380 = vcmp.lt.s32.totalorder %v1344, 16
      %vm1381 = vcmp.lt.s32.totalorder %v1345, 16
      %vm1382 = vcmp.lt.s32.totalorder %v1346, 16
      %vm1383 = vcmp.lt.s32.totalorder %v1347, 16
      %vm1384 = vcmp.lt.s32.totalorder %v1348, 16
      %v1385 = vsel %vm1349, 1, 0
      %v1386 = vsel %vm1350, 1, 0
      %v1387 = vsel %vm1351, 1, 0
      %v1388 = vsel %vm1352, 1, 0
      %v1389 = vsel %vm1353, 1, 0
      %v1390 = vsel %vm1354, 1, 0
      %v1391 = vsel %vm1355, 1, 0
      %v1392 = vsel %vm1356, 1, 0
      %v1393 = vsel %vm1357, 1, 0
      %v1394 = vsel %vm1358, 1, 0
      %v1395 = vsel %vm1359, 1, 0
      %v1396 = vsel %vm1360, 1, 0
      %v1397 = vsel %vm1361, 1, 0
      %v1398 = vsel %vm1362, 1, 0
      %v1399 = vsel %vm1363, 1, 0
      %v1400 = vsel %vm1364, 1, 0
      %v1401 = vsel %vm1365, 1, 0
      %v1402 = vsel %vm1366, 1, 0
      %v1403 = vsel %vm1367, 1, 0
      %v1404 = vsel %vm1368, 1, 0
      %v1405 = vsel %vm1369, 1, 0
      %v1406 = vsel %vm1370, 1, 0
      %v1407 = vsel %vm1371, 1, 0
      %v1408 = vsel %vm1372, 1, 0
      %v1409 = vsel %vm1373, 1, 0
      %v1410 = vsel %vm1374, 1, 0
      %v1411 = vsel %vm1375, 1, 0
      %v1412 = vsel %vm1376, 1, 0
      %v1413 = vsel %vm1377, 1, 0
      %v1414 = vsel %vm1378, 1, 0
      %v1415 = vsel %vm1379, 1, 0
      %v1416 = vsel %vm1380, 1, 0
      %v1417 = vsel %vm1381, 1, 0
      %v1418 = vsel %vm1382, 1, 0
      %v1419 = vsel %vm1383, 1, 0
      %v1420 = vsel %vm1384, 1, 0
      %v1421 = vcvt.s32.f32 %v1385
      %v1422 = vcvt.s32.f32 %v1386
      %v1423 = vcvt.s32.f32 %v1387
      %v1424 = vcvt.s32.f32 %v1388
      %v1425 = vcvt.s32.f32 %v1389
      %v1426 = vcvt.s32.f32 %v1390
      %v1427 = vcvt.s32.f32 %v1391
      %v1428 = vcvt.s32.f32 %v1392
      %v1429 = vcvt.s32.f32 %v1393
      %v1430 = vcvt.s32.f32 %v1394
      %v1431 = vcvt.s32.f32 %v1395
      %v1432 = vcvt.s32.f32 %v1396
      %v1433 = vcvt.s32.f32 %v1397
      %v1434 = vcvt.s32.f32 %v1398
      %v1435 = vcvt.s32.f32 %v1399
      %v1436 = vcvt.s32.f32 %v1400
      %v1437 = vcvt.s32.f32 %v1401
      %v1438 = vcvt.s32.f32 %v1402
      %v1439 = vcvt.s32.f32 %v1403
      %v1440 = vcvt.s32.f32 %v1404
      %v1441 = vcvt.s32.f32 %v1405
      %v1442 = vcvt.s32.f32 %v1406
      %v1443 = vcvt.s32.f32 %v1407
      %v1444 = vcvt.s32.f32 %v1408
      %v1445 = vcvt.s32.f32 %v1409
      %v1446 = vcvt.s32.f32 %v1410
      %v1447 = vcvt.s32.f32 %v1411
      %v1448 = vcvt.s32.f32 %v1412
      %v1449 = vcvt.s32.f32 %v1413
      %v1450 = vcvt.s32.f32 %v1414
      %v1451 = vcvt.s32.f32 %v1415
      %v1452 = vcvt.s32.f32 %v1416
      %v1453 = vcvt.s32.f32 %v1417
      %v1454 = vcvt.s32.f32 %v1418
      %v1455 = vcvt.s32.f32 %v1419
      %v1456 = vcvt.s32.f32 %v1420
      %v1457 = vmul.f32 %v594, %v1421
      %v1458 = vmul.f32 %v597, %v1422
      %v1459 = vmul.f32 %v602, %v1423
      %v1460 = vmul.f32 %v605, %v1424
      %v1461 = vmul.f32 %v610, %v1425
      %v1462 = vmul.f32 %v613, %v1426
      %v1463 = vmul.f32 %v618, %v1427
      %v1464 = vmul.f32 %v621, %v1428
      %v1465 = vmul.f32 %v626, %v1429
      %v1466 = vmul.f32 %v629, %v1430
      %v1467 = vmul.f32 %v634, %v1431
      %v1468 = vmul.f32 %v637, %v1432
      %v1469 = vmul.f32 %v642, %v1433
      %v1470 = vmul.f32 %v645, %v1434
      %v1471 = vmul.f32 %v650, %v1435
      %v1472 = vmul.f32 %v653, %v1436
      %v1473 = vmul.f32 %v658, %v1437
      %v1474 = vmul.f32 %v661, %v1438
      %v1475 = vmul.f32 %v666, %v1439
      %v1476 = vmul.f32 %v669, %v1440
      %v1477 = vmul.f32 %v674, %v1441
      %v1478 = vmul.f32 %v677, %v1442
      %v1479 = vmul.f32 %v682, %v1443
      %v1480 = vmul.f32 %v685, %v1444
      %v1481 = vmul.f32 %v690, %v1445
      %v1482 = vmul.f32 %v693, %v1446
      %v1483 = vmul.f32 %v698, %v1447
      %v1484 = vmul.f32 %v701, %v1448
      %v1485 = vmul.f32 %v706, %v1449
      %v1486 = vmul.f32 %v709, %v1450
      %v1487 = vmul.f32 %v714, %v1451
      %v1488 = vmul.f32 %v717, %v1452
      %v1489 = vmul.f32 %v722, %v1453
      %v1490 = vmul.f32 %v725, %v1454
      %v1491 = vmul.f32 %v730, %v1455
      %v1492 = vmul.f32 %v733, %v1456
      %v1493 = vadd.f32 %v1457, %v1458
      %v1494 = vadd.f32 %v1493, %v1459
      %v1495 = vadd.f32 %v1494, %v1460
      %v1496 = vadd.f32 %v1495, %v1461
      %v1497 = vadd.f32 %v1496, %v1462
      %v1498 = vadd.f32 %v1497, %v1463
      %v1499 = vadd.f32 %v1498, %v1464
      %v1500 = vadd.f32 %v1499, %v1465
      %v1501 = vadd.f32 %v1500, %v1466
      %v1502 = vadd.f32 %v1501, %v1467
      %v1503 = vadd.f32 %v1502, %v1468
      %v1504 = vadd.f32 %v1503, %v1469
      %v1505 = vadd.f32 %v1504, %v1470
      %v1506 = vadd.f32 %v1505, %v1471
      %v1507 = vadd.f32 %v1506, %v1472
      %v1508 = vadd.f32 %v1507, %v1473
      %v1509 = vadd.f32 %v1508, %v1474
      %v1510 = vadd.f32 %v1509, %v1475
      %v1511 = vadd.f32 %v1510, %v1476
      %v1512 = vadd.f32 %v1511, %v1477
      %v1513 = vadd.f32 %v1512, %v1478
      %v1514 = vadd.f32 %v1513, %v1479
      %v1515 = vadd.f32 %v1514, %v1480
      %v1516 = vadd.f32 %v1515, %v1481
      %v1517 = vadd.f32 %v1516, %v1482
      %v1518 = vadd.f32 %v1517, %v1483
      %v1519 = vadd.f32 %v1518, %v1484
      %v1520 = vadd.f32 %v1519, %v1485
      %v1521 = vadd.f32 %v1520, %v1486
      %v1522 = vadd.f32 %v1521, %v1487
      %v1523 = vadd.f32 %v1522, %v1488
      %v1524 = vadd.f32 %v1523, %v1489
      %v1525 = vadd.f32 %v1524, %v1490
      %v1526 = vadd.f32 %v1525, %v1491
      %v1527 = vadd.f32 %v1526, %v1492
      %v1528 = vrot.slane %v1527, 4
      %v1529 = vadd.f32 %v1527, %v1528
      %v1530 = vrot.slane %v1529, 2
      %v1531 = vadd.f32 %v1529, %v1530
      %v1532 = vrot.slane %v1531, 1
      %v1533 = vadd.f32 %v1531, %v1532
      %1534 = vst [vmem:[%s262] sm:$0x1] %v1533
      %v1535 = vmul.f32 %v1457, %v594
      %v1536 = vmul.f32 %v1458, %v597
      %v1537 = vmul.f32 %v1459, %v602
      %v1538 = vmul.f32 %v1460, %v605
      %v1539 = vmul.f32 %v1461, %v610
      %v1540 = vmul.f32 %v1462, %v613
      %v1541 = vmul.f32 %v1463, %v618
      %v1542 = vmul.f32 %v1464, %v621
      %v1543 = vmul.f32 %v1465, %v626
      %v1544 = vmul.f32 %v1466, %v629
      %v1545 = vmul.f32 %v1467, %v634
      %v1546 = vmul.f32 %v1468, %v637
      %v1547 = vmul.f32 %v1469, %v642
      %v1548 = vmul.f32 %v1470, %v645
      %v1549 = vmul.f32 %v1471, %v650
      %v1550 = vmul.f32 %v1472, %v653
      %v1551 = vmul.f32 %v1473, %v658
      %v1552 = vmul.f32 %v1474, %v661
      %v1553 = vmul.f32 %v1475, %v666
      %v1554 = vmul.f32 %v1476, %v669
      %v1555 = vmul.f32 %v1477, %v674
      %v1556 = vmul.f32 %v1478, %v677
      %v1557 = vmul.f32 %v1479, %v682
      %v1558 = vmul.f32 %v1480, %v685
      %v1559 = vmul.f32 %v1481, %v690
      %v1560 = vmul.f32 %v1482, %v693
      %v1561 = vmul.f32 %v1483, %v698
      %v1562 = vmul.f32 %v1484, %v701
      %v1563 = vmul.f32 %v1485, %v706
      %v1564 = vmul.f32 %v1486, %v709
      %v1565 = vmul.f32 %v1487, %v714
      %v1566 = vmul.f32 %v1488, %v717
      %v1567 = vmul.f32 %v1489, %v722
      %v1568 = vmul.f32 %v1490, %v725
      %v1569 = vmul.f32 %v1491, %v730
      %v1570 = vmul.f32 %v1492, %v733
      %v1571 = vadd.f32 %v1535, %v1536
      %v1572 = vadd.f32 %v1571, %v1537
      %v1573 = vadd.f32 %v1572, %v1538
      %v1574 = vadd.f32 %v1573, %v1539
      %v1575 = vadd.f32 %v1574, %v1540
      %v1576 = vadd.f32 %v1575, %v1541
      %v1577 = vadd.f32 %v1576, %v1542
      %v1578 = vadd.f32 %v1577, %v1543
      %v1579 = vadd.f32 %v1578, %v1544
      %v1580 = vadd.f32 %v1579, %v1545
      %v1581 = vadd.f32 %v1580, %v1546
      %v1582 = vadd.f32 %v1581, %v1547
      %v1583 = vadd.f32 %v1582, %v1548
      %v1584 = vadd.f32 %v1583, %v1549
      %v1585 = vadd.f32 %v1584, %v1550
      %v1586 = vadd.f32 %v1585, %v1551
      %v1587 = vadd.f32 %v1586, %v1552
      %v1588 = vadd.f32 %v1587, %v1553
      %v1589 = vadd.f32 %v1588, %v1554
      %v1590 = vadd.f32 %v1589, %v1555
      %v1591 = vadd.f32 %v1590, %v1556
      %v1592 = vadd.f32 %v1591, %v1557
      %v1593 = vadd.f32 %v1592, %v1558
      %v1594 = vadd.f32 %v1593, %v1559
      %v1595 = vadd.f32 %v1594, %v1560
      %v1596 = vadd.f32 %v1595, %v1561
      %v1597 = vadd.f32 %v1596, %v1562
      %v1598 = vadd.f32 %v1597, %v1563
      %v1599 = vadd.f32 %v1598, %v1564
      %v1600 = vadd.f32 %v1599, %v1565
      %v1601 = vadd.f32 %v1600, %v1566
      %v1602 = vadd.f32 %v1601, %v1567
      %v1603 = vadd.f32 %v1602, %v1568
      %v1604 = vadd.f32 %v1603, %v1569
      %v1605 = vadd.f32 %v1604, %v1570
      %v1606 = vrot.slane %v1605, 4
      %v1607 = vadd.f32 %v1605, %v1606
      %v1608 = vrot.slane %v1607, 2
      %v1609 = vadd.f32 %v1607, %v1608
      %v1610 = vrot.slane %v1609, 1
      %v1611 = vadd.f32 %v1609, %v1610
      %1612 = vst [vmem:[%s262 + $0x1] sm:$0x1] %v1611
      %v1613 = vpack.c.bf16 %v597, %v594
      %v1614 = vpack.c.bf16 %v605, %v602
      %v1615 = vpack.c.bf16 %v613, %v610
      %v1616 = vpack.c.bf16 %v621, %v618
      %v1617 = vpack.c.bf16 %v629, %v626
      %v1618 = vpack.c.bf16 %v637, %v634
      %v1619 = vpack.c.bf16 %v645, %v642
      %v1620 = vpack.c.bf16 %v653, %v650
      %v1621 = vpack.c.bf16 %v661, %v658
      %v1622 = vpack.c.bf16 %v669, %v666
      %v1623 = vpack.c.bf16 %v677, %v674
      %v1624 = vpack.c.bf16 %v685, %v682
      %v1625 = vpack.c.bf16 %v693, %v690
      %v1626 = vpack.c.bf16 %v701, %v698
      %v1627 = vpack.c.bf16 %v709, %v706
      %v1628 = vpack.c.bf16 %v717, %v714
      %v1629 = vpack.c.bf16 %v725, %v722
      %v1630 = vpack.c.bf16 %v733, %v730
      %v1649 = vunpack.c.l.b16 %v1613
      %v1650 = vunpack.c.h.b16 %v1613
      %v1651 = vunpack.c.l.b16 %v1614
      %v1652 = vunpack.c.h.b16 %v1614
      %v1653 = vunpack.c.l.b16 %v1615
      %v1654 = vunpack.c.h.b16 %v1615
      %v1655 = vunpack.c.l.b16 %v1616
      %v1656 = vunpack.c.h.b16 %v1616
      %v1657 = vunpack.c.l.b16 %v1617
      %v1658 = vunpack.c.h.b16 %v1617
      %v1659 = vunpack.c.l.b16 %v1618
      %v1660 = vunpack.c.h.b16 %v1618
      %v1661 = vunpack.c.l.b16 %v1619
      %v1662 = vunpack.c.h.b16 %v1619
      %v1663 = vunpack.c.l.b16 %v1620
      %v1664 = vunpack.c.h.b16 %v1620
      %v1665 = vunpack.c.l.b16 %v1621
      %v1666 = vunpack.c.h.b16 %v1621
      %v1667 = vunpack.c.l.b16 %v1622
      %v1668 = vunpack.c.h.b16 %v1622
      %v1669 = vunpack.c.l.b16 %v1623
      %v1670 = vunpack.c.h.b16 %v1623
      %v1671 = vunpack.c.l.b16 %v1624
      %v1672 = vunpack.c.h.b16 %v1624
      %v1673 = vunpack.c.l.b16 %v1625
      %v1674 = vunpack.c.h.b16 %v1625
      %v1675 = vunpack.c.l.b16 %v1626
      %v1676 = vunpack.c.h.b16 %v1626
      %v1677 = vunpack.c.l.b16 %v1627
      %v1678 = vunpack.c.h.b16 %v1627
      %v1679 = vunpack.c.l.b16 %v1628
      %v1680 = vunpack.c.h.b16 %v1628
      %v1681 = vunpack.c.l.b16 %v1629
      %v1682 = vunpack.c.h.b16 %v1629
      %v1683 = vunpack.c.l.b16 %v1630
      %v1684 = vunpack.c.h.b16 %v1630
      %v1685 = vpack.c.b16 %v1649, %v1649
      %v1686 = vpack.c.b16 %v1650, %v1650
      %v1687 = vpack.c.b16 %v1651, %v1651
      %v1688 = vpack.c.b16 %v1652, %v1652
      %v1689 = vpack.c.b16 %v1653, %v1653
      %v1690 = vpack.c.b16 %v1654, %v1654
      %v1691 = vpack.c.b16 %v1655, %v1655
      %v1692 = vpack.c.b16 %v1656, %v1656
      %v1693 = vpack.c.b16 %v1657, %v1657
      %v1694 = vpack.c.b16 %v1658, %v1658
      %v1695 = vpack.c.b16 %v1659, %v1659
      %v1696 = vpack.c.b16 %v1660, %v1660
      %v1697 = vpack.c.b16 %v1661, %v1661
      %v1698 = vpack.c.b16 %v1662, %v1662
      %v1699 = vpack.c.b16 %v1663, %v1663
      %v1700 = vpack.c.b16 %v1664, %v1664
      %v1701 = vpack.c.b16 %v1665, %v1665
      %v1702 = vpack.c.b16 %v1666, %v1666
      %v1703 = vpack.c.b16 %v1667, %v1667
      %v1704 = vpack.c.b16 %v1668, %v1668
      %v1705 = vpack.c.b16 %v1669, %v1669
      %v1706 = vpack.c.b16 %v1670, %v1670
      %v1707 = vpack.c.b16 %v1671, %v1671
      %v1708 = vpack.c.b16 %v1672, %v1672
      %v1709 = vpack.c.b16 %v1673, %v1673
      %v1710 = vpack.c.b16 %v1674, %v1674
      %v1711 = vpack.c.b16 %v1675, %v1675
      %v1712 = vpack.c.b16 %v1676, %v1676
      %v1713 = vpack.c.b16 %v1677, %v1677
      %v1714 = vpack.c.b16 %v1678, %v1678
      %v1715 = vpack.c.b16 %v1679, %v1679
      %v1716 = vpack.c.b16 %v1680, %v1680
      %v1717 = vpack.c.b16 %v1681, %v1681
      %v1718 = vpack.c.b16 %v1682, %v1682
      %v1719 = vpack.c.b16 %v1683, %v1683
      %v1720 = vpack.c.b16 %v1684, %v1684
      %1757 = vst [vmem:[%s258] sm:$0xf] %v1685
      %1758 = vst [vmem:[%s258 + $0x4] sm:$0xf] %v1686
      %1759 = vst [vmem:[%s258 + $0x8] sm:$0xf] %v1687
      %1760 = vst [vmem:[%s258 + $0xc] sm:$0xf] %v1688
      %1761 = vst [vmem:[%s258 + $0x10] sm:$0xf] %v1689
      %1762 = vst [vmem:[%s258 + $0x14] sm:$0xf] %v1690
      %1763 = vst [vmem:[%s258 + $0x18] sm:$0xf] %v1691
      %1764 = vst [vmem:[%s258 + $0x1c] sm:$0xf] %v1692
      %1765 = vst [vmem:[%s258 + $0x20] sm:$0xf] %v1693
      %1766 = vst [vmem:[%s258 + $0x24] sm:$0xf] %v1694
      %1767 = vst [vmem:[%s258 + $0x28] sm:$0xf] %v1695
      %1768 = vst [vmem:[%s258 + $0x2c] sm:$0xf] %v1696
      %1769 = vst [vmem:[%s258 + $0x30] sm:$0xf] %v1697
      %1770 = vst [vmem:[%s258 + $0x34] sm:$0xf] %v1698
      %1771 = vst [vmem:[%s258 + $0x38] sm:$0xf] %v1699
      %1772 = vst [vmem:[%s258 + $0x3c] sm:$0xf] %v1700
      %1773 = vst [vmem:[%s258 + $0x40] sm:$0xf] %v1701
      %1774 = vst [vmem:[%s258 + $0x44] sm:$0xf] %v1702
      %1775 = vst [vmem:[%s258 + $0x48] sm:$0xf] %v1703
      %1776 = vst [vmem:[%s258 + $0x4c] sm:$0xf] %v1704
      %1777 = vst [vmem:[%s258 + $0x50] sm:$0xf] %v1705
      %1778 = vst [vmem:[%s258 + $0x54] sm:$0xf] %v1706
      %1779 = vst [vmem:[%s258 + $0x58] sm:$0xf] %v1707
      %1780 = vst [vmem:[%s258 + $0x5c] sm:$0xf] %v1708
      %1781 = vst [vmem:[%s258 + $0x60] sm:$0xf] %v1709
      %1782 = vst [vmem:[%s258 + $0x64] sm:$0xf] %v1710
      %1783 = vst [vmem:[%s258 + $0x68] sm:$0xf] %v1711
      %1784 = vst [vmem:[%s258 + $0x6c] sm:$0xf] %v1712
      %1785 = vst [vmem:[%s258 + $0x70] sm:$0xf] %v1713
      %1786 = vst [vmem:[%s258 + $0x74] sm:$0xf] %v1714
      %1787 = vst [vmem:[%s258 + $0x78] sm:$0xf] %v1715
      %1788 = vst [vmem:[%s258 + $0x7c] sm:$0xf] %v1716
      %1789 = vst [vmem:[%s258 + $0x80] sm:$0xf] %v1717
      %1790 = vst [vmem:[%s258 + $0x84] sm:$0xf] %v1718
      %1791 = vst [vmem:[%s258 + $0x88] sm:$0xf] %v1719
      %1792 = vst [vmem:[%s258 + $0x8c] sm:$0xf] %v1720
      %p1793 = scmp.lt.s32.totalorder %s18, 1
      %s1794 = scalar_select %p1793, %s18, 1
      %s1795 = smul.addr %s1794, 36
      %s1796 = smul.addr %s1795, 4
      %s1797 = scalar_lea.vmem %s5, %s1796
      %p1798 = scmp.lt.s32.totalorder %s18, 1
      %s1799 = scalar_select %p1798, %s18, 1
      %s1800 = smul.addr %s1799, 2
      %s1801 = scalar_lea.vmem %s6, %s1800
      // Predicated region
      $region41: #{_lambda_.6} parent=39 // pred_check
        %p1802 = pneg %p146
      $region42: #{_lambda_.6} parent=39 // pred_check_branch
        %1804 = sbr.rel (%p1802) target = $region44
      $region43: #{_lambda_.6} parent=39 // pred_region
        _
      $region44: #{_lambda_.6} parent=39 // pred_fallthru
        _
      // Predicated region
      $region45: #{_lambda_.6} parent=39 // pred_check
        %p1805 = pneg %p172
      $region46: #{_lambda_.6} parent=39 // pred_check_branch
        %1807 = sbr.rel (%p1805) target = $region48
      $region47: #{_lambda_.6} parent=39 // pred_region
        _
      $region48: #{_lambda_.6} parent=39 // pred_fallthru
        _
    $region40: #{_lambda_.6} parent=5 // pred_fallthru
      _
    %p1808 = scmp.le.s32.totalorder 2, %s13
    // Predicated region
    $region49: #{_lambda_.6} parent=5 // pred_check
      %p1809 = pneg %p1808
    $region50: #{_lambda_.6} parent=5 // pred_check_branch
      %1811 = sbr.rel (%p1809) target = $region52
    $region51: #{_lambda_.6} parent=5 // pred_region
      %s1812 = ssub.s32 %s13, 2
      // Predicated region
      $region53: #{_lambda_.6} parent=51 // pred_check
        %p1813 = pneg %p152
      $region54: #{_lambda_.6} parent=51 // pred_check_branch
        %1815 = sbr.rel (%p1813) target = $region56
      $region55: #{_lambda_.6} parent=51 // pred_region
        %p1816 = scmp.lt.s32.totalorder %s19, 1
        %s1817 = scalar_select %p1816, %s19, 1
        %s1818 = smul.addr %s1817, 36
        %s1819 = smul.addr %s1818, 4
        %s1820 = scalar_lea.vmem %s5, %s1819
      $region56: #{_lambda_.6} parent=51 // pred_fallthru
        _
      // Predicated region
      $region57: #{_lambda_.6} parent=51 // pred_check
        %p1821 = pneg %p178
      $region58: #{_lambda_.6} parent=51 // pred_check_branch
        %1823 = sbr.rel (%p1821) target = $region60
      $region59: #{_lambda_.6} parent=51 // pred_region
        %p1824 = scmp.lt.s32.totalorder %s19, 1
        %s1825 = scalar_select %p1824, %s19, 1
        %s1826 = smul.addr %s1825, 2
        %s1827 = scalar_lea.vmem %s6, %s1826
      $region60: #{_lambda_.6} parent=51 // pred_fallthru
        _
    $region52: #{_lambda_.6} parent=5 // pred_fallthru
      _
  $region6: #{_lambda_.6} parent=0 // loop_footer
    %s17 = sadd.s32 1, %s13
  $region7: #{_lambda_.6} parent=0 // loop_footer_branch
    %12 = sbr.rel target = $region3
  $region8: #{_lambda_.6} parent=0 // loop_exit
    _

// kernel: _lambda_.4
$region0: #{_lambda_.4}
  #allocation0 [shape = 'u32[]', space=smem, size = 0x4, offset = 0x4, fixed_abs, tag = 'smem constant byte address 0x4 - core index']
  #allocation1 [shape = 'u32[144,128]{1,0:T(1,128)}', space=vmem, size = 0x12000, scoped, tag = 'internal scratch']
  #allocation2 [shape = 'f32[288,128]{1,0:T(8,128)}', space=vmem, size = 0x24000, scoped, tag = 'scratch operand']
  %s0 = inlined_call_operand.vmem [shape: f32[2,342,4], index: 0, kind: input, shape index: {}]
  %s1 = inlined_call_operand.vmem [shape: bf16[1,36,128], index: 1, kind: input, shape index: {}]
  %s2 = inlined_call_operand.vmem [shape: f32[1,128], index: 2, kind: input, shape index: {}]
  %s3 = inlined_call_operand.vmem [shape: f32[1,128], index: 3, kind: input, shape index: {}]
  %s4 = inlined_call_operand.vmem [shape: f32[1,128], index: 4, kind: input, shape index: {}]
  %s5 = inlined_call_operand.vmem [shape: bf16[2,342,128], index: 5, kind: output, shape index: {0}]
  %s6 = inlined_call_operand.vmem [shape: f32[2,2,128], index: 6, kind: output, shape index: {1}]
  %7 = xla_tuple %s5, %s6
  %s8 = sld [smem:[#allocation0]]
  $region61: #{_lambda_.4} parent=0
    _
  %s10 = ssub.s32 1, %s8
  %s11 = scalar_select 0, %s10, %s8
  loop: start=0, step=1, limit=4
  $region2: #{_lambda_.4} parent=0 // loop_pre_header
    _
  $region3: #{_lambda_.4} parent=0 // loop_header
    %s13 = sphi 0, %s17
    %p14 = scmp.ge.s32.totalorder %s13, 4
    %s23 = sphi 0, %s25
    %s26 = sphi 0, %s23
    %s27 = sphi 0, %s26
    %s43 = sphi 0, %s27
    %s47 = sphi 0, %s47
    %s49 = sphi 0, %s47
    %s50 = sphi 0, %s49
    %s64 = sphi 0, %s50
    %s68 = sphi 0, %s68
    %s70 = sphi 0, %s68
    %s71 = sphi 0, %s70
    %s85 = sphi 0, %s71
    %s89 = sphi 0, %s89
    %s91 = sphi 0, %s89
    %s92 = sphi 0, %s91
    %s106 = sphi 0, %s92
    %s110 = sphi 0, %s110
    %s112 = sphi 0, %s110
    %s113 = sphi 0, %s112
    %s127 = sphi 0, %s113
    %s133 = sphi 0, %s135
    %s136 = sphi 0, %s133
    %s137 = sphi 0, %s136
    %s153 = sphi 0, %s137
    %s159 = sphi 0, %s161
    %s162 = sphi 0, %s159
    %s163 = sphi 0, %s162
    %s179 = sphi 0, %s163
  $region4: #{_lambda_.4} parent=0 // loop_header_branch
    %16 = sbr.rel (%p14) target = $region8
  $region5: #{_lambda_.4} parent=0 // loop_body
    %s18 = ssub.s32 %s13, 1
    %s19 = ssub.s32 %s13, 2
    %s20 = sadd.s32 %s13, 1
    %s21 = ssub.s32 %s13, %s20
    %p22 = scmp.eq.s32.totalorder %s21, 0
    %s24 = sadd.s32 %s23, 1
    %s25 = scalar_select %p22, %s23, %s24
    %p28 = pneg %p22
    %p29 = scmp.eq.s32.totalorder %s13, 1
    %p30 = por %p28, %p29
    %p31 = scmp.ne.s32.totalorder %s23, %s26
    %p32 = scmp.eq.s32.totalorder %s13, 0
    %p33 = por %p31, %p32
    %p34 = scmp.ne.s32.totalorder %s23, %s26
    %p35 = scmp.eq.s32.totalorder %s18, 1
    %p36 = por %p34, %p35
    %p37 = scmp.ne.s32.totalorder %s26, %s27
    %p38 = scmp.eq.s32.totalorder %s18, 0
    %p39 = por %p37, %p38
    %p40 = scmp.ne.s32.totalorder %s26, %s27
    %p41 = scmp.eq.s32.totalorder %s19, 1
    %p42 = por %p40, %p41
    %p44 = scmp.ne.s32.totalorder %s27, %s43
    %p45 = scmp.eq.s32.totalorder %s19, 0
    %p46 = por %p44, %p45
    %s48 = sadd.s32 %s47, 1
    %p51 = scmp.eq.s32.totalorder %s13, 1
    %p52 = scmp.ne.s32.totalorder %s47, %s49
    %p53 = scmp.eq.s32.totalorder %s13, 0
    %p54 = por %p52, %p53
    %p55 = scmp.ne.s32.totalorder %s47, %s49
    %p56 = scmp.eq.s32.totalorder %s18, 1
    %p57 = por %p55, %p56
    %p58 = scmp.ne.s32.totalorder %s49, %s50
    %p59 = scmp.eq.s32.totalorder %s18, 0
    %p60 = por %p58, %p59
    %p61 = scmp.ne.s32.totalorder %s49, %s50
    %p62 = scmp.eq.s32.totalorder %s19, 1
    %p63 = por %p61, %p62
    %p65 = scmp.ne.s32.totalorder %s50, %s64
    %p66 = scmp.eq.s32.totalorder %s19, 0
    %p67 = por %p65, %p66
    %s69 = sadd.s32 %s68, 1
    %p72 = scmp.eq.s32.totalorder %s13, 1
    %p73 = scmp.ne.s32.totalorder %s68, %s70
    %p74 = scmp.eq.s32.totalorder %s13, 0
    %p75 = por %p73, %p74
    %p76 = scmp.ne.s32.totalorder %s68, %s70
    %p77 = scmp.eq.s32.totalorder %s18, 1
    %p78 = por %p76, %p77
    %p79 = scmp.ne.s32.totalorder %s70, %s71
    %p80 = scmp.eq.s32.totalorder %s18, 0
    %p81 = por %p79, %p80
    %p82 = scmp.ne.s32.totalorder %s70, %s71
    %p83 = scmp.eq.s32.totalorder %s19, 1
    %p84 = por %p82, %p83
    %p86 = scmp.ne.s32.totalorder %s71, %s85
    %p87 = scmp.eq.s32.totalorder %s19, 0
    %p88 = por %p86, %p87
    %s90 = sadd.s32 %s89, 1
    %p93 = scmp.eq.s32.totalorder %s13, 1
    %p94 = scmp.ne.s32.totalorder %s89, %s91
    %p95 = scmp.eq.s32.totalorder %s13, 0
    %p96 = por %p94, %p95
    %p97 = scmp.ne.s32.totalorder %s89, %s91
    %p98 = scmp.eq.s32.totalorder %s18, 1
    %p99 = por %p97, %p98
    %p100 = scmp.ne.s32.totalorder %s91, %s92
    %p101 = scmp.eq.s32.totalorder %s18, 0
    %p102 = por %p100, %p101
    %p103 = scmp.ne.s32.totalorder %s91, %s92
    %p104 = scmp.eq.s32.totalorder %s19, 1
    %p105 = por %p103, %p104
    %p107 = scmp.ne.s32.totalorder %s92, %s106
    %p108 = scmp.eq.s32.totalorder %s19, 0
    %p109 = por %p107, %p108
    %s111 = sadd.s32 %s110, 1
    %p114 = scmp.eq.s32.totalorder %s13, 1
    %p115 = scmp.ne.s32.totalorder %s110, %s112
    %p116 = scmp.eq.s32.totalorder %s13, 0
    %p117 = por %p115, %p116
    %p118 = scmp.ne.s32.totalorder %s110, %s112
    %p119 = scmp.eq.s32.totalorder %s18, 1
    %p120 = por %p118, %p119
    %p121 = scmp.ne.s32.totalorder %s112, %s113
    %p122 = scmp.eq.s32.totalorder %s18, 0
    %p123 = por %p121, %p122
    %p124 = scmp.ne.s32.totalorder %s112, %s113
    %p125 = scmp.eq.s32.totalorder %s19, 1
    %p126 = por %p124, %p125
    %p128 = scmp.ne.s32.totalorder %s113, %s127
    %p129 = scmp.eq.s32.totalorder %s19, 0
    %p130 = por %p128, %p129
    %s131 = ssub.s32 %s13, %s20
    %p132 = scmp.eq.s32.totalorder %s131, 0
    %s134 = sadd.s32 %s133, 1
    %s135 = scalar_select %p132, %s133, %s134
    %p138 = pneg %p132
    %p139 = scmp.eq.s32.totalorder %s13, 1
    %p140 = por %p138, %p139
    %p141 = scmp.ne.s32.totalorder %s133, %s136
    %p142 = scmp.eq.s32.totalorder %s13, 0
    %p143 = por %p141, %p142
    %p144 = scmp.ne.s32.totalorder %s133, %s136
    %p145 = scmp.eq.s32.totalorder %s18, 1
    %p146 = por %p144, %p145
    %p147 = scmp.ne.s32.totalorder %s136, %s137
    %p148 = scmp.eq.s32.totalorder %s18, 0
    %p149 = por %p147, %p148
    %p150 = scmp.ne.s32.totalorder %s136, %s137
    %p151 = scmp.eq.s32.totalorder %s19, 1
    %p152 = por %p150, %p151
    %p154 = scmp.ne.s32.totalorder %s137, %s153
    %p155 = scmp.eq.s32.totalorder %s19, 0
    %p156 = por %p154, %p155
    %s157 = ssub.s32 %s13, %s20
    %p158 = scmp.eq.s32.totalorder %s157, 0
    %s160 = sadd.s32 %s159, 1
    %s161 = scalar_select %p158, %s159, %s160
    %p164 = pneg %p158
    %p165 = scmp.eq.s32.totalorder %s13, 1
    %p166 = por %p164, %p165
    %p167 = scmp.ne.s32.totalorder %s159, %s162
    %p168 = scmp.eq.s32.totalorder %s13, 0
    %p169 = por %p167, %p168
    %p170 = scmp.ne.s32.totalorder %s159, %s162
    %p171 = scmp.eq.s32.totalorder %s18, 1
    %p172 = por %p170, %p171
    %p173 = scmp.ne.s32.totalorder %s162, %s163
    %p174 = scmp.eq.s32.totalorder %s18, 0
    %p175 = por %p173, %p174
    %p176 = scmp.ne.s32.totalorder %s162, %s163
    %p177 = scmp.eq.s32.totalorder %s19, 1
    %p178 = por %p176, %p177
    %p180 = scmp.ne.s32.totalorder %s163, %s179
    %p181 = scmp.eq.s32.totalorder %s19, 0
    %p182 = por %p180, %p181
    %p183 = scmp.le.s32.totalorder 1, %s13
    %p184 = scmp.lt.s32.totalorder %s13, 3
    %p185 = pnand %p183, %p184
    %p186 = pneg %p185
    // Predicated region
    $region9: #{_lambda_.4} parent=5 // pred_check
      _
    $region10: #{_lambda_.4} parent=5 // pred_check_branch
      %188 = sbr.rel (%p185) target = $region12
    $region11: #{_lambda_.4} parent=5 // pred_region
      %s189 = ssub.s32 %s13, 1
      // Predicated region
      $region13: #{_lambda_.4} parent=11 // pred_check
        %p190 = pneg %p60
      $region14: #{_lambda_.4} parent=11 // pred_check_branch
        %192 = sbr.rel (%p190) target = $region16
      $region15: #{_lambda_.4} parent=11 // pred_region
        _
      $region16: #{_lambda_.4} parent=11 // pred_fallthru
        _
      // Predicated region
      $region17: #{_lambda_.4} parent=11 // pred_check
        %p193 = pneg %p81
      $region18: #{_lambda_.4} parent=11 // pred_check_branch
        %195 = sbr.rel (%p193) target = $region20
      $region19: #{_lambda_.4} parent=11 // pred_region
        _
      $region20: #{_lambda_.4} parent=11 // pred_fallthru
        _
      // Predicated region
      $region21: #{_lambda_.4} parent=11 // pred_check
        %p196 = pneg %p102
      $region22: #{_lambda_.4} parent=11 // pred_check_branch
        %198 = sbr.rel (%p196) target = $region24
      $region23: #{_lambda_.4} parent=11 // pred_region
        _
      $region24: #{_lambda_.4} parent=11 // pred_fallthru
        _
      // Predicated region
      $region25: #{_lambda_.4} parent=11 // pred_check
        %p199 = pneg %p123
      $region26: #{_lambda_.4} parent=11 // pred_check_branch
        %201 = sbr.rel (%p199) target = $region28
      $region27: #{_lambda_.4} parent=11 // pred_region
        _
      $region28: #{_lambda_.4} parent=11 // pred_fallthru
        _
    $region12: #{_lambda_.4} parent=5 // pred_fallthru
      _
    %p202 = scmp.lt.s32.totalorder %s13, 2
    // Predicated region
    $region29: #{_lambda_.4} parent=5 // pred_check
      %p203 = pneg %p202
    $region30: #{_lambda_.4} parent=5 // pred_check_branch
      %205 = sbr.rel (%p203) target = $region32
    $region31: #{_lambda_.4} parent=5 // pred_region
      // Predicated region
      $region33: #{_lambda_.4} parent=31 // pred_check
        %p206 = pneg %p33
      $region34: #{_lambda_.4} parent=31 // pred_check_branch
        %208 = sbr.rel (%p206) target = $region36
      $region35: #{_lambda_.4} parent=31 // pred_region
        %p209 = scmp.lt.s32.totalorder %s13, 1
        %s210 = scalar_select %p209, %s13, 1
        %s211 = smul.addr %s210, 43
        %s212 = smul.addr %s211, 8
        %s213 = scalar_lea.vmem %s0, %s212
      $region36: #{_lambda_.4} parent=31 // pred_fallthru
        _
    $region32: #{_lambda_.4} parent=5 // pred_fallthru
      _
    %p214 = scmp.le.s32.totalorder 1, %s13
    %p215 = scmp.lt.s32.totalorder %s13, 3
    %p216 = pnand %p214, %p215
    %p217 = pneg %p216
    // Predicated region
    $region37: #{_lambda_.4} parent=5 // pred_check
      _
    $region38: #{_lambda_.4} parent=5 // pred_check_branch
      %219 = sbr.rel (%p216) target = $region40
    $region39: #{_lambda_.4} parent=5 // pred_region
      %s220 = ssub.s32 %s13, 1
      %p221 = scmp.lt.s32.totalorder %s18, 1
      %s222 = scalar_select %p221, %s18, 1
      %s223 = smul.addr %s222, 43
      %s224 = smul.addr %s223, 8
      %s225 = scalar_lea.vmem %s0, %s224
      %p226 = pneg %p39
      %p227 = pneg %p36
      %p228 = pneg %p60
      %p229 = pneg %p57
      %p230 = pneg %p81
      %p231 = pneg %p78
      %p232 = pneg %p102
      %p233 = pneg %p99
      %p234 = pneg %p123
      %p235 = pneg %p120
      %p236 = pneg %p149
      %p237 = pneg %p146
      %p238 = scmp.lt.s32.totalorder %s18, 1
      %s239 = scalar_select %p238, %s18, 1
      %s240 = smul.addr %s239, 43
      %s241 = smul.addr %s240, 4
      %s242 = scalar_lea.vmem %s5, %s241
      %p243 = pneg %p175
      %p244 = pneg %p172
      %p245 = scmp.lt.s32.totalorder %s18, 1
      %s246 = scalar_select %p245, %s18, 1
      %s247 = smul.addr %s246, 2
      %s248 = scalar_lea.vmem %s6, %s247
      %p249 = scmp.lt.s32.totalorder %s18, 1
      %s250 = scalar_select %p249, %s18, 1
      %s251 = smul.addr %s250, 43
      %s252 = smul.addr %s251, 8
      %s253 = scalar_lea.vmem %s0, %s252
      %p254 = scmp.lt.s32.totalorder %s18, 1
      %s255 = scalar_select %p254, %s18, 1
      %s256 = smul.addr %s255, 43
      %s257 = smul.addr %s256, 4
      %s258 = scalar_lea.vmem %s5, %s257
      %p259 = scmp.lt.s32.totalorder %s18, 1
      %s260 = scalar_select %p259, %s18, 1
      %s261 = smul.addr %s260, 2
      %s262 = scalar_lea.vmem %s6, %s261
      %v265 = vld [vmem:[%s253] sm:$0xff]
      %v266 = vld [vmem:[%s253 + $0x8] sm:$0xff]
      %v267 = vld [vmem:[%s253 + $0x10] sm:$0xff]
      %v268 = vld [vmem:[%s253 + $0x18] sm:$0xff]
      %v269 = vld [vmem:[%s253 + $0x20] sm:$0xff]
      %v270 = vld [vmem:[%s253 + $0x28] sm:$0xff]
      %v271 = vld [vmem:[%s253 + $0x30] sm:$0xff]
      %v272 = vld [vmem:[%s253 + $0x38] sm:$0xff]
      %v273 = vld [vmem:[%s253 + $0x40] sm:$0xff]
      %v274 = vld [vmem:[%s253 + $0x48] sm:$0xff]
      %v275 = vld [vmem:[%s253 + $0x50] sm:$0xff]
      %v276 = vld [vmem:[%s253 + $0x58] sm:$0xff]
      %v277 = vld [vmem:[%s253 + $0x60] sm:$0xff]
      %v278 = vld [vmem:[%s253 + $0x68] sm:$0xff]
      %v279 = vld [vmem:[%s253 + $0x70] sm:$0xff]
      %v280 = vld [vmem:[%s253 + $0x78] sm:$0xff]
      %v281 = vld [vmem:[%s253 + $0x80] sm:$0xff]
      %v282 = vld [vmem:[%s253 + $0x88] sm:$0xff]
      %v283 = vld [vmem:[%s253 + $0x90] sm:$0xff]
      %v284 = vld [vmem:[%s253 + $0x98] sm:$0xff]
      %v285 = vld [vmem:[%s253 + $0xa0] sm:$0xff]
      %v286 = vld [vmem:[%s253 + $0xa8] sm:$0xff]
      %v287 = vld [vmem:[%s253 + $0xb0] sm:$0xff]
      %v288 = vld [vmem:[%s253 + $0xb8] sm:$0xff]
      %v289 = vld [vmem:[%s253 + $0xc0] sm:$0xff]
      %v290 = vld [vmem:[%s253 + $0xc8] sm:$0xff]
      %v291 = vld [vmem:[%s253 + $0xd0] sm:$0xff]
      %v292 = vld [vmem:[%s253 + $0xd8] sm:$0xff]
      %v293 = vld [vmem:[%s253 + $0xe0] sm:$0xff]
      %v294 = vld [vmem:[%s253 + $0xe8] sm:$0xff]
      %v295 = vld [vmem:[%s253 + $0xf0] sm:$0xff]
      %v296 = vld [vmem:[%s253 + $0xf8] sm:$0xff]
      %v297 = vld [vmem:[%s253 + $0x100] sm:$0xff]
      %v298 = vld [vmem:[%s253 + $0x108] sm:$0xff]
      %v299 = vld [vmem:[%s253 + $0x110] sm:$0xff]
      %v300 = vld [vmem:[%s253 + $0x118] sm:$0xff]
      %v301 = vld [vmem:[%s253 + $0x120] sm:$0xff]
      %v302 = vld [vmem:[%s253 + $0x128] sm:$0xff]
      %v303 = vld [vmem:[%s253 + $0x130] sm:$0xff]
      %v304 = vld [vmem:[%s253 + $0x138] sm:$0xff]
      %v305 = vld [vmem:[%s253 + $0x140] sm:$0xff]
      %v306 = vld [vmem:[%s253 + $0x148] sm:$0xff]
      %v307 = vpack.c.bf16 %v266, %v265
      %v308 = vpack.c.bf16 %v268, %v267
      %v309 = vpack.c.bf16 %v270, %v269
      %v310 = vpack.c.bf16 %v272, %v271
      %v311 = vpack.c.bf16 %v274, %v273
      %v312 = vpack.c.bf16 %v276, %v275
      %v313 = vpack.c.bf16 %v278, %v277
      %v314 = vpack.c.bf16 %v280, %v279
      %v315 = vpack.c.bf16 %v282, %v281
      %v316 = vpack.c.bf16 %v284, %v283
      %v317 = vpack.c.bf16 %v286, %v285
      %v318 = vpack.c.bf16 %v288, %v287
      %v319 = vpack.c.bf16 %v290, %v289
      %v320 = vpack.c.bf16 %v292, %v291
      %v321 = vpack.c.bf16 %v294, %v293
      %v322 = vpack.c.bf16 %v296, %v295
      %v323 = vpack.c.bf16 %v298, %v297
      %v324 = vpack.c.bf16 %v300, %v299
      %v325 = vpack.c.bf16 %v302, %v301
      %v326 = vpack.c.bf16 %v304, %v303
      %v327 = vpack.c.bf16 %v306, %v305
      %vm328 = vsmask.f32 7424
      %v330 = vshrl.u32 %v307, 16
      %v332 = vshll.u32 %v307, 16
      %v334 = vrot.slane %v332, 1
      %v335 = vor.u32 %v330, %v334
      %v337 = vshll.u32 %v308, 16
      %v339 = vrot.slane %v337, 1
      %v340 = vsel %vm328, %v335, %v339
      %v341 = vshrl.u32 %v308, 16
      %v343 = vor.u32 %v341, %v339
      %v345 = vshll.u32 %v309, 16
      %v347 = vrot.slane %v345, 1
      %v348 = vsel %vm328, %v343, %v347
      %v349 = vshrl.u32 %v309, 16
      %v351 = vor.u32 %v349, %v347
      %v353 = vshll.u32 %v310, 16
      %v355 = vrot.slane %v353, 1
      %v356 = vsel %vm328, %v351, %v355
      %v357 = vshrl.u32 %v310, 16
      %v359 = vor.u32 %v357, %v355
      %v361 = vshll.u32 %v311, 16
      %v363 = vrot.slane %v361, 1
      %v364 = vsel %vm328, %v359, %v363
      %v365 = vshrl.u32 %v311, 16
      %v367 = vor.u32 %v365, %v363
      %v369 = vshll.u32 %v312, 16
      %v371 = vrot.slane %v369, 1
      %v372 = vsel %vm328, %v367, %v371
      %v373 = vshrl.u32 %v312, 16
      %v375 = vor.u32 %v373, %v371
      %v377 = vshll.u32 %v313, 16
      %v379 = vrot.slane %v377, 1
      %v380 = vsel %vm328, %v375, %v379
      %v381 = vshrl.u32 %v313, 16
      %v383 = vor.u32 %v381, %v379
      %v385 = vshll.u32 %v314, 16
      %v387 = vrot.slane %v385, 1
      %v388 = vsel %vm328, %v383, %v387
      %v389 = vshrl.u32 %v314, 16
      %v391 = vor.u32 %v389, %v387
      %v393 = vshll.u32 %v315, 16
      %v395 = vrot.slane %v393, 1
      %v396 = vsel %vm328, %v391, %v395
      %v397 = vshrl.u32 %v315, 16
      %v399 = vor.u32 %v397, %v395
      %v401 = vshll.u32 %v316, 16
      %v403 = vrot.slane %v401, 1
      %v404 = vsel %vm328, %v399, %v403
      %v405 = vshrl.u32 %v316, 16
      %v407 = vor.u32 %v405, %v403
      %v409 = vshll.u32 %v317, 16
      %v411 = vrot.slane %v409, 1
      %v412 = vsel %vm328, %v407, %v411
      %v413 = vshrl.u32 %v317, 16
      %v415 = vor.u32 %v413, %v411
      %v417 = vshll.u32 %v318, 16
      %v419 = vrot.slane %v417, 1
      %v420 = vsel %vm328, %v415, %v419
      %v421 = vshrl.u32 %v318, 16
      %v423 = vor.u32 %v421, %v419
      %v425 = vshll.u32 %v319, 16
      %v427 = vrot.slane %v425, 1
      %v428 = vsel %vm328, %v423, %v427
      %v429 = vshrl.u32 %v319, 16
      %v431 = vor.u32 %v429, %v427
      %v433 = vshll.u32 %v320, 16
      %v435 = vrot.slane %v433, 1
      %v436 = vsel %vm328, %v431, %v435
      %v437 = vshrl.u32 %v320, 16
      %v439 = vor.u32 %v437, %v435
      %v441 = vshll.u32 %v321, 16
      %v443 = vrot.slane %v441, 1
      %v444 = vsel %vm328, %v439, %v443
      %v445 = vshrl.u32 %v321, 16
      %v447 = vor.u32 %v445, %v443
      %v449 = vshll.u32 %v322, 16
      %v451 = vrot.slane %v449, 1
      %v452 = vsel %vm328, %v447, %v451
      %v453 = vshrl.u32 %v322, 16
      %v455 = vor.u32 %v453, %v451
      %v457 = vshll.u32 %v323, 16
      %v459 = vrot.slane %v457, 1
      %v460 = vsel %vm328, %v455, %v459
      %v461 = vshrl.u32 %v323, 16
      %v463 = vor.u32 %v461, %v459
      %v465 = vshll.u32 %v324, 16
      %v467 = vrot.slane %v465, 1
      %v468 = vsel %vm328, %v463, %v467
      %v469 = vshrl.u32 %v324, 16
      %v471 = vor.u32 %v469, %v467
      %v473 = vshll.u32 %v325, 16
      %v475 = vrot.slane %v473, 1
      %v476 = vsel %vm328, %v471, %v475
      %477 = vrot.lane.b32.xlu0 %v340, 4
      %v478 = vpop.permute.xlu0 %477
      %479 = vrot.lane.b32.xlu0 %v348, 4
      %v480 = vpop.permute.xlu0 %479
      %481 = vrot.lane.b32.xlu0 %v356, 4
      %v482 = vpop.permute.xlu0 %481
      %483 = vrot.lane.b32.xlu0 %v364, 4
      %v484 = vpop.permute.xlu0 %483
      %485 = vrot.lane.b32.xlu0 %v372, 4
      %v486 = vpop.permute.xlu0 %485
      %487 = vrot.lane.b32.xlu0 %v380, 4
      %v488 = vpop.permute.xlu0 %487
      %489 = vrot.lane.b32.xlu0 %v388, 4
      %v490 = vpop.permute.xlu0 %489
      %491 = vrot.lane.b32.xlu0 %v396, 4
      %v492 = vpop.permute.xlu0 %491
      %493 = vrot.lane.b32.xlu0 %v404, 4
      %v494 = vpop.permute.xlu0 %493
      %495 = vrot.lane.b32.xlu0 %v412, 4
      %v496 = vpop.permute.xlu0 %495
      %497 = vrot.lane.b32.xlu0 %v420, 4
      %v498 = vpop.permute.xlu0 %497
      %499 = vrot.lane.b32.xlu0 %v428, 4
      %v500 = vpop.permute.xlu0 %499
      %501 = vrot.lane.b32.xlu0 %v436, 4
      %v502 = vpop.permute.xlu0 %501
      %503 = vrot.lane.b32.xlu0 %v444, 4
      %v504 = vpop.permute.xlu0 %503
      %505 = vrot.lane.b32.xlu0 %v452, 4
      %v506 = vpop.permute.xlu0 %505
      %507 = vrot.lane.b32.xlu0 %v460, 4
      %v508 = vpop.permute.xlu0 %507
      %509 = vrot.lane.b32.xlu0 %v468, 4
      %v510 = vpop.permute.xlu0 %509
      %511 = vrot.lane.b32.xlu0 %v476, 4
      %v512 = vpop.permute.xlu0 %511
      %vm532 = vcmask 1046528
      %v533 = vrot.slane %v307, 1
      %v534 = vrot.slane %v308, 1
      %v535 = vsel %vm532, %v533, %v534
      %v536 = vrot.slane %v309, 1
      %v537 = vsel %vm532, %v534, %v536
      %v538 = vrot.slane %v310, 1
      %v539 = vsel %vm532, %v536, %v538
      %v540 = vrot.slane %v311, 1
      %v541 = vsel %vm532, %v538, %v540
      %v542 = vrot.slane %v312, 1
      %v543 = vsel %vm532, %v540, %v542
      %v544 = vrot.slane %v313, 1
      %v545 = vsel %vm532, %v542, %v544
      %v546 = vrot.slane %v314, 1
      %v547 = vsel %vm532, %v544, %v546
      %v548 = vrot.slane %v315, 1
      %v549 = vsel %vm532, %v546, %v548
      %v550 = vrot.slane %v316, 1
      %v551 = vsel %vm532, %v548, %v550
      %v552 = vrot.slane %v317, 1
      %v553 = vsel %vm532, %v550, %v552
      %v554 = vrot.slane %v318, 1
      %v555 = vsel %vm532, %v552, %v554
      %v556 = vrot.slane %v319, 1
      %v557 = vsel %vm532, %v554, %v556
      %v558 = vrot.slane %v320, 1
      %v559 = vsel %vm532, %v556, %v558
      %v560 = vrot.slane %v321, 1
      %v561 = vsel %vm532, %v558, %v560
      %v562 = vrot.slane %v322, 1
      %v563 = vsel %vm532, %v560, %v562
      %v564 = vrot.slane %v323, 1
      %v565 = vsel %vm532, %v562, %v564
      %v566 = vrot.slane %v324, 1
      %v567 = vsel %vm532, %v564, %v566
      %v568 = vrot.slane %v325, 1
      %v569 = vsel %vm532, %v566, %v568
      %570 = vrot.lane.b32.xlu0 %v535, 8
      %v571 = vpop.permute.xlu0 %570
      %572 = vrot.lane.b32.xlu0 %v537, 8
      %v573 = vpop.permute.xlu0 %572
      %574 = vrot.lane.b32.xlu0 %v539, 8
      %v575 = vpop.permute.xlu0 %574
      %576 = vrot.lane.b32.xlu0 %v541, 8
      %v577 = vpop.permute.xlu0 %576
      %578 = vrot.lane.b32.xlu0 %v543, 8
      %v579 = vpop.permute.xlu0 %578
      %580 = vrot.lane.b32.xlu0 %v545, 8
      %v581 = vpop.permute.xlu0 %580
      %582 = vrot.lane.b32.xlu0 %v547, 8
      %v583 = vpop.permute.xlu0 %582
      %584 = vrot.lane.b32.xlu0 %v549, 8
      %v585 = vpop.permute.xlu0 %584
      %586 = vrot.lane.b32.xlu0 %v551, 8
      %v587 = vpop.permute.xlu0 %586
      %588 = vrot.lane.b32.xlu0 %v553, 8
      %v589 = vpop.permute.xlu0 %588
      %590 = vrot.lane.b32.xlu0 %v555, 8
      %v591 = vpop.permute.xlu0 %590
      %592 = vrot.lane.b32.xlu0 %v557, 8
      %v593 = vpop.permute.xlu0 %592
      %594 = vrot.lane.b32.xlu0 %v559, 8
      %v595 = vpop.permute.xlu0 %594
      %596 = vrot.lane.b32.xlu0 %v561, 8
      %v597 = vpop.permute.xlu0 %596
      %598 = vrot.lane.b32.xlu0 %v563, 8
      %v599 = vpop.permute.xlu0 %598
      %600 = vrot.lane.b32.xlu0 %v565, 8
      %v601 = vpop.permute.xlu0 %600
      %602 = vrot.lane.b32.xlu0 %v567, 8
      %v603 = vpop.permute.xlu0 %602
      %604 = vrot.lane.b32.xlu0 %v569, 8
      %v605 = vpop.permute.xlu0 %604
      %v607 = vrot.slane %v326, 1
      %v608 = vsel %vm532, %v568, %v607
      %609 = vrot.lane.b32.xlu0 %v537, 12
      %v610 = vpop.permute.xlu0 %609
      %611 = vrot.lane.b32.xlu0 %v539, 12
      %v612 = vpop.permute.xlu0 %611
      %613 = vrot.lane.b32.xlu0 %v541, 12
      %v614 = vpop.permute.xlu0 %613
      %615 = vrot.lane.b32.xlu0 %v543, 12
      %v616 = vpop.permute.xlu0 %615
      %617 = vrot.lane.b32.xlu0 %v545, 12
      %v618 = vpop.permute.xlu0 %617
      %619 = vrot.lane.b32.xlu0 %v547, 12
      %v620 = vpop.permute.xlu0 %619
      %621 = vrot.lane.b32.xlu0 %v549, 12
      %v622 = vpop.permute.xlu0 %621
      %623 = vrot.lane.b32.xlu0 %v551, 12
      %v624 = vpop.permute.xlu0 %623
      %625 = vrot.lane.b32.xlu0 %v553, 12
      %v626 = vpop.permute.xlu0 %625
      %627 = vrot.lane.b32.xlu0 %v555, 12
      %v628 = vpop.permute.xlu0 %627
      %629 = vrot.lane.b32.xlu0 %v557, 12
      %v630 = vpop.permute.xlu0 %629
      %631 = vrot.lane.b32.xlu0 %v559, 12
      %v632 = vpop.permute.xlu0 %631
      %633 = vrot.lane.b32.xlu0 %v561, 12
      %v634 = vpop.permute.xlu0 %633
      %635 = vrot.lane.b32.xlu0 %v563, 12
      %v636 = vpop.permute.xlu0 %635
      %637 = vrot.lane.b32.xlu0 %v565, 12
      %v638 = vpop.permute.xlu0 %637
      %639 = vrot.lane.b32.xlu0 %v567, 12
      %v640 = vpop.permute.xlu0 %639
      %641 = vrot.lane.b32.xlu0 %v569, 12
      %v642 = vpop.permute.xlu0 %641
      %643 = vrot.lane.b32.xlu0 %v608, 12
      %v644 = vpop.permute.xlu0 %643
      %vm645 = vsmask.f32 6400
      %v646 = vrot.slane %v341, 1
      %v647 = vrot.slane %v337, 2
      %v648 = vor.u32 %v646, %v647
      %v649 = vrot.slane %v349, 1
      %v650 = vrot.slane %v345, 2
      %v651 = vor.u32 %v649, %v650
      %v652 = vsel %vm645, %v648, %v651
      %v653 = vrot.slane %v357, 1
      %v654 = vrot.slane %v353, 2
      %v655 = vor.u32 %v653, %v654
      %v656 = vsel %vm645, %v651, %v655
      %v657 = vrot.slane %v365, 1
      %v658 = vrot.slane %v361, 2
      %v659 = vor.u32 %v657, %v658
      %v660 = vsel %vm645, %v655, %v659
      %v661 = vrot.slane %v373, 1
      %v662 = vrot.slane %v369, 2
      %v663 = vor.u32 %v661, %v662
      %v664 = vsel %vm645, %v659, %v663
      %v665 = vrot.slane %v381, 1
      %v666 = vrot.slane %v377, 2
      %v667 = vor.u32 %v665, %v666
      %v668 = vsel %vm645, %v663, %v667
      %v669 = vrot.slane %v389, 1
      %v670 = vrot.slane %v385, 2
      %v671 = vor.u32 %v669, %v670
      %v672 = vsel %vm645, %v667, %v671
      %v673 = vrot.slane %v397, 1
      %v674 = vrot.slane %v393, 2
      %v675 = vor.u32 %v673, %v674
      %v676 = vsel %vm645, %v671, %v675
      %v677 = vrot.slane %v405, 1
      %v678 = vrot.slane %v401, 2
      %v679 = vor.u32 %v677, %v678
      %v680 = vsel %vm645, %v675, %v679
      %v681 = vrot.slane %v413, 1
      %v682 = vrot.slane %v409, 2
      %v683 = vor.u32 %v681, %v682
      %v684 = vsel %vm645, %v679, %v683
      %v685 = vrot.slane %v421, 1
      %v686 = vrot.slane %v417, 2
      %v687 = vor.u32 %v685, %v686
      %v688 = vsel %vm645, %v683, %v687
      %v689 = vrot.slane %v429, 1
      %v690 = vrot.slane %v425, 2
      %v691 = vor.u32 %v689, %v690
      %v692 = vsel %vm645, %v687, %v691
      %v693 = vrot.slane %v437, 1
      %v694 = vrot.slane %v433, 2
      %v695 = vor.u32 %v693, %v694
      %v696 = vsel %vm645, %v691, %v695
      %v697 = vrot.slane %v445, 1
      %v698 = vrot.slane %v441, 2
      %v699 = vor.u32 %v697, %v698
      %v700 = vsel %vm645, %v695, %v699
      %v701 = vrot.slane %v453, 1
      %v702 = vrot.slane %v449, 2
      %v703 = vor.u32 %v701, %v702
      %v704 = vsel %vm645, %v699, %v703
      %v705 = vrot.slane %v461, 1
      %v706 = vrot.slane %v457, 2
      %v707 = vor.u32 %v705, %v706
      %v708 = vsel %vm645, %v703, %v707
      %v709 = vrot.slane %v469, 1
      %v710 = vrot.slane %v465, 2
      %v711 = vor.u32 %v709, %v710
      %v712 = vsel %vm645, %v707, %v711
      %v713 = vshrl.u32 %v325, 16
      %v715 = vrot.slane %v713, 1
      %v716 = vrot.slane %v473, 2
      %v717 = vor.u32 %v715, %v716
      %v718 = vsel %vm645, %v711, %v717
      %v720 = vshrl.u32 %v326, 16
      %v722 = vrot.slane %v720, 1
      %v723 = vshll.u32 %v326, 16
      %v725 = vrot.slane %v723, 2
      %v726 = vor.u32 %v722, %v725
      %v727 = vsel %vm645, %v717, %v726
      %728 = vrot.lane.b32.xlu0 %v652, 16
      %v729 = vpop.permute.xlu0 %728
      %730 = vrot.lane.b32.xlu0 %v656, 16
      %v731 = vpop.permute.xlu0 %730
      %732 = vrot.lane.b32.xlu0 %v660, 16
      %v733 = vpop.permute.xlu0 %732
      %734 = vrot.lane.b32.xlu0 %v664, 16
      %v735 = vpop.permute.xlu0 %734
      %736 = vrot.lane.b32.xlu0 %v668, 16
      %v737 = vpop.permute.xlu0 %736
      %738 = vrot.lane.b32.xlu0 %v672, 16
      %v739 = vpop.permute.xlu0 %738
      %740 = vrot.lane.b32.xlu0 %v676, 16
      %v741 = vpop.permute.xlu0 %740
      %742 = vrot.lane.b32.xlu0 %v680, 16
      %v743 = vpop.permute.xlu0 %742
      %744 = vrot.lane.b32.xlu0 %v684, 16
      %v745 = vpop.permute.xlu0 %744
      %746 = vrot.lane.b32.xlu0 %v688, 16
      %v747 = vpop.permute.xlu0 %746
      %748 = vrot.lane.b32.xlu0 %v692, 16
      %v749 = vpop.permute.xlu0 %748
      %750 = vrot.lane.b32.xlu0 %v696, 16
      %v751 = vpop.permute.xlu0 %750
      %752 = vrot.lane.b32.xlu0 %v700, 16
      %v753 = vpop.permute.xlu0 %752
      %754 = vrot.lane.b32.xlu0 %v704, 16
      %v755 = vpop.permute.xlu0 %754
      %756 = vrot.lane.b32.xlu0 %v708, 16
      %v757 = vpop.permute.xlu0 %756
      %758 = vrot.lane.b32.xlu0 %v712, 16
      %v759 = vpop.permute.xlu0 %758
      %760 = vrot.lane.b32.xlu0 %v718, 16
      %v761 = vpop.permute.xlu0 %760
      %762 = vrot.lane.b32.xlu0 %v727, 16
      %v763 = vpop.permute.xlu0 %762
      %vm764 = vcmask 1045504
      %v765 = vrot.slane %v308, 2
      %v766 = vrot.slane %v309, 2
      %v767 = vsel %vm764, %v765, %v766
      %v768 = vrot.slane %v310, 2
      %v769 = vsel %vm764, %v766, %v768
      %v770 = vrot.slane %v311, 2
      %v771 = vsel %vm764, %v768, %v770
      %v772 = vrot.slane %v312, 2
      %v773 = vsel %vm764, %v770, %v772
      %v774 = vrot.slane %v313, 2
      %v775 = vsel %vm764, %v772, %v774
      %v776 = vrot.slane %v314, 2
      %v777 = vsel %vm764, %v774, %v776
      %v778 = vrot.slane %v315, 2
      %v779 = vsel %vm764, %v776, %v778
      %v780 = vrot.slane %v316, 2
      %v781 = vsel %vm764, %v778, %v780
      %v782 = vrot.slane %v317, 2
      %v783 = vsel %vm764, %v780, %v782
      %v784 = vrot.slane %v318, 2
      %v785 = vsel %vm764, %v782, %v784
      %v786 = vrot.slane %v319, 2
      %v787 = vsel %vm764, %v784, %v786
      %v788 = vrot.slane %v320, 2
      %v789 = vsel %vm764, %v786, %v788
      %v790 = vrot.slane %v321, 2
      %v791 = vsel %vm764, %v788, %v790
      %v792 = vrot.slane %v322, 2
      %v793 = vsel %vm764, %v790, %v792
      %v794 = vrot.slane %v323, 2
      %v795 = vsel %vm764, %v792, %v794
      %v796 = vrot.slane %v324, 2
      %v797 = vsel %vm764, %v794, %v796
      %v798 = vrot.slane %v325, 2
      %v799 = vsel %vm764, %v796, %v798
      %v800 = vrot.slane %v326, 2
      %v801 = vsel %vm764, %v798, %v800
      %802 = vrot.lane.b32.xlu0 %v767, 20
      %v803 = vpop.permute.xlu0 %802
      %804 = vrot.lane.b32.xlu0 %v769, 20
      %v805 = vpop.permute.xlu0 %804
      %806 = vrot.lane.b32.xlu0 %v771, 20
      %v807 = vpop.permute.xlu0 %806
      %808 = vrot.lane.b32.xlu0 %v773, 20
      %v809 = vpop.permute.xlu0 %808
      %810 = vrot.lane.b32.xlu0 %v775, 20
      %v811 = vpop.permute.xlu0 %810
      %812 = vrot.lane.b32.xlu0 %v777, 20
      %v813 = vpop.permute.xlu0 %812
      %814 = vrot.lane.b32.xlu0 %v779, 20
      %v815 = vpop.permute.xlu0 %814
      %816 = vrot.lane.b32.xlu0 %v781, 20
      %v817 = vpop.permute.xlu0 %816
      %818 = vrot.lane.b32.xlu0 %v783, 20
      %v819 = vpop.permute.xlu0 %818
      %820 = vrot.lane.b32.xlu0 %v785, 20
      %v821 = vpop.permute.xlu0 %820
      %822 = vrot.lane.b32.xlu0 %v787, 20
      %v823 = vpop.permute.xlu0 %822
      %824 = vrot.lane.b32.xlu0 %v789, 20
      %v825 = vpop.permute.xlu0 %824
      %826 = vrot.lane.b32.xlu0 %v791, 20
      %v827 = vpop.permute.xlu0 %826
      %828 = vrot.lane.b32.xlu0 %v793, 20
      %v829 = vpop.permute.xlu0 %828
      %830 = vrot.lane.b32.xlu0 %v795, 20
      %v831 = vpop.permute.xlu0 %830
      %832 = vrot.lane.b32.xlu0 %v797, 20
      %v833 = vpop.permute.xlu0 %832
      %834 = vrot.lane.b32.xlu0 %v799, 20
      %v835 = vpop.permute.xlu0 %834
      %836 = vrot.lane.b32.xlu0 %v801, 20
      %v837 = vpop.permute.xlu0 %836
      %v839 = vrot.slane %v327, 2
      %v840 = vsel %vm764, %v800, %v839
      %841 = vrot.lane.b32.xlu0 %v769, 24
      %v842 = vpop.permute.xlu0 %841
      %843 = vrot.lane.b32.xlu0 %v771, 24
      %v844 = vpop.permute.xlu0 %843
      %845 = vrot.lane.b32.xlu0 %v773, 24
      %v846 = vpop.permute.xlu0 %845
      %847 = vrot.lane.b32.xlu0 %v775, 24
      %v848 = vpop.permute.xlu0 %847
      %849 = vrot.lane.b32.xlu0 %v777, 24
      %v850 = vpop.permute.xlu0 %849
      %851 = vrot.lane.b32.xlu0 %v779, 24
      %v852 = vpop.permute.xlu0 %851
      %853 = vrot.lane.b32.xlu0 %v781, 24
      %v854 = vpop.permute.xlu0 %853
      %855 = vrot.lane.b32.xlu0 %v783, 24
      %v856 = vpop.permute.xlu0 %855
      %857 = vrot.lane.b32.xlu0 %v785, 24
      %v858 = vpop.permute.xlu0 %857
      %859 = vrot.lane.b32.xlu0 %v787, 24
      %v860 = vpop.permute.xlu0 %859
      %861 = vrot.lane.b32.xlu0 %v789, 24
      %v862 = vpop.permute.xlu0 %861
      %863 = vrot.lane.b32.xlu0 %v791, 24
      %v864 = vpop.permute.xlu0 %863
      %865 = vrot.lane.b32.xlu0 %v793, 24
      %v866 = vpop.permute.xlu0 %865
      %867 = vrot.lane.b32.xlu0 %v795, 24
      %v868 = vpop.permute.xlu0 %867
      %869 = vrot.lane.b32.xlu0 %v797, 24
      %v870 = vpop.permute.xlu0 %869
      %871 = vrot.lane.b32.xlu0 %v799, 24
      %v872 = vpop.permute.xlu0 %871
      %873 = vrot.lane.b32.xlu0 %v801, 24
      %v874 = vpop.permute.xlu0 %873
      %875 = vrot.lane.b32.xlu0 %v840, 24
      %v876 = vpop.permute.xlu0 %875
      %vm877 = vsmask.f32 5376
      %v878 = vrot.slane %v349, 2
      %v879 = vrot.slane %v345, 3
      %v880 = vor.u32 %v878, %v879
      %v881 = vrot.slane %v357, 2
      %v882 = vrot.slane %v353, 3
      %v883 = vor.u32 %v881, %v882
      %v884 = vsel %vm877, %v880, %v883
      %v885 = vrot.slane %v365, 2
      %v886 = vrot.slane %v361, 3
      %v887 = vor.u32 %v885, %v886
      %v888 = vsel %vm877, %v883, %v887
      %v889 = vrot.slane %v373, 2
      %v890 = vrot.slane %v369, 3
      %v891 = vor.u32 %v889, %v890
      %v892 = vsel %vm877, %v887, %v891
      %v893 = vrot.slane %v381, 2
      %v894 = vrot.slane %v377, 3
      %v895 = vor.u32 %v893, %v894
      %v896 = vsel %vm877, %v891, %v895
      %v897 = vrot.slane %v389, 2
      %v898 = vrot.slane %v385, 3
      %v899 = vor.u32 %v897, %v898
      %v900 = vsel %vm877, %v895, %v899
      %v901 = vrot.slane %v397, 2
      %v902 = vrot.slane %v393, 3
      %v903 = vor.u32 %v901, %v902
      %v904 = vsel %vm877, %v899, %v903
      %v905 = vrot.slane %v405, 2
      %v906 = vrot.slane %v401, 3
      %v907 = vor.u32 %v905, %v906
      %v908 = vsel %vm877, %v903, %v907
      %v909 = vrot.slane %v413, 2
      %v910 = vrot.slane %v409, 3
      %v911 = vor.u32 %v909, %v910
      %v912 = vsel %vm877, %v907, %v911
      %v913 = vrot.slane %v421, 2
      %v914 = vrot.slane %v417, 3
      %v915 = vor.u32 %v913, %v914
      %v916 = vsel %vm877, %v911, %v915
      %v917 = vrot.slane %v429, 2
      %v918 = vrot.slane %v425, 3
      %v919 = vor.u32 %v917, %v918
      %v920 = vsel %vm877, %v915, %v919
      %v921 = vrot.slane %v437, 2
      %v922 = vrot.slane %v433, 3
      %v923 = vor.u32 %v921, %v922
      %v924 = vsel %vm877, %v919, %v923
      %v925 = vrot.slane %v445, 2
      %v926 = vrot.slane %v441, 3
      %v927 = vor.u32 %v925, %v926
      %v928 = vsel %vm877, %v923, %v927
      %v929 = vrot.slane %v453, 2
      %v930 = vrot.slane %v449, 3
      %v931 = vor.u32 %v929, %v930
      %v932 = vsel %vm877, %v927, %v931
      %v933 = vrot.slane %v461, 2
      %v934 = vrot.slane %v457, 3
      %v935 = vor.u32 %v933, %v934
      %v936 = vsel %vm877, %v931, %v935
      %v937 = vrot.slane %v469, 2
      %v938 = vrot.slane %v465, 3
      %v939 = vor.u32 %v937, %v938
      %v940 = vsel %vm877, %v935, %v939
      %v941 = vrot.slane %v713, 2
      %v942 = vrot.slane %v473, 3
      %v943 = vor.u32 %v941, %v942
      %v944 = vsel %vm877, %v939, %v943
      %v945 = vrot.slane %v720, 2
      %v946 = vrot.slane %v723, 3
      %v947 = vor.u32 %v945, %v946
      %v948 = vsel %vm877, %v943, %v947
      %v950 = vshrl.u32 %v327, 16
      %v952 = vrot.slane %v950, 2
      %v953 = vshll.u32 %v327, 16
      %v955 = vrot.slane %v953, 3
      %v956 = vor.u32 %v952, %v955
      %v957 = vsel %vm877, %v947, %v956
      %958 = vrot.lane.b32.xlu0 %v884, 28
      %v959 = vpop.permute.xlu0 %958
      %960 = vrot.lane.b32.xlu0 %v888, 28
      %v961 = vpop.permute.xlu0 %960
      %962 = vrot.lane.b32.xlu0 %v892, 28
      %v963 = vpop.permute.xlu0 %962
      %964 = vrot.lane.b32.xlu0 %v896, 28
      %v965 = vpop.permute.xlu0 %964
      %966 = vrot.lane.b32.xlu0 %v900, 28
      %v967 = vpop.permute.xlu0 %966
      %968 = vrot.lane.b32.xlu0 %v904, 28
      %v969 = vpop.permute.xlu0 %968
      %970 = vrot.lane.b32.xlu0 %v908, 28
      %v971 = vpop.permute.xlu0 %970
      %972 = vrot.lane.b32.xlu0 %v912, 28
      %v973 = vpop.permute.xlu0 %972
      %974 = vrot.lane.b32.xlu0 %v916, 28
      %v975 = vpop.permute.xlu0 %974
      %976 = vrot.lane.b32.xlu0 %v920, 28
      %v977 = vpop.permute.xlu0 %976
      %978 = vrot.lane.b32.xlu0 %v924, 28
      %v979 = vpop.permute.xlu0 %978
      %980 = vrot.lane.b32.xlu0 %v928, 28
      %v981 = vpop.permute.xlu0 %980
      %982 = vrot.lane.b32.xlu0 %v932, 28
      %v983 = vpop.permute.xlu0 %982
      %984 = vrot.lane.b32.xlu0 %v936, 28
      %v985 = vpop.permute.xlu0 %984
      %986 = vrot.lane.b32.xlu0 %v940, 28
      %v987 = vpop.permute.xlu0 %986
      %988 = vrot.lane.b32.xlu0 %v944, 28
      %v989 = vpop.permute.xlu0 %988
      %990 = vrot.lane.b32.xlu0 %v948, 28
      %v991 = vpop.permute.xlu0 %990
      %992 = vrot.lane.b32.xlu0 %v957, 28
      %v993 = vpop.permute.xlu0 %992
      %vm994 = vcmask 1044480
      %v995 = vrot.slane %v309, 3
      %v996 = vrot.slane %v310, 3
      %v997 = vsel %vm994, %v995, %v996
      %v998 = vrot.slane %v311, 3
      %v999 = vsel %vm994, %v996, %v998
      %v1000 = vrot.slane %v312, 3
      %v1001 = vsel %vm994, %v998, %v1000
      %v1002 = vrot.slane %v313, 3
      %v1003 = vsel %vm994, %v1000, %v1002
      %v1004 = vrot.slane %v314, 3
      %v1005 = vsel %vm994, %v1002, %v1004
      %v1006 = vrot.slane %v315, 3
      %v1007 = vsel %vm994, %v1004, %v1006
      %v1008 = vrot.slane %v316, 3
      %v1009 = vsel %vm994, %v1006, %v1008
      %v1010 = vrot.slane %v317, 3
      %v1011 = vsel %vm994, %v1008, %v1010
      %v1012 = vrot.slane %v318, 3
      %v1013 = vsel %vm994, %v1010, %v1012
      %v1014 = vrot.slane %v319, 3
      %v1015 = vsel %vm994, %v1012, %v1014
      %v1016 = vrot.slane %v320, 3
      %v1017 = vsel %vm994, %v1014, %v1016
      %v1018 = vrot.slane %v321, 3
      %v1019 = vsel %vm994, %v1016, %v1018
      %v1020 = vrot.slane %v322, 3
      %v1021 = vsel %vm994, %v1018, %v1020
      %v1022 = vrot.slane %v323, 3
      %v1023 = vsel %vm994, %v1020, %v1022
      %v1024 = vrot.slane %v324, 3
      %v1025 = vsel %vm994, %v1022, %v1024
      %v1026 = vrot.slane %v325, 3
      %v1027 = vsel %vm994, %v1024, %v1026
      %v1028 = vrot.slane %v326, 3
      %v1029 = vsel %vm994, %v1026, %v1028
      %v1030 = vrot.slane %v327, 3
      %v1031 = vsel %vm994, %v1028, %v1030
      %1032 = vrot.lane.b32.xlu0 %v997, 32
      %v1033 = vpop.permute.xlu0 %1032
      %1034 = vrot.lane.b32.xlu0 %v999, 32
      %v1035 = vpop.permute.xlu0 %1034
      %1036 = vrot.lane.b32.xlu0 %v1001, 32
      %v1037 = vpop.permute.xlu0 %1036
      %1038 = vrot.lane.b32.xlu0 %v1003, 32
      %v1039 = vpop.permute.xlu0 %1038
      %1040 = vrot.lane.b32.xlu0 %v1005, 32
      %v1041 = vpop.permute.xlu0 %1040
      %1042 = vrot.lane.b32.xlu0 %v1007, 32
      %v1043 = vpop.permute.xlu0 %1042
      %1044 = vrot.lane.b32.xlu0 %v1009, 32
      %v1045 = vpop.permute.xlu0 %1044
      %1046 = vrot.lane.b32.xlu0 %v1011, 32
      %v1047 = vpop.permute.xlu0 %1046
      %1048 = vrot.lane.b32.xlu0 %v1013, 32
      %v1049 = vpop.permute.xlu0 %1048
      %1050 = vrot.lane.b32.xlu0 %v1015, 32
      %v1051 = vpop.permute.xlu0 %1050
      %1052 = vrot.lane.b32.xlu0 %v1017, 32
      %v1053 = vpop.permute.xlu0 %1052
      %1054 = vrot.lane.b32.xlu0 %v1019, 32
      %v1055 = vpop.permute.xlu0 %1054
      %1056 = vrot.lane.b32.xlu0 %v1021, 32
      %v1057 = vpop.permute.xlu0 %1056
      %1058 = vrot.lane.b32.xlu0 %v1023, 32
      %v1059 = vpop.permute.xlu0 %1058
      %1060 = vrot.lane.b32.xlu0 %v1025, 32
      %v1061 = vpop.permute.xlu0 %1060
      %1062 = vrot.lane.b32.xlu0 %v1027, 32
      %v1063 = vpop.permute.xlu0 %1062
      %1064 = vrot.lane.b32.xlu0 %v1029, 32
      %v1065 = vpop.permute.xlu0 %1064
      %1066 = vrot.lane.b32.xlu0 %v1031, 32
      %v1067 = vpop.permute.xlu0 %1066
      %vm1068 = vcmask 31744
      %v1070 = vsel %vm1068, %v307, %v478
      %v1072 = vsel %vm1068, %v308, %v480
      %v1074 = vsel %vm1068, %v309, %v482
      %v1076 = vsel %vm1068, %v310, %v484
      %v1078 = vsel %vm1068, %v311, %v486
      %v1080 = vsel %vm1068, %v312, %v488
      %v1082 = vsel %vm1068, %v313, %v490
      %v1084 = vsel %vm1068, %v314, %v492
      %v1086 = vsel %vm1068, %v315, %v494
      %v1088 = vsel %vm1068, %v316, %v496
      %v1090 = vsel %vm1068, %v317, %v498
      %v1092 = vsel %vm1068, %v318, %v500
      %v1094 = vsel %vm1068, %v319, %v502
      %v1096 = vsel %vm1068, %v320, %v504
      %v1098 = vsel %vm1068, %v321, %v506
      %v1100 = vsel %vm1068, %v322, %v508
      %v1102 = vsel %vm1068, %v323, %v510
      %v1104 = vsel %vm1068, %v324, %v512
      %vm1105 = vcmask 64512
      %v1107 = vsel %vm1105, %v1070, %v571
      %v1109 = vsel %vm1105, %v1072, %v573
      %v1111 = vsel %vm1105, %v1074, %v575
      %v1113 = vsel %vm1105, %v1076, %v577
      %v1115 = vsel %vm1105, %v1078, %v579
      %v1117 = vsel %vm1105, %v1080, %v581
      %v1119 = vsel %vm1105, %v1082, %v583
      %v1121 = vsel %vm1105, %v1084, %v585
      %v1123 = vsel %vm1105, %v1086, %v587
      %v1125 = vsel %vm1105, %v1088, %v589
      %v1127 = vsel %vm1105, %v1090, %v591
      %v1129 = vsel %vm1105, %v1092, %v593
      %v1131 = vsel %vm1105, %v1094, %v595
      %v1133 = vsel %vm1105, %v1096, %v597
      %v1135 = vsel %vm1105, %v1098, %v599
      %v1137 = vsel %vm1105, %v1100, %v601
      %v1139 = vsel %vm1105, %v1102, %v603
      %v1141 = vsel %vm1105, %v1104, %v605
      %vm1142 = vcmask 97280
      %v1144 = vsel %vm1142, %v1107, %v610
      %v1146 = vsel %vm1142, %v1109, %v612
      %v1148 = vsel %vm1142, %v1111, %v614
      %v1150 = vsel %vm1142, %v1113, %v616
      %v1152 = vsel %vm1142, %v1115, %v618
      %v1154 = vsel %vm1142, %v1117, %v620
      %v1156 = vsel %vm1142, %v1119, %v622
      %v1158 = vsel %vm1142, %v1121, %v624
      %v1160 = vsel %vm1142, %v1123, %v626
      %v1162 = vsel %vm1142, %v1125, %v628
      %v1164 = vsel %vm1142, %v1127, %v630
      %v1166 = vsel %vm1142, %v1129, %v632
      %v1168 = vsel %vm1142, %v1131, %v634
      %v1170 = vsel %vm1142, %v1133, %v636
      %v1172 = vsel %vm1142, %v1135, %v638
      %v1174 = vsel %vm1142, %v1137, %v640
      %v1176 = vsel %vm1142, %v1139, %v642
      %v1178 = vsel %vm1142, %v1141, %v644
      %vm1179 = vcmask 130048
      %v1181 = vsel %vm1179, %v1144, %v729
      %v1183 = vsel %vm1179, %v1146, %v731
      %v1185 = vsel %vm1179, %v1148, %v733
      %v1187 = vsel %vm1179, %v1150, %v735
      %v1189 = vsel %vm1179, %v1152, %v737
      %v1191 = vsel %vm1179, %v1154, %v739
      %v1193 = vsel %vm1179, %v1156, %v741
      %v1195 = vsel %vm1179, %v1158, %v743
      %v1197 = vsel %vm1179, %v1160, %v745
      %v1199 = vsel %vm1179, %v1162, %v747
      %v1201 = vsel %vm1179, %v1164, %v749
      %v1203 = vsel %vm1179, %v1166, %v751
      %v1205 = vsel %vm1179, %v1168, %v753
      %v1207 = vsel %vm1179, %v1170, %v755
      %v1209 = vsel %vm1179, %v1172, %v757
      %v1211 = vsel %vm1179, %v1174, %v759
      %v1213 = vsel %vm1179, %v1176, %v761
      %v1215 = vsel %vm1179, %v1178, %v763
      %vm1216 = vcmask 162816
      %v1218 = vsel %vm1216, %v1181, %v803
      %v1220 = vsel %vm1216, %v1183, %v805
      %v1222 = vsel %vm1216, %v1185, %v807
      %v1224 = vsel %vm1216, %v1187, %v809
      %v1226 = vsel %vm1216, %v1189, %v811
      %v1228 = vsel %vm1216, %v1191, %v813
      %v1230 = vsel %vm1216, %v1193, %v815
      %v1232 = vsel %vm1216, %v1195, %v817
      %v1234 = vsel %vm1216, %v1197, %v819
      %v1236 = vsel %vm1216, %v1199, %v821
      %v1238 = vsel %vm1216, %v1201, %v823
      %v1240 = vsel %vm1216, %v1203, %v825
      %v1242 = vsel %vm1216, %v1205, %v827
      %v1244 = vsel %vm1216, %v1207, %v829
      %v1246 = vsel %vm1216, %v1209, %v831
      %v1248 = vsel %vm1216, %v1211, %v833
      %v1250 = vsel %vm1216, %v1213, %v835
      %v1252 = vsel %vm1216, %v1215, %v837
      %vm1253 = vcmask 195584
      %v1255 = vsel %vm1253, %v1218, %v842
      %v1257 = vsel %vm1253, %v1220, %v844
      %v1259 = vsel %vm1253, %v1222, %v846
      %v1261 = vsel %vm1253, %v1224, %v848
      %v1263 = vsel %vm1253, %v1226, %v850
      %v1265 = vsel %vm1253, %v1228, %v852
      %v1267 = vsel %vm1253, %v1230, %v854
      %v1269 = vsel %vm1253, %v1232, %v856
      %v1271 = vsel %vm1253, %v1234, %v858
      %v1273 = vsel %vm1253, %v1236, %v860
      %v1275 = vsel %vm1253, %v1238, %v862
      %v1277 = vsel %vm1253, %v1240, %v864
      %v1279 = vsel %vm1253, %v1242, %v866
      %v1281 = vsel %vm1253, %v1244, %v868
      %v1283 = vsel %vm1253, %v1246, %v870
      %v1285 = vsel %vm1253, %v1248, %v872
      %v1287 = vsel %vm1253, %v1250, %v874
      %v1289 = vsel %vm1253, %v1252, %v876
      %vm1290 = vcmask 228352
      %v1292 = vsel %vm1290, %v1255, %v959
      %v1294 = vsel %vm1290, %v1257, %v961
      %v1296 = vsel %vm1290, %v1259, %v963
      %v1298 = vsel %vm1290, %v1261, %v965
      %v1300 = vsel %vm1290, %v1263, %v967
      %v1302 = vsel %vm1290, %v1265, %v969
      %v1304 = vsel %vm1290, %v1267, %v971
      %v1306 = vsel %vm1290, %v1269, %v973
      %v1308 = vsel %vm1290, %v1271, %v975
      %v1310 = vsel %vm1290, %v1273, %v977
      %v1312 = vsel %vm1290, %v1275, %v979
      %v1314 = vsel %vm1290, %v1277, %v981
      %v1316 = vsel %vm1290, %v1279, %v983
      %v1318 = vsel %vm1290, %v1281, %v985
      %v1320 = vsel %vm1290, %v1283, %v987
      %v1322 = vsel %vm1290, %v1285, %v989
      %v1324 = vsel %vm1290, %v1287, %v991
      %v1326 = vsel %vm1290, %v1289, %v993
      %vm1327 = vcmask 261120
      %v1329 = vsel %vm1327, %v1292, %v1033
      %v1331 = vsel %vm1327, %v1294, %v1035
      %v1333 = vsel %vm1327, %v1296, %v1037
      %v1335 = vsel %vm1327, %v1298, %v1039
      %v1337 = vsel %vm1327, %v1300, %v1041
      %v1339 = vsel %vm1327, %v1302, %v1043
      %v1341 = vsel %vm1327, %v1304, %v1045
      %v1343 = vsel %vm1327, %v1306, %v1047
      %v1345 = vsel %vm1327, %v1308, %v1049
      %v1347 = vsel %vm1327, %v1310, %v1051
      %v1349 = vsel %vm1327, %v1312, %v1053
      %v1351 = vsel %vm1327, %v1314, %v1055
      %v1353 = vsel %vm1327, %v1316, %v1057
      %v1355 = vsel %vm1327, %v1318, %v1059
      %v1357 = vsel %vm1327, %v1320, %v1061
      %v1359 = vsel %vm1327, %v1322, %v1063
      %v1361 = vsel %vm1327, %v1324, %v1065
      %v1363 = vsel %vm1327, %v1326, %v1067
      %v1364 = vld [vmem:[%s1] sm:$0xf]
      %v1365 = vld [vmem:[%s1 + $0x4] sm:$0xf]
      %v1366 = vld [vmem:[%s1 + $0x8] sm:$0xf]
      %v1367 = vld [vmem:[%s1 + $0xc] sm:$0xf]
      %v1368 = vld [vmem:[%s1 + $0x10] sm:$0x3]
      %v1369 = vld [vmem:[%s2] sm:$0x1]
      %v1371 = vlaneseq
      %v1372 = vshrl.u32 %v1371, 7
      %v1373 = vsub.s32 0, %v1372
      %v1374 = vrot.slane %v1369, %v1373
      %v1381 = vunpack.c.l.b16 %v1364
      %v1382 = vunpack.c.l.b16 %v1365
      %v1383 = vunpack.c.l.b16 %v1366
      %v1384 = vunpack.c.l.b16 %v1367
      %v1385 = vunpack.c.l.b16 %v1368
      %v1386 = vpack.c.b16 %v1382, %v1381
      %v1387 = vpack.c.b16 %v1384, %v1383
      %v1388 = vpack.c.b16 %v1385, %v1385
      %vm1391 = vcmask 293888
      %v1392 = vsel %vm1391, %v1329, 0
      %v1394 = vsel %vm1391, %v1331, 0
      %v1396 = vsel %vm1391, %v1333, 0
      %v1398 = vsel %vm1391, %v1335, 0
      %v1400 = vsel %vm1391, %v1337, 0
      %v1402 = vsel %vm1391, %v1339, 0
      %v1404 = vsel %vm1391, %v1341, 0
      %v1406 = vsel %vm1391, %v1343, 0
      %v1408 = vsel %vm1391, %v1345, 0
      %v1410 = vsel %vm1391, %v1347, 0
      %v1412 = vsel %vm1391, %v1349, 0
      %v1414 = vsel %vm1391, %v1351, 0
      %v1416 = vsel %vm1391, %v1353, 0
      %v1418 = vsel %vm1391, %v1355, 0
      %v1420 = vsel %vm1391, %v1357, 0
      %v1422 = vsel %vm1391, %v1359, 0
      %v1424 = vsel %vm1391, %v1361, 0
      %v1426 = vsel %vm1391, %v1363, 0
      %vm1428 = vcmask 1041408
      %v1430 = vsel %vm1428, %v1388, 0
      %1432 = vmatprep.subr.bf16.mxu0 0
      %1433 = vmatpush1.bf16.msra.mxu0 %v1386
      %1434 = vmatprep.subr.bf16.mxu0 0
      %1435 = vmatpush1.bf16.msra.mxu0 %v1387
      %1436 = vmatprep.subr.bf16.mxu0 0
      %1437 = vmatpush1.bf16.msra.mxu0 %v1430
      %1438 = vmatprep.subr.bf16.mxu0 0
      %1439 = vmatpush1.bf16.msra.mxu0 0
      %1440 = vmatprep.subr.bf16.mxu0 0
      %1441 = vmatpush1.bf16.msra.mxu0 0
      %1442 = vmatprep.subr.bf16.mxu0 0
      %1443 = vmatpush1.bf16.msra.mxu0 0
      %1444 = vmatprep.subr.bf16.mxu0 0
      %1445 = vmatpush1.bf16.msra.mxu0 0
      %1446 = vmatprep.subr.bf16.mxu0 0
      %1447 = vmatpush1.bf16.msra.mxu0 0
      %1448 = vmatprep.subr.bf16.mxu0 0
      %1449 = vmatpush1.bf16.msra.mxu0 0
      %1450 = vmatprep.subr.bf16.mxu0 0
      %1451 = vmatpush1.bf16.msra.mxu0 0
      %1452 = vmatprep.subr.bf16.mxu0 0
      %1453 = vmatpush1.bf16.msra.mxu0 0
      %1454 = vmatprep.subr.bf16.mxu0 0
      %1455 = vmatpush1.bf16.msra.mxu0 0
      %1456 = vmatprep.subr.bf16.mxu0 0
      %1457 = vmatpush1.bf16.msra.mxu0 0
      %1458 = vmatprep.subr.bf16.mxu0 0
      %1459 = vmatpush1.bf16.msra.mxu0 0
      %1460 = vmatprep.subr.bf16.mxu0 0
      %1461 = vmatpush1.bf16.msra.mxu0 0
      %1462 = vmatprep.subr.bf16.mxu0 0
      %1463 = vmatpush1.bf16.msra.mxu0 0
      %1464 = vmatprep.mubr.bf16.mxu0 0
      %1465 = vmatmul.mubr.bf16.gmra.mrb[0].mxu0 %v1392
      %v1466 = vpop.f32.mrb[0].mxu0
      %v1467 = vadd.f32 %v1374, %v1466
      %v1468 = vpop.f32.mrb[0].mxu0
      %v1469 = vpop.f32.mrb[0].mxu0
      %v1470 = vadd.f32 %v1374, %v1469
      %v1471 = vpop.f32.mrb[0].mxu0
      %1472 = vmatprep.mubr.bf16.mxu0 0
      %1473 = vmatmul.mubr.bf16.gmra.mrb[0].mxu0 %v1394
      %v1474 = vpop.f32.mrb[0].mxu0
      %v1475 = vadd.f32 %v1374, %v1474
      %v1476 = vpop.f32.mrb[0].mxu0
      %v1477 = vpop.f32.mrb[0].mxu0
      %v1478 = vadd.f32 %v1374, %v1477
      %v1479 = vpop.f32.mrb[0].mxu0
      %1480 = vmatprep.mubr.bf16.mxu0 0
      %1481 = vmatmul.mubr.bf16.gmra.mrb[0].mxu0 %v1396
      %v1482 = vpop.f32.mrb[0].mxu0
      %v1483 = vadd.f32 %v1374, %v1482
      %v1484 = vpop.f32.mrb[0].mxu0
      %v1485 = vpop.f32.mrb[0].mxu0
      %v1486 = vadd.f32 %v1374, %v1485
      %v1487 = vpop.f32.mrb[0].mxu0
      %1488 = vmatprep.mubr.bf16.mxu0 0
      %1489 = vmatmul.mubr.bf16.gmra.mrb[0].mxu0 %v1398
      %v1490 = vpop.f32.mrb[0].mxu0
      %v1491 = vadd.f32 %v1374, %v1490
      %v1492 = vpop.f32.mrb[0].mxu0
      %v1493 = vpop.f32.mrb[0].mxu0
      %v1494 = vadd.f32 %v1374, %v1493
      %v1495 = vpop.f32.mrb[0].mxu0
      %1496 = vmatprep.mubr.bf16.mxu0 0
      %1497 = vmatmul.mubr.bf16.gmra.mrb[0].mxu0 %v1400
      %v1498 = vpop.f32.mrb[0].mxu0
      %v1499 = vadd.f32 %v1374, %v1498
      %v1500 = vpop.f32.mrb[0].mxu0
      %v1501 = vpop.f32.mrb[0].mxu0
      %v1502 = vadd.f32 %v1374, %v1501
      %v1503 = vpop.f32.mrb[0].mxu0
      %1504 = vmatprep.mubr.bf16.mxu0 0
      %1505 = vmatmul.mubr.bf16.gmra.mrb[0].mxu0 %v1402
      %v1506 = vpop.f32.mrb[0].mxu0
      %v1507 = vadd.f32 %v1374, %v1506
      %v1508 = vpop.f32.mrb[0].mxu0
      %v1509 = vpop.f32.mrb[0].mxu0
      %v1510 = vadd.f32 %v1374, %v1509
      %v1511 = vpop.f32.mrb[0].mxu0
      %1512 = vmatprep.mubr.bf16.mxu0 0
      %1513 = vmatmul.mubr.bf16.gmra.mrb[0].mxu0 %v1404
      %v1514 = vpop.f32.mrb[0].mxu0
      %v1515 = vadd.f32 %v1374, %v1514
      %v1516 = vpop.f32.mrb[0].mxu0
      %v1517 = vpop.f32.mrb[0].mxu0
      %v1518 = vadd.f32 %v1374, %v1517
      %v1519 = vpop.f32.mrb[0].mxu0
      %1520 = vmatprep.mubr.bf16.mxu0 0
      %1521 = vmatmul.mubr.bf16.gmra.mrb[0].mxu0 %v1406
      %v1522 = vpop.f32.mrb[0].mxu0
      %v1523 = vadd.f32 %v1374, %v1522
      %v1524 = vpop.f32.mrb[0].mxu0
      %v1525 = vpop.f32.mrb[0].mxu0
      %v1526 = vadd.f32 %v1374, %v1525
      %v1527 = vpop.f32.mrb[0].mxu0
      %1528 = vmatprep.mubr.bf16.mxu0 0
      %1529 = vmatmul.mubr.bf16.gmra.mrb[0].mxu0 %v1408
      %v1530 = vpop.f32.mrb[0].mxu0
      %v1531 = vadd.f32 %v1374, %v1530
      %v1532 = vpop.f32.mrb[0].mxu0
      %v1533 = vpop.f32.mrb[0].mxu0
      %v1534 = vadd.f32 %v1374, %v1533
      %v1535 = vpop.f32.mrb[0].mxu0
      %1536 = vmatprep.mubr.bf16.mxu0 0
      %1537 = vmatmul.mubr.bf16.gmra.mrb[0].mxu0 %v1410
      %v1538 = vpop.f32.mrb[0].mxu0
      %v1539 = vadd.f32 %v1374, %v1538
      %v1540 = vpop.f32.mrb[0].mxu0
      %v1541 = vpop.f32.mrb[0].mxu0
      %v1542 = vadd.f32 %v1374, %v1541
      %v1543 = vpop.f32.mrb[0].mxu0
      %1544 = vmatprep.mubr.bf16.mxu0 0
      %1545 = vmatmul.mubr.bf16.gmra.mrb[0].mxu0 %v1412
      %v1546 = vpop.f32.mrb[0].mxu0
      %v1547 = vadd.f32 %v1374, %v1546
      %v1548 = vpop.f32.mrb[0].mxu0
      %v1549 = vpop.f32.mrb[0].mxu0
      %v1550 = vadd.f32 %v1374, %v1549
      %v1551 = vpop.f32.mrb[0].mxu0
      %1552 = vmatprep.mubr.bf16.mxu0 0
      %1553 = vmatmul.mubr.bf16.gmra.mrb[0].mxu0 %v1414
      %v1554 = vpop.f32.mrb[0].mxu0
      %v1555 = vadd.f32 %v1374, %v1554
      %v1556 = vpop.f32.mrb[0].mxu0
      %v1557 = vpop.f32.mrb[0].mxu0
      %v1558 = vadd.f32 %v1374, %v1557
      %v1559 = vpop.f32.mrb[0].mxu0
      %1560 = vmatprep.mubr.bf16.mxu0 0
      %1561 = vmatmul.mubr.bf16.gmra.mrb[0].mxu0 %v1416
      %v1562 = vpop.f32.mrb[0].mxu0
      %v1563 = vadd.f32 %v1374, %v1562
      %v1564 = vpop.f32.mrb[0].mxu0
      %v1565 = vpop.f32.mrb[0].mxu0
      %v1566 = vadd.f32 %v1374, %v1565
      %v1567 = vpop.f32.mrb[0].mxu0
      %1568 = vmatprep.mubr.bf16.mxu0 0
      %1569 = vmatmul.mubr.bf16.gmra.mrb[0].mxu0 %v1418
      %v1570 = vpop.f32.mrb[0].mxu0
      %v1571 = vadd.f32 %v1374, %v1570
      %v1572 = vpop.f32.mrb[0].mxu0
      %v1573 = vpop.f32.mrb[0].mxu0
      %v1574 = vadd.f32 %v1374, %v1573
      %v1575 = vpop.f32.mrb[0].mxu0
      %1576 = vmatprep.mubr.bf16.mxu0 0
      %1577 = vmatmul.mubr.bf16.gmra.mrb[0].mxu0 %v1420
      %v1578 = vpop.f32.mrb[0].mxu0
      %v1579 = vadd.f32 %v1374, %v1578
      %v1580 = vpop.f32.mrb[0].mxu0
      %v1581 = vpop.f32.mrb[0].mxu0
      %v1582 = vadd.f32 %v1374, %v1581
      %v1583 = vpop.f32.mrb[0].mxu0
      %1584 = vmatprep.mubr.bf16.mxu0 0
      %1585 = vmatmul.mubr.bf16.gmra.mrb[0].mxu0 %v1422
      %v1586 = vpop.f32.mrb[0].mxu0
      %v1587 = vadd.f32 %v1374, %v1586
      %v1588 = vpop.f32.mrb[0].mxu0
      %v1589 = vpop.f32.mrb[0].mxu0
      %v1590 = vadd.f32 %v1374, %v1589
      %v1591 = vpop.f32.mrb[0].mxu0
      %1592 = vmatprep.mubr.bf16.mxu0 0
      %1593 = vmatmul.mubr.bf16.gmra.mrb[0].mxu0 %v1424
      %v1594 = vpop.f32.mrb[0].mxu0
      %v1595 = vadd.f32 %v1374, %v1594
      %v1596 = vpop.f32.mrb[0].mxu0
      %v1597 = vpop.f32.mrb[0].mxu0
      %v1598 = vadd.f32 %v1374, %v1597
      %v1599 = vpop.f32.mrb[0].mxu0
      %1600 = vmatprep.mubr.bf16.mxu0 0
      %1601 = vmatmul.mubr.bf16.gmra.mrb[0].mxu0 %v1426
      %v1602 = vpop.f32.mrb[0].mxu0
      %v1603 = vadd.f32 %v1374, %v1602
      %v1604 = vpop.f32.mrb[0].mxu0
      %v1605 = vpop.f32.mrb[0].mxu0
      %v1606 = vadd.f32 %v1374, %v1605
      %v1607 = vpop.f32.mrb[0].mxu0
      %1608 = vdwg.mxu0
      %v1609 = vlaneseq
      %v1610 = vshrl.u32 %v1609, 7
      %v1611 = vadd.s32 %v1610, 8
      %v1612 = vadd.s32 %v1610, 16
      %v1613 = vadd.s32 %v1610, 24
      %v1614 = vadd.s32 %v1610, 32
      %v1615 = vadd.s32 %v1610, 40
      %v1616 = vadd.s32 %v1610, 48
      %v1617 = vadd.s32 %v1610, 56
      %v1618 = vadd.s32 %v1610, 64
      %v1619 = vadd.s32 %v1610, 72
      %v1620 = vadd.s32 %v1610, 80
      %v1621 = vadd.s32 %v1610, 88
      %v1622 = vadd.s32 %v1610, 96
      %v1623 = vadd.s32 %v1610, 104
      %v1624 = vadd.s32 %v1610, 112
      %v1625 = vadd.s32 %v1610, 120
      %v1626 = vadd.s32 %v1610, 128
      %v1627 = vadd.s32 %v1610, 136
      %v1628 = vadd.s32 %v1610, 144
      %v1629 = vadd.s32 %v1610, 152
      %v1630 = vadd.s32 %v1610, 160
      %v1631 = vadd.s32 %v1610, 168
      %v1632 = vadd.s32 %v1610, 176
      %v1633 = vadd.s32 %v1610, 184
      %v1634 = vadd.s32 %v1610, 192
      %v1635 = vadd.s32 %v1610, 200
      %v1636 = vadd.s32 %v1610, 208
      %v1637 = vadd.s32 %v1610, 216
      %v1638 = vadd.s32 %v1610, 224
      %v1639 = vadd.s32 %v1610, 232
      %v1640 = vadd.s32 %v1610, 240
      %v1641 = vadd.s32 %v1610, 248
      %v1642 = vadd.s32 %v1610, 256
      %v1643 = vadd.s32 %v1610, 264
      %v1644 = vadd.s32 %v1610, 272
      %v1645 = vadd.s32 %v1610, 280
      %vm1646 = vcmp.lt.s32.totalorder %v1610, 0
      %v1647 = vsub.s32 0, %v1610
      %v1648 = vsel %vm1646, %v1647, %v1610
      %v1649 = vmul.u32.u64.compose %v1648, 3817748708
      %v1650 = vextract.low.u32 %v1649
      %v1651 = vextract.high.u32 %v1649
      %v1652 = vshrl.u32 %v1651, 4
      %v1653 = vmul.u32 %v1652, 18
      %v1654 = vsub.s32 %v1648, %v1653
      %v1655 = vsub.s32 0, %v1654
      %v1656 = vsel %vm1646, %v1655, %v1654
      %vm1657 = vcmp.lt.s32.totalorder %v1611, 0
      %v1658 = vsub.s32 0, %v1611
      %v1659 = vsel %vm1657, %v1658, %v1611
      %v1660 = vmul.u32.u64.compose %v1659, 3817748708
      %v1661 = vextract.low.u32 %v1660
      %v1662 = vextract.high.u32 %v1660
      %v1663 = vshrl.u32 %v1662, 4
      %v1664 = vmul.u32 %v1663, 18
      %v1665 = vsub.s32 %v1659, %v1664
      %v1666 = vsub.s32 0, %v1665
      %v1667 = vsel %vm1657, %v1666, %v1665
      %vm1668 = vcmp.lt.s32.totalorder %v1612, 0
      %v1669 = vsub.s32 0, %v1612
      %v1670 = vsel %vm1668, %v1669, %v1612
      %v1671 = vmul.u32.u64.compose %v1670, 3817748708
      %v1672 = vextract.low.u32 %v1671
      %v1673 = vextract.high.u32 %v1671
      %v1674 = vshrl.u32 %v1673, 4
      %v1675 = vmul.u32 %v1674, 18
      %v1676 = vsub.s32 %v1670, %v1675
      %v1677 = vsub.s32 0, %v1676
      %v1678 = vsel %vm1668, %v1677, %v1676
      %vm1679 = vcmp.lt.s32.totalorder %v1613, 0
      %v1680 = vsub.s32 0, %v1613
      %v1681 = vsel %vm1679, %v1680, %v1613
      %v1682 = vmul.u32.u64.compose %v1681, 3817748708
      %v1683 = vextract.low.u32 %v1682
      %v1684 = vextract.high.u32 %v1682
      %v1685 = vshrl.u32 %v1684, 4
      %v1686 = vmul.u32 %v1685, 18
      %v1687 = vsub.s32 %v1681, %v1686
      %v1688 = vsub.s32 0, %v1687
      %v1689 = vsel %vm1679, %v1688, %v1687
      %vm1690 = vcmp.lt.s32.totalorder %v1614, 0
      %v1691 = vsub.s32 0, %v1614
      %v1692 = vsel %vm1690, %v1691, %v1614
      %v1693 = vmul.u32.u64.compose %v1692, 3817748708
      %v1694 = vextract.low.u32 %v1693
      %v1695 = vextract.high.u32 %v1693
      %v1696 = vshrl.u32 %v1695, 4
      %v1697 = vmul.u32 %v1696, 18
      %v1698 = vsub.s32 %v1692, %v1697
      %v1699 = vsub.s32 0, %v1698
      %v1700 = vsel %vm1690, %v1699, %v1698
      %vm1701 = vcmp.lt.s32.totalorder %v1615, 0
      %v1702 = vsub.s32 0, %v1615
      %v1703 = vsel %vm1701, %v1702, %v1615
      %v1704 = vmul.u32.u64.compose %v1703, 3817748708
      %v1705 = vextract.low.u32 %v1704
      %v1706 = vextract.high.u32 %v1704
      %v1707 = vshrl.u32 %v1706, 4
      %v1708 = vmul.u32 %v1707, 18
      %v1709 = vsub.s32 %v1703, %v1708
      %v1710 = vsub.s32 0, %v1709
      %v1711 = vsel %vm1701, %v1710, %v1709
      %vm1712 = vcmp.lt.s32.totalorder %v1616, 0
      %v1713 = vsub.s32 0, %v1616
      %v1714 = vsel %vm1712, %v1713, %v1616
      %v1715 = vmul.u32.u64.compose %v1714, 3817748708
      %v1716 = vextract.low.u32 %v1715
      %v1717 = vextract.high.u32 %v1715
      %v1718 = vshrl.u32 %v1717, 4
      %v1719 = vmul.u32 %v1718, 18
      %v1720 = vsub.s32 %v1714, %v1719
      %v1721 = vsub.s32 0, %v1720
      %v1722 = vsel %vm1712, %v1721, %v1720
      %vm1723 = vcmp.lt.s32.totalorder %v1617, 0
      %v1724 = vsub.s32 0, %v1617
      %v1725 = vsel %vm1723, %v1724, %v1617
      %v1726 = vmul.u32.u64.compose %v1725, 3817748708
      %v1727 = vextract.low.u32 %v1726
      %v1728 = vextract.high.u32 %v1726
      %v1729 = vshrl.u32 %v1728, 4
      %v1730 = vmul.u32 %v1729, 18
      %v1731 = vsub.s32 %v1725, %v1730
      %v1732 = vsub.s32 0, %v1731
      %v1733 = vsel %vm1723, %v1732, %v1731
      %vm1734 = vcmp.lt.s32.totalorder %v1618, 0
      %v1735 = vsub.s32 0, %v1618
      %v1736 = vsel %vm1734, %v1735, %v1618
      %v1737 = vmul.u32.u64.compose %v1736, 3817748708
      %v1738 = vextract.low.u32 %v1737
      %v1739 = vextract.high.u32 %v1737
      %v1740 = vshrl.u32 %v1739, 4
      %v1741 = vmul.u32 %v1740, 18
      %v1742 = vsub.s32 %v1736, %v1741
      %v1743 = vsub.s32 0, %v1742
      %v1744 = vsel %vm1734, %v1743, %v1742
      %vm1745 = vcmp.lt.s32.totalorder %v1619, 0
      %v1746 = vsub.s32 0, %v1619
      %v1747 = vsel %vm1745, %v1746, %v1619
      %v1748 = vmul.u32.u64.compose %v1747, 3817748708
      %v1749 = vextract.low.u32 %v1748
      %v1750 = vextract.high.u32 %v1748
      %v1751 = vshrl.u32 %v1750, 4
      %v1752 = vmul.u32 %v1751, 18
      %v1753 = vsub.s32 %v1747, %v1752
      %v1754 = vsub.s32 0, %v1753
      %v1755 = vsel %vm1745, %v1754, %v1753
      %vm1756 = vcmp.lt.s32.totalorder %v1620, 0
      %v1757 = vsub.s32 0, %v1620
      %v1758 = vsel %vm1756, %v1757, %v1620
      %v1759 = vmul.u32.u64.compose %v1758, 3817748708
      %v1760 = vextract.low.u32 %v1759
      %v1761 = vextract.high.u32 %v1759
      %v1762 = vshrl.u32 %v1761, 4
      %v1763 = vmul.u32 %v1762, 18
      %v1764 = vsub.s32 %v1758, %v1763
      %v1765 = vsub.s32 0, %v1764
      %v1766 = vsel %vm1756, %v1765, %v1764
      %vm1767 = vcmp.lt.s32.totalorder %v1621, 0
      %v1768 = vsub.s32 0, %v1621
      %v1769 = vsel %vm1767, %v1768, %v1621
      %v1770 = vmul.u32.u64.compose %v1769, 3817748708
      %v1771 = vextract.low.u32 %v1770
      %v1772 = vextract.high.u32 %v1770
      %v1773 = vshrl.u32 %v1772, 4
      %v1774 = vmul.u32 %v1773, 18
      %v1775 = vsub.s32 %v1769, %v1774
      %v1776 = vsub.s32 0, %v1775
      %v1777 = vsel %vm1767, %v1776, %v1775
      %vm1778 = vcmp.lt.s32.totalorder %v1622, 0
      %v1779 = vsub.s32 0, %v1622
      %v1780 = vsel %vm1778, %v1779, %v1622
      %v1781 = vmul.u32.u64.compose %v1780, 3817748708
      %v1782 = vextract.low.u32 %v1781
      %v1783 = vextract.high.u32 %v1781
      %v1784 = vshrl.u32 %v1783, 4
      %v1785 = vmul.u32 %v1784, 18
      %v1786 = vsub.s32 %v1780, %v1785
      %v1787 = vsub.s32 0, %v1786
      %v1788 = vsel %vm1778, %v1787, %v1786
      %vm1789 = vcmp.lt.s32.totalorder %v1623, 0
      %v1790 = vsub.s32 0, %v1623
      %v1791 = vsel %vm1789, %v1790, %v1623
      %v1792 = vmul.u32.u64.compose %v1791, 3817748708
      %v1793 = vextract.low.u32 %v1792
      %v1794 = vextract.high.u32 %v1792
      %v1795 = vshrl.u32 %v1794, 4
      %v1796 = vmul.u32 %v1795, 18
      %v1797 = vsub.s32 %v1791, %v1796
      %v1798 = vsub.s32 0, %v1797
      %v1799 = vsel %vm1789, %v1798, %v1797
      %vm1800 = vcmp.lt.s32.totalorder %v1624, 0
      %v1801 = vsub.s32 0, %v1624
      %v1802 = vsel %vm1800, %v1801, %v1624
      %v1803 = vmul.u32.u64.compose %v1802, 3817748708
      %v1804 = vextract.low.u32 %v1803
      %v1805 = vextract.high.u32 %v1803
      %v1806 = vshrl.u32 %v1805, 4
      %v1807 = vmul.u32 %v1806, 18
      %v1808 = vsub.s32 %v1802, %v1807
      %v1809 = vsub.s32 0, %v1808
      %v1810 = vsel %vm1800, %v1809, %v1808
      %vm1811 = vcmp.lt.s32.totalorder %v1625, 0
      %v1812 = vsub.s32 0, %v1625
      %v1813 = vsel %vm1811, %v1812, %v1625
      %v1814 = vmul.u32.u64.compose %v1813, 3817748708
      %v1815 = vextract.low.u32 %v1814
      %v1816 = vextract.high.u32 %v1814
      %v1817 = vshrl.u32 %v1816, 4
      %v1818 = vmul.u32 %v1817, 18
      %v1819 = vsub.s32 %v1813, %v1818
      %v1820 = vsub.s32 0, %v1819
      %v1821 = vsel %vm1811, %v1820, %v1819
      %vm1822 = vcmp.lt.s32.totalorder %v1626, 0
      %v1823 = vsub.s32 0, %v1626
      %v1824 = vsel %vm1822, %v1823, %v1626
      %v1825 = vmul.u32.u64.compose %v1824, 3817748708
      %v1826 = vextract.low.u32 %v1825
      %v1827 = vextract.high.u32 %v1825
      %v1828 = vshrl.u32 %v1827, 4
      %v1829 = vmul.u32 %v1828, 18
      %v1830 = vsub.s32 %v1824, %v1829
      %v1831 = vsub.s32 0, %v1830
      %v1832 = vsel %vm1822, %v1831, %v1830
      %vm1833 = vcmp.lt.s32.totalorder %v1627, 0
      %v1834 = vsub.s32 0, %v1627
      %v1835 = vsel %vm1833, %v1834, %v1627
      %v1836 = vmul.u32.u64.compose %v1835, 3817748708
      %v1837 = vextract.low.u32 %v1836
      %v1838 = vextract.high.u32 %v1836
      %v1839 = vshrl.u32 %v1838, 4
      %v1840 = vmul.u32 %v1839, 18
      %v1841 = vsub.s32 %v1835, %v1840
      %v1842 = vsub.s32 0, %v1841
      %v1843 = vsel %vm1833, %v1842, %v1841
      %vm1844 = vcmp.lt.s32.totalorder %v1628, 0
      %v1845 = vsub.s32 0, %v1628
      %v1846 = vsel %vm1844, %v1845, %v1628
      %v1847 = vmul.u32.u64.compose %v1846, 3817748708
      %v1848 = vextract.low.u32 %v1847
      %v1849 = vextract.high.u32 %v1847
      %v1850 = vshrl.u32 %v1849, 4
      %v1851 = vmul.u32 %v1850, 18
      %v1852 = vsub.s32 %v1846, %v1851
      %v1853 = vsub.s32 0, %v1852
      %v1854 = vsel %vm1844, %v1853, %v1852
      %vm1855 = vcmp.lt.s32.totalorder %v1629, 0
      %v1856 = vsub.s32 0, %v1629
      %v1857 = vsel %vm1855, %v1856, %v1629
      %v1858 = vmul.u32.u64.compose %v1857, 3817748708
      %v1859 = vextract.low.u32 %v1858
      %v1860 = vextract.high.u32 %v1858
      %v1861 = vshrl.u32 %v1860, 4
      %v1862 = vmul.u32 %v1861, 18
      %v1863 = vsub.s32 %v1857, %v1862
      %v1864 = vsub.s32 0, %v1863
      %v1865 = vsel %vm1855, %v1864, %v1863
      %vm1866 = vcmp.lt.s32.totalorder %v1630, 0
      %v1867 = vsub.s32 0, %v1630
      %v1868 = vsel %vm1866, %v1867, %v1630
      %v1869 = vmul.u32.u64.compose %v1868, 3817748708
      %v1870 = vextract.low.u32 %v1869
      %v1871 = vextract.high.u32 %v1869
      %v1872 = vshrl.u32 %v1871, 4
      %v1873 = vmul.u32 %v1872, 18
      %v1874 = vsub.s32 %v1868, %v1873
      %v1875 = vsub.s32 0, %v1874
      %v1876 = vsel %vm1866, %v1875, %v1874
      %vm1877 = vcmp.lt.s32.totalorder %v1631, 0
      %v1878 = vsub.s32 0, %v1631
      %v1879 = vsel %vm1877, %v1878, %v1631
      %v1880 = vmul.u32.u64.compose %v1879, 3817748708
      %v1881 = vextract.low.u32 %v1880
      %v1882 = vextract.high.u32 %v1880
      %v1883 = vshrl.u32 %v1882, 4
      %v1884 = vmul.u32 %v1883, 18
      %v1885 = vsub.s32 %v1879, %v1884
      %v1886 = vsub.s32 0, %v1885
      %v1887 = vsel %vm1877, %v1886, %v1885
      %vm1888 = vcmp.lt.s32.totalorder %v1632, 0
      %v1889 = vsub.s32 0, %v1632
      %v1890 = vsel %vm1888, %v1889, %v1632
      %v1891 = vmul.u32.u64.compose %v1890, 3817748708
      %v1892 = vextract.low.u32 %v1891
      %v1893 = vextract.high.u32 %v1891
      %v1894 = vshrl.u32 %v1893, 4
      %v1895 = vmul.u32 %v1894, 18
      %v1896 = vsub.s32 %v1890, %v1895
      %v1897 = vsub.s32 0, %v1896
      %v1898 = vsel %vm1888, %v1897, %v1896
      %vm1899 = vcmp.lt.s32.totalorder %v1633, 0
      %v1900 = vsub.s32 0, %v1633
      %v1901 = vsel %vm1899, %v1900, %v1633
      %v1902 = vmul.u32.u64.compose %v1901, 3817748708
      %v1903 = vextract.low.u32 %v1902
      %v1904 = vextract.high.u32 %v1902
      %v1905 = vshrl.u32 %v1904, 4
      %v1906 = vmul.u32 %v1905, 18
      %v1907 = vsub.s32 %v1901, %v1906
      %v1908 = vsub.s32 0, %v1907
      %v1909 = vsel %vm1899, %v1908, %v1907
      %vm1910 = vcmp.lt.s32.totalorder %v1634, 0
      %v1911 = vsub.s32 0, %v1634
      %v1912 = vsel %vm1910, %v1911, %v1634
      %v1913 = vmul.u32.u64.compose %v1912, 3817748708
      %v1914 = vextract.low.u32 %v1913
      %v1915 = vextract.high.u32 %v1913
      %v1916 = vshrl.u32 %v1915, 4
      %v1917 = vmul.u32 %v1916, 18
      %v1918 = vsub.s32 %v1912, %v1917
      %v1919 = vsub.s32 0, %v1918
      %v1920 = vsel %vm1910, %v1919, %v1918
      %vm1921 = vcmp.lt.s32.totalorder %v1635, 0
      %v1922 = vsub.s32 0, %v1635
      %v1923 = vsel %vm1921, %v1922, %v1635
      %v1924 = vmul.u32.u64.compose %v1923, 3817748708
      %v1925 = vextract.low.u32 %v1924
      %v1926 = vextract.high.u32 %v1924
      %v1927 = vshrl.u32 %v1926, 4
      %v1928 = vmul.u32 %v1927, 18
      %v1929 = vsub.s32 %v1923, %v1928
      %v1930 = vsub.s32 0, %v1929
      %v1931 = vsel %vm1921, %v1930, %v1929
      %vm1932 = vcmp.lt.s32.totalorder %v1636, 0
      %v1933 = vsub.s32 0, %v1636
      %v1934 = vsel %vm1932, %v1933, %v1636
      %v1935 = vmul.u32.u64.compose %v1934, 3817748708
      %v1936 = vextract.low.u32 %v1935
      %v1937 = vextract.high.u32 %v1935
      %v1938 = vshrl.u32 %v1937, 4
      %v1939 = vmul.u32 %v1938, 18
      %v1940 = vsub.s32 %v1934, %v1939
      %v1941 = vsub.s32 0, %v1940
      %v1942 = vsel %vm1932, %v1941, %v1940
      %vm1943 = vcmp.lt.s32.totalorder %v1637, 0
      %v1944 = vsub.s32 0, %v1637
      %v1945 = vsel %vm1943, %v1944, %v1637
      %v1946 = vmul.u32.u64.compose %v1945, 3817748708
      %v1947 = vextract.low.u32 %v1946
      %v1948 = vextract.high.u32 %v1946
      %v1949 = vshrl.u32 %v1948, 4
      %v1950 = vmul.u32 %v1949, 18
      %v1951 = vsub.s32 %v1945, %v1950
      %v1952 = vsub.s32 0, %v1951
      %v1953 = vsel %vm1943, %v1952, %v1951
      %vm1954 = vcmp.lt.s32.totalorder %v1638, 0
      %v1955 = vsub.s32 0, %v1638
      %v1956 = vsel %vm1954, %v1955, %v1638
      %v1957 = vmul.u32.u64.compose %v1956, 3817748708
      %v1958 = vextract.low.u32 %v1957
      %v1959 = vextract.high.u32 %v1957
      %v1960 = vshrl.u32 %v1959, 4
      %v1961 = vmul.u32 %v1960, 18
      %v1962 = vsub.s32 %v1956, %v1961
      %v1963 = vsub.s32 0, %v1962
      %v1964 = vsel %vm1954, %v1963, %v1962
      %vm1965 = vcmp.lt.s32.totalorder %v1639, 0
      %v1966 = vsub.s32 0, %v1639
      %v1967 = vsel %vm1965, %v1966, %v1639
      %v1968 = vmul.u32.u64.compose %v1967, 3817748708
      %v1969 = vextract.low.u32 %v1968
      %v1970 = vextract.high.u32 %v1968
      %v1971 = vshrl.u32 %v1970, 4
      %v1972 = vmul.u32 %v1971, 18
      %v1973 = vsub.s32 %v1967, %v1972
      %v1974 = vsub.s32 0, %v1973
      %v1975 = vsel %vm1965, %v1974, %v1973
      %vm1976 = vcmp.lt.s32.totalorder %v1640, 0
      %v1977 = vsub.s32 0, %v1640
      %v1978 = vsel %vm1976, %v1977, %v1640
      %v1979 = vmul.u32.u64.compose %v1978, 3817748708
      %v1980 = vextract.low.u32 %v1979
      %v1981 = vextract.high.u32 %v1979
      %v1982 = vshrl.u32 %v1981, 4
      %v1983 = vmul.u32 %v1982, 18
      %v1984 = vsub.s32 %v1978, %v1983
      %v1985 = vsub.s32 0, %v1984
      %v1986 = vsel %vm1976, %v1985, %v1984
      %vm1987 = vcmp.lt.s32.totalorder %v1641, 0
      %v1988 = vsub.s32 0, %v1641
      %v1989 = vsel %vm1987, %v1988, %v1641
      %v1990 = vmul.u32.u64.compose %v1989, 3817748708
      %v1991 = vextract.low.u32 %v1990
      %v1992 = vextract.high.u32 %v1990
      %v1993 = vshrl.u32 %v1992, 4
      %v1994 = vmul.u32 %v1993, 18
      %v1995 = vsub.s32 %v1989, %v1994
      %v1996 = vsub.s32 0, %v1995
      %v1997 = vsel %vm1987, %v1996, %v1995
      %vm1998 = vcmp.lt.s32.totalorder %v1642, 0
      %v1999 = vsub.s32 0, %v1642
      %v2000 = vsel %vm1998, %v1999, %v1642
      %v2001 = vmul.u32.u64.compose %v2000, 3817748708
      %v2002 = vextract.low.u32 %v2001
      %v2003 = vextract.high.u32 %v2001
      %v2004 = vshrl.u32 %v2003, 4
      %v2005 = vmul.u32 %v2004, 18
      %v2006 = vsub.s32 %v2000, %v2005
      %v2007 = vsub.s32 0, %v2006
      %v2008 = vsel %vm1998, %v2007, %v2006
      %vm2009 = vcmp.lt.s32.totalorder %v1643, 0
      %v2010 = vsub.s32 0, %v1643
      %v2011 = vsel %vm2009, %v2010, %v1643
      %v2012 = vmul.u32.u64.compose %v2011, 3817748708
      %v2013 = vextract.low.u32 %v2012
      %v2014 = vextract.high.u32 %v2012
      %v2015 = vshrl.u32 %v2014, 4
      %v2016 = vmul.u32 %v2015, 18
      %v2017 = vsub.s32 %v2011, %v2016
      %v2018 = vsub.s32 0, %v2017
      %v2019 = vsel %vm2009, %v2018, %v2017
      %vm2020 = vcmp.lt.s32.totalorder %v1644, 0
      %v2021 = vsub.s32 0, %v1644
      %v2022 = vsel %vm2020, %v2021, %v1644
      %v2023 = vmul.u32.u64.compose %v2022, 3817748708
      %v2024 = vextract.low.u32 %v2023
      %v2025 = vextract.high.u32 %v2023
      %v2026 = vshrl.u32 %v2025, 4
      %v2027 = vmul.u32 %v2026, 18
      %v2028 = vsub.s32 %v2022, %v2027
      %v2029 = vsub.s32 0, %v2028
      %v2030 = vsel %vm2020, %v2029, %v2028
      %vm2031 = vcmp.lt.s32.totalorder %v1645, 0
      %v2032 = vsub.s32 0, %v1645
      %v2033 = vsel %vm2031, %v2032, %v1645
      %v2034 = vmul.u32.u64.compose %v2033, 3817748708
      %v2035 = vextract.low.u32 %v2034
      %v2036 = vextract.high.u32 %v2034
      %v2037 = vshrl.u32 %v2036, 4
      %v2038 = vmul.u32 %v2037, 18
      %v2039 = vsub.s32 %v2033, %v2038
      %v2040 = vsub.s32 0, %v2039
      %v2041 = vsel %vm2031, %v2040, %v2039
      %vm2042 = vcmp.ne.s32.totalorder %v1656, 0
      %vm2043 = vcmp.ne.s32.totalorder %v1667, 0
      %vm2044 = vcmp.ne.s32.totalorder %v1678, 0
      %vm2045 = vcmp.ne.s32.totalorder %v1689, 0
      %vm2046 = vcmp.ne.s32.totalorder %v1700, 0
      %vm2047 = vcmp.ne.s32.totalorder %v1711, 0
      %vm2048 = vcmp.ne.s32.totalorder %v1722, 0
      %vm2049 = vcmp.ne.s32.totalorder %v1733, 0
      %vm2050 = vcmp.ne.s32.totalorder %v1744, 0
      %vm2051 = vcmp.ne.s32.totalorder %v1755, 0
      %vm2052 = vcmp.ne.s32.totalorder %v1766, 0
      %vm2053 = vcmp.ne.s32.totalorder %v1777, 0
      %vm2054 = vcmp.ne.s32.totalorder %v1788, 0
      %vm2055 = vcmp.ne.s32.totalorder %v1799, 0
      %vm2056 = vcmp.ne.s32.totalorder %v1810, 0
      %vm2057 = vcmp.ne.s32.totalorder %v1821, 0
      %vm2058 = vcmp.ne.s32.totalorder %v1832, 0
      %vm2059 = vcmp.ne.s32.totalorder %v1843, 0
      %vm2060 = vcmp.ne.s32.totalorder %v1854, 0
      %vm2061 = vcmp.ne.s32.totalorder %v1865, 0
      %vm2062 = vcmp.ne.s32.totalorder %v1876, 0
      %vm2063 = vcmp.ne.s32.totalorder %v1887, 0
      %vm2064 = vcmp.ne.s32.totalorder %v1898, 0
      %vm2065 = vcmp.ne.s32.totalorder %v1909, 0
      %vm2066 = vcmp.ne.s32.totalorder %v1920, 0
      %vm2067 = vcmp.ne.s32.totalorder %v1931, 0
      %vm2068 = vcmp.ne.s32.totalorder %v1942, 0
      %vm2069 = vcmp.ne.s32.totalorder %v1953, 0
      %vm2070 = vcmp.ne.s32.totalorder %v1964, 0
      %vm2071 = vcmp.ne.s32.totalorder %v1975, 0
      %vm2072 = vcmp.ne.s32.totalorder %v1986, 0
      %vm2073 = vcmp.ne.s32.totalorder %v1997, 0
      %vm2074 = vcmp.ne.s32.totalorder %v2008, 0
      %vm2075 = vcmp.ne.s32.totalorder %v2019, 0
      %vm2076 = vcmp.ne.s32.totalorder %v2030, 0
      %vm2077 = vcmp.ne.s32.totalorder %v2041, 0
      %vm2078 = vcmp.lt.s32.totalorder %v1656, 0
      %vm2079 = vcmp.lt.s32.totalorder %v1667, 0
      %vm2080 = vcmp.lt.s32.totalorder %v1678, 0
      %vm2081 = vcmp.lt.s32.totalorder %v1689, 0
      %vm2082 = vcmp.lt.s32.totalorder %v1700, 0
      %vm2083 = vcmp.lt.s32.totalorder %v1711, 0
      %vm2084 = vcmp.lt.s32.totalorder %v1722, 0
      %vm2085 = vcmp.lt.s32.totalorder %v1733, 0
      %vm2086 = vcmp.lt.s32.totalorder %v1744, 0
      %vm2087 = vcmp.lt.s32.totalorder %v1755, 0
      %vm2088 = vcmp.lt.s32.totalorder %v1766, 0
      %vm2089 = vcmp.lt.s32.totalorder %v1777, 0
      %vm2090 = vcmp.lt.s32.totalorder %v1788, 0
      %vm2091 = vcmp.lt.s32.totalorder %v1799, 0
      %vm2092 = vcmp.lt.s32.totalorder %v1810, 0
      %vm2093 = vcmp.lt.s32.totalorder %v1821, 0
      %vm2094 = vcmp.lt.s32.totalorder %v1832, 0
      %vm2095 = vcmp.lt.s32.totalorder %v1843, 0
      %vm2096 = vcmp.lt.s32.totalorder %v1854, 0
      %vm2097 = vcmp.lt.s32.totalorder %v1865, 0
      %vm2098 = vcmp.lt.s32.totalorder %v1876, 0
      %vm2099 = vcmp.lt.s32.totalorder %v1887, 0
      %vm2100 = vcmp.lt.s32.totalorder %v1898, 0
      %vm2101 = vcmp.lt.s32.totalorder %v1909, 0
      %vm2102 = vcmp.lt.s32.totalorder %v1920, 0
      %vm2103 = vcmp.lt.s32.totalorder %v1931, 0
      %vm2104 = vcmp.lt.s32.totalorder %v1942, 0
      %vm2105 = vcmp.lt.s32.totalorder %v1953, 0
      %vm2106 = vcmp.lt.s32.totalorder %v1964, 0
      %vm2107 = vcmp.lt.s32.totalorder %v1975, 0
      %vm2108 = vcmp.lt.s32.totalorder %v1986, 0
      %vm2109 = vcmp.lt.s32.totalorder %v1997, 0
      %vm2110 = vcmp.lt.s32.totalorder %v2008, 0
      %vm2111 = vcmp.lt.s32.totalorder %v2019, 0
      %vm2112 = vcmp.lt.s32.totalorder %v2030, 0
      %vm2113 = vcmp.lt.s32.totalorder %v2041, 0
      %vm2114 = vmand %vm2078, %vm2042
      %vm2115 = vmand %vm2079, %vm2043
      %vm2116 = vmand %vm2080, %vm2044
      %vm2117 = vmand %vm2081, %vm2045
      %vm2118 = vmand %vm2082, %vm2046
      %vm2119 = vmand %vm2083, %vm2047
      %vm2120 = vmand %vm2084, %vm2048
      %vm2121 = vmand %vm2085, %vm2049
      %vm2122 = vmand %vm2086, %vm2050
      %vm2123 = vmand %vm2087, %vm2051
      %vm2124 = vmand %vm2088, %vm2052
      %vm2125 = vmand %vm2089, %vm2053
      %vm2126 = vmand %vm2090, %vm2054
      %vm2127 = vmand %vm2091, %vm2055
      %vm2128 = vmand %vm2092, %vm2056
      %vm2129 = vmand %vm2093, %vm2057
      %vm2130 = vmand %vm2094, %vm2058
      %vm2131 = vmand %vm2095, %vm2059
      %vm2132 = vmand %vm2096, %vm2060
      %vm2133 = vmand %vm2097, %vm2061
      %vm2134 = vmand %vm2098, %vm2062
      %vm2135 = vmand %vm2099, %vm2063
      %vm2136 = vmand %vm2100, %vm2064
      %vm2137 = vmand %vm2101, %vm2065
      %vm2138 = vmand %vm2102, %vm2066
      %vm2139 = vmand %vm2103, %vm2067
      %vm2140 = vmand %vm2104, %vm2068
      %vm2141 = vmand %vm2105, %vm2069
      %vm2142 = vmand %vm2106, %vm2070
      %vm2143 = vmand %vm2107, %vm2071
      %vm2144 = vmand %vm2108, %vm2072
      %vm2145 = vmand %vm2109, %vm2073
      %vm2146 = vmand %vm2110, %vm2074
      %vm2147 = vmand %vm2111, %vm2075
      %vm2148 = vmand %vm2112, %vm2076
      %vm2149 = vmand %vm2113, %vm2077
      %v2150 = vadd.s32 %v1656, 18
      %v2151 = vadd.s32 %v1667, 18
      %v2152 = vadd.s32 %v1678, 18
      %v2153 = vadd.s32 %v1689, 18
      %v2154 = vadd.s32 %v1700, 18
      %v2155 = vadd.s32 %v1711, 18
      %v2156 = vadd.s32 %v1722, 18
      %v2157 = vadd.s32 %v1733, 18
      %v2158 = vadd.s32 %v1744, 18
      %v2159 = vadd.s32 %v1755, 18
      %v2160 = vadd.s32 %v1766, 18
      %v2161 = vadd.s32 %v1777, 18
      %v2162 = vadd.s32 %v1788, 18
      %v2163 = vadd.s32 %v1799, 18
      %v2164 = vadd.s32 %v1810, 18
      %v2165 = vadd.s32 %v1821, 18
      %v2166 = vadd.s32 %v1832, 18
      %v2167 = vadd.s32 %v1843, 18
      %v2168 = vadd.s32 %v1854, 18
      %v2169 = vadd.s32 %v1865, 18
      %v2170 = vadd.s32 %v1876, 18
      %v2171 = vadd.s32 %v1887, 18
      %v2172 = vadd.s32 %v1898, 18
      %v2173 = vadd.s32 %v1909, 18
      %v2174 = vadd.s32 %v1920, 18
      %v2175 = vadd.s32 %v1931, 18
      %v2176 = vadd.s32 %v1942, 18
      %v2177 = vadd.s32 %v1953, 18
      %v2178 = vadd.s32 %v1964, 18
      %v2179 = vadd.s32 %v1975, 18
      %v2180 = vadd.s32 %v1986, 18
      %v2181 = vadd.s32 %v1997, 18
      %v2182 = vadd.s32 %v2008, 18
      %v2183 = vadd.s32 %v2019, 18
      %v2184 = vadd.s32 %v2030, 18
      %v2185 = vadd.s32 %v2041, 18
      %v2186 = vsel %vm2114, %v2150, %v1656
      %v2187 = vsel %vm2115, %v2151, %v1667
      %v2188 = vsel %vm2116, %v2152, %v1678
      %v2189 = vsel %vm2117, %v2153, %v1689
      %v2190 = vsel %vm2118, %v2154, %v1700
      %v2191 = vsel %vm2119, %v2155, %v1711
      %v2192 = vsel %vm2120, %v2156, %v1722
      %v2193 = vsel %vm2121, %v2157, %v1733
      %v2194 = vsel %vm2122, %v2158, %v1744
      %v2195 = vsel %vm2123, %v2159, %v1755
      %v2196 = vsel %vm2124, %v2160, %v1766
      %v2197 = vsel %vm2125, %v2161, %v1777
      %v2198 = vsel %vm2126, %v2162, %v1788
      %v2199 = vsel %vm2127, %v2163, %v1799
      %v2200 = vsel %vm2128, %v2164, %v1810
      %v2201 = vsel %vm2129, %v2165, %v1821
      %v2202 = vsel %vm2130, %v2166, %v1832
      %v2203 = vsel %vm2131, %v2167, %v1843
      %v2204 = vsel %vm2132, %v2168, %v1854
      %v2205 = vsel %vm2133, %v2169, %v1865
      %v2206 = vsel %vm2134, %v2170, %v1876
      %v2207 = vsel %vm2135, %v2171, %v1887
      %v2208 = vsel %vm2136, %v2172, %v1898
      %v2209 = vsel %vm2137, %v2173, %v1909
      %v2210 = vsel %vm2138, %v2174, %v1920
      %v2211 = vsel %vm2139, %v2175, %v1931
      %v2212 = vsel %vm2140, %v2176, %v1942
      %v2213 = vsel %vm2141, %v2177, %v1953
      %v2214 = vsel %vm2142, %v2178, %v1964
      %v2215 = vsel %vm2143, %v2179, %v1975
      %v2216 = vsel %vm2144, %v2180, %v1986
      %v2217 = vsel %vm2145, %v2181, %v1997
      %v2218 = vsel %vm2146, %v2182, %v2008
      %v2219 = vsel %vm2147, %v2183, %v2019
      %v2220 = vsel %vm2148, %v2184, %v2030
      %v2221 = vsel %vm2149, %v2185, %v2041
      %vm2222 = vcmp.lt.s32.totalorder %v2186, 16
      %vm2223 = vcmp.lt.s32.totalorder %v2187, 16
      %vm2224 = vcmp.lt.s32.totalorder %v2188, 16
      %vm2225 = vcmp.lt.s32.totalorder %v2189, 16
      %vm2226 = vcmp.lt.s32.totalorder %v2190, 16
      %vm2227 = vcmp.lt.s32.totalorder %v2191, 16
      %vm2228 = vcmp.lt.s32.totalorder %v2192, 16
      %vm2229 = vcmp.lt.s32.totalorder %v2193, 16
      %vm2230 = vcmp.lt.s32.totalorder %v2194, 16
      %vm2231 = vcmp.lt.s32.totalorder %v2195, 16
      %vm2232 = vcmp.lt.s32.totalorder %v2196, 16
      %vm2233 = vcmp.lt.s32.totalorder %v2197, 16
      %vm2234 = vcmp.lt.s32.totalorder %v2198, 16
      %vm2235 = vcmp.lt.s32.totalorder %v2199, 16
      %vm2236 = vcmp.lt.s32.totalorder %v2200, 16
      %vm2237 = vcmp.lt.s32.totalorder %v2201, 16
      %vm2238 = vcmp.lt.s32.totalorder %v2202, 16
      %vm2239 = vcmp.lt.s32.totalorder %v2203, 16
      %vm2240 = vcmp.lt.s32.totalorder %v2204, 16
      %vm2241 = vcmp.lt.s32.totalorder %v2205, 16
      %vm2242 = vcmp.lt.s32.totalorder %v2206, 16
      %vm2243 = vcmp.lt.s32.totalorder %v2207, 16
      %vm2244 = vcmp.lt.s32.totalorder %v2208, 16
      %vm2245 = vcmp.lt.s32.totalorder %v2209, 16
      %vm2246 = vcmp.lt.s32.totalorder %v2210, 16
      %vm2247 = vcmp.lt.s32.totalorder %v2211, 16
      %vm2248 = vcmp.lt.s32.totalorder %v2212, 16
      %vm2249 = vcmp.lt.s32.totalorder %v2213, 16
      %vm2250 = vcmp.lt.s32.totalorder %v2214, 16
      %vm2251 = vcmp.lt.s32.totalorder %v2215, 16
      %vm2252 = vcmp.lt.s32.totalorder %v2216, 16
      %vm2253 = vcmp.lt.s32.totalorder %v2217, 16
      %vm2254 = vcmp.lt.s32.totalorder %v2218, 16
      %vm2255 = vcmp.lt.s32.totalorder %v2219, 16
      %vm2256 = vcmp.lt.s32.totalorder %v2220, 16
      %vm2257 = vcmp.lt.s32.totalorder %v2221, 16
      %v2258 = vsel %vm2222, 1, 0
      %v2259 = vsel %vm2223, 1, 0
      %v2260 = vsel %vm2224, 1, 0
      %v2261 = vsel %vm2225, 1, 0
      %v2262 = vsel %vm2226, 1, 0
      %v2263 = vsel %vm2227, 1, 0
      %v2264 = vsel %vm2228, 1, 0
      %v2265 = vsel %vm2229, 1, 0
      %v2266 = vsel %vm2230, 1, 0
      %v2267 = vsel %vm2231, 1, 0
      %v2268 = vsel %vm2232, 1, 0
      %v2269 = vsel %vm2233, 1, 0
      %v2270 = vsel %vm2234, 1, 0
      %v2271 = vsel %vm2235, 1, 0
      %v2272 = vsel %vm2236, 1, 0
      %v2273 = vsel %vm2237, 1, 0
      %v2274 = vsel %vm2238, 1, 0
      %v2275 = vsel %vm2239, 1, 0
      %v2276 = vsel %vm2240, 1, 0
      %v2277 = vsel %vm2241, 1, 0
      %v2278 = vsel %vm2242, 1, 0
      %v2279 = vsel %vm2243, 1, 0
      %v2280 = vsel %vm2244, 1, 0
      %v2281 = vsel %vm2245, 1, 0
      %v2282 = vsel %vm2246, 1, 0
      %v2283 = vsel %vm2247, 1, 0
      %v2284 = vsel %vm2248, 1, 0
      %v2285 = vsel %vm2249, 1, 0
      %v2286 = vsel %vm2250, 1, 0
      %v2287 = vsel %vm2251, 1, 0
      %v2288 = vsel %vm2252, 1, 0
      %v2289 = vsel %vm2253, 1, 0
      %v2290 = vsel %vm2254, 1, 0
      %v2291 = vsel %vm2255, 1, 0
      %v2292 = vsel %vm2256, 1, 0
      %v2293 = vsel %vm2257, 1, 0
      %v2294 = vcvt.s32.f32 %v2258
      %v2295 = vcvt.s32.f32 %v2259
      %v2296 = vcvt.s32.f32 %v2260
      %v2297 = vcvt.s32.f32 %v2261
      %v2298 = vcvt.s32.f32 %v2262
      %v2299 = vcvt.s32.f32 %v2263
      %v2300 = vcvt.s32.f32 %v2264
      %v2301 = vcvt.s32.f32 %v2265
      %v2302 = vcvt.s32.f32 %v2266
      %v2303 = vcvt.s32.f32 %v2267
      %v2304 = vcvt.s32.f32 %v2268
      %v2305 = vcvt.s32.f32 %v2269
      %v2306 = vcvt.s32.f32 %v2270
      %v2307 = vcvt.s32.f32 %v2271
      %v2308 = vcvt.s32.f32 %v2272
      %v2309 = vcvt.s32.f32 %v2273
      %v2310 = vcvt.s32.f32 %v2274
      %v2311 = vcvt.s32.f32 %v2275
      %v2312 = vcvt.s32.f32 %v2276
      %v2313 = vcvt.s32.f32 %v2277
      %v2314 = vcvt.s32.f32 %v2278
      %v2315 = vcvt.s32.f32 %v2279
      %v2316 = vcvt.s32.f32 %v2280
      %v2317 = vcvt.s32.f32 %v2281
      %v2318 = vcvt.s32.f32 %v2282
      %v2319 = vcvt.s32.f32 %v2283
      %v2320 = vcvt.s32.f32 %v2284
      %v2321 = vcvt.s32.f32 %v2285
      %v2322 = vcvt.s32.f32 %v2286
      %v2323 = vcvt.s32.f32 %v2287
      %v2324 = vcvt.s32.f32 %v2288
      %v2325 = vcvt.s32.f32 %v2289
      %v2326 = vcvt.s32.f32 %v2290
      %v2327 = vcvt.s32.f32 %v2291
      %v2328 = vcvt.s32.f32 %v2292
      %v2329 = vcvt.s32.f32 %v2293
      %v2330 = vmul.f32 %v1467, %v2294
      %v2331 = vmul.f32 %v1470, %v2295
      %v2332 = vmul.f32 %v1475, %v2296
      %v2333 = vmul.f32 %v1478, %v2297
      %v2334 = vmul.f32 %v1483, %v2298
      %v2335 = vmul.f32 %v1486, %v2299
      %v2336 = vmul.f32 %v1491, %v2300
      %v2337 = vmul.f32 %v1494, %v2301
      %v2338 = vmul.f32 %v1499, %v2302
      %v2339 = vmul.f32 %v1502, %v2303
      %v2340 = vmul.f32 %v1507, %v2304
      %v2341 = vmul.f32 %v1510, %v2305
      %v2342 = vmul.f32 %v1515, %v2306
      %v2343 = vmul.f32 %v1518, %v2307
      %v2344 = vmul.f32 %v1523, %v2308
      %v2345 = vmul.f32 %v1526, %v2309
      %v2346 = vmul.f32 %v1531, %v2310
      %v2347 = vmul.f32 %v1534, %v2311
      %v2348 = vmul.f32 %v1539, %v2312
      %v2349 = vmul.f32 %v1542, %v2313
      %v2350 = vmul.f32 %v1547, %v2314
      %v2351 = vmul.f32 %v1550, %v2315
      %v2352 = vmul.f32 %v1555, %v2316
      %v2353 = vmul.f32 %v1558, %v2317
      %v2354 = vmul.f32 %v1563, %v2318
      %v2355 = vmul.f32 %v1566, %v2319
      %v2356 = vmul.f32 %v1571, %v2320
      %v2357 = vmul.f32 %v1574, %v2321
      %v2358 = vmul.f32 %v1579, %v2322
      %v2359 = vmul.f32 %v1582, %v2323
      %v2360 = vmul.f32 %v1587, %v2324
      %v2361 = vmul.f32 %v1590, %v2325
      %v2362 = vmul.f32 %v1595, %v2326
      %v2363 = vmul.f32 %v1598, %v2327
      %v2364 = vmul.f32 %v1603, %v2328
      %v2365 = vmul.f32 %v1606, %v2329
      %v2366 = vadd.f32 %v2330, %v2331
      %v2367 = vadd.f32 %v2366, %v2332
      %v2368 = vadd.f32 %v2367, %v2333
      %v2369 = vadd.f32 %v2368, %v2334
      %v2370 = vadd.f32 %v2369, %v2335
      %v2371 = vadd.f32 %v2370, %v2336
      %v2372 = vadd.f32 %v2371, %v2337
      %v2373 = vadd.f32 %v2372, %v2338
      %v2374 = vadd.f32 %v2373, %v2339
      %v2375 = vadd.f32 %v2374, %v2340
      %v2376 = vadd.f32 %v2375, %v2341
      %v2377 = vadd.f32 %v2376, %v2342
      %v2378 = vadd.f32 %v2377, %v2343
      %v2379 = vadd.f32 %v2378, %v2344
      %v2380 = vadd.f32 %v2379, %v2345
      %v2381 = vadd.f32 %v2380, %v2346
      %v2382 = vadd.f32 %v2381, %v2347
      %v2383 = vadd.f32 %v2382, %v2348
      %v2384 = vadd.f32 %v2383, %v2349
      %v2385 = vadd.f32 %v2384, %v2350
      %v2386 = vadd.f32 %v2385, %v2351
      %v2387 = vadd.f32 %v2386, %v2352
      %v2388 = vadd.f32 %v2387, %v2353
      %v2389 = vadd.f32 %v2388, %v2354
      %v2390 = vadd.f32 %v2389, %v2355
      %v2391 = vadd.f32 %v2390, %v2356
      %v2392 = vadd.f32 %v2391, %v2357
      %v2393 = vadd.f32 %v2392, %v2358
      %v2394 = vadd.f32 %v2393, %v2359
      %v2395 = vadd.f32 %v2394, %v2360
      %v2396 = vadd.f32 %v2395, %v2361
      %v2397 = vadd.f32 %v2396, %v2362
      %v2398 = vadd.f32 %v2397, %v2363
      %v2399 = vadd.f32 %v2398, %v2364
      %v2400 = vadd.f32 %v2399, %v2365
      %v2401 = vrot.slane %v2400, 4
      %v2402 = vadd.f32 %v2400, %v2401
      %v2403 = vrot.slane %v2402, 2
      %v2404 = vadd.f32 %v2402, %v2403
      %v2405 = vrot.slane %v2404, 1
      %v2406 = vadd.f32 %v2404, %v2405
      %2407 = vst [vmem:[%s262] sm:$0x1] %v2406
      %v2408 = vmul.f32 %v2330, %v1467
      %v2409 = vmul.f32 %v2331, %v1470
      %v2410 = vmul.f32 %v2332, %v1475
      %v2411 = vmul.f32 %v2333, %v1478
      %v2412 = vmul.f32 %v2334, %v1483
      %v2413 = vmul.f32 %v2335, %v1486
      %v2414 = vmul.f32 %v2336, %v1491
      %v2415 = vmul.f32 %v2337, %v1494
      %v2416 = vmul.f32 %v2338, %v1499
      %v2417 = vmul.f32 %v2339, %v1502
      %v2418 = vmul.f32 %v2340, %v1507
      %v2419 = vmul.f32 %v2341, %v1510
      %v2420 = vmul.f32 %v2342, %v1515
      %v2421 = vmul.f32 %v2343, %v1518
      %v2422 = vmul.f32 %v2344, %v1523
      %v2423 = vmul.f32 %v2345, %v1526
      %v2424 = vmul.f32 %v2346, %v1531
      %v2425 = vmul.f32 %v2347, %v1534
      %v2426 = vmul.f32 %v2348, %v1539
      %v2427 = vmul.f32 %v2349, %v1542
      %v2428 = vmul.f32 %v2350, %v1547
      %v2429 = vmul.f32 %v2351, %v1550
      %v2430 = vmul.f32 %v2352, %v1555
      %v2431 = vmul.f32 %v2353, %v1558
      %v2432 = vmul.f32 %v2354, %v1563
      %v2433 = vmul.f32 %v2355, %v1566
      %v2434 = vmul.f32 %v2356, %v1571
      %v2435 = vmul.f32 %v2357, %v1574
      %v2436 = vmul.f32 %v2358, %v1579
      %v2437 = vmul.f32 %v2359, %v1582
      %v2438 = vmul.f32 %v2360, %v1587
      %v2439 = vmul.f32 %v2361, %v1590
      %v2440 = vmul.f32 %v2362, %v1595
      %v2441 = vmul.f32 %v2363, %v1598
      %v2442 = vmul.f32 %v2364, %v1603
      %v2443 = vmul.f32 %v2365, %v1606
      %v2444 = vadd.f32 %v2408, %v2409
      %v2445 = vadd.f32 %v2444, %v2410
      %v2446 = vadd.f32 %v2445, %v2411
      %v2447 = vadd.f32 %v2446, %v2412
      %v2448 = vadd.f32 %v2447, %v2413
      %v2449 = vadd.f32 %v2448, %v2414
      %v2450 = vadd.f32 %v2449, %v2415
      %v2451 = vadd.f32 %v2450, %v2416
      %v2452 = vadd.f32 %v2451, %v2417
      %v2453 = vadd.f32 %v2452, %v2418
      %v2454 = vadd.f32 %v2453, %v2419
      %v2455 = vadd.f32 %v2454, %v2420
      %v2456 = vadd.f32 %v2455, %v2421
      %v2457 = vadd.f32 %v2456, %v2422
      %v2458 = vadd.f32 %v2457, %v2423
      %v2459 = vadd.f32 %v2458, %v2424
      %v2460 = vadd.f32 %v2459, %v2425
      %v2461 = vadd.f32 %v2460, %v2426
      %v2462 = vadd.f32 %v2461, %v2427
      %v2463 = vadd.f32 %v2462, %v2428
      %v2464 = vadd.f32 %v2463, %v2429
      %v2465 = vadd.f32 %v2464, %v2430
      %v2466 = vadd.f32 %v2465, %v2431
      %v2467 = vadd.f32 %v2466, %v2432
      %v2468 = vadd.f32 %v2467, %v2433
      %v2469 = vadd.f32 %v2468, %v2434
      %v2470 = vadd.f32 %v2469, %v2435
      %v2471 = vadd.f32 %v2470, %v2436
      %v2472 = vadd.f32 %v2471, %v2437
      %v2473 = vadd.f32 %v2472, %v2438
      %v2474 = vadd.f32 %v2473, %v2439
      %v2475 = vadd.f32 %v2474, %v2440
      %v2476 = vadd.f32 %v2475, %v2441
      %v2477 = vadd.f32 %v2476, %v2442
      %v2478 = vadd.f32 %v2477, %v2443
      %v2479 = vrot.slane %v2478, 4
      %v2480 = vadd.f32 %v2478, %v2479
      %v2481 = vrot.slane %v2480, 2
      %v2482 = vadd.f32 %v2480, %v2481
      %v2483 = vrot.slane %v2482, 1
      %v2484 = vadd.f32 %v2482, %v2483
      %2485 = vst [vmem:[%s262 + $0x1] sm:$0x1] %v2484
      %2486 = vst [vmem:[%s258] sm:$0xf] 4048220490
      %2487 = vst [vmem:[%s258 + $0x4] sm:$0xf] 4048220490
      %vm2488 = vcmask 1041408
      %vm2489 = vsmask.f32 1280
      %vm2490 = vmand %vm2488, %vm2489
      %v2491 = vld [vmem:[%s258 + $0x8] sm:$0x3]
      %v2492 = vsel %vm2490, 4048220490, %v2491
      %2493 = vst [vmem:[%s258 + $0x8] sm:$0x3] %v2492
      %vm2494 = vcmask 1043457
      %vm2495 = vsmask.f32 7942
      %vm2496 = vmand %vm2494, %vm2495
      %v2497 = vld [vmem:[%s258 + $0x98] sm:$0xe]
      %v2498 = vsel %vm2496, 4048220490, %v2497
      %2499 = vst [vmem:[%s258 + $0x98] sm:$0xe] %v2498
      %2500 = vst [vmem:[%s258 + $0x9c] sm:$0xf] 4048220490
      %2501 = vst [vmem:[%s258 + $0xa0] sm:$0xf] 4048220490
      %2502 = vst [vmem:[%s258 + $0xa4] sm:$0xf] 4048220490
      %2503 = vst [vmem:[%s258 + $0xa8] sm:$0x7] 4048220490
      %vm2504 = vcmp.eq.s32.totalorder %v2258, 1
      %vm2505 = vcmp.eq.s32.totalorder %v2259, 1
      %vm2506 = vcmp.eq.s32.totalorder %v2260, 1
      %vm2507 = vcmp.eq.s32.totalorder %v2261, 1
      %vm2508 = vcmp.eq.s32.totalorder %v2262, 1
      %vm2509 = vcmp.eq.s32.totalorder %v2263, 1
      %vm2510 = vcmp.eq.s32.totalorder %v2264, 1
      %vm2511 = vcmp.eq.s32.totalorder %v2265, 1
      %vm2512 = vcmp.eq.s32.totalorder %v2266, 1
      %vm2513 = vcmp.eq.s32.totalorder %v2267, 1
      %vm2514 = vcmp.eq.s32.totalorder %v2268, 1
      %vm2515 = vcmp.eq.s32.totalorder %v2269, 1
      %vm2516 = vcmp.eq.s32.totalorder %v2270, 1
      %vm2517 = vcmp.eq.s32.totalorder %v2271, 1
      %vm2518 = vcmp.eq.s32.totalorder %v2272, 1
      %vm2519 = vcmp.eq.s32.totalorder %v2273, 1
      %vm2520 = vcmp.eq.s32.totalorder %v2274, 1
      %vm2521 = vcmp.eq.s32.totalorder %v2275, 1
      %vm2522 = vcmp.eq.s32.totalorder %v2276, 1
      %vm2523 = vcmp.eq.s32.totalorder %v2277, 1
      %vm2524 = vcmp.eq.s32.totalorder %v2278, 1
      %vm2525 = vcmp.eq.s32.totalorder %v2279, 1
      %vm2526 = vcmp.eq.s32.totalorder %v2280, 1
      %vm2527 = vcmp.eq.s32.totalorder %v2281, 1
      %vm2528 = vcmp.eq.s32.totalorder %v2282, 1
      %vm2529 = vcmp.eq.s32.totalorder %v2283, 1
      %vm2530 = vcmp.eq.s32.totalorder %v2284, 1
      %vm2531 = vcmp.eq.s32.totalorder %v2285, 1
      %vm2532 = vcmp.eq.s32.totalorder %v2286, 1
      %vm2533 = vcmp.eq.s32.totalorder %v2287, 1
      %vm2534 = vcmp.eq.s32.totalorder %v2288, 1
      %vm2535 = vcmp.eq.s32.totalorder %v2289, 1
      %vm2536 = vcmp.eq.s32.totalorder %v2290, 1
      %vm2537 = vcmp.eq.s32.totalorder %v2291, 1
      %vm2538 = vcmp.eq.s32.totalorder %v2292, 1
      %vm2539 = vcmp.eq.s32.totalorder %v2293, 1
      %v2540 = vsel %vm2504, %v1467, -1e+30
      %v2541 = vsel %vm2505, %v1470, -1e+30
      %v2542 = vsel %vm2506, %v1475, -1e+30
      %v2543 = vsel %vm2507, %v1478, -1e+30
      %v2544 = vsel %vm2508, %v1483, -1e+30
      %v2545 = vsel %vm2509, %v1486, -1e+30
      %v2546 = vsel %vm2510, %v1491, -1e+30
      %v2547 = vsel %vm2511, %v1494, -1e+30
      %v2548 = vsel %vm2512, %v1499, -1e+30
      %v2549 = vsel %vm2513, %v1502, -1e+30
      %v2550 = vsel %vm2514, %v1507, -1e+30
      %v2551 = vsel %vm2515, %v1510, -1e+30
      %v2552 = vsel %vm2516, %v1515, -1e+30
      %v2553 = vsel %vm2517, %v1518, -1e+30
      %v2554 = vsel %vm2518, %v1523, -1e+30
      %v2555 = vsel %vm2519, %v1526, -1e+30
      %v2556 = vsel %vm2520, %v1531, -1e+30
      %v2557 = vsel %vm2521, %v1534, -1e+30
      %v2558 = vsel %vm2522, %v1539, -1e+30
      %v2559 = vsel %vm2523, %v1542, -1e+30
      %v2560 = vsel %vm2524, %v1547, -1e+30
      %v2561 = vsel %vm2525, %v1550, -1e+30
      %v2562 = vsel %vm2526, %v1555, -1e+30
      %v2563 = vsel %vm2527, %v1558, -1e+30
      %v2564 = vsel %vm2528, %v1563, -1e+30
      %v2565 = vsel %vm2529, %v1566, -1e+30
      %v2566 = vsel %vm2530, %v1571, -1e+30
      %v2567 = vsel %vm2531, %v1574, -1e+30
      %v2568 = vsel %vm2532, %v1579, -1e+30
      %v2569 = vsel %vm2533, %v1582, -1e+30
      %v2570 = vsel %vm2534, %v1587, -1e+30
      %v2571 = vsel %vm2535, %v1590, -1e+30
      %v2572 = vsel %vm2536, %v1595, -1e+30
      %v2573 = vsel %vm2537, %v1598, -1e+30
      %v2574 = vsel %vm2538, %v1603, -1e+30
      %v2575 = vsel %vm2539, %v1606, -1e+30
      %v2576 = vpack.c.bf16 %v2541, %v2540
      %v2577 = vpack.c.bf16 %v2543, %v2542
      %v2578 = vpack.c.bf16 %v2545, %v2544
      %v2579 = vpack.c.bf16 %v2547, %v2546
      %v2580 = vpack.c.bf16 %v2549, %v2548
      %v2581 = vpack.c.bf16 %v2551, %v2550
      %v2582 = vpack.c.bf16 %v2553, %v2552
      %v2583 = vpack.c.bf16 %v2555, %v2554
      %v2584 = vpack.c.bf16 %v2557, %v2556
      %v2585 = vpack.c.bf16 %v2559, %v2558
      %v2586 = vpack.c.bf16 %v2561, %v2560
      %v2587 = vpack.c.bf16 %v2563, %v2562
      %v2588 = vpack.c.bf16 %v2565, %v2564
      %v2589 = vpack.c.bf16 %v2567, %v2566
      %v2590 = vpack.c.bf16 %v2569, %v2568
      %v2591 = vpack.c.bf16 %v2571, %v2570
      %v2592 = vpack.c.bf16 %v2573, %v2572
      %v2593 = vpack.c.bf16 %v2575, %v2574
      %v2612 = vunpack.c.l.b16 %v2576
      %v2613 = vunpack.c.h.b16 %v2576
      %v2614 = vunpack.c.l.b16 %v2577
      %v2615 = vunpack.c.h.b16 %v2577
      %v2616 = vunpack.c.l.b16 %v2578
      %v2617 = vunpack.c.h.b16 %v2578
      %v2618 = vunpack.c.l.b16 %v2579
      %v2619 = vunpack.c.h.b16 %v2579
      %v2620 = vunpack.c.l.b16 %v2580
      %v2621 = vunpack.c.h.b16 %v2580
      %v2622 = vunpack.c.l.b16 %v2581
      %v2623 = vunpack.c.h.b16 %v2581
      %v2624 = vunpack.c.l.b16 %v2582
      %v2625 = vunpack.c.h.b16 %v2582
      %v2626 = vunpack.c.l.b16 %v2583
      %v2627 = vunpack.c.h.b16 %v2583
      %v2628 = vunpack.c.l.b16 %v2584
      %v2629 = vunpack.c.h.b16 %v2584
      %v2630 = vunpack.c.l.b16 %v2585
      %v2631 = vunpack.c.h.b16 %v2585
      %v2632 = vunpack.c.l.b16 %v2586
      %v2633 = vunpack.c.h.b16 %v2586
      %v2634 = vunpack.c.l.b16 %v2587
      %v2635 = vunpack.c.h.b16 %v2587
      %v2636 = vunpack.c.l.b16 %v2588
      %v2637 = vunpack.c.h.b16 %v2588
      %v2638 = vunpack.c.l.b16 %v2589
      %v2639 = vunpack.c.h.b16 %v2589
      %v2640 = vunpack.c.l.b16 %v2590
      %v2641 = vunpack.c.h.b16 %v2590
      %v2642 = vunpack.c.l.b16 %v2591
      %v2643 = vunpack.c.h.b16 %v2591
      %v2644 = vunpack.c.l.b16 %v2592
      %v2645 = vunpack.c.h.b16 %v2592
      %v2646 = vunpack.c.l.b16 %v2593
      %v2647 = vunpack.c.h.b16 %v2593
      %v2648 = vpack.c.b16 %v2612, %v2612
      %v2649 = vpack.c.b16 %v2613, %v2613
      %v2650 = vpack.c.b16 %v2614, %v2614
      %v2651 = vpack.c.b16 %v2615, %v2615
      %v2652 = vpack.c.b16 %v2616, %v2616
      %v2653 = vpack.c.b16 %v2617, %v2617
      %v2654 = vpack.c.b16 %v2618, %v2618
      %v2655 = vpack.c.b16 %v2619, %v2619
      %v2656 = vpack.c.b16 %v2620, %v2620
      %v2657 = vpack.c.b16 %v2621, %v2621
      %v2658 = vpack.c.b16 %v2622, %v2622
      %v2659 = vpack.c.b16 %v2623, %v2623
      %v2660 = vpack.c.b16 %v2624, %v2624
      %v2661 = vpack.c.b16 %v2625, %v2625
      %v2662 = vpack.c.b16 %v2626, %v2626
      %v2663 = vpack.c.b16 %v2627, %v2627
      %v2664 = vpack.c.b16 %v2628, %v2628
      %v2665 = vpack.c.b16 %v2629, %v2629
      %v2666 = vpack.c.b16 %v2630, %v2630
      %v2667 = vpack.c.b16 %v2631, %v2631
      %v2668 = vpack.c.b16 %v2632, %v2632
      %v2669 = vpack.c.b16 %v2633, %v2633
      %v2670 = vpack.c.b16 %v2634, %v2634
      %v2671 = vpack.c.b16 %v2635, %v2635
      %v2672 = vpack.c.b16 %v2636, %v2636
      %v2673 = vpack.c.b16 %v2637, %v2637
      %v2674 = vpack.c.b16 %v2638, %v2638
      %v2675 = vpack.c.b16 %v2639, %v2639
      %v2676 = vpack.c.b16 %v2640, %v2640
      %v2677 = vpack.c.b16 %v2641, %v2641
      %v2678 = vpack.c.b16 %v2642, %v2642
      %v2679 = vpack.c.b16 %v2643, %v2643
      %v2680 = vpack.c.b16 %v2644, %v2644
      %v2681 = vpack.c.b16 %v2645, %v2645
      %v2682 = vpack.c.b16 %v2646, %v2646
      %v2683 = vpack.c.b16 %v2647, %v2647
      %vm2684 = vsmask.f32 5392
      %vm2685 = vmor %vm2489, %vm2684
      %v2687 = vshrl.u32 %v2648, 16
      %v2689 = vrot.slane %v2687, 6
      %v2690 = vshll.u32 %v2648, 16
      %v2692 = vrot.slane %v2690, 7
      %v2693 = vor.u32 %v2689, %v2692
      %v2694 = vrot.slane %v2693, 4
      %v2696 = vshrl.u32 %v2649, 16
      %v2698 = vrot.slane %v2696, 6
      %v2699 = vshll.u32 %v2649, 16
      %v2701 = vrot.slane %v2699, 7
      %v2702 = vor.u32 %v2698, %v2701
      %v2703 = vsel %vm2685, %v2694, %v2702
      %v2704 = vrot.slane %v2702, 4
      %v2706 = vshrl.u32 %v2650, 16
      %v2708 = vrot.slane %v2706, 6
      %v2709 = vshll.u32 %v2650, 16
      %v2711 = vrot.slane %v2709, 7
      %v2712 = vor.u32 %v2708, %v2711
      %v2713 = vsel %vm2685, %v2704, %v2712
      %v2714 = vrot.slane %v2712, 4
      %v2716 = vshrl.u32 %v2651, 16
      %v2718 = vrot.slane %v2716, 6
      %v2719 = vshll.u32 %v2651, 16
      %v2721 = vrot.slane %v2719, 7
      %v2722 = vor.u32 %v2718, %v2721
      %v2723 = vsel %vm2685, %v2714, %v2722
      %v2724 = vrot.slane %v2722, 4
      %v2726 = vshrl.u32 %v2652, 16
      %v2728 = vrot.slane %v2726, 6
      %v2729 = vshll.u32 %v2652, 16
      %v2731 = vrot.slane %v2729, 7
      %v2732 = vor.u32 %v2728, %v2731
      %v2733 = vsel %vm2685, %v2724, %v2732
      %v2734 = vrot.slane %v2732, 4
      %v2736 = vshrl.u32 %v2653, 16
      %v2738 = vrot.slane %v2736, 6
      %v2739 = vshll.u32 %v2653, 16
      %v2741 = vrot.slane %v2739, 7
      %v2742 = vor.u32 %v2738, %v2741
      %v2743 = vsel %vm2685, %v2734, %v2742
      %v2744 = vrot.slane %v2742, 4
      %v2746 = vshrl.u32 %v2654, 16
      %v2748 = vrot.slane %v2746, 6
      %v2749 = vshll.u32 %v2654, 16
      %v2751 = vrot.slane %v2749, 7
      %v2752 = vor.u32 %v2748, %v2751
      %v2753 = vsel %vm2685, %v2744, %v2752
      %v2754 = vrot.slane %v2752, 4
      %v2756 = vshrl.u32 %v2655, 16
      %v2758 = vrot.slane %v2756, 6
      %v2759 = vshll.u32 %v2655, 16
      %v2761 = vrot.slane %v2759, 7
      %v2762 = vor.u32 %v2758, %v2761
      %v2763 = vsel %vm2685, %v2754, %v2762
      %v2764 = vrot.slane %v2762, 4
      %v2766 = vshrl.u32 %v2656, 16
      %v2768 = vrot.slane %v2766, 6
      %v2769 = vshll.u32 %v2656, 16
      %v2771 = vrot.slane %v2769, 7
      %v2772 = vor.u32 %v2768, %v2771
      %v2773 = vsel %vm2685, %v2764, %v2772
      %v2774 = vrot.slane %v2772, 4
      %v2776 = vshrl.u32 %v2657, 16
      %v2778 = vrot.slane %v2776, 6
      %v2779 = vshll.u32 %v2657, 16
      %v2781 = vrot.slane %v2779, 7
      %v2782 = vor.u32 %v2778, %v2781
      %v2783 = vsel %vm2685, %v2774, %v2782
      %v2784 = vrot.slane %v2782, 4
      %v2786 = vshrl.u32 %v2658, 16
      %v2788 = vrot.slane %v2786, 6
      %v2789 = vshll.u32 %v2658, 16
      %v2791 = vrot.slane %v2789, 7
      %v2792 = vor.u32 %v2788, %v2791
      %v2793 = vsel %vm2685, %v2784, %v2792
      %v2794 = vrot.slane %v2792, 4
      %v2796 = vshrl.u32 %v2659, 16
      %v2798 = vrot.slane %v2796, 6
      %v2799 = vshll.u32 %v2659, 16
      %v2801 = vrot.slane %v2799, 7
      %v2802 = vor.u32 %v2798, %v2801
      %v2803 = vsel %vm2685, %v2794, %v2802
      %v2804 = vrot.slane %v2802, 4
      %v2806 = vshrl.u32 %v2660, 16
      %v2808 = vrot.slane %v2806, 6
      %v2809 = vshll.u32 %v2660, 16
      %v2811 = vrot.slane %v2809, 7
      %v2812 = vor.u32 %v2808, %v2811
      %v2813 = vsel %vm2685, %v2804, %v2812
      %v2814 = vrot.slane %v2812, 4
      %v2816 = vshrl.u32 %v2661, 16
      %v2818 = vrot.slane %v2816, 6
      %v2819 = vshll.u32 %v2661, 16
      %v2821 = vrot.slane %v2819, 7
      %v2822 = vor.u32 %v2818, %v2821
      %v2823 = vsel %vm2685, %v2814, %v2822
      %v2824 = vrot.slane %v2822, 4
      %v2826 = vshrl.u32 %v2662, 16
      %v2828 = vrot.slane %v2826, 6
      %v2829 = vshll.u32 %v2662, 16
      %v2831 = vrot.slane %v2829, 7
      %v2832 = vor.u32 %v2828, %v2831
      %v2833 = vsel %vm2685, %v2824, %v2832
      %v2834 = vrot.slane %v2832, 4
      %v2836 = vshrl.u32 %v2663, 16
      %v2838 = vrot.slane %v2836, 6
      %v2839 = vshll.u32 %v2663, 16
      %v2841 = vrot.slane %v2839, 7
      %v2842 = vor.u32 %v2838, %v2841
      %v2843 = vsel %vm2685, %v2834, %v2842
      %v2844 = vrot.slane %v2842, 4
      %v2846 = vshrl.u32 %v2664, 16
      %v2848 = vrot.slane %v2846, 6
      %v2849 = vshll.u32 %v2664, 16
      %v2851 = vrot.slane %v2849, 7
      %v2852 = vor.u32 %v2848, %v2851
      %v2853 = vsel %vm2685, %v2844, %v2852
      %v2854 = vrot.slane %v2852, 4
      %v2856 = vshrl.u32 %v2665, 16
      %v2858 = vrot.slane %v2856, 6
      %v2859 = vshll.u32 %v2665, 16
      %v2861 = vrot.slane %v2859, 7
      %v2862 = vor.u32 %v2858, %v2861
      %v2863 = vsel %vm2685, %v2854, %v2862
      %v2864 = vrot.slane %v2862, 4
      %v2866 = vshrl.u32 %v2666, 16
      %v2868 = vrot.slane %v2866, 6
      %v2869 = vshll.u32 %v2666, 16
      %v2871 = vrot.slane %v2869, 7
      %v2872 = vor.u32 %v2868, %v2871
      %v2873 = vsel %vm2685, %v2864, %v2872
      %v2874 = vrot.slane %v2872, 4
      %v2876 = vshrl.u32 %v2667, 16
      %v2878 = vrot.slane %v2876, 6
      %v2879 = vshll.u32 %v2667, 16
      %v2881 = vrot.slane %v2879, 7
      %v2882 = vor.u32 %v2878, %v2881
      %v2883 = vsel %vm2685, %v2874, %v2882
      %v2884 = vrot.slane %v2882, 4
      %v2886 = vshrl.u32 %v2668, 16
      %v2888 = vrot.slane %v2886, 6
      %v2889 = vshll.u32 %v2668, 16
      %v2891 = vrot.slane %v2889, 7
      %v2892 = vor.u32 %v2888, %v2891
      %v2893 = vsel %vm2685, %v2884, %v2892
      %v2894 = vrot.slane %v2892, 4
      %v2896 = vshrl.u32 %v2669, 16
      %v2898 = vrot.slane %v2896, 6
      %v2899 = vshll.u32 %v2669, 16
      %v2901 = vrot.slane %v2899, 7
      %v2902 = vor.u32 %v2898, %v2901
      %v2903 = vsel %vm2685, %v2894, %v2902
      %v2904 = vrot.slane %v2902, 4
      %v2906 = vshrl.u32 %v2670, 16
      %v2908 = vrot.slane %v2906, 6
      %v2909 = vshll.u32 %v2670, 16
      %v2911 = vrot.slane %v2909, 7
      %v2912 = vor.u32 %v2908, %v2911
      %v2913 = vsel %vm2685, %v2904, %v2912
      %v2914 = vrot.slane %v2912, 4
      %v2916 = vshrl.u32 %v2671, 16
      %v2918 = vrot.slane %v2916, 6
      %v2919 = vshll.u32 %v2671, 16
      %v2921 = vrot.slane %v2919, 7
      %v2922 = vor.u32 %v2918, %v2921
      %v2923 = vsel %vm2685, %v2914, %v2922
      %v2924 = vrot.slane %v2922, 4
      %v2926 = vshrl.u32 %v2672, 16
      %v2928 = vrot.slane %v2926, 6
      %v2929 = vshll.u32 %v2672, 16
      %v2931 = vrot.slane %v2929, 7
      %v2932 = vor.u32 %v2928, %v2931
      %v2933 = vsel %vm2685, %v2924, %v2932
      %v2934 = vrot.slane %v2932, 4
      %v2936 = vshrl.u32 %v2673, 16
      %v2938 = vrot.slane %v2936, 6
      %v2939 = vshll.u32 %v2673, 16
      %v2941 = vrot.slane %v2939, 7
      %v2942 = vor.u32 %v2938, %v2941
      %v2943 = vsel %vm2685, %v2934, %v2942
      %v2944 = vrot.slane %v2942, 4
      %v2946 = vshrl.u32 %v2674, 16
      %v2948 = vrot.slane %v2946, 6
      %v2949 = vshll.u32 %v2674, 16
      %v2951 = vrot.slane %v2949, 7
      %v2952 = vor.u32 %v2948, %v2951
      %v2953 = vsel %vm2685, %v2944, %v2952
      %v2954 = vrot.slane %v2952, 4
      %v2956 = vshrl.u32 %v2675, 16
      %v2958 = vrot.slane %v2956, 6
      %v2959 = vshll.u32 %v2675, 16
      %v2961 = vrot.slane %v2959, 7
      %v2962 = vor.u32 %v2958, %v2961
      %v2963 = vsel %vm2685, %v2954, %v2962
      %v2964 = vrot.slane %v2962, 4
      %v2966 = vshrl.u32 %v2676, 16
      %v2968 = vrot.slane %v2966, 6
      %v2969 = vshll.u32 %v2676, 16
      %v2971 = vrot.slane %v2969, 7
      %v2972 = vor.u32 %v2968, %v2971
      %v2973 = vsel %vm2685, %v2964, %v2972
      %v2974 = vrot.slane %v2972, 4
      %v2976 = vshrl.u32 %v2677, 16
      %v2978 = vrot.slane %v2976, 6
      %v2979 = vshll.u32 %v2677, 16
      %v2981 = vrot.slane %v2979, 7
      %v2982 = vor.u32 %v2978, %v2981
      %v2983 = vsel %vm2685, %v2974, %v2982
      %v2984 = vrot.slane %v2982, 4
      %v2986 = vshrl.u32 %v2678, 16
      %v2988 = vrot.slane %v2986, 6
      %v2989 = vshll.u32 %v2678, 16
      %v2991 = vrot.slane %v2989, 7
      %v2992 = vor.u32 %v2988, %v2991
      %v2993 = vsel %vm2685, %v2984, %v2992
      %v2994 = vrot.slane %v2992, 4
      %v2996 = vshrl.u32 %v2679, 16
      %v2998 = vrot.slane %v2996, 6
      %v2999 = vshll.u32 %v2679, 16
      %v3001 = vrot.slane %v2999, 7
      %v3002 = vor.u32 %v2998, %v3001
      %v3003 = vsel %vm2685, %v2994, %v3002
      %v3004 = vrot.slane %v3002, 4
      %v3006 = vshrl.u32 %v2680, 16
      %v3008 = vrot.slane %v3006, 6
      %v3009 = vshll.u32 %v2680, 16
      %v3011 = vrot.slane %v3009, 7
      %v3012 = vor.u32 %v3008, %v3011
      %v3013 = vsel %vm2685, %v3004, %v3012
      %v3014 = vrot.slane %v3012, 4
      %v3016 = vshrl.u32 %v2681, 16
      %v3018 = vrot.slane %v3016, 6
      %v3019 = vshll.u32 %v2681, 16
      %v3021 = vrot.slane %v3019, 7
      %v3022 = vor.u32 %v3018, %v3021
      %v3023 = vsel %vm2685, %v3014, %v3022
      %v3024 = vrot.slane %v3022, 4
      %v3026 = vshrl.u32 %v2682, 16
      %v3028 = vrot.slane %v3026, 6
      %v3029 = vshll.u32 %v2682, 16
      %v3031 = vrot.slane %v3029, 7
      %v3032 = vor.u32 %v3028, %v3031
      %v3033 = vsel %vm2685, %v3024, %v3032
      %v3034 = vrot.slane %v3032, 4
      %v3036 = vshrl.u32 %v2683, 16
      %v3038 = vrot.slane %v3036, 6
      %v3039 = vshll.u32 %v2683, 16
      %v3041 = vrot.slane %v3039, 7
      %v3042 = vor.u32 %v3038, %v3041
      %v3043 = vsel %vm2685, %v3034, %v3042
      %v3044 = vrot.slane %v3042, 4
      %v3082 = vld [vmem:[%s258 + $0x8] sm:$0xe]
      %v3083 = vsel %vm2496, %v2693, %v3082
      %3084 = vst [vmem:[%s258 + $0x8] sm:$0xe] %v3083
      %3085 = vst [vmem:[%s258 + $0xc] sm:$0xf] %v2703
      %3086 = vst [vmem:[%s258 + $0x10] sm:$0xf] %v2713
      %3087 = vst [vmem:[%s258 + $0x14] sm:$0xf] %v2723
      %3088 = vst [vmem:[%s258 + $0x18] sm:$0xf] %v2733
      %3089 = vst [vmem:[%s258 + $0x1c] sm:$0xf] %v2743
      %3090 = vst [vmem:[%s258 + $0x20] sm:$0xf] %v2753
      %3091 = vst [vmem:[%s258 + $0x24] sm:$0xf] %v2763
      %3092 = vst [vmem:[%s258 + $0x28] sm:$0xf] %v2773
      %3093 = vst [vmem:[%s258 + $0x2c] sm:$0xf] %v2783
      %3094 = vst [vmem:[%s258 + $0x30] sm:$0xf] %v2793
      %3095 = vst [vmem:[%s258 + $0x34] sm:$0xf] %v2803
      %3096 = vst [vmem:[%s258 + $0x38] sm:$0xf] %v2813
      %3097 = vst [vmem:[%s258 + $0x3c] sm:$0xf] %v2823
      %3098 = vst [vmem:[%s258 + $0x40] sm:$0xf] %v2833
      %3099 = vst [vmem:[%s258 + $0x44] sm:$0xf] %v2843
      %3100 = vst [vmem:[%s258 + $0x48] sm:$0xf] %v2853
      %3101 = vst [vmem:[%s258 + $0x4c] sm:$0xf] %v2863
      %3102 = vst [vmem:[%s258 + $0x50] sm:$0xf] %v2873
      %3103 = vst [vmem:[%s258 + $0x54] sm:$0xf] %v2883
      %3104 = vst [vmem:[%s258 + $0x58] sm:$0xf] %v2893
      %3105 = vst [vmem:[%s258 + $0x5c] sm:$0xf] %v2903
      %3106 = vst [vmem:[%s258 + $0x60] sm:$0xf] %v2913
      %3107 = vst [vmem:[%s258 + $0x64] sm:$0xf] %v2923
      %3108 = vst [vmem:[%s258 + $0x68] sm:$0xf] %v2933
      %3109 = vst [vmem:[%s258 + $0x6c] sm:$0xf] %v2943
      %3110 = vst [vmem:[%s258 + $0x70] sm:$0xf] %v2953
      %3111 = vst [vmem:[%s258 + $0x74] sm:$0xf] %v2963
      %3112 = vst [vmem:[%s258 + $0x78] sm:$0xf] %v2973
      %3113 = vst [vmem:[%s258 + $0x7c] sm:$0xf] %v2983
      %3114 = vst [vmem:[%s258 + $0x80] sm:$0xf] %v2993
      %3115 = vst [vmem:[%s258 + $0x84] sm:$0xf] %v3003
      %3116 = vst [vmem:[%s258 + $0x88] sm:$0xf] %v3013
      %3117 = vst [vmem:[%s258 + $0x8c] sm:$0xf] %v3023
      %3118 = vst [vmem:[%s258 + $0x90] sm:$0xf] %v3033
      %3119 = vst [vmem:[%s258 + $0x94] sm:$0xf] %v3043
      %v3120 = vld [vmem:[%s258 + $0x98] sm:$0x3]
      %v3121 = vsel %vm2490, %v3044, %v3120
      %3122 = vst [vmem:[%s258 + $0x98] sm:$0x3] %v3121
      %p3123 = scmp.lt.s32.totalorder %s18, 1
      %s3124 = scalar_select %p3123, %s18, 1
      %s3125 = smul.addr %s3124, 43
      %s3126 = smul.addr %s3125, 4
      %s3127 = scalar_lea.vmem %s5, %s3126
      %p3128 = scmp.lt.s32.totalorder %s18, 1
      %s3129 = scalar_select %p3128, %s18, 1
      %s3130 = smul.addr %s3129, 2
      %s3131 = scalar_lea.vmem %s6, %s3130
      // Predicated region
      $region41: #{_lambda_.4} parent=39 // pred_check
        %p3132 = pneg %p146
      $region42: #{_lambda_.4} parent=39 // pred_check_branch
        %3134 = sbr.rel (%p3132) target = $region44
      $region43: #{_lambda_.4} parent=39 // pred_region
        _
      $region44: #{_lambda_.4} parent=39 // pred_fallthru
        _
      // Predicated region
      $region45: #{_lambda_.4} parent=39 // pred_check
        %p3135 = pneg %p172
      $region46: #{_lambda_.4} parent=39 // pred_check_branch
        %3137 = sbr.rel (%p3135) target = $region48
      $region47: #{_lambda_.4} parent=39 // pred_region
        _
      $region48: #{_lambda_.4} parent=39 // pred_fallthru
        _
    $region40: #{_lambda_.4} parent=5 // pred_fallthru
      _
    %p3138 = scmp.le.s32.totalorder 2, %s13
    // Predicated region
    $region49: #{_lambda_.4} parent=5 // pred_check
      %p3139 = pneg %p3138
    $region50: #{_lambda_.4} parent=5 // pred_check_branch
      %3141 = sbr.rel (%p3139) target = $region52
    $region51: #{_lambda_.4} parent=5 // pred_region
      %s3142 = ssub.s32 %s13, 2
      // Predicated region
      $region53: #{_lambda_.4} parent=51 // pred_check
        %p3143 = pneg %p152
      $region54: #{_lambda_.4} parent=51 // pred_check_branch
        %3145 = sbr.rel (%p3143) target = $region56
      $region55: #{_lambda_.4} parent=51 // pred_region
        %p3146 = scmp.lt.s32.totalorder %s19, 1
        %s3147 = scalar_select %p3146, %s19, 1
        %s3148 = smul.addr %s3147, 43
        %s3149 = smul.addr %s3148, 4
        %s3150 = scalar_lea.vmem %s5, %s3149
      $region56: #{_lambda_.4} parent=51 // pred_fallthru
        _
      // Predicated region
      $region57: #{_lambda_.4} parent=51 // pred_check
        %p3151 = pneg %p178
      $region58: #{_lambda_.4} parent=51 // pred_check_branch
        %3153 = sbr.rel (%p3151) target = $region60
      $region59: #{_lambda_.4} parent=51 // pred_region
        %p3154 = scmp.lt.s32.totalorder %s19, 1
        %s3155 = scalar_select %p3154, %s19, 1
        %s3156 = smul.addr %s3155, 2
        %s3157 = scalar_lea.vmem %s6, %s3156
      $region60: #{_lambda_.4} parent=51 // pred_fallthru
        _
    $region52: #{_lambda_.4} parent=5 // pred_fallthru
      _
  $region6: #{_lambda_.4} parent=0 // loop_footer
    %s17 = sadd.s32 1, %s13
  $region7: #{_lambda_.4} parent=0 // loop_footer_branch
    %12 = sbr.rel target = $region3
  $region8: #{_lambda_.4} parent=0 // loop_exit
    _

// kernel: _lambda_.5
$region0: #{_lambda_.5}
  #allocation0 [shape = 'u32[]', space=smem, size = 0x4, offset = 0x4, fixed_abs, tag = 'smem constant byte address 0x4 - core index']
  #allocation1 [shape = 'u32[144,128]{1,0:T(1,128)}', space=vmem, size = 0x12000, scoped, tag = 'internal scratch']
  #allocation2 [shape = 'f32[288,128]{1,0:T(8,128)}', space=vmem, size = 0x24000, scoped, tag = 'scratch operand']
  %s0 = inlined_call_operand.vmem [shape: bf16[2,342,128], index: 0, kind: input, shape index: {}]
  %s1 = inlined_call_operand.vmem [shape: bf16[9,128,128], index: 1, kind: input, shape index: {}]
  %s2 = inlined_call_operand.vmem [shape: f32[1,128], index: 2, kind: input, shape index: {}]
  %s3 = inlined_call_operand.vmem [shape: f32[1,128], index: 3, kind: input, shape index: {}]
  %s4 = inlined_call_operand.vmem [shape: f32[1,128], index: 4, kind: input, shape index: {}]
  %s5 = inlined_call_operand.vmem [shape: bf16[2,288,128], index: 5, kind: output, shape index: {0}]
  %s6 = inlined_call_operand.vmem [shape: f32[2,2,128], index: 6, kind: output, shape index: {1}]
  %7 = xla_tuple %s5, %s6
  %s8 = sld [smem:[#allocation0]]
  $region61: #{_lambda_.5} parent=0
    _
  %s10 = ssub.s32 1, %s8
  %s11 = scalar_select 0, %s10, %s8
  loop: start=0, step=1, limit=4
  $region2: #{_lambda_.5} parent=0 // loop_pre_header
    _
  $region3: #{_lambda_.5} parent=0 // loop_header
    %s13 = sphi 0, %s17
    %p14 = scmp.ge.s32.totalorder %s13, 4
    %s23 = sphi 0, %s25
    %s26 = sphi 0, %s23
    %s27 = sphi 0, %s26
    %s43 = sphi 0, %s27
    %s47 = sphi 0, %s47
    %s49 = sphi 0, %s47
    %s50 = sphi 0, %s49
    %s64 = sphi 0, %s50
    %s68 = sphi 0, %s68
    %s70 = sphi 0, %s68
    %s71 = sphi 0, %s70
    %s85 = sphi 0, %s71
    %s89 = sphi 0, %s89
    %s91 = sphi 0, %s89
    %s92 = sphi 0, %s91
    %s106 = sphi 0, %s92
    %s110 = sphi 0, %s110
    %s112 = sphi 0, %s110
    %s113 = sphi 0, %s112
    %s127 = sphi 0, %s113
    %s133 = sphi 0, %s135
    %s136 = sphi 0, %s133
    %s137 = sphi 0, %s136
    %s153 = sphi 0, %s137
    %s159 = sphi 0, %s161
    %s162 = sphi 0, %s159
    %s163 = sphi 0, %s162
    %s179 = sphi 0, %s163
  $region4: #{_lambda_.5} parent=0 // loop_header_branch
    %16 = sbr.rel (%p14) target = $region8
  $region5: #{_lambda_.5} parent=0 // loop_body
    %s18 = ssub.s32 %s13, 1
    %s19 = ssub.s32 %s13, 2
    %s20 = sadd.s32 %s13, 1
    %s21 = ssub.s32 %s13, %s20
    %p22 = scmp.eq.s32.totalorder %s21, 0
    %s24 = sadd.s32 %s23, 1
    %s25 = scalar_select %p22, %s23, %s24
    %p28 = pneg %p22
    %p29 = scmp.eq.s32.totalorder %s13, 1
    %p30 = por %p28, %p29
    %p31 = scmp.ne.s32.totalorder %s23, %s26
    %p32 = scmp.eq.s32.totalorder %s13, 0
    %p33 = por %p31, %p32
    %p34 = scmp.ne.s32.totalorder %s23, %s26
    %p35 = scmp.eq.s32.totalorder %s18, 1
    %p36 = por %p34, %p35
    %p37 = scmp.ne.s32.totalorder %s26, %s27
    %p38 = scmp.eq.s32.totalorder %s18, 0
    %p39 = por %p37, %p38
    %p40 = scmp.ne.s32.totalorder %s26, %s27
    %p41 = scmp.eq.s32.totalorder %s19, 1
    %p42 = por %p40, %p41
    %p44 = scmp.ne.s32.totalorder %s27, %s43
    %p45 = scmp.eq.s32.totalorder %s19, 0
    %p46 = por %p44, %p45
    %s48 = sadd.s32 %s47, 1
    %p51 = scmp.eq.s32.totalorder %s13, 1
    %p52 = scmp.ne.s32.totalorder %s47, %s49
    %p53 = scmp.eq.s32.totalorder %s13, 0
    %p54 = por %p52, %p53
    %p55 = scmp.ne.s32.totalorder %s47, %s49
    %p56 = scmp.eq.s32.totalorder %s18, 1
    %p57 = por %p55, %p56
    %p58 = scmp.ne.s32.totalorder %s49, %s50
    %p59 = scmp.eq.s32.totalorder %s18, 0
    %p60 = por %p58, %p59
    %p61 = scmp.ne.s32.totalorder %s49, %s50
    %p62 = scmp.eq.s32.totalorder %s19, 1
    %p63 = por %p61, %p62
    %p65 = scmp.ne.s32.totalorder %s50, %s64
    %p66 = scmp.eq.s32.totalorder %s19, 0
    %p67 = por %p65, %p66
    %s69 = sadd.s32 %s68, 1
    %p72 = scmp.eq.s32.totalorder %s13, 1
    %p73 = scmp.ne.s32.totalorder %s68, %s70
    %p74 = scmp.eq.s32.totalorder %s13, 0
    %p75 = por %p73, %p74
    %p76 = scmp.ne.s32.totalorder %s68, %s70
    %p77 = scmp.eq.s32.totalorder %s18, 1
    %p78 = por %p76, %p77
    %p79 = scmp.ne.s32.totalorder %s70, %s71
    %p80 = scmp.eq.s32.totalorder %s18, 0
    %p81 = por %p79, %p80
    %p82 = scmp.ne.s32.totalorder %s70, %s71
    %p83 = scmp.eq.s32.totalorder %s19, 1
    %p84 = por %p82, %p83
    %p86 = scmp.ne.s32.totalorder %s71, %s85
    %p87 = scmp.eq.s32.totalorder %s19, 0
    %p88 = por %p86, %p87
    %s90 = sadd.s32 %s89, 1
    %p93 = scmp.eq.s32.totalorder %s13, 1
    %p94 = scmp.ne.s32.totalorder %s89, %s91
    %p95 = scmp.eq.s32.totalorder %s13, 0
    %p96 = por %p94, %p95
    %p97 = scmp.ne.s32.totalorder %s89, %s91
    %p98 = scmp.eq.s32.totalorder %s18, 1
    %p99 = por %p97, %p98
    %p100 = scmp.ne.s32.totalorder %s91, %s92
    %p101 = scmp.eq.s32.totalorder %s18, 0
    %p102 = por %p100, %p101
    %p103 = scmp.ne.s32.totalorder %s91, %s92
    %p104 = scmp.eq.s32.totalorder %s19, 1
    %p105 = por %p103, %p104
    %p107 = scmp.ne.s32.totalorder %s92, %s106
    %p108 = scmp.eq.s32.totalorder %s19, 0
    %p109 = por %p107, %p108
    %s111 = sadd.s32 %s110, 1
    %p114 = scmp.eq.s32.totalorder %s13, 1
    %p115 = scmp.ne.s32.totalorder %s110, %s112
    %p116 = scmp.eq.s32.totalorder %s13, 0
    %p117 = por %p115, %p116
    %p118 = scmp.ne.s32.totalorder %s110, %s112
    %p119 = scmp.eq.s32.totalorder %s18, 1
    %p120 = por %p118, %p119
    %p121 = scmp.ne.s32.totalorder %s112, %s113
    %p122 = scmp.eq.s32.totalorder %s18, 0
    %p123 = por %p121, %p122
    %p124 = scmp.ne.s32.totalorder %s112, %s113
    %p125 = scmp.eq.s32.totalorder %s19, 1
    %p126 = por %p124, %p125
    %p128 = scmp.ne.s32.totalorder %s113, %s127
    %p129 = scmp.eq.s32.totalorder %s19, 0
    %p130 = por %p128, %p129
    %s131 = ssub.s32 %s13, %s20
    %p132 = scmp.eq.s32.totalorder %s131, 0
    %s134 = sadd.s32 %s133, 1
    %s135 = scalar_select %p132, %s133, %s134
    %p138 = pneg %p132
    %p139 = scmp.eq.s32.totalorder %s13, 1
    %p140 = por %p138, %p139
    %p141 = scmp.ne.s32.totalorder %s133, %s136
    %p142 = scmp.eq.s32.totalorder %s13, 0
    %p143 = por %p141, %p142
    %p144 = scmp.ne.s32.totalorder %s133, %s136
    %p145 = scmp.eq.s32.totalorder %s18, 1
    %p146 = por %p144, %p145
    %p147 = scmp.ne.s32.totalorder %s136, %s137
    %p148 = scmp.eq.s32.totalorder %s18, 0
    %p149 = por %p147, %p148
    %p150 = scmp.ne.s32.totalorder %s136, %s137
    %p151 = scmp.eq.s32.totalorder %s19, 1
    %p152 = por %p150, %p151
    %p154 = scmp.ne.s32.totalorder %s137, %s153
    %p155 = scmp.eq.s32.totalorder %s19, 0
    %p156 = por %p154, %p155
    %s157 = ssub.s32 %s13, %s20
    %p158 = scmp.eq.s32.totalorder %s157, 0
    %s160 = sadd.s32 %s159, 1
    %s161 = scalar_select %p158, %s159, %s160
    %p164 = pneg %p158
    %p165 = scmp.eq.s32.totalorder %s13, 1
    %p166 = por %p164, %p165
    %p167 = scmp.ne.s32.totalorder %s159, %s162
    %p168 = scmp.eq.s32.totalorder %s13, 0
    %p169 = por %p167, %p168
    %p170 = scmp.ne.s32.totalorder %s159, %s162
    %p171 = scmp.eq.s32.totalorder %s18, 1
    %p172 = por %p170, %p171
    %p173 = scmp.ne.s32.totalorder %s162, %s163
    %p174 = scmp.eq.s32.totalorder %s18, 0
    %p175 = por %p173, %p174
    %p176 = scmp.ne.s32.totalorder %s162, %s163
    %p177 = scmp.eq.s32.totalorder %s19, 1
    %p178 = por %p176, %p177
    %p180 = scmp.ne.s32.totalorder %s163, %s179
    %p181 = scmp.eq.s32.totalorder %s19, 0
    %p182 = por %p180, %p181
    %p183 = scmp.le.s32.totalorder 1, %s13
    %p184 = scmp.lt.s32.totalorder %s13, 3
    %p185 = pnand %p183, %p184
    %p186 = pneg %p185
    // Predicated region
    $region9: #{_lambda_.5} parent=5 // pred_check
      _
    $region10: #{_lambda_.5} parent=5 // pred_check_branch
      %188 = sbr.rel (%p185) target = $region12
    $region11: #{_lambda_.5} parent=5 // pred_region
      %s189 = ssub.s32 %s13, 1
      // Predicated region
      $region13: #{_lambda_.5} parent=11 // pred_check
        %p190 = pneg %p60
      $region14: #{_lambda_.5} parent=11 // pred_check_branch
        %192 = sbr.rel (%p190) target = $region16
      $region15: #{_lambda_.5} parent=11 // pred_region
        _
      $region16: #{_lambda_.5} parent=11 // pred_fallthru
        _
      // Predicated region
      $region17: #{_lambda_.5} parent=11 // pred_check
        %p193 = pneg %p81
      $region18: #{_lambda_.5} parent=11 // pred_check_branch
        %195 = sbr.rel (%p193) target = $region20
      $region19: #{_lambda_.5} parent=11 // pred_region
        _
      $region20: #{_lambda_.5} parent=11 // pred_fallthru
        _
      // Predicated region
      $region21: #{_lambda_.5} parent=11 // pred_check
        %p196 = pneg %p102
      $region22: #{_lambda_.5} parent=11 // pred_check_branch
        %198 = sbr.rel (%p196) target = $region24
      $region23: #{_lambda_.5} parent=11 // pred_region
        _
      $region24: #{_lambda_.5} parent=11 // pred_fallthru
        _
      // Predicated region
      $region25: #{_lambda_.5} parent=11 // pred_check
        %p199 = pneg %p123
      $region26: #{_lambda_.5} parent=11 // pred_check_branch
        %201 = sbr.rel (%p199) target = $region28
      $region27: #{_lambda_.5} parent=11 // pred_region
        _
      $region28: #{_lambda_.5} parent=11 // pred_fallthru
        _
    $region12: #{_lambda_.5} parent=5 // pred_fallthru
      _
    %p202 = scmp.lt.s32.totalorder %s13, 2
    // Predicated region
    $region29: #{_lambda_.5} parent=5 // pred_check
      %p203 = pneg %p202
    $region30: #{_lambda_.5} parent=5 // pred_check_branch
      %205 = sbr.rel (%p203) target = $region32
    $region31: #{_lambda_.5} parent=5 // pred_region
      // Predicated region
      $region33: #{_lambda_.5} parent=31 // pred_check
        %p206 = pneg %p33
      $region34: #{_lambda_.5} parent=31 // pred_check_branch
        %208 = sbr.rel (%p206) target = $region36
      $region35: #{_lambda_.5} parent=31 // pred_region
        %p209 = scmp.lt.s32.totalorder %s13, 1
        %s210 = scalar_select %p209, %s13, 1
        %s211 = smul.addr %s210, 43
        %s212 = smul.addr %s211, 4
        %s213 = scalar_lea.vmem %s0, %s212
      $region36: #{_lambda_.5} parent=31 // pred_fallthru
        _
    $region32: #{_lambda_.5} parent=5 // pred_fallthru
      _
    %p214 = scmp.le.s32.totalorder 1, %s13
    %p215 = scmp.lt.s32.totalorder %s13, 3
    %p216 = pnand %p214, %p215
    %p217 = pneg %p216
    // Predicated region
    $region37: #{_lambda_.5} parent=5 // pred_check
      _
    $region38: #{_lambda_.5} parent=5 // pred_check_branch
      %219 = sbr.rel (%p216) target = $region40
    $region39: #{_lambda_.5} parent=5 // pred_region
      %s220 = ssub.s32 %s13, 1
      %p221 = scmp.lt.s32.totalorder %s18, 1
      %s222 = scalar_select %p221, %s18, 1
      %s223 = smul.addr %s222, 43
      %s224 = smul.addr %s223, 4
      %s225 = scalar_lea.vmem %s0, %s224
      %p226 = pneg %p39
      %p227 = pneg %p36
      %p228 = pneg %p60
      %p229 = pneg %p57
      %p230 = pneg %p81
      %p231 = pneg %p78
      %p232 = pneg %p102
      %p233 = pneg %p99
      %p234 = pneg %p123
      %p235 = pneg %p120
      %p236 = pneg %p149
      %p237 = pneg %p146
      %p238 = scmp.lt.s32.totalorder %s18, 1
      %s239 = scalar_select %p238, %s18, 1
      %s240 = smul.addr %s239, 36
      %s241 = smul.addr %s240, 4
      %s242 = scalar_lea.vmem %s5, %s241
      %p243 = pneg %p175
      %p244 = pneg %p172
      %p245 = scmp.lt.s32.totalorder %s18, 1
      %s246 = scalar_select %p245, %s18, 1
      %s247 = smul.addr %s246, 2
      %s248 = scalar_lea.vmem %s6, %s247
      %p249 = scmp.lt.s32.totalorder %s18, 1
      %s250 = scalar_select %p249, %s18, 1
      %s251 = smul.addr %s250, 43
      %s252 = smul.addr %s251, 4
      %s253 = scalar_lea.vmem %s0, %s252
      %p254 = scmp.lt.s32.totalorder %s18, 1
      %s255 = scalar_select %p254, %s18, 1
      %s256 = smul.addr %s255, 36
      %s257 = smul.addr %s256, 4
      %s258 = scalar_lea.vmem %s5, %s257
      %p259 = scmp.lt.s32.totalorder %s18, 1
      %s260 = scalar_select %p259, %s18, 1
      %s261 = smul.addr %s260, 2
      %s262 = scalar_lea.vmem %s6, %s261
      %v264 = vld [vmem:[%s253] sm:$0xf]
      %v265 = vld [vmem:[%s253 + $0x4] sm:$0xf]
      %v266 = vld [vmem:[%s253 + $0x8] sm:$0xf]
      %v267 = vld [vmem:[%s253 + $0xc] sm:$0xf]
      %v268 = vld [vmem:[%s253 + $0x10] sm:$0xf]
      %v269 = vld [vmem:[%s253 + $0x14] sm:$0xf]
      %v270 = vld [vmem:[%s253 + $0x18] sm:$0xf]
      %v271 = vld [vmem:[%s253 + $0x1c] sm:$0xf]
      %v272 = vld [vmem:[%s253 + $0x20] sm:$0xf]
      %v273 = vld [vmem:[%s253 + $0x24] sm:$0xf]
      %v274 = vld [vmem:[%s253 + $0x28] sm:$0xf]
      %v275 = vld [vmem:[%s253 + $0x2c] sm:$0xf]
      %v276 = vld [vmem:[%s253 + $0x30] sm:$0xf]
      %v277 = vld [vmem:[%s253 + $0x34] sm:$0xf]
      %v278 = vld [vmem:[%s253 + $0x38] sm:$0xf]
      %v279 = vld [vmem:[%s253 + $0x3c] sm:$0xf]
      %v280 = vld [vmem:[%s253 + $0x40] sm:$0xf]
      %v281 = vld [vmem:[%s253 + $0x44] sm:$0xf]
      %v282 = vld [vmem:[%s253 + $0x48] sm:$0xf]
      %v283 = vld [vmem:[%s253 + $0x4c] sm:$0xf]
      %v284 = vld [vmem:[%s253 + $0x50] sm:$0xf]
      %v285 = vld [vmem:[%s253 + $0x54] sm:$0xf]
      %v286 = vld [vmem:[%s253 + $0x58] sm:$0xf]
      %v287 = vld [vmem:[%s253 + $0x5c] sm:$0xf]
      %v288 = vld [vmem:[%s253 + $0x60] sm:$0xf]
      %v289 = vld [vmem:[%s253 + $0x64] sm:$0xf]
      %v290 = vld [vmem:[%s253 + $0x68] sm:$0xf]
      %v291 = vld [vmem:[%s253 + $0x6c] sm:$0xf]
      %v292 = vld [vmem:[%s253 + $0x70] sm:$0xf]
      %v293 = vld [vmem:[%s253 + $0x74] sm:$0xf]
      %v294 = vld [vmem:[%s253 + $0x78] sm:$0xf]
      %v295 = vld [vmem:[%s253 + $0x7c] sm:$0xf]
      %v296 = vld [vmem:[%s253 + $0x80] sm:$0xf]
      %v297 = vld [vmem:[%s253 + $0x84] sm:$0xf]
      %v298 = vld [vmem:[%s253 + $0x88] sm:$0xf]
      %v299 = vld [vmem:[%s253 + $0x8c] sm:$0xf]
      %v300 = vld [vmem:[%s253 + $0x90] sm:$0xf]
      %v301 = vld [vmem:[%s253 + $0x94] sm:$0xf]
      %v302 = vld [vmem:[%s253 + $0x98] sm:$0xf]
      %v303 = vld [vmem:[%s253 + $0x9c] sm:$0xf]
      %v304 = vld [vmem:[%s253 + $0xa0] sm:$0xf]
      %v305 = vld [vmem:[%s253 + $0xa4] sm:$0xf]
      %v306 = vunpack.c.l.bf16 %v264
      %v307 = vunpack.c.l.bf16 %v265
      %v308 = vunpack.c.l.bf16 %v266
      %v309 = vunpack.c.l.bf16 %v267
      %v310 = vunpack.c.l.bf16 %v268
      %v311 = vunpack.c.l.bf16 %v269
      %v312 = vunpack.c.l.bf16 %v270
      %v313 = vunpack.c.l.bf16 %v271
      %v314 = vunpack.c.l.bf16 %v272
      %v315 = vunpack.c.l.bf16 %v273
      %v316 = vunpack.c.l.bf16 %v274
      %v317 = vunpack.c.l.bf16 %v275
      %v318 = vunpack.c.l.bf16 %v276
      %v319 = vunpack.c.l.bf16 %v277
      %v320 = vunpack.c.l.bf16 %v278
      %v321 = vunpack.c.l.bf16 %v279
      %v322 = vunpack.c.l.bf16 %v280
      %v323 = vunpack.c.l.bf16 %v281
      %v324 = vunpack.c.l.bf16 %v282
      %v325 = vunpack.c.l.bf16 %v283
      %v326 = vunpack.c.l.bf16 %v284
      %v327 = vunpack.c.l.bf16 %v285
      %v328 = vunpack.c.l.bf16 %v286
      %v329 = vunpack.c.l.bf16 %v287
      %v330 = vunpack.c.l.bf16 %v288
      %v331 = vunpack.c.l.bf16 %v289
      %v332 = vunpack.c.l.bf16 %v290
      %v333 = vunpack.c.l.bf16 %v291
      %v334 = vunpack.c.l.bf16 %v292
      %v335 = vunpack.c.l.bf16 %v293
      %v336 = vunpack.c.l.bf16 %v294
      %v337 = vunpack.c.l.bf16 %v295
      %v338 = vunpack.c.l.bf16 %v296
      %v339 = vunpack.c.l.bf16 %v297
      %v340 = vunpack.c.l.bf16 %v298
      %v341 = vunpack.c.l.bf16 %v299
      %v342 = vunpack.c.l.bf16 %v300
      %v343 = vunpack.c.l.bf16 %v301
      %v344 = vunpack.c.l.bf16 %v302
      %v345 = vunpack.c.l.bf16 %v303
      %v346 = vunpack.c.l.bf16 %v304
      %v347 = vunpack.c.l.bf16 %v305
      %v348 = vld [vmem:[%s3] sm:$0x1]
      %v350 = vlaneseq
      %v351 = vshrl.u32 %v350, 7
      %v352 = vsub.s32 0, %v351
      %v353 = vrot.slane %v348, %v352
      %v355 = vmul.f32 %v306, %v353
      %v356 = vmul.f32 %v307, %v353
      %v357 = vmul.f32 %v308, %v353
      %v358 = vmul.f32 %v309, %v353
      %v359 = vmul.f32 %v310, %v353
      %v360 = vmul.f32 %v311, %v353
      %v361 = vmul.f32 %v312, %v353
      %v362 = vmul.f32 %v313, %v353
      %v363 = vmul.f32 %v314, %v353
      %v364 = vmul.f32 %v315, %v353
      %v365 = vmul.f32 %v316, %v353
      %v366 = vmul.f32 %v317, %v353
      %v367 = vmul.f32 %v318, %v353
      %v368 = vmul.f32 %v319, %v353
      %v369 = vmul.f32 %v320, %v353
      %v370 = vmul.f32 %v321, %v353
      %v371 = vmul.f32 %v322, %v353
      %v372 = vmul.f32 %v323, %v353
      %v373 = vmul.f32 %v324, %v353
      %v374 = vmul.f32 %v325, %v353
      %v375 = vmul.f32 %v326, %v353
      %v376 = vmul.f32 %v327, %v353
      %v377 = vmul.f32 %v328, %v353
      %v378 = vmul.f32 %v329, %v353
      %v379 = vmul.f32 %v330, %v353
      %v380 = vmul.f32 %v331, %v353
      %v381 = vmul.f32 %v332, %v353
      %v382 = vmul.f32 %v333, %v353
      %v383 = vmul.f32 %v334, %v353
      %v384 = vmul.f32 %v335, %v353
      %v385 = vmul.f32 %v336, %v353
      %v386 = vmul.f32 %v337, %v353
      %v387 = vmul.f32 %v338, %v353
      %v388 = vmul.f32 %v339, %v353
      %v389 = vmul.f32 %v340, %v353
      %v390 = vmul.f32 %v341, %v353
      %v391 = vmul.f32 %v342, %v353
      %v392 = vmul.f32 %v343, %v353
      %v393 = vmul.f32 %v344, %v353
      %v394 = vmul.f32 %v345, %v353
      %v395 = vmul.f32 %v346, %v353
      %v396 = vmul.f32 %v347, %v353
      %v397 = vld [vmem:[%s4] sm:$0x1]
      %v399 = vlaneseq
      %v400 = vshrl.u32 %v399, 7
      %v401 = vsub.s32 0, %v400
      %v402 = vrot.slane %v397, %v401
      %v404 = vadd.f32 %v355, %v402
      %v405 = vadd.f32 %v356, %v402
      %v406 = vadd.f32 %v357, %v402
      %v407 = vadd.f32 %v358, %v402
      %v408 = vadd.f32 %v359, %v402
      %v409 = vadd.f32 %v360, %v402
      %v410 = vadd.f32 %v361, %v402
      %v411 = vadd.f32 %v362, %v402
      %v412 = vadd.f32 %v363, %v402
      %v413 = vadd.f32 %v364, %v402
      %v414 = vadd.f32 %v365, %v402
      %v415 = vadd.f32 %v366, %v402
      %v416 = vadd.f32 %v367, %v402
      %v417 = vadd.f32 %v368, %v402
      %v418 = vadd.f32 %v369, %v402
      %v419 = vadd.f32 %v370, %v402
      %v420 = vadd.f32 %v371, %v402
      %v421 = vadd.f32 %v372, %v402
      %v422 = vadd.f32 %v373, %v402
      %v423 = vadd.f32 %v374, %v402
      %v424 = vadd.f32 %v375, %v402
      %v425 = vadd.f32 %v376, %v402
      %v426 = vadd.f32 %v377, %v402
      %v427 = vadd.f32 %v378, %v402
      %v428 = vadd.f32 %v379, %v402
      %v429 = vadd.f32 %v380, %v402
      %v430 = vadd.f32 %v381, %v402
      %v431 = vadd.f32 %v382, %v402
      %v432 = vadd.f32 %v383, %v402
      %v433 = vadd.f32 %v384, %v402
      %v434 = vadd.f32 %v385, %v402
      %v435 = vadd.f32 %v386, %v402
      %v436 = vadd.f32 %v387, %v402
      %v437 = vadd.f32 %v388, %v402
      %v438 = vadd.f32 %v389, %v402
      %v439 = vadd.f32 %v390, %v402
      %v440 = vadd.f32 %v391, %v402
      %v441 = vadd.f32 %v392, %v402
      %v442 = vadd.f32 %v393, %v402
      %v443 = vadd.f32 %v394, %v402
      %v444 = vadd.f32 %v395, %v402
      %v445 = vadd.f32 %v396, %v402
      %v446 = vmax.f32 %v404, 0.0
      %v447 = vmax.f32 %v405, 0.0
      %v448 = vmax.f32 %v406, 0.0
      %v449 = vmax.f32 %v407, 0.0
      %v450 = vmax.f32 %v408, 0.0
      %v451 = vmax.f32 %v409, 0.0
      %v452 = vmax.f32 %v410, 0.0
      %v453 = vmax.f32 %v411, 0.0
      %v454 = vmax.f32 %v412, 0.0
      %v455 = vmax.f32 %v413, 0.0
      %v456 = vmax.f32 %v414, 0.0
      %v457 = vmax.f32 %v415, 0.0
      %v458 = vmax.f32 %v416, 0.0
      %v459 = vmax.f32 %v417, 0.0
      %v460 = vmax.f32 %v418, 0.0
      %v461 = vmax.f32 %v419, 0.0
      %v462 = vmax.f32 %v420, 0.0
      %v463 = vmax.f32 %v421, 0.0
      %v464 = vmax.f32 %v422, 0.0
      %v465 = vmax.f32 %v423, 0.0
      %v466 = vmax.f32 %v424, 0.0
      %v467 = vmax.f32 %v425, 0.0
      %v468 = vmax.f32 %v426, 0.0
      %v469 = vmax.f32 %v427, 0.0
      %v470 = vmax.f32 %v428, 0.0
      %v471 = vmax.f32 %v429, 0.0
      %v472 = vmax.f32 %v430, 0.0
      %v473 = vmax.f32 %v431, 0.0
      %v474 = vmax.f32 %v432, 0.0
      %v475 = vmax.f32 %v433, 0.0
      %v476 = vmax.f32 %v434, 0.0
      %v477 = vmax.f32 %v435, 0.0
      %v478 = vmax.f32 %v436, 0.0
      %v479 = vmax.f32 %v437, 0.0
      %v480 = vmax.f32 %v438, 0.0
      %v481 = vmax.f32 %v439, 0.0
      %v482 = vmax.f32 %v440, 0.0
      %v483 = vmax.f32 %v441, 0.0
      %v484 = vmax.f32 %v442, 0.0
      %v485 = vmax.f32 %v443, 0.0
      %v486 = vmax.f32 %v444, 0.0
      %v487 = vmax.f32 %v445, 0.0
      %v488 = vpack.c.bf16 %v447, %v446
      %v489 = vpack.c.bf16 %v449, %v448
      %v490 = vpack.c.bf16 %v451, %v450
      %v491 = vpack.c.bf16 %v453, %v452
      %v492 = vpack.c.bf16 %v455, %v454
      %v493 = vpack.c.bf16 %v457, %v456
      %v494 = vpack.c.bf16 %v459, %v458
      %v495 = vpack.c.bf16 %v461, %v460
      %v496 = vpack.c.bf16 %v463, %v462
      %v497 = vpack.c.bf16 %v465, %v464
      %v498 = vpack.c.bf16 %v467, %v466
      %v499 = vpack.c.bf16 %v469, %v468
      %v500 = vpack.c.bf16 %v471, %v470
      %v501 = vpack.c.bf16 %v473, %v472
      %v502 = vpack.c.bf16 %v475, %v474
      %v503 = vpack.c.bf16 %v477, %v476
      %v504 = vpack.c.bf16 %v479, %v478
      %v505 = vpack.c.bf16 %v481, %v480
      %v506 = vpack.c.bf16 %v483, %v482
      %v507 = vpack.c.bf16 %v485, %v484
      %v508 = vpack.c.bf16 %v487, %v486
      %v509 = vld [vmem:[%s1] sm:$0xf]
      %v510 = vld [vmem:[%s1 + $0x4] sm:$0xf]
      %v511 = vld [vmem:[%s1 + $0x8] sm:$0xf]
      %v512 = vld [vmem:[%s1 + $0xc] sm:$0xf]
      %v513 = vld [vmem:[%s1 + $0x10] sm:$0xf]
      %v514 = vld [vmem:[%s1 + $0x14] sm:$0xf]
      %v515 = vld [vmem:[%s1 + $0x18] sm:$0xf]
      %v516 = vld [vmem:[%s1 + $0x1c] sm:$0xf]
      %v517 = vld [vmem:[%s1 + $0x20] sm:$0xf]
      %v518 = vld [vmem:[%s1 + $0x24] sm:$0xf]
      %v519 = vld [vmem:[%s1 + $0x28] sm:$0xf]
      %v520 = vld [vmem:[%s1 + $0x2c] sm:$0xf]
      %v521 = vld [vmem:[%s1 + $0x30] sm:$0xf]
      %v522 = vld [vmem:[%s1 + $0x34] sm:$0xf]
      %v523 = vld [vmem:[%s1 + $0x38] sm:$0xf]
      %v524 = vld [vmem:[%s1 + $0x3c] sm:$0xf]
      %v541 = vunpack.c.l.b16 %v509
      %v542 = vunpack.c.l.b16 %v510
      %v543 = vunpack.c.l.b16 %v511
      %v544 = vunpack.c.l.b16 %v512
      %v545 = vunpack.c.l.b16 %v513
      %v546 = vunpack.c.l.b16 %v514
      %v547 = vunpack.c.l.b16 %v515
      %v548 = vunpack.c.l.b16 %v516
      %v549 = vunpack.c.l.b16 %v517
      %v550 = vunpack.c.l.b16 %v518
      %v551 = vunpack.c.l.b16 %v519
      %v552 = vunpack.c.l.b16 %v520
      %v553 = vunpack.c.l.b16 %v521
      %v554 = vunpack.c.l.b16 %v522
      %v555 = vunpack.c.l.b16 %v523
      %v556 = vunpack.c.l.b16 %v524
      %v557 = vpack.c.b16 %v542, %v541
      %v558 = vpack.c.b16 %v544, %v543
      %v559 = vpack.c.b16 %v546, %v545
      %v560 = vpack.c.b16 %v548, %v547
      %v561 = vpack.c.b16 %v550, %v549
      %v562 = vpack.c.b16 %v552, %v551
      %v563 = vpack.c.b16 %v554, %v553
      %v564 = vpack.c.b16 %v556, %v555
      %573 = vmatprep.subr.bf16.mxu0 0
      %574 = vmatpush1.bf16.msra.mxu0 %v557
      %575 = vmatprep.subr.bf16.mxu0 0
      %576 = vmatpush1.bf16.msra.mxu0 %v558
      %577 = vmatprep.subr.bf16.mxu0 0
      %578 = vmatpush1.bf16.msra.mxu0 %v559
      %579 = vmatprep.subr.bf16.mxu0 0
      %580 = vmatpush1.bf16.msra.mxu0 %v560
      %581 = vmatprep.subr.bf16.mxu0 0
      %582 = vmatpush1.bf16.msra.mxu0 %v561
      %583 = vmatprep.subr.bf16.mxu0 0
      %584 = vmatpush1.bf16.msra.mxu0 %v562
      %585 = vmatprep.subr.bf16.mxu0 0
      %586 = vmatpush1.bf16.msra.mxu0 %v563
      %587 = vmatprep.subr.bf16.mxu0 0
      %588 = vmatpush1.bf16.msra.mxu0 %v564
      %589 = vmatprep.subr.bf16.mxu0 0
      %590 = vmatpush1.bf16.msra.mxu0 0
      %591 = vmatprep.subr.bf16.mxu0 0
      %592 = vmatpush1.bf16.msra.mxu0 0
      %593 = vmatprep.subr.bf16.mxu0 0
      %594 = vmatpush1.bf16.msra.mxu0 0
      %595 = vmatprep.subr.bf16.mxu0 0
      %596 = vmatpush1.bf16.msra.mxu0 0
      %597 = vmatprep.subr.bf16.mxu0 0
      %598 = vmatpush1.bf16.msra.mxu0 0
      %599 = vmatprep.subr.bf16.mxu0 0
      %600 = vmatpush1.bf16.msra.mxu0 0
      %601 = vmatprep.subr.bf16.mxu0 0
      %602 = vmatpush1.bf16.msra.mxu0 0
      %603 = vmatprep.subr.bf16.mxu0 0
      %604 = vmatpush1.bf16.msra.mxu0 0
      %605 = vmatprep.mubr.bf16.mxu0 0
      %606 = vmatmul.mubr.bf16.gmra.mrb[0].mxu0 %v488
      %v607 = vpop.f32.mrb[0].mxu0
      %v608 = vadd.f32 0.0, %v607
      %v609 = vpop.f32.mrb[0].mxu0
      %v610 = vpop.f32.mrb[0].mxu0
      %v611 = vadd.f32 0.0, %v610
      %v612 = vpop.f32.mrb[0].mxu0
      %613 = vmatprep.mubr.bf16.mxu0 0
      %614 = vmatmul.mubr.bf16.gmra.mrb[0].mxu0 %v489
      %v615 = vpop.f32.mrb[0].mxu0
      %v616 = vadd.f32 0.0, %v615
      %v617 = vpop.f32.mrb[0].mxu0
      %v618 = vpop.f32.mrb[0].mxu0
      %v619 = vadd.f32 0.0, %v618
      %v620 = vpop.f32.mrb[0].mxu0
      %621 = vmatprep.mubr.bf16.mxu0 0
      %622 = vmatmul.mubr.bf16.gmra.mrb[0].mxu0 %v490
      %v623 = vpop.f32.mrb[0].mxu0
      %v624 = vadd.f32 0.0, %v623
      %v625 = vpop.f32.mrb[0].mxu0
      %v626 = vpop.f32.mrb[0].mxu0
      %v627 = vadd.f32 0.0, %v626
      %v628 = vpop.f32.mrb[0].mxu0
      %629 = vmatprep.mubr.bf16.mxu0 0
      %630 = vmatmul.mubr.bf16.gmra.mrb[0].mxu0 %v491
      %v631 = vpop.f32.mrb[0].mxu0
      %v632 = vadd.f32 0.0, %v631
      %v633 = vpop.f32.mrb[0].mxu0
      %v634 = vpop.f32.mrb[0].mxu0
      %v635 = vadd.f32 0.0, %v634
      %v636 = vpop.f32.mrb[0].mxu0
      %637 = vmatprep.mubr.bf16.mxu0 0
      %638 = vmatmul.mubr.bf16.gmra.mrb[0].mxu0 %v492
      %v639 = vpop.f32.mrb[0].mxu0
      %v640 = vadd.f32 0.0, %v639
      %v641 = vpop.f32.mrb[0].mxu0
      %v642 = vpop.f32.mrb[0].mxu0
      %v643 = vadd.f32 0.0, %v642
      %v644 = vpop.f32.mrb[0].mxu0
      %645 = vmatprep.mubr.bf16.mxu0 0
      %646 = vmatmul.mubr.bf16.gmra.mrb[0].mxu0 %v493
      %v647 = vpop.f32.mrb[0].mxu0
      %v648 = vadd.f32 0.0, %v647
      %v649 = vpop.f32.mrb[0].mxu0
      %v650 = vpop.f32.mrb[0].mxu0
      %v651 = vadd.f32 0.0, %v650
      %v652 = vpop.f32.mrb[0].mxu0
      %653 = vmatprep.mubr.bf16.mxu0 0
      %654 = vmatmul.mubr.bf16.gmra.mrb[0].mxu0 %v494
      %v655 = vpop.f32.mrb[0].mxu0
      %v656 = vadd.f32 0.0, %v655
      %v657 = vpop.f32.mrb[0].mxu0
      %v658 = vpop.f32.mrb[0].mxu0
      %v659 = vadd.f32 0.0, %v658
      %v660 = vpop.f32.mrb[0].mxu0
      %661 = vmatprep.mubr.bf16.mxu0 0
      %662 = vmatmul.mubr.bf16.gmra.mrb[0].mxu0 %v495
      %v663 = vpop.f32.mrb[0].mxu0
      %v664 = vadd.f32 0.0, %v663
      %v665 = vpop.f32.mrb[0].mxu0
      %v666 = vpop.f32.mrb[0].mxu0
      %v667 = vadd.f32 0.0, %v666
      %v668 = vpop.f32.mrb[0].mxu0
      %669 = vmatprep.mubr.bf16.mxu0 0
      %670 = vmatmul.mubr.bf16.gmra.mrb[0].mxu0 %v496
      %v671 = vpop.f32.mrb[0].mxu0
      %v672 = vadd.f32 0.0, %v671
      %v673 = vpop.f32.mrb[0].mxu0
      %v674 = vpop.f32.mrb[0].mxu0
      %v675 = vadd.f32 0.0, %v674
      %v676 = vpop.f32.mrb[0].mxu0
      %677 = vmatprep.mubr.bf16.mxu0 0
      %678 = vmatmul.mubr.bf16.gmra.mrb[0].mxu0 %v497
      %v679 = vpop.f32.mrb[0].mxu0
      %v680 = vadd.f32 0.0, %v679
      %v681 = vpop.f32.mrb[0].mxu0
      %v682 = vpop.f32.mrb[0].mxu0
      %v683 = vadd.f32 0.0, %v682
      %v684 = vpop.f32.mrb[0].mxu0
      %685 = vmatprep.mubr.bf16.mxu0 0
      %686 = vmatmul.mubr.bf16.gmra.mrb[0].mxu0 %v498
      %v687 = vpop.f32.mrb[0].mxu0
      %v688 = vadd.f32 0.0, %v687
      %v689 = vpop.f32.mrb[0].mxu0
      %v690 = vpop.f32.mrb[0].mxu0
      %v691 = vadd.f32 0.0, %v690
      %v692 = vpop.f32.mrb[0].mxu0
      %693 = vmatprep.mubr.bf16.mxu0 0
      %694 = vmatmul.mubr.bf16.gmra.mrb[0].mxu0 %v499
      %v695 = vpop.f32.mrb[0].mxu0
      %v696 = vadd.f32 0.0, %v695
      %v697 = vpop.f32.mrb[0].mxu0
      %v698 = vpop.f32.mrb[0].mxu0
      %v699 = vadd.f32 0.0, %v698
      %v700 = vpop.f32.mrb[0].mxu0
      %701 = vmatprep.mubr.bf16.mxu0 0
      %702 = vmatmul.mubr.bf16.gmra.mrb[0].mxu0 %v500
      %v703 = vpop.f32.mrb[0].mxu0
      %v704 = vadd.f32 0.0, %v703
      %v705 = vpop.f32.mrb[0].mxu0
      %v706 = vpop.f32.mrb[0].mxu0
      %v707 = vadd.f32 0.0, %v706
      %v708 = vpop.f32.mrb[0].mxu0
      %709 = vmatprep.mubr.bf16.mxu0 0
      %710 = vmatmul.mubr.bf16.gmra.mrb[0].mxu0 %v501
      %v711 = vpop.f32.mrb[0].mxu0
      %v712 = vadd.f32 0.0, %v711
      %v713 = vpop.f32.mrb[0].mxu0
      %v714 = vpop.f32.mrb[0].mxu0
      %v715 = vadd.f32 0.0, %v714
      %v716 = vpop.f32.mrb[0].mxu0
      %717 = vmatprep.mubr.bf16.mxu0 0
      %718 = vmatmul.mubr.bf16.gmra.mrb[0].mxu0 %v502
      %v719 = vpop.f32.mrb[0].mxu0
      %v720 = vadd.f32 0.0, %v719
      %v721 = vpop.f32.mrb[0].mxu0
      %v722 = vpop.f32.mrb[0].mxu0
      %v723 = vadd.f32 0.0, %v722
      %v724 = vpop.f32.mrb[0].mxu0
      %725 = vmatprep.mubr.bf16.mxu0 0
      %726 = vmatmul.mubr.bf16.gmra.mrb[0].mxu0 %v503
      %v727 = vpop.f32.mrb[0].mxu0
      %v728 = vadd.f32 0.0, %v727
      %v729 = vpop.f32.mrb[0].mxu0
      %v730 = vpop.f32.mrb[0].mxu0
      %v731 = vadd.f32 0.0, %v730
      %v732 = vpop.f32.mrb[0].mxu0
      %733 = vmatprep.mubr.bf16.mxu0 0
      %734 = vmatmul.mubr.bf16.gmra.mrb[0].mxu0 %v504
      %v735 = vpop.f32.mrb[0].mxu0
      %v736 = vadd.f32 0.0, %v735
      %v737 = vpop.f32.mrb[0].mxu0
      %v738 = vpop.f32.mrb[0].mxu0
      %v739 = vadd.f32 0.0, %v738
      %v740 = vpop.f32.mrb[0].mxu0
      %741 = vmatprep.mubr.bf16.mxu0 0
      %742 = vmatmul.mubr.bf16.gmra.mrb[0].mxu0 %v505
      %v743 = vpop.f32.mrb[0].mxu0
      %v744 = vadd.f32 0.0, %v743
      %v745 = vpop.f32.mrb[0].mxu0
      %v746 = vpop.f32.mrb[0].mxu0
      %v747 = vadd.f32 0.0, %v746
      %v748 = vpop.f32.mrb[0].mxu0
      %749 = vdwg.mxu0
      %750 = vst [vmem:[#allocation2] sm:$0xff] %v608
      %751 = vst [vmem:[#allocation2 + $0x8] sm:$0xff] %v611
      %752 = vst [vmem:[#allocation2 + $0x10] sm:$0xff] %v616
      %753 = vst [vmem:[#allocation2 + $0x18] sm:$0xff] %v619
      %754 = vst [vmem:[#allocation2 + $0x20] sm:$0xff] %v624
      %755 = vst [vmem:[#allocation2 + $0x28] sm:$0xff] %v627
      %756 = vst [vmem:[#allocation2 + $0x30] sm:$0xff] %v632
      %757 = vst [vmem:[#allocation2 + $0x38] sm:$0xff] %v635
      %758 = vst [vmem:[#allocation2 + $0x40] sm:$0xff] %v640
      %759 = vst [vmem:[#allocation2 + $0x48] sm:$0xff] %v643
      %760 = vst [vmem:[#allocation2 + $0x50] sm:$0xff] %v648
      %761 = vst [vmem:[#allocation2 + $0x58] sm:$0xff] %v651
      %762 = vst [vmem:[#allocation2 + $0x60] sm:$0xff] %v656
      %763 = vst [vmem:[#allocation2 + $0x68] sm:$0xff] %v659
      %764 = vst [vmem:[#allocation2 + $0x70] sm:$0xff] %v664
      %765 = vst [vmem:[#allocation2 + $0x78] sm:$0xff] %v667
      %766 = vst [vmem:[#allocation2 + $0x80] sm:$0xff] %v672
      %767 = vst [vmem:[#allocation2 + $0x88] sm:$0xff] %v675
      %768 = vst [vmem:[#allocation2 + $0x90] sm:$0xff] %v680
      %769 = vst [vmem:[#allocation2 + $0x98] sm:$0xff] %v683
      %770 = vst [vmem:[#allocation2 + $0xa0] sm:$0xff] %v688
      %771 = vst [vmem:[#allocation2 + $0xa8] sm:$0xff] %v691
      %772 = vst [vmem:[#allocation2 + $0xb0] sm:$0xff] %v696
      %773 = vst [vmem:[#allocation2 + $0xb8] sm:$0xff] %v699
      %774 = vst [vmem:[#allocation2 + $0xc0] sm:$0xff] %v704
      %775 = vst [vmem:[#allocation2 + $0xc8] sm:$0xff] %v707
      %776 = vst [vmem:[#allocation2 + $0xd0] sm:$0xff] %v712
      %777 = vst [vmem:[#allocation2 + $0xd8] sm:$0xff] %v715
      %778 = vst [vmem:[#allocation2 + $0xe0] sm:$0xff] %v720
      %779 = vst [vmem:[#allocation2 + $0xe8] sm:$0xff] %v723
      %780 = vst [vmem:[#allocation2 + $0xf0] sm:$0xff] %v728
      %781 = vst [vmem:[#allocation2 + $0xf8] sm:$0xff] %v731
      %782 = vst [vmem:[#allocation2 + $0x100] sm:$0xff] %v736
      %783 = vst [vmem:[#allocation2 + $0x108] sm:$0xff] %v739
      %784 = vst [vmem:[#allocation2 + $0x110] sm:$0xff] %v744
      %785 = vst [vmem:[#allocation2 + $0x118] sm:$0xff] %v747
      %v786 = vld [vmem:[#allocation2] sm:$0xff]
      %v787 = vld [vmem:[#allocation2 + $0x8] sm:$0xff]
      %v788 = vld [vmem:[#allocation2 + $0x10] sm:$0xff]
      %v789 = vld [vmem:[#allocation2 + $0x18] sm:$0xff]
      %v790 = vld [vmem:[#allocation2 + $0x20] sm:$0xff]
      %v791 = vld [vmem:[#allocation2 + $0x28] sm:$0xff]
      %v792 = vld [vmem:[#allocation2 + $0x30] sm:$0xff]
      %v793 = vld [vmem:[#allocation2 + $0x38] sm:$0xff]
      %v794 = vld [vmem:[#allocation2 + $0x40] sm:$0xff]
      %v795 = vld [vmem:[#allocation2 + $0x48] sm:$0xff]
      %v796 = vld [vmem:[#allocation2 + $0x50] sm:$0xff]
      %v797 = vld [vmem:[#allocation2 + $0x58] sm:$0xff]
      %v798 = vld [vmem:[#allocation2 + $0x60] sm:$0xff]
      %v799 = vld [vmem:[#allocation2 + $0x68] sm:$0xff]
      %v800 = vld [vmem:[#allocation2 + $0x70] sm:$0xff]
      %v801 = vld [vmem:[#allocation2 + $0x78] sm:$0xff]
      %v802 = vld [vmem:[#allocation2 + $0x80] sm:$0xff]
      %v803 = vld [vmem:[#allocation2 + $0x88] sm:$0xff]
      %v804 = vld [vmem:[#allocation2 + $0x90] sm:$0xff]
      %v805 = vld [vmem:[#allocation2 + $0x98] sm:$0xff]
      %v806 = vld [vmem:[#allocation2 + $0xa0] sm:$0xff]
      %v807 = vld [vmem:[#allocation2 + $0xa8] sm:$0xff]
      %v808 = vld [vmem:[#allocation2 + $0xb0] sm:$0xff]
      %v809 = vld [vmem:[#allocation2 + $0xb8] sm:$0xff]
      %v810 = vld [vmem:[#allocation2 + $0xc0] sm:$0xff]
      %v811 = vld [vmem:[#allocation2 + $0xc8] sm:$0xff]
      %v812 = vld [vmem:[#allocation2 + $0xd0] sm:$0xff]
      %v813 = vld [vmem:[#allocation2 + $0xd8] sm:$0xff]
      %v814 = vld [vmem:[#allocation2 + $0xe0] sm:$0xff]
      %v815 = vld [vmem:[#allocation2 + $0xe8] sm:$0xff]
      %v816 = vld [vmem:[#allocation2 + $0xf0] sm:$0xff]
      %v817 = vld [vmem:[#allocation2 + $0xf8] sm:$0xff]
      %v818 = vld [vmem:[#allocation2 + $0x100] sm:$0xff]
      %v819 = vld [vmem:[#allocation2 + $0x108] sm:$0xff]
      %v820 = vld [vmem:[#allocation2 + $0x110] sm:$0xff]
      %v821 = vld [vmem:[#allocation2 + $0x118] sm:$0xff]
      %s822 = scalar_lea.vmem %s1, 64
      %v823 = vld [vmem:[%s822] sm:$0xf]
      %v824 = vld [vmem:[%s822 + $0x4] sm:$0xf]
      %v825 = vld [vmem:[%s822 + $0x8] sm:$0xf]
      %v826 = vld [vmem:[%s822 + $0xc] sm:$0xf]
      %v827 = vld [vmem:[%s822 + $0x10] sm:$0xf]
      %v828 = vld [vmem:[%s822 + $0x14] sm:$0xf]
      %v829 = vld [vmem:[%s822 + $0x18] sm:$0xf]
      %v830 = vld [vmem:[%s822 + $0x1c] sm:$0xf]
      %v831 = vld [vmem:[%s822 + $0x20] sm:$0xf]
      %v832 = vld [vmem:[%s822 + $0x24] sm:$0xf]
      %v833 = vld [vmem:[%s822 + $0x28] sm:$0xf]
      %v834 = vld [vmem:[%s822 + $0x2c] sm:$0xf]
      %v835 = vld [vmem:[%s822 + $0x30] sm:$0xf]
      %v836 = vld [vmem:[%s822 + $0x34] sm:$0xf]
      %v837 = vld [vmem:[%s822 + $0x38] sm:$0xf]
      %v838 = vld [vmem:[%s822 + $0x3c] sm:$0xf]
      %vm839 = vsmask.f32 7424
      %v841 = vshrl.u32 %v488, 16
      %v843 = vshll.u32 %v488, 16
      %v845 = vrot.slane %v843, 1
      %v846 = vor.u32 %v841, %v845
      %v848 = vshll.u32 %v489, 16
      %v850 = vrot.slane %v848, 1
      %v851 = vsel %vm839, %v846, %v850
      %v852 = vshrl.u32 %v489, 16
      %v854 = vor.u32 %v852, %v850
      %v856 = vshll.u32 %v490, 16
      %v858 = vrot.slane %v856, 1
      %v859 = vsel %vm839, %v854, %v858
      %v860 = vshrl.u32 %v490, 16
      %v862 = vor.u32 %v860, %v858
      %v864 = vshll.u32 %v491, 16
      %v866 = vrot.slane %v864, 1
      %v867 = vsel %vm839, %v862, %v866
      %v868 = vshrl.u32 %v491, 16
      %v870 = vor.u32 %v868, %v866
      %v872 = vshll.u32 %v492, 16
      %v874 = vrot.slane %v872, 1
      %v875 = vsel %vm839, %v870, %v874
      %v876 = vshrl.u32 %v492, 16
      %v878 = vor.u32 %v876, %v874
      %v880 = vshll.u32 %v493, 16
      %v882 = vrot.slane %v880, 1
      %v883 = vsel %vm839, %v878, %v882
      %v884 = vshrl.u32 %v493, 16
      %v886 = vor.u32 %v884, %v882
      %v888 = vshll.u32 %v494, 16
      %v890 = vrot.slane %v888, 1
      %v891 = vsel %vm839, %v886, %v890
      %v892 = vshrl.u32 %v494, 16
      %v894 = vor.u32 %v892, %v890
      %v896 = vshll.u32 %v495, 16
      %v898 = vrot.slane %v896, 1
      %v899 = vsel %vm839, %v894, %v898
      %v900 = vshrl.u32 %v495, 16
      %v902 = vor.u32 %v900, %v898
      %v904 = vshll.u32 %v496, 16
      %v906 = vrot.slane %v904, 1
      %v907 = vsel %vm839, %v902, %v906
      %v908 = vshrl.u32 %v496, 16
      %v910 = vor.u32 %v908, %v906
      %v912 = vshll.u32 %v497, 16
      %v914 = vrot.slane %v912, 1
      %v915 = vsel %vm839, %v910, %v914
      %v916 = vshrl.u32 %v497, 16
      %v918 = vor.u32 %v916, %v914
      %v920 = vshll.u32 %v498, 16
      %v922 = vrot.slane %v920, 1
      %v923 = vsel %vm839, %v918, %v922
      %v924 = vshrl.u32 %v498, 16
      %v926 = vor.u32 %v924, %v922
      %v928 = vshll.u32 %v499, 16
      %v930 = vrot.slane %v928, 1
      %v931 = vsel %vm839, %v926, %v930
      %v932 = vshrl.u32 %v499, 16
      %v934 = vor.u32 %v932, %v930
      %v936 = vshll.u32 %v500, 16
      %v938 = vrot.slane %v936, 1
      %v939 = vsel %vm839, %v934, %v938
      %v940 = vshrl.u32 %v500, 16
      %v942 = vor.u32 %v940, %v938
      %v944 = vshll.u32 %v501, 16
      %v946 = vrot.slane %v944, 1
      %v947 = vsel %vm839, %v942, %v946
      %v948 = vshrl.u32 %v501, 16
      %v950 = vor.u32 %v948, %v946
      %v952 = vshll.u32 %v502, 16
      %v954 = vrot.slane %v952, 1
      %v955 = vsel %vm839, %v950, %v954
      %v956 = vshrl.u32 %v502, 16
      %v958 = vor.u32 %v956, %v954
      %v960 = vshll.u32 %v503, 16
      %v962 = vrot.slane %v960, 1
      %v963 = vsel %vm839, %v958, %v962
      %v964 = vshrl.u32 %v503, 16
      %v966 = vor.u32 %v964, %v962
      %v968 = vshll.u32 %v504, 16
      %v970 = vrot.slane %v968, 1
      %v971 = vsel %vm839, %v966, %v970
      %v972 = vshrl.u32 %v504, 16
      %v974 = vor.u32 %v972, %v970
      %v976 = vshll.u32 %v505, 16
      %v978 = vrot.slane %v976, 1
      %v979 = vsel %vm839, %v974, %v978
      %v980 = vshrl.u32 %v505, 16
      %v982 = vor.u32 %v980, %v978
      %v984 = vshll.u32 %v506, 16
      %v986 = vrot.slane %v984, 1
      %v987 = vsel %vm839, %v982, %v986
      %v1022 = vunpack.c.l.b16 %v823
      %v1023 = vunpack.c.l.b16 %v824
      %v1024 = vunpack.c.l.b16 %v825
      %v1025 = vunpack.c.l.b16 %v826
      %v1026 = vunpack.c.l.b16 %v827
      %v1027 = vunpack.c.l.b16 %v828
      %v1028 = vunpack.c.l.b16 %v829
      %v1029 = vunpack.c.l.b16 %v830
      %v1030 = vunpack.c.l.b16 %v831
      %v1031 = vunpack.c.l.b16 %v832
      %v1032 = vunpack.c.l.b16 %v833
      %v1033 = vunpack.c.l.b16 %v834
      %v1034 = vunpack.c.l.b16 %v835
      %v1035 = vunpack.c.l.b16 %v836
      %v1036 = vunpack.c.l.b16 %v837
      %v1037 = vunpack.c.l.b16 %v838
      %v1038 = vpack.c.b16 %v1023, %v1022
      %v1039 = vpack.c.b16 %v1025, %v1024
      %v1040 = vpack.c.b16 %v1027, %v1026
      %v1041 = vpack.c.b16 %v1029, %v1028
      %v1042 = vpack.c.b16 %v1031, %v1030
      %v1043 = vpack.c.b16 %v1033, %v1032
      %v1044 = vpack.c.b16 %v1035, %v1034
      %v1045 = vpack.c.b16 %v1037, %v1036
      %1054 = vmatprep.subr.bf16.mxu0 0
      %1055 = vmatpush1.bf16.msra.mxu0 %v1038
      %1056 = vmatprep.subr.bf16.mxu0 0
      %1057 = vmatpush1.bf16.msra.mxu0 %v1039
      %1058 = vmatprep.subr.bf16.mxu0 0
      %1059 = vmatpush1.bf16.msra.mxu0 %v1040
      %1060 = vmatprep.subr.bf16.mxu0 0
      %1061 = vmatpush1.bf16.msra.mxu0 %v1041
      %1062 = vmatprep.subr.bf16.mxu0 0
      %1063 = vmatpush1.bf16.msra.mxu0 %v1042
      %1064 = vmatprep.subr.bf16.mxu0 0
      %1065 = vmatpush1.bf16.msra.mxu0 %v1043
      %1066 = vmatprep.subr.bf16.mxu0 0
      %1067 = vmatpush1.bf16.msra.mxu0 %v1044
      %1068 = vmatprep.subr.bf16.mxu0 0
      %1069 = vmatpush1.bf16.msra.mxu0 %v1045
      %1070 = vmatprep.subr.bf16.mxu0 0
      %1071 = vmatpush1.bf16.msra.mxu0 0
      %1072 = vmatprep.subr.bf16.mxu0 0
      %1073 = vmatpush1.bf16.msra.mxu0 0
      %1074 = vmatprep.subr.bf16.mxu0 0
      %1075 = vmatpush1.bf16.msra.mxu0 0
      %1076 = vmatprep.subr.bf16.mxu0 0
      %1077 = vmatpush1.bf16.msra.mxu0 0
      %1078 = vmatprep.subr.bf16.mxu0 0
      %1079 = vmatpush1.bf16.msra.mxu0 0
      %1080 = vmatprep.subr.bf16.mxu0 0
      %1081 = vmatpush1.bf16.msra.mxu0 0
      %1082 = vmatprep.subr.bf16.mxu0 0
      %1083 = vmatpush1.bf16.msra.mxu0 0
      %1084 = vmatprep.subr.bf16.mxu0 0
      %1085 = vmatpush1.bf16.msra.mxu0 0
      %1086 = vmatprep.mubr.bf16.mxu0 0
      %1087 = vmatmul.mubr.bf16.gmra.mrb[0].mxu0 %v851
      %v1088 = vpop.f32.mrb[0].mxu0
      %v1089 = vadd.f32 0.0, %v1088
      %v1090 = vpop.f32.mrb[0].mxu0
      %v1091 = vpop.f32.mrb[0].mxu0
      %v1092 = vadd.f32 0.0, %v1091
      %v1093 = vpop.f32.mrb[0].mxu0
      %1094 = vmatprep.mubr.bf16.mxu0 0
      %1095 = vmatmul.mubr.bf16.gmra.mrb[0].mxu0 %v859
      %v1096 = vpop.f32.mrb[0].mxu0
      %v1097 = vadd.f32 0.0, %v1096
      %v1098 = vpop.f32.mrb[0].mxu0
      %v1099 = vpop.f32.mrb[0].mxu0
      %v1100 = vadd.f32 0.0, %v1099
      %v1101 = vpop.f32.mrb[0].mxu0
      %1102 = vmatprep.mubr.bf16.mxu0 0
      %1103 = vmatmul.mubr.bf16.gmra.mrb[0].mxu0 %v867
      %v1104 = vpop.f32.mrb[0].mxu0
      %v1105 = vadd.f32 0.0, %v1104
      %v1106 = vpop.f32.mrb[0].mxu0
      %v1107 = vpop.f32.mrb[0].mxu0
      %v1108 = vadd.f32 0.0, %v1107
      %v1109 = vpop.f32.mrb[0].mxu0
      %1110 = vmatprep.mubr.bf16.mxu0 0
      %1111 = vmatmul.mubr.bf16.gmra.mrb[0].mxu0 %v875
      %v1112 = vpop.f32.mrb[0].mxu0
      %v1113 = vadd.f32 0.0, %v1112
      %v1114 = vpop.f32.mrb[0].mxu0
      %v1115 = vpop.f32.mrb[0].mxu0
      %v1116 = vadd.f32 0.0, %v1115
      %v1117 = vpop.f32.mrb[0].mxu0
      %1118 = vmatprep.mubr.bf16.mxu0 0
      %1119 = vmatmul.mubr.bf16.gmra.mrb[0].mxu0 %v883
      %v1120 = vpop.f32.mrb[0].mxu0
      %v1121 = vadd.f32 0.0, %v1120
      %v1122 = vpop.f32.mrb[0].mxu0
      %v1123 = vpop.f32.mrb[0].mxu0
      %v1124 = vadd.f32 0.0, %v1123
      %v1125 = vpop.f32.mrb[0].mxu0
      %1126 = vmatprep.mubr.bf16.mxu0 0
      %1127 = vmatmul.mubr.bf16.gmra.mrb[0].mxu0 %v891
      %v1128 = vpop.f32.mrb[0].mxu0
      %v1129 = vadd.f32 0.0, %v1128
      %v1130 = vpop.f32.mrb[0].mxu0
      %v1131 = vpop.f32.mrb[0].mxu0
      %v1132 = vadd.f32 0.0, %v1131
      %v1133 = vpop.f32.mrb[0].mxu0
      %1134 = vmatprep.mubr.bf16.mxu0 0
      %1135 = vmatmul.mubr.bf16.gmra.mrb[0].mxu0 %v899
      %v1136 = vpop.f32.mrb[0].mxu0
      %v1137 = vadd.f32 0.0, %v1136
      %v1138 = vpop.f32.mrb[0].mxu0
      %v1139 = vpop.f32.mrb[0].mxu0
      %v1140 = vadd.f32 0.0, %v1139
      %v1141 = vpop.f32.mrb[0].mxu0
      %1142 = vmatprep.mubr.bf16.mxu0 0
      %1143 = vmatmul.mubr.bf16.gmra.mrb[0].mxu0 %v907
      %v1144 = vpop.f32.mrb[0].mxu0
      %v1145 = vadd.f32 0.0, %v1144
      %v1146 = vpop.f32.mrb[0].mxu0
      %v1147 = vpop.f32.mrb[0].mxu0
      %v1148 = vadd.f32 0.0, %v1147
      %v1149 = vpop.f32.mrb[0].mxu0
      %1150 = vmatprep.mubr.bf16.mxu0 0
      %1151 = vmatmul.mubr.bf16.gmra.mrb[0].mxu0 %v915
      %v1152 = vpop.f32.mrb[0].mxu0
      %v1153 = vadd.f32 0.0, %v1152
      %v1154 = vpop.f32.mrb[0].mxu0
      %v1155 = vpop.f32.mrb[0].mxu0
      %v1156 = vadd.f32 0.0, %v1155
      %v1157 = vpop.f32.mrb[0].mxu0
      %1158 = vmatprep.mubr.bf16.mxu0 0
      %1159 = vmatmul.mubr.bf16.gmra.mrb[0].mxu0 %v923
      %v1160 = vpop.f32.mrb[0].mxu0
      %v1161 = vadd.f32 0.0, %v1160
      %v1162 = vpop.f32.mrb[0].mxu0
      %v1163 = vpop.f32.mrb[0].mxu0
      %v1164 = vadd.f32 0.0, %v1163
      %v1165 = vpop.f32.mrb[0].mxu0
      %1166 = vmatprep.mubr.bf16.mxu0 0
      %1167 = vmatmul.mubr.bf16.gmra.mrb[0].mxu0 %v931
      %v1168 = vpop.f32.mrb[0].mxu0
      %v1169 = vadd.f32 0.0, %v1168
      %v1170 = vpop.f32.mrb[0].mxu0
      %v1171 = vpop.f32.mrb[0].mxu0
      %v1172 = vadd.f32 0.0, %v1171
      %v1173 = vpop.f32.mrb[0].mxu0
      %1174 = vmatprep.mubr.bf16.mxu0 0
      %1175 = vmatmul.mubr.bf16.gmra.mrb[0].mxu0 %v939
      %v1176 = vpop.f32.mrb[0].mxu0
      %v1177 = vadd.f32 0.0, %v1176
      %v1178 = vpop.f32.mrb[0].mxu0
      %v1179 = vpop.f32.mrb[0].mxu0
      %v1180 = vadd.f32 0.0, %v1179
      %v1181 = vpop.f32.mrb[0].mxu0
      %1182 = vmatprep.mubr.bf16.mxu0 0
      %1183 = vmatmul.mubr.bf16.gmra.mrb[0].mxu0 %v947
      %v1184 = vpop.f32.mrb[0].mxu0
      %v1185 = vadd.f32 0.0, %v1184
      %v1186 = vpop.f32.mrb[0].mxu0
      %v1187 = vpop.f32.mrb[0].mxu0
      %v1188 = vadd.f32 0.0, %v1187
      %v1189 = vpop.f32.mrb[0].mxu0
      %1190 = vmatprep.mubr.bf16.mxu0 0
      %1191 = vmatmul.mubr.bf16.gmra.mrb[0].mxu0 %v955
      %v1192 = vpop.f32.mrb[0].mxu0
      %v1193 = vadd.f32 0.0, %v1192
      %v1194 = vpop.f32.mrb[0].mxu0
      %v1195 = vpop.f32.mrb[0].mxu0
      %v1196 = vadd.f32 0.0, %v1195
      %v1197 = vpop.f32.mrb[0].mxu0
      %1198 = vmatprep.mubr.bf16.mxu0 0
      %1199 = vmatmul.mubr.bf16.gmra.mrb[0].mxu0 %v963
      %v1200 = vpop.f32.mrb[0].mxu0
      %v1201 = vadd.f32 0.0, %v1200
      %v1202 = vpop.f32.mrb[0].mxu0
      %v1203 = vpop.f32.mrb[0].mxu0
      %v1204 = vadd.f32 0.0, %v1203
      %v1205 = vpop.f32.mrb[0].mxu0
      %1206 = vmatprep.mubr.bf16.mxu0 0
      %1207 = vmatmul.mubr.bf16.gmra.mrb[0].mxu0 %v971
      %v1208 = vpop.f32.mrb[0].mxu0
      %v1209 = vadd.f32 0.0, %v1208
      %v1210 = vpop.f32.mrb[0].mxu0
      %v1211 = vpop.f32.mrb[0].mxu0
      %v1212 = vadd.f32 0.0, %v1211
      %v1213 = vpop.f32.mrb[0].mxu0
      %1214 = vmatprep.mubr.bf16.mxu0 0
      %1215 = vmatmul.mubr.bf16.gmra.mrb[0].mxu0 %v979
      %v1216 = vpop.f32.mrb[0].mxu0
      %v1217 = vadd.f32 0.0, %v1216
      %v1218 = vpop.f32.mrb[0].mxu0
      %v1219 = vpop.f32.mrb[0].mxu0
      %v1220 = vadd.f32 0.0, %v1219
      %v1221 = vpop.f32.mrb[0].mxu0
      %1222 = vmatprep.mubr.bf16.mxu0 0
      %1223 = vmatmul.mubr.bf16.gmra.mrb[0].mxu0 %v987
      %v1224 = vpop.f32.mrb[0].mxu0
      %v1225 = vadd.f32 0.0, %v1224
      %v1226 = vpop.f32.mrb[0].mxu0
      %v1227 = vpop.f32.mrb[0].mxu0
      %v1228 = vadd.f32 0.0, %v1227
      %v1229 = vpop.f32.mrb[0].mxu0
      %1230 = vdwg.mxu0
      %v1231 = vadd.f32 %v786, %v1089
      %v1232 = vadd.f32 %v787, %v1092
      %v1233 = vadd.f32 %v788, %v1097
      %v1234 = vadd.f32 %v789, %v1100
      %v1235 = vadd.f32 %v790, %v1105
      %v1236 = vadd.f32 %v791, %v1108
      %v1237 = vadd.f32 %v792, %v1113
      %v1238 = vadd.f32 %v793, %v1116
      %v1239 = vadd.f32 %v794, %v1121
      %v1240 = vadd.f32 %v795, %v1124
      %v1241 = vadd.f32 %v796, %v1129
      %v1242 = vadd.f32 %v797, %v1132
      %v1243 = vadd.f32 %v798, %v1137
      %v1244 = vadd.f32 %v799, %v1140
      %v1245 = vadd.f32 %v800, %v1145
      %v1246 = vadd.f32 %v801, %v1148
      %v1247 = vadd.f32 %v802, %v1153
      %v1248 = vadd.f32 %v803, %v1156
      %v1249 = vadd.f32 %v804, %v1161
      %v1250 = vadd.f32 %v805, %v1164
      %v1251 = vadd.f32 %v806, %v1169
      %v1252 = vadd.f32 %v807, %v1172
      %v1253 = vadd.f32 %v808, %v1177
      %v1254 = vadd.f32 %v809, %v1180
      %v1255 = vadd.f32 %v810, %v1185
      %v1256 = vadd.f32 %v811, %v1188
      %v1257 = vadd.f32 %v812, %v1193
      %v1258 = vadd.f32 %v813, %v1196
      %v1259 = vadd.f32 %v814, %v1201
      %v1260 = vadd.f32 %v815, %v1204
      %v1261 = vadd.f32 %v816, %v1209
      %v1262 = vadd.f32 %v817, %v1212
      %v1263 = vadd.f32 %v818, %v1217
      %v1264 = vadd.f32 %v819, %v1220
      %v1265 = vadd.f32 %v820, %v1225
      %v1266 = vadd.f32 %v821, %v1228
      %1267 = vst [vmem:[#allocation2] sm:$0xff] %v1231
      %1268 = vst [vmem:[#allocation2 + $0x8] sm:$0xff] %v1232
      %1269 = vst [vmem:[#allocation2 + $0x10] sm:$0xff] %v1233
      %1270 = vst [vmem:[#allocation2 + $0x18] sm:$0xff] %v1234
      %1271 = vst [vmem:[#allocation2 + $0x20] sm:$0xff] %v1235
      %1272 = vst [vmem:[#allocation2 + $0x28] sm:$0xff] %v1236
      %1273 = vst [vmem:[#allocation2 + $0x30] sm:$0xff] %v1237
      %1274 = vst [vmem:[#allocation2 + $0x38] sm:$0xff] %v1238
      %1275 = vst [vmem:[#allocation2 + $0x40] sm:$0xff] %v1239
      %1276 = vst [vmem:[#allocation2 + $0x48] sm:$0xff] %v1240
      %1277 = vst [vmem:[#allocation2 + $0x50] sm:$0xff] %v1241
      %1278 = vst [vmem:[#allocation2 + $0x58] sm:$0xff] %v1242
      %1279 = vst [vmem:[#allocation2 + $0x60] sm:$0xff] %v1243
      %1280 = vst [vmem:[#allocation2 + $0x68] sm:$0xff] %v1244
      %1281 = vst [vmem:[#allocation2 + $0x70] sm:$0xff] %v1245
      %1282 = vst [vmem:[#allocation2 + $0x78] sm:$0xff] %v1246
      %1283 = vst [vmem:[#allocation2 + $0x80] sm:$0xff] %v1247
      %1284 = vst [vmem:[#allocation2 + $0x88] sm:$0xff] %v1248
      %1285 = vst [vmem:[#allocation2 + $0x90] sm:$0xff] %v1249
      %1286 = vst [vmem:[#allocation2 + $0x98] sm:$0xff] %v1250
      %1287 = vst [vmem:[#allocation2 + $0xa0] sm:$0xff] %v1251
      %1288 = vst [vmem:[#allocation2 + $0xa8] sm:$0xff] %v1252
      %1289 = vst [vmem:[#allocation2 + $0xb0] sm:$0xff] %v1253
      %1290 = vst [vmem:[#allocation2 + $0xb8] sm:$0xff] %v1254
      %1291 = vst [vmem:[#allocation2 + $0xc0] sm:$0xff] %v1255
      %1292 = vst [vmem:[#allocation2 + $0xc8] sm:$0xff] %v1256
      %1293 = vst [vmem:[#allocation2 + $0xd0] sm:$0xff] %v1257
      %1294 = vst [vmem:[#allocation2 + $0xd8] sm:$0xff] %v1258
      %1295 = vst [vmem:[#allocation2 + $0xe0] sm:$0xff] %v1259
      %1296 = vst [vmem:[#allocation2 + $0xe8] sm:$0xff] %v1260
      %1297 = vst [vmem:[#allocation2 + $0xf0] sm:$0xff] %v1261
      %1298 = vst [vmem:[#allocation2 + $0xf8] sm:$0xff] %v1262
      %1299 = vst [vmem:[#allocation2 + $0x100] sm:$0xff] %v1263
      %1300 = vst [vmem:[#allocation2 + $0x108] sm:$0xff] %v1264
      %1301 = vst [vmem:[#allocation2 + $0x110] sm:$0xff] %v1265
      %1302 = vst [vmem:[#allocation2 + $0x118] sm:$0xff] %v1266
      %v1303 = vld [vmem:[#allocation2] sm:$0xff]
      %v1304 = vld [vmem:[#allocation2 + $0x8] sm:$0xff]
      %v1305 = vld [vmem:[#allocation2 + $0x10] sm:$0xff]
      %v1306 = vld [vmem:[#allocation2 + $0x18] sm:$0xff]
      %v1307 = vld [vmem:[#allocation2 + $0x20] sm:$0xff]
      %v1308 = vld [vmem:[#allocation2 + $0x28] sm:$0xff]
      %v1309 = vld [vmem:[#allocation2 + $0x30] sm:$0xff]
      %v1310 = vld [vmem:[#allocation2 + $0x38] sm:$0xff]
      %v1311 = vld [vmem:[#allocation2 + $0x40] sm:$0xff]
      %v1312 = vld [vmem:[#allocation2 + $0x48] sm:$0xff]
      %v1313 = vld [vmem:[#allocation2 + $0x50] sm:$0xff]
      %v1314 = vld [vmem:[#allocation2 + $0x58] sm:$0xff]
      %v1315 = vld [vmem:[#allocation2 + $0x60] sm:$0xff]
      %v1316 = vld [vmem:[#allocation2 + $0x68] sm:$0xff]
      %v1317 = vld [vmem:[#allocation2 + $0x70] sm:$0xff]
      %v1318 = vld [vmem:[#allocation2 + $0x78] sm:$0xff]
      %v1319 = vld [vmem:[#allocation2 + $0x80] sm:$0xff]
      %v1320 = vld [vmem:[#allocation2 + $0x88] sm:$0xff]
      %v1321 = vld [vmem:[#allocation2 + $0x90] sm:$0xff]
      %v1322 = vld [vmem:[#allocation2 + $0x98] sm:$0xff]
      %v1323 = vld [vmem:[#allocation2 + $0xa0] sm:$0xff]
      %v1324 = vld [vmem:[#allocation2 + $0xa8] sm:$0xff]
      %v1325 = vld [vmem:[#allocation2 + $0xb0] sm:$0xff]
      %v1326 = vld [vmem:[#allocation2 + $0xb8] sm:$0xff]
      %v1327 = vld [vmem:[#allocation2 + $0xc0] sm:$0xff]
      %v1328 = vld [vmem:[#allocation2 + $0xc8] sm:$0xff]
      %v1329 = vld [vmem:[#allocation2 + $0xd0] sm:$0xff]
      %v1330 = vld [vmem:[#allocation2 + $0xd8] sm:$0xff]
      %v1331 = vld [vmem:[#allocation2 + $0xe0] sm:$0xff]
      %v1332 = vld [vmem:[#allocation2 + $0xe8] sm:$0xff]
      %v1333 = vld [vmem:[#allocation2 + $0xf0] sm:$0xff]
      %v1334 = vld [vmem:[#allocation2 + $0xf8] sm:$0xff]
      %v1335 = vld [vmem:[#allocation2 + $0x100] sm:$0xff]
      %v1336 = vld [vmem:[#allocation2 + $0x108] sm:$0xff]
      %v1337 = vld [vmem:[#allocation2 + $0x110] sm:$0xff]
      %v1338 = vld [vmem:[#allocation2 + $0x118] sm:$0xff]
      %s1339 = scalar_lea.vmem %s1, 128
      %v1340 = vld [vmem:[%s1339] sm:$0xf]
      %v1341 = vld [vmem:[%s1339 + $0x4] sm:$0xf]
      %v1342 = vld [vmem:[%s1339 + $0x8] sm:$0xf]
      %v1343 = vld [vmem:[%s1339 + $0xc] sm:$0xf]
      %v1344 = vld [vmem:[%s1339 + $0x10] sm:$0xf]
      %v1345 = vld [vmem:[%s1339 + $0x14] sm:$0xf]
      %v1346 = vld [vmem:[%s1339 + $0x18] sm:$0xf]
      %v1347 = vld [vmem:[%s1339 + $0x1c] sm:$0xf]
      %v1348 = vld [vmem:[%s1339 + $0x20] sm:$0xf]
      %v1349 = vld [vmem:[%s1339 + $0x24] sm:$0xf]
      %v1350 = vld [vmem:[%s1339 + $0x28] sm:$0xf]
      %v1351 = vld [vmem:[%s1339 + $0x2c] sm:$0xf]
      %v1352 = vld [vmem:[%s1339 + $0x30] sm:$0xf]
      %v1353 = vld [vmem:[%s1339 + $0x34] sm:$0xf]
      %v1354 = vld [vmem:[%s1339 + $0x38] sm:$0xf]
      %v1355 = vld [vmem:[%s1339 + $0x3c] sm:$0xf]
      %vm1375 = vcmask 1046528
      %v1376 = vrot.slane %v488, 1
      %v1377 = vrot.slane %v489, 1
      %v1378 = vsel %vm1375, %v1376, %v1377
      %v1379 = vrot.slane %v490, 1
      %v1380 = vsel %vm1375, %v1377, %v1379
      %v1381 = vrot.slane %v491, 1
      %v1382 = vsel %vm1375, %v1379, %v1381
      %v1383 = vrot.slane %v492, 1
      %v1384 = vsel %vm1375, %v1381, %v1383
      %v1385 = vrot.slane %v493, 1
      %v1386 = vsel %vm1375, %v1383, %v1385
      %v1387 = vrot.slane %v494, 1
      %v1388 = vsel %vm1375, %v1385, %v1387
      %v1389 = vrot.slane %v495, 1
      %v1390 = vsel %vm1375, %v1387, %v1389
      %v1391 = vrot.slane %v496, 1
      %v1392 = vsel %vm1375, %v1389, %v1391
      %v1393 = vrot.slane %v497, 1
      %v1394 = vsel %vm1375, %v1391, %v1393
      %v1395 = vrot.slane %v498, 1
      %v1396 = vsel %vm1375, %v1393, %v1395
      %v1397 = vrot.slane %v499, 1
      %v1398 = vsel %vm1375, %v1395, %v1397
      %v1399 = vrot.slane %v500, 1
      %v1400 = vsel %vm1375, %v1397, %v1399
      %v1401 = vrot.slane %v501, 1
      %v1402 = vsel %vm1375, %v1399, %v1401
      %v1403 = vrot.slane %v502, 1
      %v1404 = vsel %vm1375, %v1401, %v1403
      %v1405 = vrot.slane %v503, 1
      %v1406 = vsel %vm1375, %v1403, %v1405
      %v1407 = vrot.slane %v504, 1
      %v1408 = vsel %vm1375, %v1405, %v1407
      %v1409 = vrot.slane %v505, 1
      %v1410 = vsel %vm1375, %v1407, %v1409
      %v1411 = vrot.slane %v506, 1
      %v1412 = vsel %vm1375, %v1409, %v1411
      %v1447 = vunpack.c.l.b16 %v1340
      %v1448 = vunpack.c.l.b16 %v1341
      %v1449 = vunpack.c.l.b16 %v1342
      %v1450 = vunpack.c.l.b16 %v1343
      %v1451 = vunpack.c.l.b16 %v1344
      %v1452 = vunpack.c.l.b16 %v1345
      %v1453 = vunpack.c.l.b16 %v1346
      %v1454 = vunpack.c.l.b16 %v1347
      %v1455 = vunpack.c.l.b16 %v1348
      %v1456 = vunpack.c.l.b16 %v1349
      %v1457 = vunpack.c.l.b16 %v1350
      %v1458 = vunpack.c.l.b16 %v1351
      %v1459 = vunpack.c.l.b16 %v1352
      %v1460 = vunpack.c.l.b16 %v1353
      %v1461 = vunpack.c.l.b16 %v1354
      %v1462 = vunpack.c.l.b16 %v1355
      %v1463 = vpack.c.b16 %v1448, %v1447
      %v1464 = vpack.c.b16 %v1450, %v1449
      %v1465 = vpack.c.b16 %v1452, %v1451
      %v1466 = vpack.c.b16 %v1454, %v1453
      %v1467 = vpack.c.b16 %v1456, %v1455
      %v1468 = vpack.c.b16 %v1458, %v1457
      %v1469 = vpack.c.b16 %v1460, %v1459
      %v1470 = vpack.c.b16 %v1462, %v1461
      %1479 = vmatprep.subr.bf16.mxu0 0
      %1480 = vmatpush1.bf16.msra.mxu0 %v1463
      %1481 = vmatprep.subr.bf16.mxu0 0
      %1482 = vmatpush1.bf16.msra.mxu0 %v1464
      %1483 = vmatprep.subr.bf16.mxu0 0
      %1484 = vmatpush1.bf16.msra.mxu0 %v1465
      %1485 = vmatprep.subr.bf16.mxu0 0
      %1486 = vmatpush1.bf16.msra.mxu0 %v1466
      %1487 = vmatprep.subr.bf16.mxu0 0
      %1488 = vmatpush1.bf16.msra.mxu0 %v1467
      %1489 = vmatprep.subr.bf16.mxu0 0
      %1490 = vmatpush1.bf16.msra.mxu0 %v1468
      %1491 = vmatprep.subr.bf16.mxu0 0
      %1492 = vmatpush1.bf16.msra.mxu0 %v1469
      %1493 = vmatprep.subr.bf16.mxu0 0
      %1494 = vmatpush1.bf16.msra.mxu0 %v1470
      %1495 = vmatprep.subr.bf16.mxu0 0
      %1496 = vmatpush1.bf16.msra.mxu0 0
      %1497 = vmatprep.subr.bf16.mxu0 0
      %1498 = vmatpush1.bf16.msra.mxu0 0
      %1499 = vmatprep.subr.bf16.mxu0 0
      %1500 = vmatpush1.bf16.msra.mxu0 0
      %1501 = vmatprep.subr.bf16.mxu0 0
      %1502 = vmatpush1.bf16.msra.mxu0 0
      %1503 = vmatprep.subr.bf16.mxu0 0
      %1504 = vmatpush1.bf16.msra.mxu0 0
      %1505 = vmatprep.subr.bf16.mxu0 0
      %1506 = vmatpush1.bf16.msra.mxu0 0
      %1507 = vmatprep.subr.bf16.mxu0 0
      %1508 = vmatpush1.bf16.msra.mxu0 0
      %1509 = vmatprep.subr.bf16.mxu0 0
      %1510 = vmatpush1.bf16.msra.mxu0 0
      %1511 = vmatprep.mubr.bf16.mxu0 0
      %1512 = vmatmul.mubr.bf16.gmra.mrb[0].mxu0 %v1378
      %v1513 = vpop.f32.mrb[0].mxu0
      %v1514 = vadd.f32 0.0, %v1513
      %v1515 = vpop.f32.mrb[0].mxu0
      %v1516 = vpop.f32.mrb[0].mxu0
      %v1517 = vadd.f32 0.0, %v1516
      %v1518 = vpop.f32.mrb[0].mxu0
      %1519 = vmatprep.mubr.bf16.mxu0 0
      %1520 = vmatmul.mubr.bf16.gmra.mrb[0].mxu0 %v1380
      %v1521 = vpop.f32.mrb[0].mxu0
      %v1522 = vadd.f32 0.0, %v1521
      %v1523 = vpop.f32.mrb[0].mxu0
      %v1524 = vpop.f32.mrb[0].mxu0
      %v1525 = vadd.f32 0.0, %v1524
      %v1526 = vpop.f32.mrb[0].mxu0
      %1527 = vmatprep.mubr.bf16.mxu0 0
      %1528 = vmatmul.mubr.bf16.gmra.mrb[0].mxu0 %v1382
      %v1529 = vpop.f32.mrb[0].mxu0
      %v1530 = vadd.f32 0.0, %v1529
      %v1531 = vpop.f32.mrb[0].mxu0
      %v1532 = vpop.f32.mrb[0].mxu0
      %v1533 = vadd.f32 0.0, %v1532
      %v1534 = vpop.f32.mrb[0].mxu0
      %1535 = vmatprep.mubr.bf16.mxu0 0
      %1536 = vmatmul.mubr.bf16.gmra.mrb[0].mxu0 %v1384
      %v1537 = vpop.f32.mrb[0].mxu0
      %v1538 = vadd.f32 0.0, %v1537
      %v1539 = vpop.f32.mrb[0].mxu0
      %v1540 = vpop.f32.mrb[0].mxu0
      %v1541 = vadd.f32 0.0, %v1540
      %v1542 = vpop.f32.mrb[0].mxu0
      %1543 = vmatprep.mubr.bf16.mxu0 0
      %1544 = vmatmul.mubr.bf16.gmra.mrb[0].mxu0 %v1386
      %v1545 = vpop.f32.mrb[0].mxu0
      %v1546 = vadd.f32 0.0, %v1545
      %v1547 = vpop.f32.mrb[0].mxu0
      %v1548 = vpop.f32.mrb[0].mxu0
      %v1549 = vadd.f32 0.0, %v1548
      %v1550 = vpop.f32.mrb[0].mxu0
      %1551 = vmatprep.mubr.bf16.mxu0 0
      %1552 = vmatmul.mubr.bf16.gmra.mrb[0].mxu0 %v1388
      %v1553 = vpop.f32.mrb[0].mxu0
      %v1554 = vadd.f32 0.0, %v1553
      %v1555 = vpop.f32.mrb[0].mxu0
      %v1556 = vpop.f32.mrb[0].mxu0
      %v1557 = vadd.f32 0.0, %v1556
      %v1558 = vpop.f32.mrb[0].mxu0
      %1559 = vmatprep.mubr.bf16.mxu0 0
      %1560 = vmatmul.mubr.bf16.gmra.mrb[0].mxu0 %v1390
      %v1561 = vpop.f32.mrb[0].mxu0
      %v1562 = vadd.f32 0.0, %v1561
      %v1563 = vpop.f32.mrb[0].mxu0
      %v1564 = vpop.f32.mrb[0].mxu0
      %v1565 = vadd.f32 0.0, %v1564
      %v1566 = vpop.f32.mrb[0].mxu0
      %1567 = vmatprep.mubr.bf16.mxu0 0
      %1568 = vmatmul.mubr.bf16.gmra.mrb[0].mxu0 %v1392
      %v1569 = vpop.f32.mrb[0].mxu0
      %v1570 = vadd.f32 0.0, %v1569
      %v1571 = vpop.f32.mrb[0].mxu0
      %v1572 = vpop.f32.mrb[0].mxu0
      %v1573 = vadd.f32 0.0, %v1572
      %v1574 = vpop.f32.mrb[0].mxu0
      %1575 = vmatprep.mubr.bf16.mxu0 0
      %1576 = vmatmul.mubr.bf16.gmra.mrb[0].mxu0 %v1394
      %v1577 = vpop.f32.mrb[0].mxu0
      %v1578 = vadd.f32 0.0, %v1577
      %v1579 = vpop.f32.mrb[0].mxu0
      %v1580 = vpop.f32.mrb[0].mxu0
      %v1581 = vadd.f32 0.0, %v1580
      %v1582 = vpop.f32.mrb[0].mxu0
      %1583 = vmatprep.mubr.bf16.mxu0 0
      %1584 = vmatmul.mubr.bf16.gmra.mrb[0].mxu0 %v1396
      %v1585 = vpop.f32.mrb[0].mxu0
      %v1586 = vadd.f32 0.0, %v1585
      %v1587 = vpop.f32.mrb[0].mxu0
      %v1588 = vpop.f32.mrb[0].mxu0
      %v1589 = vadd.f32 0.0, %v1588
      %v1590 = vpop.f32.mrb[0].mxu0
      %1591 = vmatprep.mubr.bf16.mxu0 0
      %1592 = vmatmul.mubr.bf16.gmra.mrb[0].mxu0 %v1398
      %v1593 = vpop.f32.mrb[0].mxu0
      %v1594 = vadd.f32 0.0, %v1593
      %v1595 = vpop.f32.mrb[0].mxu0
      %v1596 = vpop.f32.mrb[0].mxu0
      %v1597 = vadd.f32 0.0, %v1596
      %v1598 = vpop.f32.mrb[0].mxu0
      %1599 = vmatprep.mubr.bf16.mxu0 0
      %1600 = vmatmul.mubr.bf16.gmra.mrb[0].mxu0 %v1400
      %v1601 = vpop.f32.mrb[0].mxu0
      %v1602 = vadd.f32 0.0, %v1601
      %v1603 = vpop.f32.mrb[0].mxu0
      %v1604 = vpop.f32.mrb[0].mxu0
      %v1605 = vadd.f32 0.0, %v1604
      %v1606 = vpop.f32.mrb[0].mxu0
      %1607 = vmatprep.mubr.bf16.mxu0 0
      %1608 = vmatmul.mubr.bf16.gmra.mrb[0].mxu0 %v1402
      %v1609 = vpop.f32.mrb[0].mxu0
      %v1610 = vadd.f32 0.0, %v1609
      %v1611 = vpop.f32.mrb[0].mxu0
      %v1612 = vpop.f32.mrb[0].mxu0
      %v1613 = vadd.f32 0.0, %v1612
      %v1614 = vpop.f32.mrb[0].mxu0
      %1615 = vmatprep.mubr.bf16.mxu0 0
      %1616 = vmatmul.mubr.bf16.gmra.mrb[0].mxu0 %v1404
      %v1617 = vpop.f32.mrb[0].mxu0
      %v1618 = vadd.f32 0.0, %v1617
      %v1619 = vpop.f32.mrb[0].mxu0
      %v1620 = vpop.f32.mrb[0].mxu0
      %v1621 = vadd.f32 0.0, %v1620
      %v1622 = vpop.f32.mrb[0].mxu0
      %1623 = vmatprep.mubr.bf16.mxu0 0
      %1624 = vmatmul.mubr.bf16.gmra.mrb[0].mxu0 %v1406
      %v1625 = vpop.f32.mrb[0].mxu0
      %v1626 = vadd.f32 0.0, %v1625
      %v1627 = vpop.f32.mrb[0].mxu0
      %v1628 = vpop.f32.mrb[0].mxu0
      %v1629 = vadd.f32 0.0, %v1628
      %v1630 = vpop.f32.mrb[0].mxu0
      %1631 = vmatprep.mubr.bf16.mxu0 0
      %1632 = vmatmul.mubr.bf16.gmra.mrb[0].mxu0 %v1408
      %v1633 = vpop.f32.mrb[0].mxu0
      %v1634 = vadd.f32 0.0, %v1633
      %v1635 = vpop.f32.mrb[0].mxu0
      %v1636 = vpop.f32.mrb[0].mxu0
      %v1637 = vadd.f32 0.0, %v1636
      %v1638 = vpop.f32.mrb[0].mxu0
      %1639 = vmatprep.mubr.bf16.mxu0 0
      %1640 = vmatmul.mubr.bf16.gmra.mrb[0].mxu0 %v1410
      %v1641 = vpop.f32.mrb[0].mxu0
      %v1642 = vadd.f32 0.0, %v1641
      %v1643 = vpop.f32.mrb[0].mxu0
      %v1644 = vpop.f32.mrb[0].mxu0
      %v1645 = vadd.f32 0.0, %v1644
      %v1646 = vpop.f32.mrb[0].mxu0
      %1647 = vmatprep.mubr.bf16.mxu0 0
      %1648 = vmatmul.mubr.bf16.gmra.mrb[0].mxu0 %v1412
      %v1649 = vpop.f32.mrb[0].mxu0
      %v1650 = vadd.f32 0.0, %v1649
      %v1651 = vpop.f32.mrb[0].mxu0
      %v1652 = vpop.f32.mrb[0].mxu0
      %v1653 = vadd.f32 0.0, %v1652
      %v1654 = vpop.f32.mrb[0].mxu0
      %1655 = vdwg.mxu0
      %v1656 = vadd.f32 %v1303, %v1514
      %v1657 = vadd.f32 %v1304, %v1517
      %v1658 = vadd.f32 %v1305, %v1522
      %v1659 = vadd.f32 %v1306, %v1525
      %v1660 = vadd.f32 %v1307, %v1530
      %v1661 = vadd.f32 %v1308, %v1533
      %v1662 = vadd.f32 %v1309, %v1538
      %v1663 = vadd.f32 %v1310, %v1541
      %v1664 = vadd.f32 %v1311, %v1546
      %v1665 = vadd.f32 %v1312, %v1549
      %v1666 = vadd.f32 %v1313, %v1554
      %v1667 = vadd.f32 %v1314, %v1557
      %v1668 = vadd.f32 %v1315, %v1562
      %v1669 = vadd.f32 %v1316, %v1565
      %v1670 = vadd.f32 %v1317, %v1570
      %v1671 = vadd.f32 %v1318, %v1573
      %v1672 = vadd.f32 %v1319, %v1578
      %v1673 = vadd.f32 %v1320, %v1581
      %v1674 = vadd.f32 %v1321, %v1586
      %v1675 = vadd.f32 %v1322, %v1589
      %v1676 = vadd.f32 %v1323, %v1594
      %v1677 = vadd.f32 %v1324, %v1597
      %v1678 = vadd.f32 %v1325, %v1602
      %v1679 = vadd.f32 %v1326, %v1605
      %v1680 = vadd.f32 %v1327, %v1610
      %v1681 = vadd.f32 %v1328, %v1613
      %v1682 = vadd.f32 %v1329, %v1618
      %v1683 = vadd.f32 %v1330, %v1621
      %v1684 = vadd.f32 %v1331, %v1626
      %v1685 = vadd.f32 %v1332, %v1629
      %v1686 = vadd.f32 %v1333, %v1634
      %v1687 = vadd.f32 %v1334, %v1637
      %v1688 = vadd.f32 %v1335, %v1642
      %v1689 = vadd.f32 %v1336, %v1645
      %v1690 = vadd.f32 %v1337, %v1650
      %v1691 = vadd.f32 %v1338, %v1653
      %1692 = vst [vmem:[#allocation2] sm:$0xff] %v1656
      %1693 = vst [vmem:[#allocation2 + $0x8] sm:$0xff] %v1657
      %1694 = vst [vmem:[#allocation2 + $0x10] sm:$0xff] %v1658
      %1695 = vst [vmem:[#allocation2 + $0x18] sm:$0xff] %v1659
      %1696 = vst [vmem:[#allocation2 + $0x20] sm:$0xff] %v1660
      %1697 = vst [vmem:[#allocation2 + $0x28] sm:$0xff] %v1661
      %1698 = vst [vmem:[#allocation2 + $0x30] sm:$0xff] %v1662
      %1699 = vst [vmem:[#allocation2 + $0x38] sm:$0xff] %v1663
      %1700 = vst [vmem:[#allocation2 + $0x40] sm:$0xff] %v1664
      %1701 = vst [vmem:[#allocation2 + $0x48] sm:$0xff] %v1665
      %1702 = vst [vmem:[#allocation2 + $0x50] sm:$0xff] %v1666
      %1703 = vst [vmem:[#allocation2 + $0x58] sm:$0xff] %v1667
      %1704 = vst [vmem:[#allocation2 + $0x60] sm:$0xff] %v1668
      %1705 = vst [vmem:[#allocation2 + $0x68] sm:$0xff] %v1669
      %1706 = vst [vmem:[#allocation2 + $0x70] sm:$0xff] %v1670
      %1707 = vst [vmem:[#allocation2 + $0x78] sm:$0xff] %v1671
      %1708 = vst [vmem:[#allocation2 + $0x80] sm:$0xff] %v1672
      %1709 = vst [vmem:[#allocation2 + $0x88] sm:$0xff] %v1673
      %1710 = vst [vmem:[#allocation2 + $0x90] sm:$0xff] %v1674
      %1711 = vst [vmem:[#allocation2 + $0x98] sm:$0xff] %v1675
      %1712 = vst [vmem:[#allocation2 + $0xa0] sm:$0xff] %v1676
      %1713 = vst [vmem:[#allocation2 + $0xa8] sm:$0xff] %v1677
      %1714 = vst [vmem:[#allocation2 + $0xb0] sm:$0xff] %v1678
      %1715 = vst [vmem:[#allocation2 + $0xb8] sm:$0xff] %v1679
      %1716 = vst [vmem:[#allocation2 + $0xc0] sm:$0xff] %v1680
      %1717 = vst [vmem:[#allocation2 + $0xc8] sm:$0xff] %v1681
      %1718 = vst [vmem:[#allocation2 + $0xd0] sm:$0xff] %v1682
      %1719 = vst [vmem:[#allocation2 + $0xd8] sm:$0xff] %v1683
      %1720 = vst [vmem:[#allocation2 + $0xe0] sm:$0xff] %v1684
      %1721 = vst [vmem:[#allocation2 + $0xe8] sm:$0xff] %v1685
      %1722 = vst [vmem:[#allocation2 + $0xf0] sm:$0xff] %v1686
      %1723 = vst [vmem:[#allocation2 + $0xf8] sm:$0xff] %v1687
      %1724 = vst [vmem:[#allocation2 + $0x100] sm:$0xff] %v1688
      %1725 = vst [vmem:[#allocation2 + $0x108] sm:$0xff] %v1689
      %1726 = vst [vmem:[#allocation2 + $0x110] sm:$0xff] %v1690
      %1727 = vst [vmem:[#allocation2 + $0x118] sm:$0xff] %v1691
      %v1728 = vld [vmem:[#allocation2] sm:$0xff]
      %v1729 = vld [vmem:[#allocation2 + $0x8] sm:$0xff]
      %v1730 = vld [vmem:[#allocation2 + $0x10] sm:$0xff]
      %v1731 = vld [vmem:[#allocation2 + $0x18] sm:$0xff]
      %v1732 = vld [vmem:[#allocation2 + $0x20] sm:$0xff]
      %v1733 = vld [vmem:[#allocation2 + $0x28] sm:$0xff]
      %v1734 = vld [vmem:[#allocation2 + $0x30] sm:$0xff]
      %v1735 = vld [vmem:[#allocation2 + $0x38] sm:$0xff]
      %v1736 = vld [vmem:[#allocation2 + $0x40] sm:$0xff]
      %v1737 = vld [vmem:[#allocation2 + $0x48] sm:$0xff]
      %v1738 = vld [vmem:[#allocation2 + $0x50] sm:$0xff]
      %v1739 = vld [vmem:[#allocation2 + $0x58] sm:$0xff]
      %v1740 = vld [vmem:[#allocation2 + $0x60] sm:$0xff]
      %v1741 = vld [vmem:[#allocation2 + $0x68] sm:$0xff]
      %v1742 = vld [vmem:[#allocation2 + $0x70] sm:$0xff]
      %v1743 = vld [vmem:[#allocation2 + $0x78] sm:$0xff]
      %v1744 = vld [vmem:[#allocation2 + $0x80] sm:$0xff]
      %v1745 = vld [vmem:[#allocation2 + $0x88] sm:$0xff]
      %v1746 = vld [vmem:[#allocation2 + $0x90] sm:$0xff]
      %v1747 = vld [vmem:[#allocation2 + $0x98] sm:$0xff]
      %v1748 = vld [vmem:[#allocation2 + $0xa0] sm:$0xff]
      %v1749 = vld [vmem:[#allocation2 + $0xa8] sm:$0xff]
      %v1750 = vld [vmem:[#allocation2 + $0xb0] sm:$0xff]
      %v1751 = vld [vmem:[#allocation2 + $0xb8] sm:$0xff]
      %v1752 = vld [vmem:[#allocation2 + $0xc0] sm:$0xff]
      %v1753 = vld [vmem:[#allocation2 + $0xc8] sm:$0xff]
      %v1754 = vld [vmem:[#allocation2 + $0xd0] sm:$0xff]
      %v1755 = vld [vmem:[#allocation2 + $0xd8] sm:$0xff]
      %v1756 = vld [vmem:[#allocation2 + $0xe0] sm:$0xff]
      %v1757 = vld [vmem:[#allocation2 + $0xe8] sm:$0xff]
      %v1758 = vld [vmem:[#allocation2 + $0xf0] sm:$0xff]
      %v1759 = vld [vmem:[#allocation2 + $0xf8] sm:$0xff]
      %v1760 = vld [vmem:[#allocation2 + $0x100] sm:$0xff]
      %v1761 = vld [vmem:[#allocation2 + $0x108] sm:$0xff]
      %v1762 = vld [vmem:[#allocation2 + $0x110] sm:$0xff]
      %v1763 = vld [vmem:[#allocation2 + $0x118] sm:$0xff]
      %s1764 = scalar_lea.vmem %s1, 192
      %v1765 = vld [vmem:[%s1764] sm:$0xf]
      %v1766 = vld [vmem:[%s1764 + $0x4] sm:$0xf]
      %v1767 = vld [vmem:[%s1764 + $0x8] sm:$0xf]
      %v1768 = vld [vmem:[%s1764 + $0xc] sm:$0xf]
      %v1769 = vld [vmem:[%s1764 + $0x10] sm:$0xf]
      %v1770 = vld [vmem:[%s1764 + $0x14] sm:$0xf]
      %v1771 = vld [vmem:[%s1764 + $0x18] sm:$0xf]
      %v1772 = vld [vmem:[%s1764 + $0x1c] sm:$0xf]
      %v1773 = vld [vmem:[%s1764 + $0x20] sm:$0xf]
      %v1774 = vld [vmem:[%s1764 + $0x24] sm:$0xf]
      %v1775 = vld [vmem:[%s1764 + $0x28] sm:$0xf]
      %v1776 = vld [vmem:[%s1764 + $0x2c] sm:$0xf]
      %v1777 = vld [vmem:[%s1764 + $0x30] sm:$0xf]
      %v1778 = vld [vmem:[%s1764 + $0x34] sm:$0xf]
      %v1779 = vld [vmem:[%s1764 + $0x38] sm:$0xf]
      %v1780 = vld [vmem:[%s1764 + $0x3c] sm:$0xf]
      %v1782 = vrot.slane %v507, 1
      %v1783 = vsel %vm1375, %v1411, %v1782
      %v1801 = vunpack.c.l.b16 %v1765
      %v1802 = vunpack.c.l.b16 %v1766
      %v1803 = vunpack.c.l.b16 %v1767
      %v1804 = vunpack.c.l.b16 %v1768
      %v1805 = vunpack.c.l.b16 %v1769
      %v1806 = vunpack.c.l.b16 %v1770
      %v1807 = vunpack.c.l.b16 %v1771
      %v1808 = vunpack.c.l.b16 %v1772
      %v1809 = vunpack.c.l.b16 %v1773
      %v1810 = vunpack.c.l.b16 %v1774
      %v1811 = vunpack.c.l.b16 %v1775
      %v1812 = vunpack.c.l.b16 %v1776
      %v1813 = vunpack.c.l.b16 %v1777
      %v1814 = vunpack.c.l.b16 %v1778
      %v1815 = vunpack.c.l.b16 %v1779
      %v1816 = vunpack.c.l.b16 %v1780
      %v1817 = vpack.c.b16 %v1802, %v1801
      %v1818 = vpack.c.b16 %v1804, %v1803
      %v1819 = vpack.c.b16 %v1806, %v1805
      %v1820 = vpack.c.b16 %v1808, %v1807
      %v1821 = vpack.c.b16 %v1810, %v1809
      %v1822 = vpack.c.b16 %v1812, %v1811
      %v1823 = vpack.c.b16 %v1814, %v1813
      %v1824 = vpack.c.b16 %v1816, %v1815
      %1833 = vmatprep.subr.bf16.mxu0 0
      %1834 = vmatpush1.bf16.msra.mxu0 %v1817
      %1835 = vmatprep.subr.bf16.mxu0 0
      %1836 = vmatpush1.bf16.msra.mxu0 %v1818
      %1837 = vmatprep.subr.bf16.mxu0 0
      %1838 = vmatpush1.bf16.msra.mxu0 %v1819
      %1839 = vmatprep.subr.bf16.mxu0 0
      %1840 = vmatpush1.bf16.msra.mxu0 %v1820
      %1841 = vmatprep.subr.bf16.mxu0 0
      %1842 = vmatpush1.bf16.msra.mxu0 %v1821
      %1843 = vmatprep.subr.bf16.mxu0 0
      %1844 = vmatpush1.bf16.msra.mxu0 %v1822
      %1845 = vmatprep.subr.bf16.mxu0 0
      %1846 = vmatpush1.bf16.msra.mxu0 %v1823
      %1847 = vmatprep.subr.bf16.mxu0 0
      %1848 = vmatpush1.bf16.msra.mxu0 %v1824
      %1849 = vmatprep.subr.bf16.mxu0 0
      %1850 = vmatpush1.bf16.msra.mxu0 0
      %1851 = vmatprep.subr.bf16.mxu0 0
      %1852 = vmatpush1.bf16.msra.mxu0 0
      %1853 = vmatprep.subr.bf16.mxu0 0
      %1854 = vmatpush1.bf16.msra.mxu0 0
      %1855 = vmatprep.subr.bf16.mxu0 0
      %1856 = vmatpush1.bf16.msra.mxu0 0
      %1857 = vmatprep.subr.bf16.mxu0 0
      %1858 = vmatpush1.bf16.msra.mxu0 0
      %1859 = vmatprep.subr.bf16.mxu0 0
      %1860 = vmatpush1.bf16.msra.mxu0 0
      %1861 = vmatprep.subr.bf16.mxu0 0
      %1862 = vmatpush1.bf16.msra.mxu0 0
      %1863 = vmatprep.subr.bf16.mxu0 0
      %1864 = vmatpush1.bf16.msra.mxu0 0
      %1865 = vmatprep.mubr.bf16.mxu0 0
      %1866 = vmatmul.mubr.bf16.gmra.mrb[0].mxu0 %v1380
      %v1867 = vpop.f32.mrb[0].mxu0
      %v1868 = vadd.f32 0.0, %v1867
      %v1869 = vpop.f32.mrb[0].mxu0
      %v1870 = vpop.f32.mrb[0].mxu0
      %v1871 = vadd.f32 0.0, %v1870
      %v1872 = vpop.f32.mrb[0].mxu0
      %1873 = vmatprep.mubr.bf16.mxu0 0
      %1874 = vmatmul.mubr.bf16.gmra.mrb[0].mxu0 %v1382
      %v1875 = vpop.f32.mrb[0].mxu0
      %v1876 = vadd.f32 0.0, %v1875
      %v1877 = vpop.f32.mrb[0].mxu0
      %v1878 = vpop.f32.mrb[0].mxu0
      %v1879 = vadd.f32 0.0, %v1878
      %v1880 = vpop.f32.mrb[0].mxu0
      %1881 = vmatprep.mubr.bf16.mxu0 0
      %1882 = vmatmul.mubr.bf16.gmra.mrb[0].mxu0 %v1384
      %v1883 = vpop.f32.mrb[0].mxu0
      %v1884 = vadd.f32 0.0, %v1883
      %v1885 = vpop.f32.mrb[0].mxu0
      %v1886 = vpop.f32.mrb[0].mxu0
      %v1887 = vadd.f32 0.0, %v1886
      %v1888 = vpop.f32.mrb[0].mxu0
      %1889 = vmatprep.mubr.bf16.mxu0 0
      %1890 = vmatmul.mubr.bf16.gmra.mrb[0].mxu0 %v1386
      %v1891 = vpop.f32.mrb[0].mxu0
      %v1892 = vadd.f32 0.0, %v1891
      %v1893 = vpop.f32.mrb[0].mxu0
      %v1894 = vpop.f32.mrb[0].mxu0
      %v1895 = vadd.f32 0.0, %v1894
      %v1896 = vpop.f32.mrb[0].mxu0
      %1897 = vmatprep.mubr.bf16.mxu0 0
      %1898 = vmatmul.mubr.bf16.gmra.mrb[0].mxu0 %v1388
      %v1899 = vpop.f32.mrb[0].mxu0
      %v1900 = vadd.f32 0.0, %v1899
      %v1901 = vpop.f32.mrb[0].mxu0
      %v1902 = vpop.f32.mrb[0].mxu0
      %v1903 = vadd.f32 0.0, %v1902
      %v1904 = vpop.f32.mrb[0].mxu0
      %1905 = vmatprep.mubr.bf16.mxu0 0
      %1906 = vmatmul.mubr.bf16.gmra.mrb[0].mxu0 %v1390
      %v1907 = vpop.f32.mrb[0].mxu0
      %v1908 = vadd.f32 0.0, %v1907
      %v1909 = vpop.f32.mrb[0].mxu0
      %v1910 = vpop.f32.mrb[0].mxu0
      %v1911 = vadd.f32 0.0, %v1910
      %v1912 = vpop.f32.mrb[0].mxu0
      %1913 = vmatprep.mubr.bf16.mxu0 0
      %1914 = vmatmul.mubr.bf16.gmra.mrb[0].mxu0 %v1392
      %v1915 = vpop.f32.mrb[0].mxu0
      %v1916 = vadd.f32 0.0, %v1915
      %v1917 = vpop.f32.mrb[0].mxu0
      %v1918 = vpop.f32.mrb[0].mxu0
      %v1919 = vadd.f32 0.0, %v1918
      %v1920 = vpop.f32.mrb[0].mxu0
      %1921 = vmatprep.mubr.bf16.mxu0 0
      %1922 = vmatmul.mubr.bf16.gmra.mrb[0].mxu0 %v1394
      %v1923 = vpop.f32.mrb[0].mxu0
      %v1924 = vadd.f32 0.0, %v1923
      %v1925 = vpop.f32.mrb[0].mxu0
      %v1926 = vpop.f32.mrb[0].mxu0
      %v1927 = vadd.f32 0.0, %v1926
      %v1928 = vpop.f32.mrb[0].mxu0
      %1929 = vmatprep.mubr.bf16.mxu0 0
      %1930 = vmatmul.mubr.bf16.gmra.mrb[0].mxu0 %v1396
      %v1931 = vpop.f32.mrb[0].mxu0
      %v1932 = vadd.f32 0.0, %v1931
      %v1933 = vpop.f32.mrb[0].mxu0
      %v1934 = vpop.f32.mrb[0].mxu0
      %v1935 = vadd.f32 0.0, %v1934
      %v1936 = vpop.f32.mrb[0].mxu0
      %1937 = vmatprep.mubr.bf16.mxu0 0
      %1938 = vmatmul.mubr.bf16.gmra.mrb[0].mxu0 %v1398
      %v1939 = vpop.f32.mrb[0].mxu0
      %v1940 = vadd.f32 0.0, %v1939
      %v1941 = vpop.f32.mrb[0].mxu0
      %v1942 = vpop.f32.mrb[0].mxu0
      %v1943 = vadd.f32 0.0, %v1942
      %v1944 = vpop.f32.mrb[0].mxu0
      %1945 = vmatprep.mubr.bf16.mxu0 0
      %1946 = vmatmul.mubr.bf16.gmra.mrb[0].mxu0 %v1400
      %v1947 = vpop.f32.mrb[0].mxu0
      %v1948 = vadd.f32 0.0, %v1947
      %v1949 = vpop.f32.mrb[0].mxu0
      %v1950 = vpop.f32.mrb[0].mxu0
      %v1951 = vadd.f32 0.0, %v1950
      %v1952 = vpop.f32.mrb[0].mxu0
      %1953 = vmatprep.mubr.bf16.mxu0 0
      %1954 = vmatmul.mubr.bf16.gmra.mrb[0].mxu0 %v1402
      %v1955 = vpop.f32.mrb[0].mxu0
      %v1956 = vadd.f32 0.0, %v1955
      %v1957 = vpop.f32.mrb[0].mxu0
      %v1958 = vpop.f32.mrb[0].mxu0
      %v1959 = vadd.f32 0.0, %v1958
      %v1960 = vpop.f32.mrb[0].mxu0
      %1961 = vmatprep.mubr.bf16.mxu0 0
      %1962 = vmatmul.mubr.bf16.gmra.mrb[0].mxu0 %v1404
      %v1963 = vpop.f32.mrb[0].mxu0
      %v1964 = vadd.f32 0.0, %v1963
      %v1965 = vpop.f32.mrb[0].mxu0
      %v1966 = vpop.f32.mrb[0].mxu0
      %v1967 = vadd.f32 0.0, %v1966
      %v1968 = vpop.f32.mrb[0].mxu0
      %1969 = vmatprep.mubr.bf16.mxu0 0
      %1970 = vmatmul.mubr.bf16.gmra.mrb[0].mxu0 %v1406
      %v1971 = vpop.f32.mrb[0].mxu0
      %v1972 = vadd.f32 0.0, %v1971
      %v1973 = vpop.f32.mrb[0].mxu0
      %v1974 = vpop.f32.mrb[0].mxu0
      %v1975 = vadd.f32 0.0, %v1974
      %v1976 = vpop.f32.mrb[0].mxu0
      %1977 = vmatprep.mubr.bf16.mxu0 0
      %1978 = vmatmul.mubr.bf16.gmra.mrb[0].mxu0 %v1408
      %v1979 = vpop.f32.mrb[0].mxu0
      %v1980 = vadd.f32 0.0, %v1979
      %v1981 = vpop.f32.mrb[0].mxu0
      %v1982 = vpop.f32.mrb[0].mxu0
      %v1983 = vadd.f32 0.0, %v1982
      %v1984 = vpop.f32.mrb[0].mxu0
      %1985 = vmatprep.mubr.bf16.mxu0 0
      %1986 = vmatmul.mubr.bf16.gmra.mrb[0].mxu0 %v1410
      %v1987 = vpop.f32.mrb[0].mxu0
      %v1988 = vadd.f32 0.0, %v1987
      %v1989 = vpop.f32.mrb[0].mxu0
      %v1990 = vpop.f32.mrb[0].mxu0
      %v1991 = vadd.f32 0.0, %v1990
      %v1992 = vpop.f32.mrb[0].mxu0
      %1993 = vmatprep.mubr.bf16.mxu0 0
      %1994 = vmatmul.mubr.bf16.gmra.mrb[0].mxu0 %v1412
      %v1995 = vpop.f32.mrb[0].mxu0
      %v1996 = vadd.f32 0.0, %v1995
      %v1997 = vpop.f32.mrb[0].mxu0
      %v1998 = vpop.f32.mrb[0].mxu0
      %v1999 = vadd.f32 0.0, %v1998
      %v2000 = vpop.f32.mrb[0].mxu0
      %2001 = vmatprep.mubr.bf16.mxu0 0
      %2002 = vmatmul.mubr.bf16.gmra.mrb[0].mxu0 %v1783
      %v2003 = vpop.f32.mrb[0].mxu0
      %v2004 = vadd.f32 0.0, %v2003
      %v2005 = vpop.f32.mrb[0].mxu0
      %v2006 = vpop.f32.mrb[0].mxu0
      %v2007 = vadd.f32 0.0, %v2006
      %v2008 = vpop.f32.mrb[0].mxu0
      %2009 = vdwg.mxu0
      %v2010 = vadd.f32 %v1728, %v1868
      %v2011 = vadd.f32 %v1729, %v1871
      %v2012 = vadd.f32 %v1730, %v1876
      %v2013 = vadd.f32 %v1731, %v1879
      %v2014 = vadd.f32 %v1732, %v1884
      %v2015 = vadd.f32 %v1733, %v1887
      %v2016 = vadd.f32 %v1734, %v1892
      %v2017 = vadd.f32 %v1735, %v1895
      %v2018 = vadd.f32 %v1736, %v1900
      %v2019 = vadd.f32 %v1737, %v1903
      %v2020 = vadd.f32 %v1738, %v1908
      %v2021 = vadd.f32 %v1739, %v1911
      %v2022 = vadd.f32 %v1740, %v1916
      %v2023 = vadd.f32 %v1741, %v1919
      %v2024 = vadd.f32 %v1742, %v1924
      %v2025 = vadd.f32 %v1743, %v1927
      %v2026 = vadd.f32 %v1744, %v1932
      %v2027 = vadd.f32 %v1745, %v1935
      %v2028 = vadd.f32 %v1746, %v1940
      %v2029 = vadd.f32 %v1747, %v1943
      %v2030 = vadd.f32 %v1748, %v1948
      %v2031 = vadd.f32 %v1749, %v1951
      %v2032 = vadd.f32 %v1750, %v1956
      %v2033 = vadd.f32 %v1751, %v1959
      %v2034 = vadd.f32 %v1752, %v1964
      %v2035 = vadd.f32 %v1753, %v1967
      %v2036 = vadd.f32 %v1754, %v1972
      %v2037 = vadd.f32 %v1755, %v1975
      %v2038 = vadd.f32 %v1756, %v1980
      %v2039 = vadd.f32 %v1757, %v1983
      %v2040 = vadd.f32 %v1758, %v1988
      %v2041 = vadd.f32 %v1759, %v1991
      %v2042 = vadd.f32 %v1760, %v1996
      %v2043 = vadd.f32 %v1761, %v1999
      %v2044 = vadd.f32 %v1762, %v2004
      %v2045 = vadd.f32 %v1763, %v2007
      %2046 = vst [vmem:[#allocation2] sm:$0xff] %v2010
      %2047 = vst [vmem:[#allocation2 + $0x8] sm:$0xff] %v2011
      %2048 = vst [vmem:[#allocation2 + $0x10] sm:$0xff] %v2012
      %2049 = vst [vmem:[#allocation2 + $0x18] sm:$0xff] %v2013
      %2050 = vst [vmem:[#allocation2 + $0x20] sm:$0xff] %v2014
      %2051 = vst [vmem:[#allocation2 + $0x28] sm:$0xff] %v2015
      %2052 = vst [vmem:[#allocation2 + $0x30] sm:$0xff] %v2016
      %2053 = vst [vmem:[#allocation2 + $0x38] sm:$0xff] %v2017
      %2054 = vst [vmem:[#allocation2 + $0x40] sm:$0xff] %v2018
      %2055 = vst [vmem:[#allocation2 + $0x48] sm:$0xff] %v2019
      %2056 = vst [vmem:[#allocation2 + $0x50] sm:$0xff] %v2020
      %2057 = vst [vmem:[#allocation2 + $0x58] sm:$0xff] %v2021
      %2058 = vst [vmem:[#allocation2 + $0x60] sm:$0xff] %v2022
      %2059 = vst [vmem:[#allocation2 + $0x68] sm:$0xff] %v2023
      %2060 = vst [vmem:[#allocation2 + $0x70] sm:$0xff] %v2024
      %2061 = vst [vmem:[#allocation2 + $0x78] sm:$0xff] %v2025
      %2062 = vst [vmem:[#allocation2 + $0x80] sm:$0xff] %v2026
      %2063 = vst [vmem:[#allocation2 + $0x88] sm:$0xff] %v2027
      %2064 = vst [vmem:[#allocation2 + $0x90] sm:$0xff] %v2028
      %2065 = vst [vmem:[#allocation2 + $0x98] sm:$0xff] %v2029
      %2066 = vst [vmem:[#allocation2 + $0xa0] sm:$0xff] %v2030
      %2067 = vst [vmem:[#allocation2 + $0xa8] sm:$0xff] %v2031
      %2068 = vst [vmem:[#allocation2 + $0xb0] sm:$0xff] %v2032
      %2069 = vst [vmem:[#allocation2 + $0xb8] sm:$0xff] %v2033
      %2070 = vst [vmem:[#allocation2 + $0xc0] sm:$0xff] %v2034
      %2071 = vst [vmem:[#allocation2 + $0xc8] sm:$0xff] %v2035
      %2072 = vst [vmem:[#allocation2 + $0xd0] sm:$0xff] %v2036
      %2073 = vst [vmem:[#allocation2 + $0xd8] sm:$0xff] %v2037
      %2074 = vst [vmem:[#allocation2 + $0xe0] sm:$0xff] %v2038
      %2075 = vst [vmem:[#allocation2 + $0xe8] sm:$0xff] %v2039
      %2076 = vst [vmem:[#allocation2 + $0xf0] sm:$0xff] %v2040
      %2077 = vst [vmem:[#allocation2 + $0xf8] sm:$0xff] %v2041
      %2078 = vst [vmem:[#allocation2 + $0x100] sm:$0xff] %v2042
      %2079 = vst [vmem:[#allocation2 + $0x108] sm:$0xff] %v2043
      %2080 = vst [vmem:[#allocation2 + $0x110] sm:$0xff] %v2044
      %2081 = vst [vmem:[#allocation2 + $0x118] sm:$0xff] %v2045
      %v2082 = vld [vmem:[#allocation2] sm:$0xff]
      %v2083 = vld [vmem:[#allocation2 + $0x8] sm:$0xff]
      %v2084 = vld [vmem:[#allocation2 + $0x10] sm:$0xff]
      %v2085 = vld [vmem:[#allocation2 + $0x18] sm:$0xff]
      %v2086 = vld [vmem:[#allocation2 + $0x20] sm:$0xff]
      %v2087 = vld [vmem:[#allocation2 + $0x28] sm:$0xff]
      %v2088 = vld [vmem:[#allocation2 + $0x30] sm:$0xff]
      %v2089 = vld [vmem:[#allocation2 + $0x38] sm:$0xff]
      %v2090 = vld [vmem:[#allocation2 + $0x40] sm:$0xff]
      %v2091 = vld [vmem:[#allocation2 + $0x48] sm:$0xff]
      %v2092 = vld [vmem:[#allocation2 + $0x50] sm:$0xff]
      %v2093 = vld [vmem:[#allocation2 + $0x58] sm:$0xff]
      %v2094 = vld [vmem:[#allocation2 + $0x60] sm:$0xff]
      %v2095 = vld [vmem:[#allocation2 + $0x68] sm:$0xff]
      %v2096 = vld [vmem:[#allocation2 + $0x70] sm:$0xff]
      %v2097 = vld [vmem:[#allocation2 + $0x78] sm:$0xff]
      %v2098 = vld [vmem:[#allocation2 + $0x80] sm:$0xff]
      %v2099 = vld [vmem:[#allocation2 + $0x88] sm:$0xff]
      %v2100 = vld [vmem:[#allocation2 + $0x90] sm:$0xff]
      %v2101 = vld [vmem:[#allocation2 + $0x98] sm:$0xff]
      %v2102 = vld [vmem:[#allocation2 + $0xa0] sm:$0xff]
      %v2103 = vld [vmem:[#allocation2 + $0xa8] sm:$0xff]
      %v2104 = vld [vmem:[#allocation2 + $0xb0] sm:$0xff]
      %v2105 = vld [vmem:[#allocation2 + $0xb8] sm:$0xff]
      %v2106 = vld [vmem:[#allocation2 + $0xc0] sm:$0xff]
      %v2107 = vld [vmem:[#allocation2 + $0xc8] sm:$0xff]
      %v2108 = vld [vmem:[#allocation2 + $0xd0] sm:$0xff]
      %v2109 = vld [vmem:[#allocation2 + $0xd8] sm:$0xff]
      %v2110 = vld [vmem:[#allocation2 + $0xe0] sm:$0xff]
      %v2111 = vld [vmem:[#allocation2 + $0xe8] sm:$0xff]
      %v2112 = vld [vmem:[#allocation2 + $0xf0] sm:$0xff]
      %v2113 = vld [vmem:[#allocation2 + $0xf8] sm:$0xff]
      %v2114 = vld [vmem:[#allocation2 + $0x100] sm:$0xff]
      %v2115 = vld [vmem:[#allocation2 + $0x108] sm:$0xff]
      %v2116 = vld [vmem:[#allocation2 + $0x110] sm:$0xff]
      %v2117 = vld [vmem:[#allocation2 + $0x118] sm:$0xff]
      %s2118 = scalar_lea.vmem %s1, 256
      %v2119 = vld [vmem:[%s2118] sm:$0xf]
      %v2120 = vld [vmem:[%s2118 + $0x4] sm:$0xf]
      %v2121 = vld [vmem:[%s2118 + $0x8] sm:$0xf]
      %v2122 = vld [vmem:[%s2118 + $0xc] sm:$0xf]
      %v2123 = vld [vmem:[%s2118 + $0x10] sm:$0xf]
      %v2124 = vld [vmem:[%s2118 + $0x14] sm:$0xf]
      %v2125 = vld [vmem:[%s2118 + $0x18] sm:$0xf]
      %v2126 = vld [vmem:[%s2118 + $0x1c] sm:$0xf]
      %v2127 = vld [vmem:[%s2118 + $0x20] sm:$0xf]
      %v2128 = vld [vmem:[%s2118 + $0x24] sm:$0xf]
      %v2129 = vld [vmem:[%s2118 + $0x28] sm:$0xf]
      %v2130 = vld [vmem:[%s2118 + $0x2c] sm:$0xf]
      %v2131 = vld [vmem:[%s2118 + $0x30] sm:$0xf]
      %v2132 = vld [vmem:[%s2118 + $0x34] sm:$0xf]
      %v2133 = vld [vmem:[%s2118 + $0x38] sm:$0xf]
      %v2134 = vld [vmem:[%s2118 + $0x3c] sm:$0xf]
      %vm2135 = vsmask.f32 6400
      %v2136 = vrot.slane %v852, 1
      %v2137 = vrot.slane %v848, 2
      %v2138 = vor.u32 %v2136, %v2137
      %v2139 = vrot.slane %v860, 1
      %v2140 = vrot.slane %v856, 2
      %v2141 = vor.u32 %v2139, %v2140
      %v2142 = vsel %vm2135, %v2138, %v2141
      %v2143 = vrot.slane %v868, 1
      %v2144 = vrot.slane %v864, 2
      %v2145 = vor.u32 %v2143, %v2144
      %v2146 = vsel %vm2135, %v2141, %v2145
      %v2147 = vrot.slane %v876, 1
      %v2148 = vrot.slane %v872, 2
      %v2149 = vor.u32 %v2147, %v2148
      %v2150 = vsel %vm2135, %v2145, %v2149
      %v2151 = vrot.slane %v884, 1
      %v2152 = vrot.slane %v880, 2
      %v2153 = vor.u32 %v2151, %v2152
      %v2154 = vsel %vm2135, %v2149, %v2153
      %v2155 = vrot.slane %v892, 1
      %v2156 = vrot.slane %v888, 2
      %v2157 = vor.u32 %v2155, %v2156
      %v2158 = vsel %vm2135, %v2153, %v2157
      %v2159 = vrot.slane %v900, 1
      %v2160 = vrot.slane %v896, 2
      %v2161 = vor.u32 %v2159, %v2160
      %v2162 = vsel %vm2135, %v2157, %v2161
      %v2163 = vrot.slane %v908, 1
      %v2164 = vrot.slane %v904, 2
      %v2165 = vor.u32 %v2163, %v2164
      %v2166 = vsel %vm2135, %v2161, %v2165
      %v2167 = vrot.slane %v916, 1
      %v2168 = vrot.slane %v912, 2
      %v2169 = vor.u32 %v2167, %v2168
      %v2170 = vsel %vm2135, %v2165, %v2169
      %v2171 = vrot.slane %v924, 1
      %v2172 = vrot.slane %v920, 2
      %v2173 = vor.u32 %v2171, %v2172
      %v2174 = vsel %vm2135, %v2169, %v2173
      %v2175 = vrot.slane %v932, 1
      %v2176 = vrot.slane %v928, 2
      %v2177 = vor.u32 %v2175, %v2176
      %v2178 = vsel %vm2135, %v2173, %v2177
      %v2179 = vrot.slane %v940, 1
      %v2180 = vrot.slane %v936, 2
      %v2181 = vor.u32 %v2179, %v2180
      %v2182 = vsel %vm2135, %v2177, %v2181
      %v2183 = vrot.slane %v948, 1
      %v2184 = vrot.slane %v944, 2
      %v2185 = vor.u32 %v2183, %v2184
      %v2186 = vsel %vm2135, %v2181, %v2185
      %v2187 = vrot.slane %v956, 1
      %v2188 = vrot.slane %v952, 2
      %v2189 = vor.u32 %v2187, %v2188
      %v2190 = vsel %vm2135, %v2185, %v2189
      %v2191 = vrot.slane %v964, 1
      %v2192 = vrot.slane %v960, 2
      %v2193 = vor.u32 %v2191, %v2192
      %v2194 = vsel %vm2135, %v2189, %v2193
      %v2195 = vrot.slane %v972, 1
      %v2196 = vrot.slane %v968, 2
      %v2197 = vor.u32 %v2195, %v2196
      %v2198 = vsel %vm2135, %v2193, %v2197
      %v2199 = vrot.slane %v980, 1
      %v2200 = vrot.slane %v976, 2
      %v2201 = vor.u32 %v2199, %v2200
      %v2202 = vsel %vm2135, %v2197, %v2201
      %v2203 = vshrl.u32 %v506, 16
      %v2205 = vrot.slane %v2203, 1
      %v2206 = vrot.slane %v984, 2
      %v2207 = vor.u32 %v2205, %v2206
      %v2208 = vsel %vm2135, %v2201, %v2207
      %v2210 = vshrl.u32 %v507, 16
      %v2212 = vrot.slane %v2210, 1
      %v2213 = vshll.u32 %v507, 16
      %v2215 = vrot.slane %v2213, 2
      %v2216 = vor.u32 %v2212, %v2215
      %v2217 = vsel %vm2135, %v2207, %v2216
      %v2252 = vunpack.c.l.b16 %v2119
      %v2253 = vunpack.c.l.b16 %v2120
      %v2254 = vunpack.c.l.b16 %v2121
      %v2255 = vunpack.c.l.b16 %v2122
      %v2256 = vunpack.c.l.b16 %v2123
      %v2257 = vunpack.c.l.b16 %v2124
      %v2258 = vunpack.c.l.b16 %v2125
      %v2259 = vunpack.c.l.b16 %v2126
      %v2260 = vunpack.c.l.b16 %v2127
      %v2261 = vunpack.c.l.b16 %v2128
      %v2262 = vunpack.c.l.b16 %v2129
      %v2263 = vunpack.c.l.b16 %v2130
      %v2264 = vunpack.c.l.b16 %v2131
      %v2265 = vunpack.c.l.b16 %v2132
      %v2266 = vunpack.c.l.b16 %v2133
      %v2267 = vunpack.c.l.b16 %v2134
      %v2268 = vpack.c.b16 %v2253, %v2252
      %v2269 = vpack.c.b16 %v2255, %v2254
      %v2270 = vpack.c.b16 %v2257, %v2256
      %v2271 = vpack.c.b16 %v2259, %v2258
      %v2272 = vpack.c.b16 %v2261, %v2260
      %v2273 = vpack.c.b16 %v2263, %v2262
      %v2274 = vpack.c.b16 %v2265, %v2264
      %v2275 = vpack.c.b16 %v2267, %v2266
      %2284 = vmatprep.subr.bf16.mxu0 0
      %2285 = vmatpush1.bf16.msra.mxu0 %v2268
      %2286 = vmatprep.subr.bf16.mxu0 0
      %2287 = vmatpush1.bf16.msra.mxu0 %v2269
      %2288 = vmatprep.subr.bf16.mxu0 0
      %2289 = vmatpush1.bf16.msra.mxu0 %v2270
      %2290 = vmatprep.subr.bf16.mxu0 0
      %2291 = vmatpush1.bf16.msra.mxu0 %v2271
      %2292 = vmatprep.subr.bf16.mxu0 0
      %2293 = vmatpush1.bf16.msra.mxu0 %v2272
      %2294 = vmatprep.subr.bf16.mxu0 0
      %2295 = vmatpush1.bf16.msra.mxu0 %v2273
      %2296 = vmatprep.subr.bf16.mxu0 0
      %2297 = vmatpush1.bf16.msra.mxu0 %v2274
      %2298 = vmatprep.subr.bf16.mxu0 0
      %2299 = vmatpush1.bf16.msra.mxu0 %v2275
      %2300 = vmatprep.subr.bf16.mxu0 0
      %2301 = vmatpush1.bf16.msra.mxu0 0
      %2302 = vmatprep.subr.bf16.mxu0 0
      %2303 = vmatpush1.bf16.msra.mxu0 0
      %2304 = vmatprep.subr.bf16.mxu0 0
      %2305 = vmatpush1.bf16.msra.mxu0 0
      %2306 = vmatprep.subr.bf16.mxu0 0
      %2307 = vmatpush1.bf16.msra.mxu0 0
      %2308 = vmatprep.subr.bf16.mxu0 0
      %2309 = vmatpush1.bf16.msra.mxu0 0
      %2310 = vmatprep.subr.bf16.mxu0 0
      %2311 = vmatpush1.bf16.msra.mxu0 0
      %2312 = vmatprep.subr.bf16.mxu0 0
      %2313 = vmatpush1.bf16.msra.mxu0 0
      %2314 = vmatprep.subr.bf16.mxu0 0
      %2315 = vmatpush1.bf16.msra.mxu0 0
      %2316 = vmatprep.mubr.bf16.mxu0 0
      %2317 = vmatmul.mubr.bf16.gmra.mrb[0].mxu0 %v2142
      %v2318 = vpop.f32.mrb[0].mxu0
      %v2319 = vadd.f32 0.0, %v2318
      %v2320 = vpop.f32.mrb[0].mxu0
      %v2321 = vpop.f32.mrb[0].mxu0
      %v2322 = vadd.f32 0.0, %v2321
      %v2323 = vpop.f32.mrb[0].mxu0
      %2324 = vmatprep.mubr.bf16.mxu0 0
      %2325 = vmatmul.mubr.bf16.gmra.mrb[0].mxu0 %v2146
      %v2326 = vpop.f32.mrb[0].mxu0
      %v2327 = vadd.f32 0.0, %v2326
      %v2328 = vpop.f32.mrb[0].mxu0
      %v2329 = vpop.f32.mrb[0].mxu0
      %v2330 = vadd.f32 0.0, %v2329
      %v2331 = vpop.f32.mrb[0].mxu0
      %2332 = vmatprep.mubr.bf16.mxu0 0
      %2333 = vmatmul.mubr.bf16.gmra.mrb[0].mxu0 %v2150
      %v2334 = vpop.f32.mrb[0].mxu0
      %v2335 = vadd.f32 0.0, %v2334
      %v2336 = vpop.f32.mrb[0].mxu0
      %v2337 = vpop.f32.mrb[0].mxu0
      %v2338 = vadd.f32 0.0, %v2337
      %v2339 = vpop.f32.mrb[0].mxu0
      %2340 = vmatprep.mubr.bf16.mxu0 0
      %2341 = vmatmul.mubr.bf16.gmra.mrb[0].mxu0 %v2154
      %v2342 = vpop.f32.mrb[0].mxu0
      %v2343 = vadd.f32 0.0, %v2342
      %v2344 = vpop.f32.mrb[0].mxu0
      %v2345 = vpop.f32.mrb[0].mxu0
      %v2346 = vadd.f32 0.0, %v2345
      %v2347 = vpop.f32.mrb[0].mxu0
      %2348 = vmatprep.mubr.bf16.mxu0 0
      %2349 = vmatmul.mubr.bf16.gmra.mrb[0].mxu0 %v2158
      %v2350 = vpop.f32.mrb[0].mxu0
      %v2351 = vadd.f32 0.0, %v2350
      %v2352 = vpop.f32.mrb[0].mxu0
      %v2353 = vpop.f32.mrb[0].mxu0
      %v2354 = vadd.f32 0.0, %v2353
      %v2355 = vpop.f32.mrb[0].mxu0
      %2356 = vmatprep.mubr.bf16.mxu0 0
      %2357 = vmatmul.mubr.bf16.gmra.mrb[0].mxu0 %v2162
      %v2358 = vpop.f32.mrb[0].mxu0
      %v2359 = vadd.f32 0.0, %v2358
      %v2360 = vpop.f32.mrb[0].mxu0
      %v2361 = vpop.f32.mrb[0].mxu0
      %v2362 = vadd.f32 0.0, %v2361
      %v2363 = vpop.f32.mrb[0].mxu0
      %2364 = vmatprep.mubr.bf16.mxu0 0
      %2365 = vmatmul.mubr.bf16.gmra.mrb[0].mxu0 %v2166
      %v2366 = vpop.f32.mrb[0].mxu0
      %v2367 = vadd.f32 0.0, %v2366
      %v2368 = vpop.f32.mrb[0].mxu0
      %v2369 = vpop.f32.mrb[0].mxu0
      %v2370 = vadd.f32 0.0, %v2369
      %v2371 = vpop.f32.mrb[0].mxu0
      %2372 = vmatprep.mubr.bf16.mxu0 0
      %2373 = vmatmul.mubr.bf16.gmra.mrb[0].mxu0 %v2170
      %v2374 = vpop.f32.mrb[0].mxu0
      %v2375 = vadd.f32 0.0, %v2374
      %v2376 = vpop.f32.mrb[0].mxu0
      %v2377 = vpop.f32.mrb[0].mxu0
      %v2378 = vadd.f32 0.0, %v2377
      %v2379 = vpop.f32.mrb[0].mxu0
      %2380 = vmatprep.mubr.bf16.mxu0 0
      %2381 = vmatmul.mubr.bf16.gmra.mrb[0].mxu0 %v2174
      %v2382 = vpop.f32.mrb[0].mxu0
      %v2383 = vadd.f32 0.0, %v2382
      %v2384 = vpop.f32.mrb[0].mxu0
      %v2385 = vpop.f32.mrb[0].mxu0
      %v2386 = vadd.f32 0.0, %v2385
      %v2387 = vpop.f32.mrb[0].mxu0
      %2388 = vmatprep.mubr.bf16.mxu0 0
      %2389 = vmatmul.mubr.bf16.gmra.mrb[0].mxu0 %v2178
      %v2390 = vpop.f32.mrb[0].mxu0
      %v2391 = vadd.f32 0.0, %v2390
      %v2392 = vpop.f32.mrb[0].mxu0
      %v2393 = vpop.f32.mrb[0].mxu0
      %v2394 = vadd.f32 0.0, %v2393
      %v2395 = vpop.f32.mrb[0].mxu0
      %2396 = vmatprep.mubr.bf16.mxu0 0
      %2397 = vmatmul.mubr.bf16.gmra.mrb[0].mxu0 %v2182
      %v2398 = vpop.f32.mrb[0].mxu0
      %v2399 = vadd.f32 0.0, %v2398
      %v2400 = vpop.f32.mrb[0].mxu0
      %v2401 = vpop.f32.mrb[0].mxu0
      %v2402 = vadd.f32 0.0, %v2401
      %v2403 = vpop.f32.mrb[0].mxu0
      %2404 = vmatprep.mubr.bf16.mxu0 0
      %2405 = vmatmul.mubr.bf16.gmra.mrb[0].mxu0 %v2186
      %v2406 = vpop.f32.mrb[0].mxu0
      %v2407 = vadd.f32 0.0, %v2406
      %v2408 = vpop.f32.mrb[0].mxu0
      %v2409 = vpop.f32.mrb[0].mxu0
      %v2410 = vadd.f32 0.0, %v2409
      %v2411 = vpop.f32.mrb[0].mxu0
      %2412 = vmatprep.mubr.bf16.mxu0 0
      %2413 = vmatmul.mubr.bf16.gmra.mrb[0].mxu0 %v2190
      %v2414 = vpop.f32.mrb[0].mxu0
      %v2415 = vadd.f32 0.0, %v2414
      %v2416 = vpop.f32.mrb[0].mxu0
      %v2417 = vpop.f32.mrb[0].mxu0
      %v2418 = vadd.f32 0.0, %v2417
      %v2419 = vpop.f32.mrb[0].mxu0
      %2420 = vmatprep.mubr.bf16.mxu0 0
      %2421 = vmatmul.mubr.bf16.gmra.mrb[0].mxu0 %v2194
      %v2422 = vpop.f32.mrb[0].mxu0
      %v2423 = vadd.f32 0.0, %v2422
      %v2424 = vpop.f32.mrb[0].mxu0
      %v2425 = vpop.f32.mrb[0].mxu0
      %v2426 = vadd.f32 0.0, %v2425
      %v2427 = vpop.f32.mrb[0].mxu0
      %2428 = vmatprep.mubr.bf16.mxu0 0
      %2429 = vmatmul.mubr.bf16.gmra.mrb[0].mxu0 %v2198
      %v2430 = vpop.f32.mrb[0].mxu0
      %v2431 = vadd.f32 0.0, %v2430
      %v2432 = vpop.f32.mrb[0].mxu0
      %v2433 = vpop.f32.mrb[0].mxu0
      %v2434 = vadd.f32 0.0, %v2433
      %v2435 = vpop.f32.mrb[0].mxu0
      %2436 = vmatprep.mubr.bf16.mxu0 0
      %2437 = vmatmul.mubr.bf16.gmra.mrb[0].mxu0 %v2202
      %v2438 = vpop.f32.mrb[0].mxu0
      %v2439 = vadd.f32 0.0, %v2438
      %v2440 = vpop.f32.mrb[0].mxu0
      %v2441 = vpop.f32.mrb[0].mxu0
      %v2442 = vadd.f32 0.0, %v2441
      %v2443 = vpop.f32.mrb[0].mxu0
      %2444 = vmatprep.mubr.bf16.mxu0 0
      %2445 = vmatmul.mubr.bf16.gmra.mrb[0].mxu0 %v2208
      %v2446 = vpop.f32.mrb[0].mxu0
      %v2447 = vadd.f32 0.0, %v2446
      %v2448 = vpop.f32.mrb[0].mxu0
      %v2449 = vpop.f32.mrb[0].mxu0
      %v2450 = vadd.f32 0.0, %v2449
      %v2451 = vpop.f32.mrb[0].mxu0
      %2452 = vmatprep.mubr.bf16.mxu0 0
      %2453 = vmatmul.mubr.bf16.gmra.mrb[0].mxu0 %v2217
      %v2454 = vpop.f32.mrb[0].mxu0
      %v2455 = vadd.f32 0.0, %v2454
      %v2456 = vpop.f32.mrb[0].mxu0
      %v2457 = vpop.f32.mrb[0].mxu0
      %v2458 = vadd.f32 0.0, %v2457
      %v2459 = vpop.f32.mrb[0].mxu0
      %2460 = vdwg.mxu0
      %v2461 = vadd.f32 %v2082, %v2319
      %v2462 = vadd.f32 %v2083, %v2322
      %v2463 = vadd.f32 %v2084, %v2327
      %v2464 = vadd.f32 %v2085, %v2330
      %v2465 = vadd.f32 %v2086, %v2335
      %v2466 = vadd.f32 %v2087, %v2338
      %v2467 = vadd.f32 %v2088, %v2343
      %v2468 = vadd.f32 %v2089, %v2346
      %v2469 = vadd.f32 %v2090, %v2351
      %v2470 = vadd.f32 %v2091, %v2354
      %v2471 = vadd.f32 %v2092, %v2359
      %v2472 = vadd.f32 %v2093, %v2362
      %v2473 = vadd.f32 %v2094, %v2367
      %v2474 = vadd.f32 %v2095, %v2370
      %v2475 = vadd.f32 %v2096, %v2375
      %v2476 = vadd.f32 %v2097, %v2378
      %v2477 = vadd.f32 %v2098, %v2383
      %v2478 = vadd.f32 %v2099, %v2386
      %v2479 = vadd.f32 %v2100, %v2391
      %v2480 = vadd.f32 %v2101, %v2394
      %v2481 = vadd.f32 %v2102, %v2399
      %v2482 = vadd.f32 %v2103, %v2402
      %v2483 = vadd.f32 %v2104, %v2407
      %v2484 = vadd.f32 %v2105, %v2410
      %v2485 = vadd.f32 %v2106, %v2415
      %v2486 = vadd.f32 %v2107, %v2418
      %v2487 = vadd.f32 %v2108, %v2423
      %v2488 = vadd.f32 %v2109, %v2426
      %v2489 = vadd.f32 %v2110, %v2431
      %v2490 = vadd.f32 %v2111, %v2434
      %v2491 = vadd.f32 %v2112, %v2439
      %v2492 = vadd.f32 %v2113, %v2442
      %v2493 = vadd.f32 %v2114, %v2447
      %v2494 = vadd.f32 %v2115, %v2450
      %v2495 = vadd.f32 %v2116, %v2455
      %v2496 = vadd.f32 %v2117, %v2458
      %2497 = vst [vmem:[#allocation2] sm:$0xff] %v2461
      %2498 = vst [vmem:[#allocation2 + $0x8] sm:$0xff] %v2462
      %2499 = vst [vmem:[#allocation2 + $0x10] sm:$0xff] %v2463
      %2500 = vst [vmem:[#allocation2 + $0x18] sm:$0xff] %v2464
      %2501 = vst [vmem:[#allocation2 + $0x20] sm:$0xff] %v2465
      %2502 = vst [vmem:[#allocation2 + $0x28] sm:$0xff] %v2466
      %2503 = vst [vmem:[#allocation2 + $0x30] sm:$0xff] %v2467
      %2504 = vst [vmem:[#allocation2 + $0x38] sm:$0xff] %v2468
      %2505 = vst [vmem:[#allocation2 + $0x40] sm:$0xff] %v2469
      %2506 = vst [vmem:[#allocation2 + $0x48] sm:$0xff] %v2470
      %2507 = vst [vmem:[#allocation2 + $0x50] sm:$0xff] %v2471
      %2508 = vst [vmem:[#allocation2 + $0x58] sm:$0xff] %v2472
      %2509 = vst [vmem:[#allocation2 + $0x60] sm:$0xff] %v2473
      %2510 = vst [vmem:[#allocation2 + $0x68] sm:$0xff] %v2474
      %2511 = vst [vmem:[#allocation2 + $0x70] sm:$0xff] %v2475
      %2512 = vst [vmem:[#allocation2 + $0x78] sm:$0xff] %v2476
      %2513 = vst [vmem:[#allocation2 + $0x80] sm:$0xff] %v2477
      %2514 = vst [vmem:[#allocation2 + $0x88] sm:$0xff] %v2478
      %2515 = vst [vmem:[#allocation2 + $0x90] sm:$0xff] %v2479
      %2516 = vst [vmem:[#allocation2 + $0x98] sm:$0xff] %v2480
      %2517 = vst [vmem:[#allocation2 + $0xa0] sm:$0xff] %v2481
      %2518 = vst [vmem:[#allocation2 + $0xa8] sm:$0xff] %v2482
      %2519 = vst [vmem:[#allocation2 + $0xb0] sm:$0xff] %v2483
      %2520 = vst [vmem:[#allocation2 + $0xb8] sm:$0xff] %v2484
      %2521 = vst [vmem:[#allocation2 + $0xc0] sm:$0xff] %v2485
      %2522 = vst [vmem:[#allocation2 + $0xc8] sm:$0xff] %v2486
      %2523 = vst [vmem:[#allocation2 + $0xd0] sm:$0xff] %v2487
      %2524 = vst [vmem:[#allocation2 + $0xd8] sm:$0xff] %v2488
      %2525 = vst [vmem:[#allocation2 + $0xe0] sm:$0xff] %v2489
      %2526 = vst [vmem:[#allocation2 + $0xe8] sm:$0xff] %v2490
      %2527 = vst [vmem:[#allocation2 + $0xf0] sm:$0xff] %v2491
      %2528 = vst [vmem:[#allocation2 + $0xf8] sm:$0xff] %v2492
      %2529 = vst [vmem:[#allocation2 + $0x100] sm:$0xff] %v2493
      %2530 = vst [vmem:[#allocation2 + $0x108] sm:$0xff] %v2494
      %2531 = vst [vmem:[#allocation2 + $0x110] sm:$0xff] %v2495
      %2532 = vst [vmem:[#allocation2 + $0x118] sm:$0xff] %v2496
      %v2533 = vld [vmem:[#allocation2] sm:$0xff]
      %v2534 = vld [vmem:[#allocation2 + $0x8] sm:$0xff]
      %v2535 = vld [vmem:[#allocation2 + $0x10] sm:$0xff]
      %v2536 = vld [vmem:[#allocation2 + $0x18] sm:$0xff]
      %v2537 = vld [vmem:[#allocation2 + $0x20] sm:$0xff]
      %v2538 = vld [vmem:[#allocation2 + $0x28] sm:$0xff]
      %v2539 = vld [vmem:[#allocation2 + $0x30] sm:$0xff]
      %v2540 = vld [vmem:[#allocation2 + $0x38] sm:$0xff]
      %v2541 = vld [vmem:[#allocation2 + $0x40] sm:$0xff]
      %v2542 = vld [vmem:[#allocation2 + $0x48] sm:$0xff]
      %v2543 = vld [vmem:[#allocation2 + $0x50] sm:$0xff]
      %v2544 = vld [vmem:[#allocation2 + $0x58] sm:$0xff]
      %v2545 = vld [vmem:[#allocation2 + $0x60] sm:$0xff]
      %v2546 = vld [vmem:[#allocation2 + $0x68] sm:$0xff]
      %v2547 = vld [vmem:[#allocation2 + $0x70] sm:$0xff]
      %v2548 = vld [vmem:[#allocation2 + $0x78] sm:$0xff]
      %v2549 = vld [vmem:[#allocation2 + $0x80] sm:$0xff]
      %v2550 = vld [vmem:[#allocation2 + $0x88] sm:$0xff]
      %v2551 = vld [vmem:[#allocation2 + $0x90] sm:$0xff]
      %v2552 = vld [vmem:[#allocation2 + $0x98] sm:$0xff]
      %v2553 = vld [vmem:[#allocation2 + $0xa0] sm:$0xff]
      %v2554 = vld [vmem:[#allocation2 + $0xa8] sm:$0xff]
      %v2555 = vld [vmem:[#allocation2 + $0xb0] sm:$0xff]
      %v2556 = vld [vmem:[#allocation2 + $0xb8] sm:$0xff]
      %v2557 = vld [vmem:[#allocation2 + $0xc0] sm:$0xff]
      %v2558 = vld [vmem:[#allocation2 + $0xc8] sm:$0xff]
      %v2559 = vld [vmem:[#allocation2 + $0xd0] sm:$0xff]
      %v2560 = vld [vmem:[#allocation2 + $0xd8] sm:$0xff]
      %v2561 = vld [vmem:[#allocation2 + $0xe0] sm:$0xff]
      %v2562 = vld [vmem:[#allocation2 + $0xe8] sm:$0xff]
      %v2563 = vld [vmem:[#allocation2 + $0xf0] sm:$0xff]
      %v2564 = vld [vmem:[#allocation2 + $0xf8] sm:$0xff]
      %v2565 = vld [vmem:[#allocation2 + $0x100] sm:$0xff]
      %v2566 = vld [vmem:[#allocation2 + $0x108] sm:$0xff]
      %v2567 = vld [vmem:[#allocation2 + $0x110] sm:$0xff]
      %v2568 = vld [vmem:[#allocation2 + $0x118] sm:$0xff]
      %s2569 = scalar_lea.vmem %s1, 320
      %v2570 = vld [vmem:[%s2569] sm:$0xf]
      %v2571 = vld [vmem:[%s2569 + $0x4] sm:$0xf]
      %v2572 = vld [vmem:[%s2569 + $0x8] sm:$0xf]
      %v2573 = vld [vmem:[%s2569 + $0xc] sm:$0xf]
      %v2574 = vld [vmem:[%s2569 + $0x10] sm:$0xf]
      %v2575 = vld [vmem:[%s2569 + $0x14] sm:$0xf]
      %v2576 = vld [vmem:[%s2569 + $0x18] sm:$0xf]
      %v2577 = vld [vmem:[%s2569 + $0x1c] sm:$0xf]
      %v2578 = vld [vmem:[%s2569 + $0x20] sm:$0xf]
      %v2579 = vld [vmem:[%s2569 + $0x24] sm:$0xf]
      %v2580 = vld [vmem:[%s2569 + $0x28] sm:$0xf]
      %v2581 = vld [vmem:[%s2569 + $0x2c] sm:$0xf]
      %v2582 = vld [vmem:[%s2569 + $0x30] sm:$0xf]
      %v2583 = vld [vmem:[%s2569 + $0x34] sm:$0xf]
      %v2584 = vld [vmem:[%s2569 + $0x38] sm:$0xf]
      %v2585 = vld [vmem:[%s2569 + $0x3c] sm:$0xf]
      %vm2586 = vcmask 1045504
      %v2587 = vrot.slane %v489, 2
      %v2588 = vrot.slane %v490, 2
      %v2589 = vsel %vm2586, %v2587, %v2588
      %v2590 = vrot.slane %v491, 2
      %v2591 = vsel %vm2586, %v2588, %v2590
      %v2592 = vrot.slane %v492, 2
      %v2593 = vsel %vm2586, %v2590, %v2592
      %v2594 = vrot.slane %v493, 2
      %v2595 = vsel %vm2586, %v2592, %v2594
      %v2596 = vrot.slane %v494, 2
      %v2597 = vsel %vm2586, %v2594, %v2596
      %v2598 = vrot.slane %v495, 2
      %v2599 = vsel %vm2586, %v2596, %v2598
      %v2600 = vrot.slane %v496, 2
      %v2601 = vsel %vm2586, %v2598, %v2600
      %v2602 = vrot.slane %v497, 2
      %v2603 = vsel %vm2586, %v2600, %v2602
      %v2604 = vrot.slane %v498, 2
      %v2605 = vsel %vm2586, %v2602, %v2604
      %v2606 = vrot.slane %v499, 2
      %v2607 = vsel %vm2586, %v2604, %v2606
      %v2608 = vrot.slane %v500, 2
      %v2609 = vsel %vm2586, %v2606, %v2608
      %v2610 = vrot.slane %v501, 2
      %v2611 = vsel %vm2586, %v2608, %v2610
      %v2612 = vrot.slane %v502, 2
      %v2613 = vsel %vm2586, %v2610, %v2612
      %v2614 = vrot.slane %v503, 2
      %v2615 = vsel %vm2586, %v2612, %v2614
      %v2616 = vrot.slane %v504, 2
      %v2617 = vsel %vm2586, %v2614, %v2616
      %v2618 = vrot.slane %v505, 2
      %v2619 = vsel %vm2586, %v2616, %v2618
      %v2620 = vrot.slane %v506, 2
      %v2621 = vsel %vm2586, %v2618, %v2620
      %v2622 = vrot.slane %v507, 2
      %v2623 = vsel %vm2586, %v2620, %v2622
      %v2658 = vunpack.c.l.b16 %v2570
      %v2659 = vunpack.c.l.b16 %v2571
      %v2660 = vunpack.c.l.b16 %v2572
      %v2661 = vunpack.c.l.b16 %v2573
      %v2662 = vunpack.c.l.b16 %v2574
      %v2663 = vunpack.c.l.b16 %v2575
      %v2664 = vunpack.c.l.b16 %v2576
      %v2665 = vunpack.c.l.b16 %v2577
      %v2666 = vunpack.c.l.b16 %v2578
      %v2667 = vunpack.c.l.b16 %v2579
      %v2668 = vunpack.c.l.b16 %v2580
      %v2669 = vunpack.c.l.b16 %v2581
      %v2670 = vunpack.c.l.b16 %v2582
      %v2671 = vunpack.c.l.b16 %v2583
      %v2672 = vunpack.c.l.b16 %v2584
      %v2673 = vunpack.c.l.b16 %v2585
      %v2674 = vpack.c.b16 %v2659, %v2658
      %v2675 = vpack.c.b16 %v2661, %v2660
      %v2676 = vpack.c.b16 %v2663, %v2662
      %v2677 = vpack.c.b16 %v2665, %v2664
      %v2678 = vpack.c.b16 %v2667, %v2666
      %v2679 = vpack.c.b16 %v2669, %v2668
      %v2680 = vpack.c.b16 %v2671, %v2670
      %v2681 = vpack.c.b16 %v2673, %v2672
      %2690 = vmatprep.subr.bf16.mxu0 0
      %2691 = vmatpush1.bf16.msra.mxu0 %v2674
      %2692 = vmatprep.subr.bf16.mxu0 0
      %2693 = vmatpush1.bf16.msra.mxu0 %v2675
      %2694 = vmatprep.subr.bf16.mxu0 0
      %2695 = vmatpush1.bf16.msra.mxu0 %v2676
      %2696 = vmatprep.subr.bf16.mxu0 0
      %2697 = vmatpush1.bf16.msra.mxu0 %v2677
      %2698 = vmatprep.subr.bf16.mxu0 0
      %2699 = vmatpush1.bf16.msra.mxu0 %v2678
      %2700 = vmatprep.subr.bf16.mxu0 0
      %2701 = vmatpush1.bf16.msra.mxu0 %v2679
      %2702 = vmatprep.subr.bf16.mxu0 0
      %2703 = vmatpush1.bf16.msra.mxu0 %v2680
      %2704 = vmatprep.subr.bf16.mxu0 0
      %2705 = vmatpush1.bf16.msra.mxu0 %v2681
      %2706 = vmatprep.subr.bf16.mxu0 0
      %2707 = vmatpush1.bf16.msra.mxu0 0
      %2708 = vmatprep.subr.bf16.mxu0 0
      %2709 = vmatpush1.bf16.msra.mxu0 0
      %2710 = vmatprep.subr.bf16.mxu0 0
      %2711 = vmatpush1.bf16.msra.mxu0 0
      %2712 = vmatprep.subr.bf16.mxu0 0
      %2713 = vmatpush1.bf16.msra.mxu0 0
      %2714 = vmatprep.subr.bf16.mxu0 0
      %2715 = vmatpush1.bf16.msra.mxu0 0
      %2716 = vmatprep.subr.bf16.mxu0 0
      %2717 = vmatpush1.bf16.msra.mxu0 0
      %2718 = vmatprep.subr.bf16.mxu0 0
      %2719 = vmatpush1.bf16.msra.mxu0 0
      %2720 = vmatprep.subr.bf16.mxu0 0
      %2721 = vmatpush1.bf16.msra.mxu0 0
      %2722 = vmatprep.mubr.bf16.mxu0 0
      %2723 = vmatmul.mubr.bf16.gmra.mrb[0].mxu0 %v2589
      %v2724 = vpop.f32.mrb[0].mxu0
      %v2725 = vadd.f32 0.0, %v2724
      %v2726 = vpop.f32.mrb[0].mxu0
      %v2727 = vpop.f32.mrb[0].mxu0
      %v2728 = vadd.f32 0.0, %v2727
      %v2729 = vpop.f32.mrb[0].mxu0
      %2730 = vmatprep.mubr.bf16.mxu0 0
      %2731 = vmatmul.mubr.bf16.gmra.mrb[0].mxu0 %v2591
      %v2732 = vpop.f32.mrb[0].mxu0
      %v2733 = vadd.f32 0.0, %v2732
      %v2734 = vpop.f32.mrb[0].mxu0
      %v2735 = vpop.f32.mrb[0].mxu0
      %v2736 = vadd.f32 0.0, %v2735
      %v2737 = vpop.f32.mrb[0].mxu0
      %2738 = vmatprep.mubr.bf16.mxu0 0
      %2739 = vmatmul.mubr.bf16.gmra.mrb[0].mxu0 %v2593
      %v2740 = vpop.f32.mrb[0].mxu0
      %v2741 = vadd.f32 0.0, %v2740
      %v2742 = vpop.f32.mrb[0].mxu0
      %v2743 = vpop.f32.mrb[0].mxu0
      %v2744 = vadd.f32 0.0, %v2743
      %v2745 = vpop.f32.mrb[0].mxu0
      %2746 = vmatprep.mubr.bf16.mxu0 0
      %2747 = vmatmul.mubr.bf16.gmra.mrb[0].mxu0 %v2595
      %v2748 = vpop.f32.mrb[0].mxu0
      %v2749 = vadd.f32 0.0, %v2748
      %v2750 = vpop.f32.mrb[0].mxu0
      %v2751 = vpop.f32.mrb[0].mxu0
      %v2752 = vadd.f32 0.0, %v2751
      %v2753 = vpop.f32.mrb[0].mxu0
      %2754 = vmatprep.mubr.bf16.mxu0 0
      %2755 = vmatmul.mubr.bf16.gmra.mrb[0].mxu0 %v2597
      %v2756 = vpop.f32.mrb[0].mxu0
      %v2757 = vadd.f32 0.0, %v2756
      %v2758 = vpop.f32.mrb[0].mxu0
      %v2759 = vpop.f32.mrb[0].mxu0
      %v2760 = vadd.f32 0.0, %v2759
      %v2761 = vpop.f32.mrb[0].mxu0
      %2762 = vmatprep.mubr.bf16.mxu0 0
      %2763 = vmatmul.mubr.bf16.gmra.mrb[0].mxu0 %v2599
      %v2764 = vpop.f32.mrb[0].mxu0
      %v2765 = vadd.f32 0.0, %v2764
      %v2766 = vpop.f32.mrb[0].mxu0
      %v2767 = vpop.f32.mrb[0].mxu0
      %v2768 = vadd.f32 0.0, %v2767
      %v2769 = vpop.f32.mrb[0].mxu0
      %2770 = vmatprep.mubr.bf16.mxu0 0
      %2771 = vmatmul.mubr.bf16.gmra.mrb[0].mxu0 %v2601
      %v2772 = vpop.f32.mrb[0].mxu0
      %v2773 = vadd.f32 0.0, %v2772
      %v2774 = vpop.f32.mrb[0].mxu0
      %v2775 = vpop.f32.mrb[0].mxu0
      %v2776 = vadd.f32 0.0, %v2775
      %v2777 = vpop.f32.mrb[0].mxu0
      %2778 = vmatprep.mubr.bf16.mxu0 0
      %2779 = vmatmul.mubr.bf16.gmra.mrb[0].mxu0 %v2603
      %v2780 = vpop.f32.mrb[0].mxu0
      %v2781 = vadd.f32 0.0, %v2780
      %v2782 = vpop.f32.mrb[0].mxu0
      %v2783 = vpop.f32.mrb[0].mxu0
      %v2784 = vadd.f32 0.0, %v2783
      %v2785 = vpop.f32.mrb[0].mxu0
      %2786 = vmatprep.mubr.bf16.mxu0 0
      %2787 = vmatmul.mubr.bf16.gmra.mrb[0].mxu0 %v2605
      %v2788 = vpop.f32.mrb[0].mxu0
      %v2789 = vadd.f32 0.0, %v2788
      %v2790 = vpop.f32.mrb[0].mxu0
      %v2791 = vpop.f32.mrb[0].mxu0
      %v2792 = vadd.f32 0.0, %v2791
      %v2793 = vpop.f32.mrb[0].mxu0
      %2794 = vmatprep.mubr.bf16.mxu0 0
      %2795 = vmatmul.mubr.bf16.gmra.mrb[0].mxu0 %v2607
      %v2796 = vpop.f32.mrb[0].mxu0
      %v2797 = vadd.f32 0.0, %v2796
      %v2798 = vpop.f32.mrb[0].mxu0
      %v2799 = vpop.f32.mrb[0].mxu0
      %v2800 = vadd.f32 0.0, %v2799
      %v2801 = vpop.f32.mrb[0].mxu0
      %2802 = vmatprep.mubr.bf16.mxu0 0
      %2803 = vmatmul.mubr.bf16.gmra.mrb[0].mxu0 %v2609
      %v2804 = vpop.f32.mrb[0].mxu0
      %v2805 = vadd.f32 0.0, %v2804
      %v2806 = vpop.f32.mrb[0].mxu0
      %v2807 = vpop.f32.mrb[0].mxu0
      %v2808 = vadd.f32 0.0, %v2807
      %v2809 = vpop.f32.mrb[0].mxu0
      %2810 = vmatprep.mubr.bf16.mxu0 0
      %2811 = vmatmul.mubr.bf16.gmra.mrb[0].mxu0 %v2611
      %v2812 = vpop.f32.mrb[0].mxu0
      %v2813 = vadd.f32 0.0, %v2812
      %v2814 = vpop.f32.mrb[0].mxu0
      %v2815 = vpop.f32.mrb[0].mxu0
      %v2816 = vadd.f32 0.0, %v2815
      %v2817 = vpop.f32.mrb[0].mxu0
      %2818 = vmatprep.mubr.bf16.mxu0 0
      %2819 = vmatmul.mubr.bf16.gmra.mrb[0].mxu0 %v2613
      %v2820 = vpop.f32.mrb[0].mxu0
      %v2821 = vadd.f32 0.0, %v2820
      %v2822 = vpop.f32.mrb[0].mxu0
      %v2823 = vpop.f32.mrb[0].mxu0
      %v2824 = vadd.f32 0.0, %v2823
      %v2825 = vpop.f32.mrb[0].mxu0
      %2826 = vmatprep.mubr.bf16.mxu0 0
      %2827 = vmatmul.mubr.bf16.gmra.mrb[0].mxu0 %v2615
      %v2828 = vpop.f32.mrb[0].mxu0
      %v2829 = vadd.f32 0.0, %v2828
      %v2830 = vpop.f32.mrb[0].mxu0
      %v2831 = vpop.f32.mrb[0].mxu0
      %v2832 = vadd.f32 0.0, %v2831
      %v2833 = vpop.f32.mrb[0].mxu0
      %2834 = vmatprep.mubr.bf16.mxu0 0
      %2835 = vmatmul.mubr.bf16.gmra.mrb[0].mxu0 %v2617
      %v2836 = vpop.f32.mrb[0].mxu0
      %v2837 = vadd.f32 0.0, %v2836
      %v2838 = vpop.f32.mrb[0].mxu0
      %v2839 = vpop.f32.mrb[0].mxu0
      %v2840 = vadd.f32 0.0, %v2839
      %v2841 = vpop.f32.mrb[0].mxu0
      %2842 = vmatprep.mubr.bf16.mxu0 0
      %2843 = vmatmul.mubr.bf16.gmra.mrb[0].mxu0 %v2619
      %v2844 = vpop.f32.mrb[0].mxu0
      %v2845 = vadd.f32 0.0, %v2844
      %v2846 = vpop.f32.mrb[0].mxu0
      %v2847 = vpop.f32.mrb[0].mxu0
      %v2848 = vadd.f32 0.0, %v2847
      %v2849 = vpop.f32.mrb[0].mxu0
      %2850 = vmatprep.mubr.bf16.mxu0 0
      %2851 = vmatmul.mubr.bf16.gmra.mrb[0].mxu0 %v2621
      %v2852 = vpop.f32.mrb[0].mxu0
      %v2853 = vadd.f32 0.0, %v2852
      %v2854 = vpop.f32.mrb[0].mxu0
      %v2855 = vpop.f32.mrb[0].mxu0
      %v2856 = vadd.f32 0.0, %v2855
      %v2857 = vpop.f32.mrb[0].mxu0
      %2858 = vmatprep.mubr.bf16.mxu0 0
      %2859 = vmatmul.mubr.bf16.gmra.mrb[0].mxu0 %v2623
      %v2860 = vpop.f32.mrb[0].mxu0
      %v2861 = vadd.f32 0.0, %v2860
      %v2862 = vpop.f32.mrb[0].mxu0
      %v2863 = vpop.f32.mrb[0].mxu0
      %v2864 = vadd.f32 0.0, %v2863
      %v2865 = vpop.f32.mrb[0].mxu0
      %2866 = vdwg.mxu0
      %v2867 = vadd.f32 %v2533, %v2725
      %v2868 = vadd.f32 %v2534, %v2728
      %v2869 = vadd.f32 %v2535, %v2733
      %v2870 = vadd.f32 %v2536, %v2736
      %v2871 = vadd.f32 %v2537, %v2741
      %v2872 = vadd.f32 %v2538, %v2744
      %v2873 = vadd.f32 %v2539, %v2749
      %v2874 = vadd.f32 %v2540, %v2752
      %v2875 = vadd.f32 %v2541, %v2757
      %v2876 = vadd.f32 %v2542, %v2760
      %v2877 = vadd.f32 %v2543, %v2765
      %v2878 = vadd.f32 %v2544, %v2768
      %v2879 = vadd.f32 %v2545, %v2773
      %v2880 = vadd.f32 %v2546, %v2776
      %v2881 = vadd.f32 %v2547, %v2781
      %v2882 = vadd.f32 %v2548, %v2784
      %v2883 = vadd.f32 %v2549, %v2789
      %v2884 = vadd.f32 %v2550, %v2792
      %v2885 = vadd.f32 %v2551, %v2797
      %v2886 = vadd.f32 %v2552, %v2800
      %v2887 = vadd.f32 %v2553, %v2805
      %v2888 = vadd.f32 %v2554, %v2808
      %v2889 = vadd.f32 %v2555, %v2813
      %v2890 = vadd.f32 %v2556, %v2816
      %v2891 = vadd.f32 %v2557, %v2821
      %v2892 = vadd.f32 %v2558, %v2824
      %v2893 = vadd.f32 %v2559, %v2829
      %v2894 = vadd.f32 %v2560, %v2832
      %v2895 = vadd.f32 %v2561, %v2837
      %v2896 = vadd.f32 %v2562, %v2840
      %v2897 = vadd.f32 %v2563, %v2845
      %v2898 = vadd.f32 %v2564, %v2848
      %v2899 = vadd.f32 %v2565, %v2853
      %v2900 = vadd.f32 %v2566, %v2856
      %v2901 = vadd.f32 %v2567, %v2861
      %v2902 = vadd.f32 %v2568, %v2864
      %2903 = vst [vmem:[#allocation2] sm:$0xff] %v2867
      %2904 = vst [vmem:[#allocation2 + $0x8] sm:$0xff] %v2868
      %2905 = vst [vmem:[#allocation2 + $0x10] sm:$0xff] %v2869
      %2906 = vst [vmem:[#allocation2 + $0x18] sm:$0xff] %v2870
      %2907 = vst [vmem:[#allocation2 + $0x20] sm:$0xff] %v2871
      %2908 = vst [vmem:[#allocation2 + $0x28] sm:$0xff] %v2872
      %2909 = vst [vmem:[#allocation2 + $0x30] sm:$0xff] %v2873
      %2910 = vst [vmem:[#allocation2 + $0x38] sm:$0xff] %v2874
      %2911 = vst [vmem:[#allocation2 + $0x40] sm:$0xff] %v2875
      %2912 = vst [vmem:[#allocation2 + $0x48] sm:$0xff] %v2876
      %2913 = vst [vmem:[#allocation2 + $0x50] sm:$0xff] %v2877
      %2914 = vst [vmem:[#allocation2 + $0x58] sm:$0xff] %v2878
      %2915 = vst [vmem:[#allocation2 + $0x60] sm:$0xff] %v2879
      %2916 = vst [vmem:[#allocation2 + $0x68] sm:$0xff] %v2880
      %2917 = vst [vmem:[#allocation2 + $0x70] sm:$0xff] %v2881
      %2918 = vst [vmem:[#allocation2 + $0x78] sm:$0xff] %v2882
      %2919 = vst [vmem:[#allocation2 + $0x80] sm:$0xff] %v2883
      %2920 = vst [vmem:[#allocation2 + $0x88] sm:$0xff] %v2884
      %2921 = vst [vmem:[#allocation2 + $0x90] sm:$0xff] %v2885
      %2922 = vst [vmem:[#allocation2 + $0x98] sm:$0xff] %v2886
      %2923 = vst [vmem:[#allocation2 + $0xa0] sm:$0xff] %v2887
      %2924 = vst [vmem:[#allocation2 + $0xa8] sm:$0xff] %v2888
      %2925 = vst [vmem:[#allocation2 + $0xb0] sm:$0xff] %v2889
      %2926 = vst [vmem:[#allocation2 + $0xb8] sm:$0xff] %v2890
      %2927 = vst [vmem:[#allocation2 + $0xc0] sm:$0xff] %v2891
      %2928 = vst [vmem:[#allocation2 + $0xc8] sm:$0xff] %v2892
      %2929 = vst [vmem:[#allocation2 + $0xd0] sm:$0xff] %v2893
      %2930 = vst [vmem:[#allocation2 + $0xd8] sm:$0xff] %v2894
      %2931 = vst [vmem:[#allocation2 + $0xe0] sm:$0xff] %v2895
      %2932 = vst [vmem:[#allocation2 + $0xe8] sm:$0xff] %v2896
      %2933 = vst [vmem:[#allocation2 + $0xf0] sm:$0xff] %v2897
      %2934 = vst [vmem:[#allocation2 + $0xf8] sm:$0xff] %v2898
      %2935 = vst [vmem:[#allocation2 + $0x100] sm:$0xff] %v2899
      %2936 = vst [vmem:[#allocation2 + $0x108] sm:$0xff] %v2900
      %2937 = vst [vmem:[#allocation2 + $0x110] sm:$0xff] %v2901
      %2938 = vst [vmem:[#allocation2 + $0x118] sm:$0xff] %v2902
      %v2939 = vld [vmem:[#allocation2] sm:$0xff]
      %v2940 = vld [vmem:[#allocation2 + $0x8] sm:$0xff]
      %v2941 = vld [vmem:[#allocation2 + $0x10] sm:$0xff]
      %v2942 = vld [vmem:[#allocation2 + $0x18] sm:$0xff]
      %v2943 = vld [vmem:[#allocation2 + $0x20] sm:$0xff]
      %v2944 = vld [vmem:[#allocation2 + $0x28] sm:$0xff]
      %v2945 = vld [vmem:[#allocation2 + $0x30] sm:$0xff]
      %v2946 = vld [vmem:[#allocation2 + $0x38] sm:$0xff]
      %v2947 = vld [vmem:[#allocation2 + $0x40] sm:$0xff]
      %v2948 = vld [vmem:[#allocation2 + $0x48] sm:$0xff]
      %v2949 = vld [vmem:[#allocation2 + $0x50] sm:$0xff]
      %v2950 = vld [vmem:[#allocation2 + $0x58] sm:$0xff]
      %v2951 = vld [vmem:[#allocation2 + $0x60] sm:$0xff]
      %v2952 = vld [vmem:[#allocation2 + $0x68] sm:$0xff]
      %v2953 = vld [vmem:[#allocation2 + $0x70] sm:$0xff]
      %v2954 = vld [vmem:[#allocation2 + $0x78] sm:$0xff]
      %v2955 = vld [vmem:[#allocation2 + $0x80] sm:$0xff]
      %v2956 = vld [vmem:[#allocation2 + $0x88] sm:$0xff]
      %v2957 = vld [vmem:[#allocation2 + $0x90] sm:$0xff]
      %v2958 = vld [vmem:[#allocation2 + $0x98] sm:$0xff]
      %v2959 = vld [vmem:[#allocation2 + $0xa0] sm:$0xff]
      %v2960 = vld [vmem:[#allocation2 + $0xa8] sm:$0xff]
      %v2961 = vld [vmem:[#allocation2 + $0xb0] sm:$0xff]
      %v2962 = vld [vmem:[#allocation2 + $0xb8] sm:$0xff]
      %v2963 = vld [vmem:[#allocation2 + $0xc0] sm:$0xff]
      %v2964 = vld [vmem:[#allocation2 + $0xc8] sm:$0xff]
      %v2965 = vld [vmem:[#allocation2 + $0xd0] sm:$0xff]
      %v2966 = vld [vmem:[#allocation2 + $0xd8] sm:$0xff]
      %v2967 = vld [vmem:[#allocation2 + $0xe0] sm:$0xff]
      %v2968 = vld [vmem:[#allocation2 + $0xe8] sm:$0xff]
      %v2969 = vld [vmem:[#allocation2 + $0xf0] sm:$0xff]
      %v2970 = vld [vmem:[#allocation2 + $0xf8] sm:$0xff]
      %v2971 = vld [vmem:[#allocation2 + $0x100] sm:$0xff]
      %v2972 = vld [vmem:[#allocation2 + $0x108] sm:$0xff]
      %v2973 = vld [vmem:[#allocation2 + $0x110] sm:$0xff]
      %v2974 = vld [vmem:[#allocation2 + $0x118] sm:$0xff]
      %s2975 = scalar_lea.vmem %s1, 384
      %v2976 = vld [vmem:[%s2975] sm:$0xf]
      %v2977 = vld [vmem:[%s2975 + $0x4] sm:$0xf]
      %v2978 = vld [vmem:[%s2975 + $0x8] sm:$0xf]
      %v2979 = vld [vmem:[%s2975 + $0xc] sm:$0xf]
      %v2980 = vld [vmem:[%s2975 + $0x10] sm:$0xf]
      %v2981 = vld [vmem:[%s2975 + $0x14] sm:$0xf]
      %v2982 = vld [vmem:[%s2975 + $0x18] sm:$0xf]
      %v2983 = vld [vmem:[%s2975 + $0x1c] sm:$0xf]
      %v2984 = vld [vmem:[%s2975 + $0x20] sm:$0xf]
      %v2985 = vld [vmem:[%s2975 + $0x24] sm:$0xf]
      %v2986 = vld [vmem:[%s2975 + $0x28] sm:$0xf]
      %v2987 = vld [vmem:[%s2975 + $0x2c] sm:$0xf]
      %v2988 = vld [vmem:[%s2975 + $0x30] sm:$0xf]
      %v2989 = vld [vmem:[%s2975 + $0x34] sm:$0xf]
      %v2990 = vld [vmem:[%s2975 + $0x38] sm:$0xf]
      %v2991 = vld [vmem:[%s2975 + $0x3c] sm:$0xf]
      %v2993 = vrot.slane %v508, 2
      %v2994 = vsel %vm2586, %v2622, %v2993
      %v3012 = vunpack.c.l.b16 %v2976
      %v3013 = vunpack.c.l.b16 %v2977
      %v3014 = vunpack.c.l.b16 %v2978
      %v3015 = vunpack.c.l.b16 %v2979
      %v3016 = vunpack.c.l.b16 %v2980
      %v3017 = vunpack.c.l.b16 %v2981
      %v3018 = vunpack.c.l.b16 %v2982
      %v3019 = vunpack.c.l.b16 %v2983
      %v3020 = vunpack.c.l.b16 %v2984
      %v3021 = vunpack.c.l.b16 %v2985
      %v3022 = vunpack.c.l.b16 %v2986
      %v3023 = vunpack.c.l.b16 %v2987
      %v3024 = vunpack.c.l.b16 %v2988
      %v3025 = vunpack.c.l.b16 %v2989
      %v3026 = vunpack.c.l.b16 %v2990
      %v3027 = vunpack.c.l.b16 %v2991
      %v3028 = vpack.c.b16 %v3013, %v3012
      %v3029 = vpack.c.b16 %v3015, %v3014
      %v3030 = vpack.c.b16 %v3017, %v3016
      %v3031 = vpack.c.b16 %v3019, %v3018
      %v3032 = vpack.c.b16 %v3021, %v3020
      %v3033 = vpack.c.b16 %v3023, %v3022
      %v3034 = vpack.c.b16 %v3025, %v3024
      %v3035 = vpack.c.b16 %v3027, %v3026
      %3044 = vmatprep.subr.bf16.mxu0 0
      %3045 = vmatpush1.bf16.msra.mxu0 %v3028
      %3046 = vmatprep.subr.bf16.mxu0 0
      %3047 = vmatpush1.bf16.msra.mxu0 %v3029
      %3048 = vmatprep.subr.bf16.mxu0 0
      %3049 = vmatpush1.bf16.msra.mxu0 %v3030
      %3050 = vmatprep.subr.bf16.mxu0 0
      %3051 = vmatpush1.bf16.msra.mxu0 %v3031
      %3052 = vmatprep.subr.bf16.mxu0 0
      %3053 = vmatpush1.bf16.msra.mxu0 %v3032
      %3054 = vmatprep.subr.bf16.mxu0 0
      %3055 = vmatpush1.bf16.msra.mxu0 %v3033
      %3056 = vmatprep.subr.bf16.mxu0 0
      %3057 = vmatpush1.bf16.msra.mxu0 %v3034
      %3058 = vmatprep.subr.bf16.mxu0 0
      %3059 = vmatpush1.bf16.msra.mxu0 %v3035
      %3060 = vmatprep.subr.bf16.mxu0 0
      %3061 = vmatpush1.bf16.msra.mxu0 0
      %3062 = vmatprep.subr.bf16.mxu0 0
      %3063 = vmatpush1.bf16.msra.mxu0 0
      %3064 = vmatprep.subr.bf16.mxu0 0
      %3065 = vmatpush1.bf16.msra.mxu0 0
      %3066 = vmatprep.subr.bf16.mxu0 0
      %3067 = vmatpush1.bf16.msra.mxu0 0
      %3068 = vmatprep.subr.bf16.mxu0 0
      %3069 = vmatpush1.bf16.msra.mxu0 0
      %3070 = vmatprep.subr.bf16.mxu0 0
      %3071 = vmatpush1.bf16.msra.mxu0 0
      %3072 = vmatprep.subr.bf16.mxu0 0
      %3073 = vmatpush1.bf16.msra.mxu0 0
      %3074 = vmatprep.subr.bf16.mxu0 0
      %3075 = vmatpush1.bf16.msra.mxu0 0
      %3076 = vmatprep.mubr.bf16.mxu0 0
      %3077 = vmatmul.mubr.bf16.gmra.mrb[0].mxu0 %v2591
      %v3078 = vpop.f32.mrb[0].mxu0
      %v3079 = vadd.f32 0.0, %v3078
      %v3080 = vpop.f32.mrb[0].mxu0
      %v3081 = vpop.f32.mrb[0].mxu0
      %v3082 = vadd.f32 0.0, %v3081
      %v3083 = vpop.f32.mrb[0].mxu0
      %3084 = vmatprep.mubr.bf16.mxu0 0
      %3085 = vmatmul.mubr.bf16.gmra.mrb[0].mxu0 %v2593
      %v3086 = vpop.f32.mrb[0].mxu0
      %v3087 = vadd.f32 0.0, %v3086
      %v3088 = vpop.f32.mrb[0].mxu0
      %v3089 = vpop.f32.mrb[0].mxu0
      %v3090 = vadd.f32 0.0, %v3089
      %v3091 = vpop.f32.mrb[0].mxu0
      %3092 = vmatprep.mubr.bf16.mxu0 0
      %3093 = vmatmul.mubr.bf16.gmra.mrb[0].mxu0 %v2595
      %v3094 = vpop.f32.mrb[0].mxu0
      %v3095 = vadd.f32 0.0, %v3094
      %v3096 = vpop.f32.mrb[0].mxu0
      %v3097 = vpop.f32.mrb[0].mxu0
      %v3098 = vadd.f32 0.0, %v3097
      %v3099 = vpop.f32.mrb[0].mxu0
      %3100 = vmatprep.mubr.bf16.mxu0 0
      %3101 = vmatmul.mubr.bf16.gmra.mrb[0].mxu0 %v2597
      %v3102 = vpop.f32.mrb[0].mxu0
      %v3103 = vadd.f32 0.0, %v3102
      %v3104 = vpop.f32.mrb[0].mxu0
      %v3105 = vpop.f32.mrb[0].mxu0
      %v3106 = vadd.f32 0.0, %v3105
      %v3107 = vpop.f32.mrb[0].mxu0
      %3108 = vmatprep.mubr.bf16.mxu0 0
      %3109 = vmatmul.mubr.bf16.gmra.mrb[0].mxu0 %v2599
      %v3110 = vpop.f32.mrb[0].mxu0
      %v3111 = vadd.f32 0.0, %v3110
      %v3112 = vpop.f32.mrb[0].mxu0
      %v3113 = vpop.f32.mrb[0].mxu0
      %v3114 = vadd.f32 0.0, %v3113
      %v3115 = vpop.f32.mrb[0].mxu0
      %3116 = vmatprep.mubr.bf16.mxu0 0
      %3117 = vmatmul.mubr.bf16.gmra.mrb[0].mxu0 %v2601
      %v3118 = vpop.f32.mrb[0].mxu0
      %v3119 = vadd.f32 0.0, %v3118
      %v3120 = vpop.f32.mrb[0].mxu0
      %v3121 = vpop.f32.mrb[0].mxu0
      %v3122 = vadd.f32 0.0, %v3121
      %v3123 = vpop.f32.mrb[0].mxu0
      %3124 = vmatprep.mubr.bf16.mxu0 0
      %3125 = vmatmul.mubr.bf16.gmra.mrb[0].mxu0 %v2603
      %v3126 = vpop.f32.mrb[0].mxu0
      %v3127 = vadd.f32 0.0, %v3126
      %v3128 = vpop.f32.mrb[0].mxu0
      %v3129 = vpop.f32.mrb[0].mxu0
      %v3130 = vadd.f32 0.0, %v3129
      %v3131 = vpop.f32.mrb[0].mxu0
      %3132 = vmatprep.mubr.bf16.mxu0 0
      %3133 = vmatmul.mubr.bf16.gmra.mrb[0].mxu0 %v2605
      %v3134 = vpop.f32.mrb[0].mxu0
      %v3135 = vadd.f32 0.0, %v3134
      %v3136 = vpop.f32.mrb[0].mxu0
      %v3137 = vpop.f32.mrb[0].mxu0
      %v3138 = vadd.f32 0.0, %v3137
      %v3139 = vpop.f32.mrb[0].mxu0
      %3140 = vmatprep.mubr.bf16.mxu0 0
      %3141 = vmatmul.mubr.bf16.gmra.mrb[0].mxu0 %v2607
      %v3142 = vpop.f32.mrb[0].mxu0
      %v3143 = vadd.f32 0.0, %v3142
      %v3144 = vpop.f32.mrb[0].mxu0
      %v3145 = vpop.f32.mrb[0].mxu0
      %v3146 = vadd.f32 0.0, %v3145
      %v3147 = vpop.f32.mrb[0].mxu0
      %3148 = vmatprep.mubr.bf16.mxu0 0
      %3149 = vmatmul.mubr.bf16.gmra.mrb[0].mxu0 %v2609
      %v3150 = vpop.f32.mrb[0].mxu0
      %v3151 = vadd.f32 0.0, %v3150
      %v3152 = vpop.f32.mrb[0].mxu0
      %v3153 = vpop.f32.mrb[0].mxu0
      %v3154 = vadd.f32 0.0, %v3153
      %v3155 = vpop.f32.mrb[0].mxu0
      %3156 = vmatprep.mubr.bf16.mxu0 0
      %3157 = vmatmul.mubr.bf16.gmra.mrb[0].mxu0 %v2611
      %v3158 = vpop.f32.mrb[0].mxu0
      %v3159 = vadd.f32 0.0, %v3158
      %v3160 = vpop.f32.mrb[0].mxu0
      %v3161 = vpop.f32.mrb[0].mxu0
      %v3162 = vadd.f32 0.0, %v3161
      %v3163 = vpop.f32.mrb[0].mxu0
      %3164 = vmatprep.mubr.bf16.mxu0 0
      %3165 = vmatmul.mubr.bf16.gmra.mrb[0].mxu0 %v2613
      %v3166 = vpop.f32.mrb[0].mxu0
      %v3167 = vadd.f32 0.0, %v3166
      %v3168 = vpop.f32.mrb[0].mxu0
      %v3169 = vpop.f32.mrb[0].mxu0
      %v3170 = vadd.f32 0.0, %v3169
      %v3171 = vpop.f32.mrb[0].mxu0
      %3172 = vmatprep.mubr.bf16.mxu0 0
      %3173 = vmatmul.mubr.bf16.gmra.mrb[0].mxu0 %v2615
      %v3174 = vpop.f32.mrb[0].mxu0
      %v3175 = vadd.f32 0.0, %v3174
      %v3176 = vpop.f32.mrb[0].mxu0
      %v3177 = vpop.f32.mrb[0].mxu0
      %v3178 = vadd.f32 0.0, %v3177
      %v3179 = vpop.f32.mrb[0].mxu0
      %3180 = vmatprep.mubr.bf16.mxu0 0
      %3181 = vmatmul.mubr.bf16.gmra.mrb[0].mxu0 %v2617
      %v3182 = vpop.f32.mrb[0].mxu0
      %v3183 = vadd.f32 0.0, %v3182
      %v3184 = vpop.f32.mrb[0].mxu0
      %v3185 = vpop.f32.mrb[0].mxu0
      %v3186 = vadd.f32 0.0, %v3185
      %v3187 = vpop.f32.mrb[0].mxu0
      %3188 = vmatprep.mubr.bf16.mxu0 0
      %3189 = vmatmul.mubr.bf16.gmra.mrb[0].mxu0 %v2619
      %v3190 = vpop.f32.mrb[0].mxu0
      %v3191 = vadd.f32 0.0, %v3190
      %v3192 = vpop.f32.mrb[0].mxu0
      %v3193 = vpop.f32.mrb[0].mxu0
      %v3194 = vadd.f32 0.0, %v3193
      %v3195 = vpop.f32.mrb[0].mxu0
      %3196 = vmatprep.mubr.bf16.mxu0 0
      %3197 = vmatmul.mubr.bf16.gmra.mrb[0].mxu0 %v2621
      %v3198 = vpop.f32.mrb[0].mxu0
      %v3199 = vadd.f32 0.0, %v3198
      %v3200 = vpop.f32.mrb[0].mxu0
      %v3201 = vpop.f32.mrb[0].mxu0
      %v3202 = vadd.f32 0.0, %v3201
      %v3203 = vpop.f32.mrb[0].mxu0
      %3204 = vmatprep.mubr.bf16.mxu0 0
      %3205 = vmatmul.mubr.bf16.gmra.mrb[0].mxu0 %v2623
      %v3206 = vpop.f32.mrb[0].mxu0
      %v3207 = vadd.f32 0.0, %v3206
      %v3208 = vpop.f32.mrb[0].mxu0
      %v3209 = vpop.f32.mrb[0].mxu0
      %v3210 = vadd.f32 0.0, %v3209
      %v3211 = vpop.f32.mrb[0].mxu0
      %3212 = vmatprep.mubr.bf16.mxu0 0
      %3213 = vmatmul.mubr.bf16.gmra.mrb[0].mxu0 %v2994
      %v3214 = vpop.f32.mrb[0].mxu0
      %v3215 = vadd.f32 0.0, %v3214
      %v3216 = vpop.f32.mrb[0].mxu0
      %v3217 = vpop.f32.mrb[0].mxu0
      %v3218 = vadd.f32 0.0, %v3217
      %v3219 = vpop.f32.mrb[0].mxu0
      %3220 = vdwg.mxu0
      %v3221 = vadd.f32 %v2939, %v3079
      %v3222 = vadd.f32 %v2940, %v3082
      %v3223 = vadd.f32 %v2941, %v3087
      %v3224 = vadd.f32 %v2942, %v3090
      %v3225 = vadd.f32 %v2943, %v3095
      %v3226 = vadd.f32 %v2944, %v3098
      %v3227 = vadd.f32 %v2945, %v3103
      %v3228 = vadd.f32 %v2946, %v3106
      %v3229 = vadd.f32 %v2947, %v3111
      %v3230 = vadd.f32 %v2948, %v3114
      %v3231 = vadd.f32 %v2949, %v3119
      %v3232 = vadd.f32 %v2950, %v3122
      %v3233 = vadd.f32 %v2951, %v3127
      %v3234 = vadd.f32 %v2952, %v3130
      %v3235 = vadd.f32 %v2953, %v3135
      %v3236 = vadd.f32 %v2954, %v3138
      %v3237 = vadd.f32 %v2955, %v3143
      %v3238 = vadd.f32 %v2956, %v3146
      %v3239 = vadd.f32 %v2957, %v3151
      %v3240 = vadd.f32 %v2958, %v3154
      %v3241 = vadd.f32 %v2959, %v3159
      %v3242 = vadd.f32 %v2960, %v3162
      %v3243 = vadd.f32 %v2961, %v3167
      %v3244 = vadd.f32 %v2962, %v3170
      %v3245 = vadd.f32 %v2963, %v3175
      %v3246 = vadd.f32 %v2964, %v3178
      %v3247 = vadd.f32 %v2965, %v3183
      %v3248 = vadd.f32 %v2966, %v3186
      %v3249 = vadd.f32 %v2967, %v3191
      %v3250 = vadd.f32 %v2968, %v3194
      %v3251 = vadd.f32 %v2969, %v3199
      %v3252 = vadd.f32 %v2970, %v3202
      %v3253 = vadd.f32 %v2971, %v3207
      %v3254 = vadd.f32 %v2972, %v3210
      %v3255 = vadd.f32 %v2973, %v3215
      %v3256 = vadd.f32 %v2974, %v3218
      %3257 = vst [vmem:[#allocation2] sm:$0xff] %v3221
      %3258 = vst [vmem:[#allocation2 + $0x8] sm:$0xff] %v3222
      %3259 = vst [vmem:[#allocation2 + $0x10] sm:$0xff] %v3223
      %3260 = vst [vmem:[#allocation2 + $0x18] sm:$0xff] %v3224
      %3261 = vst [vmem:[#allocation2 + $0x20] sm:$0xff] %v3225
      %3262 = vst [vmem:[#allocation2 + $0x28] sm:$0xff] %v3226
      %3263 = vst [vmem:[#allocation2 + $0x30] sm:$0xff] %v3227
      %3264 = vst [vmem:[#allocation2 + $0x38] sm:$0xff] %v3228
      %3265 = vst [vmem:[#allocation2 + $0x40] sm:$0xff] %v3229
      %3266 = vst [vmem:[#allocation2 + $0x48] sm:$0xff] %v3230
      %3267 = vst [vmem:[#allocation2 + $0x50] sm:$0xff] %v3231
      %3268 = vst [vmem:[#allocation2 + $0x58] sm:$0xff] %v3232
      %3269 = vst [vmem:[#allocation2 + $0x60] sm:$0xff] %v3233
      %3270 = vst [vmem:[#allocation2 + $0x68] sm:$0xff] %v3234
      %3271 = vst [vmem:[#allocation2 + $0x70] sm:$0xff] %v3235
      %3272 = vst [vmem:[#allocation2 + $0x78] sm:$0xff] %v3236
      %3273 = vst [vmem:[#allocation2 + $0x80] sm:$0xff] %v3237
      %3274 = vst [vmem:[#allocation2 + $0x88] sm:$0xff] %v3238
      %3275 = vst [vmem:[#allocation2 + $0x90] sm:$0xff] %v3239
      %3276 = vst [vmem:[#allocation2 + $0x98] sm:$0xff] %v3240
      %3277 = vst [vmem:[#allocation2 + $0xa0] sm:$0xff] %v3241
      %3278 = vst [vmem:[#allocation2 + $0xa8] sm:$0xff] %v3242
      %3279 = vst [vmem:[#allocation2 + $0xb0] sm:$0xff] %v3243
      %3280 = vst [vmem:[#allocation2 + $0xb8] sm:$0xff] %v3244
      %3281 = vst [vmem:[#allocation2 + $0xc0] sm:$0xff] %v3245
      %3282 = vst [vmem:[#allocation2 + $0xc8] sm:$0xff] %v3246
      %3283 = vst [vmem:[#allocation2 + $0xd0] sm:$0xff] %v3247
      %3284 = vst [vmem:[#allocation2 + $0xd8] sm:$0xff] %v3248
      %3285 = vst [vmem:[#allocation2 + $0xe0] sm:$0xff] %v3249
      %3286 = vst [vmem:[#allocation2 + $0xe8] sm:$0xff] %v3250
      %3287 = vst [vmem:[#allocation2 + $0xf0] sm:$0xff] %v3251
      %3288 = vst [vmem:[#allocation2 + $0xf8] sm:$0xff] %v3252
      %3289 = vst [vmem:[#allocation2 + $0x100] sm:$0xff] %v3253
      %3290 = vst [vmem:[#allocation2 + $0x108] sm:$0xff] %v3254
      %3291 = vst [vmem:[#allocation2 + $0x110] sm:$0xff] %v3255
      %3292 = vst [vmem:[#allocation2 + $0x118] sm:$0xff] %v3256
      %v3293 = vld [vmem:[#allocation2] sm:$0xff]
      %v3294 = vld [vmem:[#allocation2 + $0x8] sm:$0xff]
      %v3295 = vld [vmem:[#allocation2 + $0x10] sm:$0xff]
      %v3296 = vld [vmem:[#allocation2 + $0x18] sm:$0xff]
      %v3297 = vld [vmem:[#allocation2 + $0x20] sm:$0xff]
      %v3298 = vld [vmem:[#allocation2 + $0x28] sm:$0xff]
      %v3299 = vld [vmem:[#allocation2 + $0x30] sm:$0xff]
      %v3300 = vld [vmem:[#allocation2 + $0x38] sm:$0xff]
      %v3301 = vld [vmem:[#allocation2 + $0x40] sm:$0xff]
      %v3302 = vld [vmem:[#allocation2 + $0x48] sm:$0xff]
      %v3303 = vld [vmem:[#allocation2 + $0x50] sm:$0xff]
      %v3304 = vld [vmem:[#allocation2 + $0x58] sm:$0xff]
      %v3305 = vld [vmem:[#allocation2 + $0x60] sm:$0xff]
      %v3306 = vld [vmem:[#allocation2 + $0x68] sm:$0xff]
      %v3307 = vld [vmem:[#allocation2 + $0x70] sm:$0xff]
      %v3308 = vld [vmem:[#allocation2 + $0x78] sm:$0xff]
      %v3309 = vld [vmem:[#allocation2 + $0x80] sm:$0xff]
      %v3310 = vld [vmem:[#allocation2 + $0x88] sm:$0xff]
      %v3311 = vld [vmem:[#allocation2 + $0x90] sm:$0xff]
      %v3312 = vld [vmem:[#allocation2 + $0x98] sm:$0xff]
      %v3313 = vld [vmem:[#allocation2 + $0xa0] sm:$0xff]
      %v3314 = vld [vmem:[#allocation2 + $0xa8] sm:$0xff]
      %v3315 = vld [vmem:[#allocation2 + $0xb0] sm:$0xff]
      %v3316 = vld [vmem:[#allocation2 + $0xb8] sm:$0xff]
      %v3317 = vld [vmem:[#allocation2 + $0xc0] sm:$0xff]
      %v3318 = vld [vmem:[#allocation2 + $0xc8] sm:$0xff]
      %v3319 = vld [vmem:[#allocation2 + $0xd0] sm:$0xff]
      %v3320 = vld [vmem:[#allocation2 + $0xd8] sm:$0xff]
      %v3321 = vld [vmem:[#allocation2 + $0xe0] sm:$0xff]
      %v3322 = vld [vmem:[#allocation2 + $0xe8] sm:$0xff]
      %v3323 = vld [vmem:[#allocation2 + $0xf0] sm:$0xff]
      %v3324 = vld [vmem:[#allocation2 + $0xf8] sm:$0xff]
      %v3325 = vld [vmem:[#allocation2 + $0x100] sm:$0xff]
      %v3326 = vld [vmem:[#allocation2 + $0x108] sm:$0xff]
      %v3327 = vld [vmem:[#allocation2 + $0x110] sm:$0xff]
      %v3328 = vld [vmem:[#allocation2 + $0x118] sm:$0xff]
      %s3329 = scalar_lea.vmem %s1, 448
      %v3330 = vld [vmem:[%s3329] sm:$0xf]
      %v3331 = vld [vmem:[%s3329 + $0x4] sm:$0xf]
      %v3332 = vld [vmem:[%s3329 + $0x8] sm:$0xf]
      %v3333 = vld [vmem:[%s3329 + $0xc] sm:$0xf]
      %v3334 = vld [vmem:[%s3329 + $0x10] sm:$0xf]
      %v3335 = vld [vmem:[%s3329 + $0x14] sm:$0xf]
      %v3336 = vld [vmem:[%s3329 + $0x18] sm:$0xf]
      %v3337 = vld [vmem:[%s3329 + $0x1c] sm:$0xf]
      %v3338 = vld [vmem:[%s3329 + $0x20] sm:$0xf]
      %v3339 = vld [vmem:[%s3329 + $0x24] sm:$0xf]
      %v3340 = vld [vmem:[%s3329 + $0x28] sm:$0xf]
      %v3341 = vld [vmem:[%s3329 + $0x2c] sm:$0xf]
      %v3342 = vld [vmem:[%s3329 + $0x30] sm:$0xf]
      %v3343 = vld [vmem:[%s3329 + $0x34] sm:$0xf]
      %v3344 = vld [vmem:[%s3329 + $0x38] sm:$0xf]
      %v3345 = vld [vmem:[%s3329 + $0x3c] sm:$0xf]
      %vm3346 = vsmask.f32 5376
      %v3347 = vrot.slane %v860, 2
      %v3348 = vrot.slane %v856, 3
      %v3349 = vor.u32 %v3347, %v3348
      %v3350 = vrot.slane %v868, 2
      %v3351 = vrot.slane %v864, 3
      %v3352 = vor.u32 %v3350, %v3351
      %v3353 = vsel %vm3346, %v3349, %v3352
      %v3354 = vrot.slane %v876, 2
      %v3355 = vrot.slane %v872, 3
      %v3356 = vor.u32 %v3354, %v3355
      %v3357 = vsel %vm3346, %v3352, %v3356
      %v3358 = vrot.slane %v884, 2
      %v3359 = vrot.slane %v880, 3
      %v3360 = vor.u32 %v3358, %v3359
      %v3361 = vsel %vm3346, %v3356, %v3360
      %v3362 = vrot.slane %v892, 2
      %v3363 = vrot.slane %v888, 3
      %v3364 = vor.u32 %v3362, %v3363
      %v3365 = vsel %vm3346, %v3360, %v3364
      %v3366 = vrot.slane %v900, 2
      %v3367 = vrot.slane %v896, 3
      %v3368 = vor.u32 %v3366, %v3367
      %v3369 = vsel %vm3346, %v3364, %v3368
      %v3370 = vrot.slane %v908, 2
      %v3371 = vrot.slane %v904, 3
      %v3372 = vor.u32 %v3370, %v3371
      %v3373 = vsel %vm3346, %v3368, %v3372
      %v3374 = vrot.slane %v916, 2
      %v3375 = vrot.slane %v912, 3
      %v3376 = vor.u32 %v3374, %v3375
      %v3377 = vsel %vm3346, %v3372, %v3376
      %v3378 = vrot.slane %v924, 2
      %v3379 = vrot.slane %v920, 3
      %v3380 = vor.u32 %v3378, %v3379
      %v3381 = vsel %vm3346, %v3376, %v3380
      %v3382 = vrot.slane %v932, 2
      %v3383 = vrot.slane %v928, 3
      %v3384 = vor.u32 %v3382, %v3383
      %v3385 = vsel %vm3346, %v3380, %v3384
      %v3386 = vrot.slane %v940, 2
      %v3387 = vrot.slane %v936, 3
      %v3388 = vor.u32 %v3386, %v3387
      %v3389 = vsel %vm3346, %v3384, %v3388
      %v3390 = vrot.slane %v948, 2
      %v3391 = vrot.slane %v944, 3
      %v3392 = vor.u32 %v3390, %v3391
      %v3393 = vsel %vm3346, %v3388, %v3392
      %v3394 = vrot.slane %v956, 2
      %v3395 = vrot.slane %v952, 3
      %v3396 = vor.u32 %v3394, %v3395
      %v3397 = vsel %vm3346, %v3392, %v3396
      %v3398 = vrot.slane %v964, 2
      %v3399 = vrot.slane %v960, 3
      %v3400 = vor.u32 %v3398, %v3399
      %v3401 = vsel %vm3346, %v3396, %v3400
      %v3402 = vrot.slane %v972, 2
      %v3403 = vrot.slane %v968, 3
      %v3404 = vor.u32 %v3402, %v3403
      %v3405 = vsel %vm3346, %v3400, %v3404
      %v3406 = vrot.slane %v980, 2
      %v3407 = vrot.slane %v976, 3
      %v3408 = vor.u32 %v3406, %v3407
      %v3409 = vsel %vm3346, %v3404, %v3408
      %v3410 = vrot.slane %v2203, 2
      %v3411 = vrot.slane %v984, 3
      %v3412 = vor.u32 %v3410, %v3411
      %v3413 = vsel %vm3346, %v3408, %v3412
      %v3414 = vrot.slane %v2210, 2
      %v3415 = vrot.slane %v2213, 3
      %v3416 = vor.u32 %v3414, %v3415
      %v3417 = vsel %vm3346, %v3412, %v3416
      %v3419 = vshrl.u32 %v508, 16
      %v3421 = vrot.slane %v3419, 2
      %v3422 = vshll.u32 %v508, 16
      %v3424 = vrot.slane %v3422, 3
      %v3425 = vor.u32 %v3421, %v3424
      %v3426 = vsel %vm3346, %v3416, %v3425
      %v3461 = vunpack.c.l.b16 %v3330
      %v3462 = vunpack.c.l.b16 %v3331
      %v3463 = vunpack.c.l.b16 %v3332
      %v3464 = vunpack.c.l.b16 %v3333
      %v3465 = vunpack.c.l.b16 %v3334
      %v3466 = vunpack.c.l.b16 %v3335
      %v3467 = vunpack.c.l.b16 %v3336
      %v3468 = vunpack.c.l.b16 %v3337
      %v3469 = vunpack.c.l.b16 %v3338
      %v3470 = vunpack.c.l.b16 %v3339
      %v3471 = vunpack.c.l.b16 %v3340
      %v3472 = vunpack.c.l.b16 %v3341
      %v3473 = vunpack.c.l.b16 %v3342
      %v3474 = vunpack.c.l.b16 %v3343
      %v3475 = vunpack.c.l.b16 %v3344
      %v3476 = vunpack.c.l.b16 %v3345
      %v3477 = vpack.c.b16 %v3462, %v3461
      %v3478 = vpack.c.b16 %v3464, %v3463
      %v3479 = vpack.c.b16 %v3466, %v3465
      %v3480 = vpack.c.b16 %v3468, %v3467
      %v3481 = vpack.c.b16 %v3470, %v3469
      %v3482 = vpack.c.b16 %v3472, %v3471
      %v3483 = vpack.c.b16 %v3474, %v3473
      %v3484 = vpack.c.b16 %v3476, %v3475
      %3493 = vmatprep.subr.bf16.mxu0 0
      %3494 = vmatpush1.bf16.msra.mxu0 %v3477
      %3495 = vmatprep.subr.bf16.mxu0 0
      %3496 = vmatpush1.bf16.msra.mxu0 %v3478
      %3497 = vmatprep.subr.bf16.mxu0 0
      %3498 = vmatpush1.bf16.msra.mxu0 %v3479
      %3499 = vmatprep.subr.bf16.mxu0 0
      %3500 = vmatpush1.bf16.msra.mxu0 %v3480
      %3501 = vmatprep.subr.bf16.mxu0 0
      %3502 = vmatpush1.bf16.msra.mxu0 %v3481
      %3503 = vmatprep.subr.bf16.mxu0 0
      %3504 = vmatpush1.bf16.msra.mxu0 %v3482
      %3505 = vmatprep.subr.bf16.mxu0 0
      %3506 = vmatpush1.bf16.msra.mxu0 %v3483
      %3507 = vmatprep.subr.bf16.mxu0 0
      %3508 = vmatpush1.bf16.msra.mxu0 %v3484
      %3509 = vmatprep.subr.bf16.mxu0 0
      %3510 = vmatpush1.bf16.msra.mxu0 0
      %3511 = vmatprep.subr.bf16.mxu0 0
      %3512 = vmatpush1.bf16.msra.mxu0 0
      %3513 = vmatprep.subr.bf16.mxu0 0
      %3514 = vmatpush1.bf16.msra.mxu0 0
      %3515 = vmatprep.subr.bf16.mxu0 0
      %3516 = vmatpush1.bf16.msra.mxu0 0
      %3517 = vmatprep.subr.bf16.mxu0 0
      %3518 = vmatpush1.bf16.msra.mxu0 0
      %3519 = vmatprep.subr.bf16.mxu0 0
      %3520 = vmatpush1.bf16.msra.mxu0 0
      %3521 = vmatprep.subr.bf16.mxu0 0
      %3522 = vmatpush1.bf16.msra.mxu0 0
      %3523 = vmatprep.subr.bf16.mxu0 0
      %3524 = vmatpush1.bf16.msra.mxu0 0
      %3525 = vmatprep.mubr.bf16.mxu0 0
      %3526 = vmatmul.mubr.bf16.gmra.mrb[0].mxu0 %v3353
      %v3527 = vpop.f32.mrb[0].mxu0
      %v3528 = vadd.f32 0.0, %v3527
      %v3529 = vpop.f32.mrb[0].mxu0
      %v3530 = vpop.f32.mrb[0].mxu0
      %v3531 = vadd.f32 0.0, %v3530
      %v3532 = vpop.f32.mrb[0].mxu0
      %3533 = vmatprep.mubr.bf16.mxu0 0
      %3534 = vmatmul.mubr.bf16.gmra.mrb[0].mxu0 %v3357
      %v3535 = vpop.f32.mrb[0].mxu0
      %v3536 = vadd.f32 0.0, %v3535
      %v3537 = vpop.f32.mrb[0].mxu0
      %v3538 = vpop.f32.mrb[0].mxu0
      %v3539 = vadd.f32 0.0, %v3538
      %v3540 = vpop.f32.mrb[0].mxu0
      %3541 = vmatprep.mubr.bf16.mxu0 0
      %3542 = vmatmul.mubr.bf16.gmra.mrb[0].mxu0 %v3361
      %v3543 = vpop.f32.mrb[0].mxu0
      %v3544 = vadd.f32 0.0, %v3543
      %v3545 = vpop.f32.mrb[0].mxu0
      %v3546 = vpop.f32.mrb[0].mxu0
      %v3547 = vadd.f32 0.0, %v3546
      %v3548 = vpop.f32.mrb[0].mxu0
      %3549 = vmatprep.mubr.bf16.mxu0 0
      %3550 = vmatmul.mubr.bf16.gmra.mrb[0].mxu0 %v3365
      %v3551 = vpop.f32.mrb[0].mxu0
      %v3552 = vadd.f32 0.0, %v3551
      %v3553 = vpop.f32.mrb[0].mxu0
      %v3554 = vpop.f32.mrb[0].mxu0
      %v3555 = vadd.f32 0.0, %v3554
      %v3556 = vpop.f32.mrb[0].mxu0
      %3557 = vmatprep.mubr.bf16.mxu0 0
      %3558 = vmatmul.mubr.bf16.gmra.mrb[0].mxu0 %v3369
      %v3559 = vpop.f32.mrb[0].mxu0
      %v3560 = vadd.f32 0.0, %v3559
      %v3561 = vpop.f32.mrb[0].mxu0
      %v3562 = vpop.f32.mrb[0].mxu0
      %v3563 = vadd.f32 0.0, %v3562
      %v3564 = vpop.f32.mrb[0].mxu0
      %3565 = vmatprep.mubr.bf16.mxu0 0
      %3566 = vmatmul.mubr.bf16.gmra.mrb[0].mxu0 %v3373
      %v3567 = vpop.f32.mrb[0].mxu0
      %v3568 = vadd.f32 0.0, %v3567
      %v3569 = vpop.f32.mrb[0].mxu0
      %v3570 = vpop.f32.mrb[0].mxu0
      %v3571 = vadd.f32 0.0, %v3570
      %v3572 = vpop.f32.mrb[0].mxu0
      %3573 = vmatprep.mubr.bf16.mxu0 0
      %3574 = vmatmul.mubr.bf16.gmra.mrb[0].mxu0 %v3377
      %v3575 = vpop.f32.mrb[0].mxu0
      %v3576 = vadd.f32 0.0, %v3575
      %v3577 = vpop.f32.mrb[0].mxu0
      %v3578 = vpop.f32.mrb[0].mxu0
      %v3579 = vadd.f32 0.0, %v3578
      %v3580 = vpop.f32.mrb[0].mxu0
      %3581 = vmatprep.mubr.bf16.mxu0 0
      %3582 = vmatmul.mubr.bf16.gmra.mrb[0].mxu0 %v3381
      %v3583 = vpop.f32.mrb[0].mxu0
      %v3584 = vadd.f32 0.0, %v3583
      %v3585 = vpop.f32.mrb[0].mxu0
      %v3586 = vpop.f32.mrb[0].mxu0
      %v3587 = vadd.f32 0.0, %v3586
      %v3588 = vpop.f32.mrb[0].mxu0
      %3589 = vmatprep.mubr.bf16.mxu0 0
      %3590 = vmatmul.mubr.bf16.gmra.mrb[0].mxu0 %v3385
      %v3591 = vpop.f32.mrb[0].mxu0
      %v3592 = vadd.f32 0.0, %v3591
      %v3593 = vpop.f32.mrb[0].mxu0
      %v3594 = vpop.f32.mrb[0].mxu0
      %v3595 = vadd.f32 0.0, %v3594
      %v3596 = vpop.f32.mrb[0].mxu0
      %3597 = vmatprep.mubr.bf16.mxu0 0
      %3598 = vmatmul.mubr.bf16.gmra.mrb[0].mxu0 %v3389
      %v3599 = vpop.f32.mrb[0].mxu0
      %v3600 = vadd.f32 0.0, %v3599
      %v3601 = vpop.f32.mrb[0].mxu0
      %v3602 = vpop.f32.mrb[0].mxu0
      %v3603 = vadd.f32 0.0, %v3602
      %v3604 = vpop.f32.mrb[0].mxu0
      %3605 = vmatprep.mubr.bf16.mxu0 0
      %3606 = vmatmul.mubr.bf16.gmra.mrb[0].mxu0 %v3393
      %v3607 = vpop.f32.mrb[0].mxu0
      %v3608 = vadd.f32 0.0, %v3607
      %v3609 = vpop.f32.mrb[0].mxu0
      %v3610 = vpop.f32.mrb[0].mxu0
      %v3611 = vadd.f32 0.0, %v3610
      %v3612 = vpop.f32.mrb[0].mxu0
      %3613 = vmatprep.mubr.bf16.mxu0 0
      %3614 = vmatmul.mubr.bf16.gmra.mrb[0].mxu0 %v3397
      %v3615 = vpop.f32.mrb[0].mxu0
      %v3616 = vadd.f32 0.0, %v3615
      %v3617 = vpop.f32.mrb[0].mxu0
      %v3618 = vpop.f32.mrb[0].mxu0
      %v3619 = vadd.f32 0.0, %v3618
      %v3620 = vpop.f32.mrb[0].mxu0
      %3621 = vmatprep.mubr.bf16.mxu0 0
      %3622 = vmatmul.mubr.bf16.gmra.mrb[0].mxu0 %v3401
      %v3623 = vpop.f32.mrb[0].mxu0
      %v3624 = vadd.f32 0.0, %v3623
      %v3625 = vpop.f32.mrb[0].mxu0
      %v3626 = vpop.f32.mrb[0].mxu0
      %v3627 = vadd.f32 0.0, %v3626
      %v3628 = vpop.f32.mrb[0].mxu0
      %3629 = vmatprep.mubr.bf16.mxu0 0
      %3630 = vmatmul.mubr.bf16.gmra.mrb[0].mxu0 %v3405
      %v3631 = vpop.f32.mrb[0].mxu0
      %v3632 = vadd.f32 0.0, %v3631
      %v3633 = vpop.f32.mrb[0].mxu0
      %v3634 = vpop.f32.mrb[0].mxu0
      %v3635 = vadd.f32 0.0, %v3634
      %v3636 = vpop.f32.mrb[0].mxu0
      %3637 = vmatprep.mubr.bf16.mxu0 0
      %3638 = vmatmul.mubr.bf16.gmra.mrb[0].mxu0 %v3409
      %v3639 = vpop.f32.mrb[0].mxu0
      %v3640 = vadd.f32 0.0, %v3639
      %v3641 = vpop.f32.mrb[0].mxu0
      %v3642 = vpop.f32.mrb[0].mxu0
      %v3643 = vadd.f32 0.0, %v3642
      %v3644 = vpop.f32.mrb[0].mxu0
      %3645 = vmatprep.mubr.bf16.mxu0 0
      %3646 = vmatmul.mubr.bf16.gmra.mrb[0].mxu0 %v3413
      %v3647 = vpop.f32.mrb[0].mxu0
      %v3648 = vadd.f32 0.0, %v3647
      %v3649 = vpop.f32.mrb[0].mxu0
      %v3650 = vpop.f32.mrb[0].mxu0
      %v3651 = vadd.f32 0.0, %v3650
      %v3652 = vpop.f32.mrb[0].mxu0
      %3653 = vmatprep.mubr.bf16.mxu0 0
      %3654 = vmatmul.mubr.bf16.gmra.mrb[0].mxu0 %v3417
      %v3655 = vpop.f32.mrb[0].mxu0
      %v3656 = vadd.f32 0.0, %v3655
      %v3657 = vpop.f32.mrb[0].mxu0
      %v3658 = vpop.f32.mrb[0].mxu0
      %v3659 = vadd.f32 0.0, %v3658
      %v3660 = vpop.f32.mrb[0].mxu0
      %3661 = vmatprep.mubr.bf16.mxu0 0
      %3662 = vmatmul.mubr.bf16.gmra.mrb[0].mxu0 %v3426
      %v3663 = vpop.f32.mrb[0].mxu0
      %v3664 = vadd.f32 0.0, %v3663
      %v3665 = vpop.f32.mrb[0].mxu0
      %v3666 = vpop.f32.mrb[0].mxu0
      %v3667 = vadd.f32 0.0, %v3666
      %v3668 = vpop.f32.mrb[0].mxu0
      %3669 = vdwg.mxu0
      %v3670 = vadd.f32 %v3293, %v3528
      %v3671 = vadd.f32 %v3294, %v3531
      %v3672 = vadd.f32 %v3295, %v3536
      %v3673 = vadd.f32 %v3296, %v3539
      %v3674 = vadd.f32 %v3297, %v3544
      %v3675 = vadd.f32 %v3298, %v3547
      %v3676 = vadd.f32 %v3299, %v3552
      %v3677 = vadd.f32 %v3300, %v3555
      %v3678 = vadd.f32 %v3301, %v3560
      %v3679 = vadd.f32 %v3302, %v3563
      %v3680 = vadd.f32 %v3303, %v3568
      %v3681 = vadd.f32 %v3304, %v3571
      %v3682 = vadd.f32 %v3305, %v3576
      %v3683 = vadd.f32 %v3306, %v3579
      %v3684 = vadd.f32 %v3307, %v3584
      %v3685 = vadd.f32 %v3308, %v3587
      %v3686 = vadd.f32 %v3309, %v3592
      %v3687 = vadd.f32 %v3310, %v3595
      %v3688 = vadd.f32 %v3311, %v3600
      %v3689 = vadd.f32 %v3312, %v3603
      %v3690 = vadd.f32 %v3313, %v3608
      %v3691 = vadd.f32 %v3314, %v3611
      %v3692 = vadd.f32 %v3315, %v3616
      %v3693 = vadd.f32 %v3316, %v3619
      %v3694 = vadd.f32 %v3317, %v3624
      %v3695 = vadd.f32 %v3318, %v3627
      %v3696 = vadd.f32 %v3319, %v3632
      %v3697 = vadd.f32 %v3320, %v3635
      %v3698 = vadd.f32 %v3321, %v3640
      %v3699 = vadd.f32 %v3322, %v3643
      %v3700 = vadd.f32 %v3323, %v3648
      %v3701 = vadd.f32 %v3324, %v3651
      %v3702 = vadd.f32 %v3325, %v3656
      %v3703 = vadd.f32 %v3326, %v3659
      %v3704 = vadd.f32 %v3327, %v3664
      %v3705 = vadd.f32 %v3328, %v3667
      %3706 = vst [vmem:[#allocation2] sm:$0xff] %v3670
      %3707 = vst [vmem:[#allocation2 + $0x8] sm:$0xff] %v3671
      %3708 = vst [vmem:[#allocation2 + $0x10] sm:$0xff] %v3672
      %3709 = vst [vmem:[#allocation2 + $0x18] sm:$0xff] %v3673
      %3710 = vst [vmem:[#allocation2 + $0x20] sm:$0xff] %v3674
      %3711 = vst [vmem:[#allocation2 + $0x28] sm:$0xff] %v3675
      %3712 = vst [vmem:[#allocation2 + $0x30] sm:$0xff] %v3676
      %3713 = vst [vmem:[#allocation2 + $0x38] sm:$0xff] %v3677
      %3714 = vst [vmem:[#allocation2 + $0x40] sm:$0xff] %v3678
      %3715 = vst [vmem:[#allocation2 + $0x48] sm:$0xff] %v3679
      %3716 = vst [vmem:[#allocation2 + $0x50] sm:$0xff] %v3680
      %3717 = vst [vmem:[#allocation2 + $0x58] sm:$0xff] %v3681
      %3718 = vst [vmem:[#allocation2 + $0x60] sm:$0xff] %v3682
      %3719 = vst [vmem:[#allocation2 + $0x68] sm:$0xff] %v3683
      %3720 = vst [vmem:[#allocation2 + $0x70] sm:$0xff] %v3684
      %3721 = vst [vmem:[#allocation2 + $0x78] sm:$0xff] %v3685
      %3722 = vst [vmem:[#allocation2 + $0x80] sm:$0xff] %v3686
      %3723 = vst [vmem:[#allocation2 + $0x88] sm:$0xff] %v3687
      %3724 = vst [vmem:[#allocation2 + $0x90] sm:$0xff] %v3688
      %3725 = vst [vmem:[#allocation2 + $0x98] sm:$0xff] %v3689
      %3726 = vst [vmem:[#allocation2 + $0xa0] sm:$0xff] %v3690
      %3727 = vst [vmem:[#allocation2 + $0xa8] sm:$0xff] %v3691
      %3728 = vst [vmem:[#allocation2 + $0xb0] sm:$0xff] %v3692
      %3729 = vst [vmem:[#allocation2 + $0xb8] sm:$0xff] %v3693
      %3730 = vst [vmem:[#allocation2 + $0xc0] sm:$0xff] %v3694
      %3731 = vst [vmem:[#allocation2 + $0xc8] sm:$0xff] %v3695
      %3732 = vst [vmem:[#allocation2 + $0xd0] sm:$0xff] %v3696
      %3733 = vst [vmem:[#allocation2 + $0xd8] sm:$0xff] %v3697
      %3734 = vst [vmem:[#allocation2 + $0xe0] sm:$0xff] %v3698
      %3735 = vst [vmem:[#allocation2 + $0xe8] sm:$0xff] %v3699
      %3736 = vst [vmem:[#allocation2 + $0xf0] sm:$0xff] %v3700
      %3737 = vst [vmem:[#allocation2 + $0xf8] sm:$0xff] %v3701
      %3738 = vst [vmem:[#allocation2 + $0x100] sm:$0xff] %v3702
      %3739 = vst [vmem:[#allocation2 + $0x108] sm:$0xff] %v3703
      %3740 = vst [vmem:[#allocation2 + $0x110] sm:$0xff] %v3704
      %3741 = vst [vmem:[#allocation2 + $0x118] sm:$0xff] %v3705
      %v3742 = vld [vmem:[#allocation2] sm:$0xff]
      %v3743 = vld [vmem:[#allocation2 + $0x8] sm:$0xff]
      %v3744 = vld [vmem:[#allocation2 + $0x10] sm:$0xff]
      %v3745 = vld [vmem:[#allocation2 + $0x18] sm:$0xff]
      %v3746 = vld [vmem:[#allocation2 + $0x20] sm:$0xff]
      %v3747 = vld [vmem:[#allocation2 + $0x28] sm:$0xff]
      %v3748 = vld [vmem:[#allocation2 + $0x30] sm:$0xff]
      %v3749 = vld [vmem:[#allocation2 + $0x38] sm:$0xff]
      %v3750 = vld [vmem:[#allocation2 + $0x40] sm:$0xff]
      %v3751 = vld [vmem:[#allocation2 + $0x48] sm:$0xff]
      %v3752 = vld [vmem:[#allocation2 + $0x50] sm:$0xff]
      %v3753 = vld [vmem:[#allocation2 + $0x58] sm:$0xff]
      %v3754 = vld [vmem:[#allocation2 + $0x60] sm:$0xff]
      %v3755 = vld [vmem:[#allocation2 + $0x68] sm:$0xff]
      %v3756 = vld [vmem:[#allocation2 + $0x70] sm:$0xff]
      %v3757 = vld [vmem:[#allocation2 + $0x78] sm:$0xff]
      %v3758 = vld [vmem:[#allocation2 + $0x80] sm:$0xff]
      %v3759 = vld [vmem:[#allocation2 + $0x88] sm:$0xff]
      %v3760 = vld [vmem:[#allocation2 + $0x90] sm:$0xff]
      %v3761 = vld [vmem:[#allocation2 + $0x98] sm:$0xff]
      %v3762 = vld [vmem:[#allocation2 + $0xa0] sm:$0xff]
      %v3763 = vld [vmem:[#allocation2 + $0xa8] sm:$0xff]
      %v3764 = vld [vmem:[#allocation2 + $0xb0] sm:$0xff]
      %v3765 = vld [vmem:[#allocation2 + $0xb8] sm:$0xff]
      %v3766 = vld [vmem:[#allocation2 + $0xc0] sm:$0xff]
      %v3767 = vld [vmem:[#allocation2 + $0xc8] sm:$0xff]
      %v3768 = vld [vmem:[#allocation2 + $0xd0] sm:$0xff]
      %v3769 = vld [vmem:[#allocation2 + $0xd8] sm:$0xff]
      %v3770 = vld [vmem:[#allocation2 + $0xe0] sm:$0xff]
      %v3771 = vld [vmem:[#allocation2 + $0xe8] sm:$0xff]
      %v3772 = vld [vmem:[#allocation2 + $0xf0] sm:$0xff]
      %v3773 = vld [vmem:[#allocation2 + $0xf8] sm:$0xff]
      %v3774 = vld [vmem:[#allocation2 + $0x100] sm:$0xff]
      %v3775 = vld [vmem:[#allocation2 + $0x108] sm:$0xff]
      %v3776 = vld [vmem:[#allocation2 + $0x110] sm:$0xff]
      %v3777 = vld [vmem:[#allocation2 + $0x118] sm:$0xff]
      %s3778 = scalar_lea.vmem %s1, 512
      %v3779 = vld [vmem:[%s3778] sm:$0xf]
      %v3780 = vld [vmem:[%s3778 + $0x4] sm:$0xf]
      %v3781 = vld [vmem:[%s3778 + $0x8] sm:$0xf]
      %v3782 = vld [vmem:[%s3778 + $0xc] sm:$0xf]
      %v3783 = vld [vmem:[%s3778 + $0x10] sm:$0xf]
      %v3784 = vld [vmem:[%s3778 + $0x14] sm:$0xf]
      %v3785 = vld [vmem:[%s3778 + $0x18] sm:$0xf]
      %v3786 = vld [vmem:[%s3778 + $0x1c] sm:$0xf]
      %v3787 = vld [vmem:[%s3778 + $0x20] sm:$0xf]
      %v3788 = vld [vmem:[%s3778 + $0x24] sm:$0xf]
      %v3789 = vld [vmem:[%s3778 + $0x28] sm:$0xf]
      %v3790 = vld [vmem:[%s3778 + $0x2c] sm:$0xf]
      %v3791 = vld [vmem:[%s3778 + $0x30] sm:$0xf]
      %v3792 = vld [vmem:[%s3778 + $0x34] sm:$0xf]
      %v3793 = vld [vmem:[%s3778 + $0x38] sm:$0xf]
      %v3794 = vld [vmem:[%s3778 + $0x3c] sm:$0xf]
      %vm3795 = vcmask 1044480
      %v3796 = vrot.slane %v490, 3
      %v3797 = vrot.slane %v491, 3
      %v3798 = vsel %vm3795, %v3796, %v3797
      %v3799 = vrot.slane %v492, 3
      %v3800 = vsel %vm3795, %v3797, %v3799
      %v3801 = vrot.slane %v493, 3
      %v3802 = vsel %vm3795, %v3799, %v3801
      %v3803 = vrot.slane %v494, 3
      %v3804 = vsel %vm3795, %v3801, %v3803
      %v3805 = vrot.slane %v495, 3
      %v3806 = vsel %vm3795, %v3803, %v3805
      %v3807 = vrot.slane %v496, 3
      %v3808 = vsel %vm3795, %v3805, %v3807
      %v3809 = vrot.slane %v497, 3
      %v3810 = vsel %vm3795, %v3807, %v3809
      %v3811 = vrot.slane %v498, 3
      %v3812 = vsel %vm3795, %v3809, %v3811
      %v3813 = vrot.slane %v499, 3
      %v3814 = vsel %vm3795, %v3811, %v3813
      %v3815 = vrot.slane %v500, 3
      %v3816 = vsel %vm3795, %v3813, %v3815
      %v3817 = vrot.slane %v501, 3
      %v3818 = vsel %vm3795, %v3815, %v3817
      %v3819 = vrot.slane %v502, 3
      %v3820 = vsel %vm3795, %v3817, %v3819
      %v3821 = vrot.slane %v503, 3
      %v3822 = vsel %vm3795, %v3819, %v3821
      %v3823 = vrot.slane %v504, 3
      %v3824 = vsel %vm3795, %v3821, %v3823
      %v3825 = vrot.slane %v505, 3
      %v3826 = vsel %vm3795, %v3823, %v3825
      %v3827 = vrot.slane %v506, 3
      %v3828 = vsel %vm3795, %v3825, %v3827
      %v3829 = vrot.slane %v507, 3
      %v3830 = vsel %vm3795, %v3827, %v3829
      %v3831 = vrot.slane %v508, 3
      %v3832 = vsel %vm3795, %v3829, %v3831
      %v3867 = vunpack.c.l.b16 %v3779
      %v3868 = vunpack.c.l.b16 %v3780
      %v3869 = vunpack.c.l.b16 %v3781
      %v3870 = vunpack.c.l.b16 %v3782
      %v3871 = vunpack.c.l.b16 %v3783
      %v3872 = vunpack.c.l.b16 %v3784
      %v3873 = vunpack.c.l.b16 %v3785
      %v3874 = vunpack.c.l.b16 %v3786
      %v3875 = vunpack.c.l.b16 %v3787
      %v3876 = vunpack.c.l.b16 %v3788
      %v3877 = vunpack.c.l.b16 %v3789
      %v3878 = vunpack.c.l.b16 %v3790
      %v3879 = vunpack.c.l.b16 %v3791
      %v3880 = vunpack.c.l.b16 %v3792
      %v3881 = vunpack.c.l.b16 %v3793
      %v3882 = vunpack.c.l.b16 %v3794
      %v3883 = vpack.c.b16 %v3868, %v3867
      %v3884 = vpack.c.b16 %v3870, %v3869
      %v3885 = vpack.c.b16 %v3872, %v3871
      %v3886 = vpack.c.b16 %v3874, %v3873
      %v3887 = vpack.c.b16 %v3876, %v3875
      %v3888 = vpack.c.b16 %v3878, %v3877
      %v3889 = vpack.c.b16 %v3880, %v3879
      %v3890 = vpack.c.b16 %v3882, %v3881
      %3899 = vmatprep.subr.bf16.mxu0 0
      %3900 = vmatpush1.bf16.msra.mxu0 %v3883
      %3901 = vmatprep.subr.bf16.mxu0 0
      %3902 = vmatpush1.bf16.msra.mxu0 %v3884
      %3903 = vmatprep.subr.bf16.mxu0 0
      %3904 = vmatpush1.bf16.msra.mxu0 %v3885
      %3905 = vmatprep.subr.bf16.mxu0 0
      %3906 = vmatpush1.bf16.msra.mxu0 %v3886
      %3907 = vmatprep.subr.bf16.mxu0 0
      %3908 = vmatpush1.bf16.msra.mxu0 %v3887
      %3909 = vmatprep.subr.bf16.mxu0 0
      %3910 = vmatpush1.bf16.msra.mxu0 %v3888
      %3911 = vmatprep.subr.bf16.mxu0 0
      %3912 = vmatpush1.bf16.msra.mxu0 %v3889
      %3913 = vmatprep.subr.bf16.mxu0 0
      %3914 = vmatpush1.bf16.msra.mxu0 %v3890
      %3915 = vmatprep.subr.bf16.mxu0 0
      %3916 = vmatpush1.bf16.msra.mxu0 0
      %3917 = vmatprep.subr.bf16.mxu0 0
      %3918 = vmatpush1.bf16.msra.mxu0 0
      %3919 = vmatprep.subr.bf16.mxu0 0
      %3920 = vmatpush1.bf16.msra.mxu0 0
      %3921 = vmatprep.subr.bf16.mxu0 0
      %3922 = vmatpush1.bf16.msra.mxu0 0
      %3923 = vmatprep.subr.bf16.mxu0 0
      %3924 = vmatpush1.bf16.msra.mxu0 0
      %3925 = vmatprep.subr.bf16.mxu0 0
      %3926 = vmatpush1.bf16.msra.mxu0 0
      %3927 = vmatprep.subr.bf16.mxu0 0
      %3928 = vmatpush1.bf16.msra.mxu0 0
      %3929 = vmatprep.subr.bf16.mxu0 0
      %3930 = vmatpush1.bf16.msra.mxu0 0
      %3931 = vmatprep.mubr.bf16.mxu0 0
      %3932 = vmatmul.mubr.bf16.gmra.mrb[0].mxu0 %v3798
      %v3933 = vpop.f32.mrb[0].mxu0
      %v3934 = vadd.f32 0.0, %v3933
      %v3935 = vpop.f32.mrb[0].mxu0
      %v3936 = vpop.f32.mrb[0].mxu0
      %v3937 = vadd.f32 0.0, %v3936
      %v3938 = vpop.f32.mrb[0].mxu0
      %3939 = vmatprep.mubr.bf16.mxu0 0
      %3940 = vmatmul.mubr.bf16.gmra.mrb[0].mxu0 %v3800
      %v3941 = vpop.f32.mrb[0].mxu0
      %v3942 = vadd.f32 0.0, %v3941
      %v3943 = vpop.f32.mrb[0].mxu0
      %v3944 = vpop.f32.mrb[0].mxu0
      %v3945 = vadd.f32 0.0, %v3944
      %v3946 = vpop.f32.mrb[0].mxu0
      %3947 = vmatprep.mubr.bf16.mxu0 0
      %3948 = vmatmul.mubr.bf16.gmra.mrb[0].mxu0 %v3802
      %v3949 = vpop.f32.mrb[0].mxu0
      %v3950 = vadd.f32 0.0, %v3949
      %v3951 = vpop.f32.mrb[0].mxu0
      %v3952 = vpop.f32.mrb[0].mxu0
      %v3953 = vadd.f32 0.0, %v3952
      %v3954 = vpop.f32.mrb[0].mxu0
      %3955 = vmatprep.mubr.bf16.mxu0 0
      %3956 = vmatmul.mubr.bf16.gmra.mrb[0].mxu0 %v3804
      %v3957 = vpop.f32.mrb[0].mxu0
      %v3958 = vadd.f32 0.0, %v3957
      %v3959 = vpop.f32.mrb[0].mxu0
      %v3960 = vpop.f32.mrb[0].mxu0
      %v3961 = vadd.f32 0.0, %v3960
      %v3962 = vpop.f32.mrb[0].mxu0
      %3963 = vmatprep.mubr.bf16.mxu0 0
      %3964 = vmatmul.mubr.bf16.gmra.mrb[0].mxu0 %v3806
      %v3965 = vpop.f32.mrb[0].mxu0
      %v3966 = vadd.f32 0.0, %v3965
      %v3967 = vpop.f32.mrb[0].mxu0
      %v3968 = vpop.f32.mrb[0].mxu0
      %v3969 = vadd.f32 0.0, %v3968
      %v3970 = vpop.f32.mrb[0].mxu0
      %3971 = vmatprep.mubr.bf16.mxu0 0
      %3972 = vmatmul.mubr.bf16.gmra.mrb[0].mxu0 %v3808
      %v3973 = vpop.f32.mrb[0].mxu0
      %v3974 = vadd.f32 0.0, %v3973
      %v3975 = vpop.f32.mrb[0].mxu0
      %v3976 = vpop.f32.mrb[0].mxu0
      %v3977 = vadd.f32 0.0, %v3976
      %v3978 = vpop.f32.mrb[0].mxu0
      %3979 = vmatprep.mubr.bf16.mxu0 0
      %3980 = vmatmul.mubr.bf16.gmra.mrb[0].mxu0 %v3810
      %v3981 = vpop.f32.mrb[0].mxu0
      %v3982 = vadd.f32 0.0, %v3981
      %v3983 = vpop.f32.mrb[0].mxu0
      %v3984 = vpop.f32.mrb[0].mxu0
      %v3985 = vadd.f32 0.0, %v3984
      %v3986 = vpop.f32.mrb[0].mxu0
      %3987 = vmatprep.mubr.bf16.mxu0 0
      %3988 = vmatmul.mubr.bf16.gmra.mrb[0].mxu0 %v3812
      %v3989 = vpop.f32.mrb[0].mxu0
      %v3990 = vadd.f32 0.0, %v3989
      %v3991 = vpop.f32.mrb[0].mxu0
      %v3992 = vpop.f32.mrb[0].mxu0
      %v3993 = vadd.f32 0.0, %v3992
      %v3994 = vpop.f32.mrb[0].mxu0
      %3995 = vmatprep.mubr.bf16.mxu0 0
      %3996 = vmatmul.mubr.bf16.gmra.mrb[0].mxu0 %v3814
      %v3997 = vpop.f32.mrb[0].mxu0
      %v3998 = vadd.f32 0.0, %v3997
      %v3999 = vpop.f32.mrb[0].mxu0
      %v4000 = vpop.f32.mrb[0].mxu0
      %v4001 = vadd.f32 0.0, %v4000
      %v4002 = vpop.f32.mrb[0].mxu0
      %4003 = vmatprep.mubr.bf16.mxu0 0
      %4004 = vmatmul.mubr.bf16.gmra.mrb[0].mxu0 %v3816
      %v4005 = vpop.f32.mrb[0].mxu0
      %v4006 = vadd.f32 0.0, %v4005
      %v4007 = vpop.f32.mrb[0].mxu0
      %v4008 = vpop.f32.mrb[0].mxu0
      %v4009 = vadd.f32 0.0, %v4008
      %v4010 = vpop.f32.mrb[0].mxu0
      %4011 = vmatprep.mubr.bf16.mxu0 0
      %4012 = vmatmul.mubr.bf16.gmra.mrb[0].mxu0 %v3818
      %v4013 = vpop.f32.mrb[0].mxu0
      %v4014 = vadd.f32 0.0, %v4013
      %v4015 = vpop.f32.mrb[0].mxu0
      %v4016 = vpop.f32.mrb[0].mxu0
      %v4017 = vadd.f32 0.0, %v4016
      %v4018 = vpop.f32.mrb[0].mxu0
      %4019 = vmatprep.mubr.bf16.mxu0 0
      %4020 = vmatmul.mubr.bf16.gmra.mrb[0].mxu0 %v3820
      %v4021 = vpop.f32.mrb[0].mxu0
      %v4022 = vadd.f32 0.0, %v4021
      %v4023 = vpop.f32.mrb[0].mxu0
      %v4024 = vpop.f32.mrb[0].mxu0
      %v4025 = vadd.f32 0.0, %v4024
      %v4026 = vpop.f32.mrb[0].mxu0
      %4027 = vmatprep.mubr.bf16.mxu0 0
      %4028 = vmatmul.mubr.bf16.gmra.mrb[0].mxu0 %v3822
      %v4029 = vpop.f32.mrb[0].mxu0
      %v4030 = vadd.f32 0.0, %v4029
      %v4031 = vpop.f32.mrb[0].mxu0
      %v4032 = vpop.f32.mrb[0].mxu0
      %v4033 = vadd.f32 0.0, %v4032
      %v4034 = vpop.f32.mrb[0].mxu0
      %4035 = vmatprep.mubr.bf16.mxu0 0
      %4036 = vmatmul.mubr.bf16.gmra.mrb[0].mxu0 %v3824
      %v4037 = vpop.f32.mrb[0].mxu0
      %v4038 = vadd.f32 0.0, %v4037
      %v4039 = vpop.f32.mrb[0].mxu0
      %v4040 = vpop.f32.mrb[0].mxu0
      %v4041 = vadd.f32 0.0, %v4040
      %v4042 = vpop.f32.mrb[0].mxu0
      %4043 = vmatprep.mubr.bf16.mxu0 0
      %4044 = vmatmul.mubr.bf16.gmra.mrb[0].mxu0 %v3826
      %v4045 = vpop.f32.mrb[0].mxu0
      %v4046 = vadd.f32 0.0, %v4045
      %v4047 = vpop.f32.mrb[0].mxu0
      %v4048 = vpop.f32.mrb[0].mxu0
      %v4049 = vadd.f32 0.0, %v4048
      %v4050 = vpop.f32.mrb[0].mxu0
      %4051 = vmatprep.mubr.bf16.mxu0 0
      %4052 = vmatmul.mubr.bf16.gmra.mrb[0].mxu0 %v3828
      %v4053 = vpop.f32.mrb[0].mxu0
      %v4054 = vadd.f32 0.0, %v4053
      %v4055 = vpop.f32.mrb[0].mxu0
      %v4056 = vpop.f32.mrb[0].mxu0
      %v4057 = vadd.f32 0.0, %v4056
      %v4058 = vpop.f32.mrb[0].mxu0
      %4059 = vmatprep.mubr.bf16.mxu0 0
      %4060 = vmatmul.mubr.bf16.gmra.mrb[0].mxu0 %v3830
      %v4061 = vpop.f32.mrb[0].mxu0
      %v4062 = vadd.f32 0.0, %v4061
      %v4063 = vpop.f32.mrb[0].mxu0
      %v4064 = vpop.f32.mrb[0].mxu0
      %v4065 = vadd.f32 0.0, %v4064
      %v4066 = vpop.f32.mrb[0].mxu0
      %4067 = vmatprep.mubr.bf16.mxu0 0
      %4068 = vmatmul.mubr.bf16.gmra.mrb[0].mxu0 %v3832
      %v4069 = vpop.f32.mrb[0].mxu0
      %v4070 = vadd.f32 0.0, %v4069
      %v4071 = vpop.f32.mrb[0].mxu0
      %v4072 = vpop.f32.mrb[0].mxu0
      %v4073 = vadd.f32 0.0, %v4072
      %v4074 = vpop.f32.mrb[0].mxu0
      %4075 = vdwg.mxu0
      %v4076 = vadd.f32 %v3742, %v3934
      %v4077 = vadd.f32 %v3743, %v3937
      %v4078 = vadd.f32 %v3744, %v3942
      %v4079 = vadd.f32 %v3745, %v3945
      %v4080 = vadd.f32 %v3746, %v3950
      %v4081 = vadd.f32 %v3747, %v3953
      %v4082 = vadd.f32 %v3748, %v3958
      %v4083 = vadd.f32 %v3749, %v3961
      %v4084 = vadd.f32 %v3750, %v3966
      %v4085 = vadd.f32 %v3751, %v3969
      %v4086 = vadd.f32 %v3752, %v3974
      %v4087 = vadd.f32 %v3753, %v3977
      %v4088 = vadd.f32 %v3754, %v3982
      %v4089 = vadd.f32 %v3755, %v3985
      %v4090 = vadd.f32 %v3756, %v3990
      %v4091 = vadd.f32 %v3757, %v3993
      %v4092 = vadd.f32 %v3758, %v3998
      %v4093 = vadd.f32 %v3759, %v4001
      %v4094 = vadd.f32 %v3760, %v4006
      %v4095 = vadd.f32 %v3761, %v4009
      %v4096 = vadd.f32 %v3762, %v4014
      %v4097 = vadd.f32 %v3763, %v4017
      %v4098 = vadd.f32 %v3764, %v4022
      %v4099 = vadd.f32 %v3765, %v4025
      %v4100 = vadd.f32 %v3766, %v4030
      %v4101 = vadd.f32 %v3767, %v4033
      %v4102 = vadd.f32 %v3768, %v4038
      %v4103 = vadd.f32 %v3769, %v4041
      %v4104 = vadd.f32 %v3770, %v4046
      %v4105 = vadd.f32 %v3771, %v4049
      %v4106 = vadd.f32 %v3772, %v4054
      %v4107 = vadd.f32 %v3773, %v4057
      %v4108 = vadd.f32 %v3774, %v4062
      %v4109 = vadd.f32 %v3775, %v4065
      %v4110 = vadd.f32 %v3776, %v4070
      %v4111 = vadd.f32 %v3777, %v4073
      %4112 = vst [vmem:[#allocation2] sm:$0xff] %v4076
      %4113 = vst [vmem:[#allocation2 + $0x8] sm:$0xff] %v4077
      %4114 = vst [vmem:[#allocation2 + $0x10] sm:$0xff] %v4078
      %4115 = vst [vmem:[#allocation2 + $0x18] sm:$0xff] %v4079
      %4116 = vst [vmem:[#allocation2 + $0x20] sm:$0xff] %v4080
      %4117 = vst [vmem:[#allocation2 + $0x28] sm:$0xff] %v4081
      %4118 = vst [vmem:[#allocation2 + $0x30] sm:$0xff] %v4082
      %4119 = vst [vmem:[#allocation2 + $0x38] sm:$0xff] %v4083
      %4120 = vst [vmem:[#allocation2 + $0x40] sm:$0xff] %v4084
      %4121 = vst [vmem:[#allocation2 + $0x48] sm:$0xff] %v4085
      %4122 = vst [vmem:[#allocation2 + $0x50] sm:$0xff] %v4086
      %4123 = vst [vmem:[#allocation2 + $0x58] sm:$0xff] %v4087
      %4124 = vst [vmem:[#allocation2 + $0x60] sm:$0xff] %v4088
      %4125 = vst [vmem:[#allocation2 + $0x68] sm:$0xff] %v4089
      %4126 = vst [vmem:[#allocation2 + $0x70] sm:$0xff] %v4090
      %4127 = vst [vmem:[#allocation2 + $0x78] sm:$0xff] %v4091
      %4128 = vst [vmem:[#allocation2 + $0x80] sm:$0xff] %v4092
      %4129 = vst [vmem:[#allocation2 + $0x88] sm:$0xff] %v4093
      %4130 = vst [vmem:[#allocation2 + $0x90] sm:$0xff] %v4094
      %4131 = vst [vmem:[#allocation2 + $0x98] sm:$0xff] %v4095
      %4132 = vst [vmem:[#allocation2 + $0xa0] sm:$0xff] %v4096
      %4133 = vst [vmem:[#allocation2 + $0xa8] sm:$0xff] %v4097
      %4134 = vst [vmem:[#allocation2 + $0xb0] sm:$0xff] %v4098
      %4135 = vst [vmem:[#allocation2 + $0xb8] sm:$0xff] %v4099
      %4136 = vst [vmem:[#allocation2 + $0xc0] sm:$0xff] %v4100
      %4137 = vst [vmem:[#allocation2 + $0xc8] sm:$0xff] %v4101
      %4138 = vst [vmem:[#allocation2 + $0xd0] sm:$0xff] %v4102
      %4139 = vst [vmem:[#allocation2 + $0xd8] sm:$0xff] %v4103
      %4140 = vst [vmem:[#allocation2 + $0xe0] sm:$0xff] %v4104
      %4141 = vst [vmem:[#allocation2 + $0xe8] sm:$0xff] %v4105
      %4142 = vst [vmem:[#allocation2 + $0xf0] sm:$0xff] %v4106
      %4143 = vst [vmem:[#allocation2 + $0xf8] sm:$0xff] %v4107
      %4144 = vst [vmem:[#allocation2 + $0x100] sm:$0xff] %v4108
      %4145 = vst [vmem:[#allocation2 + $0x108] sm:$0xff] %v4109
      %4146 = vst [vmem:[#allocation2 + $0x110] sm:$0xff] %v4110
      %4147 = vst [vmem:[#allocation2 + $0x118] sm:$0xff] %v4111
      %v4148 = vld [vmem:[#allocation2] sm:$0xff]
      %v4149 = vld [vmem:[#allocation2 + $0x8] sm:$0xff]
      %v4150 = vld [vmem:[#allocation2 + $0x10] sm:$0xff]
      %v4151 = vld [vmem:[#allocation2 + $0x18] sm:$0xff]
      %v4152 = vld [vmem:[#allocation2 + $0x20] sm:$0xff]
      %v4153 = vld [vmem:[#allocation2 + $0x28] sm:$0xff]
      %v4154 = vld [vmem:[#allocation2 + $0x30] sm:$0xff]
      %v4155 = vld [vmem:[#allocation2 + $0x38] sm:$0xff]
      %v4156 = vld [vmem:[#allocation2 + $0x40] sm:$0xff]
      %v4157 = vld [vmem:[#allocation2 + $0x48] sm:$0xff]
      %v4158 = vld [vmem:[#allocation2 + $0x50] sm:$0xff]
      %v4159 = vld [vmem:[#allocation2 + $0x58] sm:$0xff]
      %v4160 = vld [vmem:[#allocation2 + $0x60] sm:$0xff]
      %v4161 = vld [vmem:[#allocation2 + $0x68] sm:$0xff]
      %v4162 = vld [vmem:[#allocation2 + $0x70] sm:$0xff]
      %v4163 = vld [vmem:[#allocation2 + $0x78] sm:$0xff]
      %v4164 = vld [vmem:[#allocation2 + $0x80] sm:$0xff]
      %v4165 = vld [vmem:[#allocation2 + $0x88] sm:$0xff]
      %v4166 = vld [vmem:[#allocation2 + $0x90] sm:$0xff]
      %v4167 = vld [vmem:[#allocation2 + $0x98] sm:$0xff]
      %v4168 = vld [vmem:[#allocation2 + $0xa0] sm:$0xff]
      %v4169 = vld [vmem:[#allocation2 + $0xa8] sm:$0xff]
      %v4170 = vld [vmem:[#allocation2 + $0xb0] sm:$0xff]
      %v4171 = vld [vmem:[#allocation2 + $0xb8] sm:$0xff]
      %v4172 = vld [vmem:[#allocation2 + $0xc0] sm:$0xff]
      %v4173 = vld [vmem:[#allocation2 + $0xc8] sm:$0xff]
      %v4174 = vld [vmem:[#allocation2 + $0xd0] sm:$0xff]
      %v4175 = vld [vmem:[#allocation2 + $0xd8] sm:$0xff]
      %v4176 = vld [vmem:[#allocation2 + $0xe0] sm:$0xff]
      %v4177 = vld [vmem:[#allocation2 + $0xe8] sm:$0xff]
      %v4178 = vld [vmem:[#allocation2 + $0xf0] sm:$0xff]
      %v4179 = vld [vmem:[#allocation2 + $0xf8] sm:$0xff]
      %v4180 = vld [vmem:[#allocation2 + $0x100] sm:$0xff]
      %v4181 = vld [vmem:[#allocation2 + $0x108] sm:$0xff]
      %v4182 = vld [vmem:[#allocation2 + $0x110] sm:$0xff]
      %v4183 = vld [vmem:[#allocation2 + $0x118] sm:$0xff]
      %v4184 = vld [vmem:[%s2] sm:$0x1]
      %v4186 = vlaneseq
      %v4187 = vshrl.u32 %v4186, 7
      %v4188 = vsub.s32 0, %v4187
      %v4189 = vrot.slane %v4184, %v4188
      %v4191 = vadd.f32 %v4148, %v4189
      %v4192 = vadd.f32 %v4149, %v4189
      %v4193 = vadd.f32 %v4150, %v4189
      %v4194 = vadd.f32 %v4151, %v4189
      %v4195 = vadd.f32 %v4152, %v4189
      %v4196 = vadd.f32 %v4153, %v4189
      %v4197 = vadd.f32 %v4154, %v4189
      %v4198 = vadd.f32 %v4155, %v4189
      %v4199 = vadd.f32 %v4156, %v4189
      %v4200 = vadd.f32 %v4157, %v4189
      %v4201 = vadd.f32 %v4158, %v4189
      %v4202 = vadd.f32 %v4159, %v4189
      %v4203 = vadd.f32 %v4160, %v4189
      %v4204 = vadd.f32 %v4161, %v4189
      %v4205 = vadd.f32 %v4162, %v4189
      %v4206 = vadd.f32 %v4163, %v4189
      %v4207 = vadd.f32 %v4164, %v4189
      %v4208 = vadd.f32 %v4165, %v4189
      %v4209 = vadd.f32 %v4166, %v4189
      %v4210 = vadd.f32 %v4167, %v4189
      %v4211 = vadd.f32 %v4168, %v4189
      %v4212 = vadd.f32 %v4169, %v4189
      %v4213 = vadd.f32 %v4170, %v4189
      %v4214 = vadd.f32 %v4171, %v4189
      %v4215 = vadd.f32 %v4172, %v4189
      %v4216 = vadd.f32 %v4173, %v4189
      %v4217 = vadd.f32 %v4174, %v4189
      %v4218 = vadd.f32 %v4175, %v4189
      %v4219 = vadd.f32 %v4176, %v4189
      %v4220 = vadd.f32 %v4177, %v4189
      %v4221 = vadd.f32 %v4178, %v4189
      %v4222 = vadd.f32 %v4179, %v4189
      %v4223 = vadd.f32 %v4180, %v4189
      %v4224 = vadd.f32 %v4181, %v4189
      %v4225 = vadd.f32 %v4182, %v4189
      %v4226 = vadd.f32 %v4183, %v4189
      %v4227 = vlaneseq
      %v4228 = vshrl.u32 %v4227, 7
      %v4229 = vadd.s32 %v4228, 8
      %v4230 = vadd.s32 %v4228, 16
      %v4231 = vadd.s32 %v4228, 24
      %v4232 = vadd.s32 %v4228, 32
      %v4233 = vadd.s32 %v4228, 40
      %v4234 = vadd.s32 %v4228, 48
      %v4235 = vadd.s32 %v4228, 56
      %v4236 = vadd.s32 %v4228, 64
      %v4237 = vadd.s32 %v4228, 72
      %v4238 = vadd.s32 %v4228, 80
      %v4239 = vadd.s32 %v4228, 88
      %v4240 = vadd.s32 %v4228, 96
      %v4241 = vadd.s32 %v4228, 104
      %v4242 = vadd.s32 %v4228, 112
      %v4243 = vadd.s32 %v4228, 120
      %v4244 = vadd.s32 %v4228, 128
      %v4245 = vadd.s32 %v4228, 136
      %v4246 = vadd.s32 %v4228, 144
      %v4247 = vadd.s32 %v4228, 152
      %v4248 = vadd.s32 %v4228, 160
      %v4249 = vadd.s32 %v4228, 168
      %v4250 = vadd.s32 %v4228, 176
      %v4251 = vadd.s32 %v4228, 184
      %v4252 = vadd.s32 %v4228, 192
      %v4253 = vadd.s32 %v4228, 200
      %v4254 = vadd.s32 %v4228, 208
      %v4255 = vadd.s32 %v4228, 216
      %v4256 = vadd.s32 %v4228, 224
      %v4257 = vadd.s32 %v4228, 232
      %v4258 = vadd.s32 %v4228, 240
      %v4259 = vadd.s32 %v4228, 248
      %v4260 = vadd.s32 %v4228, 256
      %v4261 = vadd.s32 %v4228, 264
      %v4262 = vadd.s32 %v4228, 272
      %v4263 = vadd.s32 %v4228, 280
      %vm4264 = vcmp.lt.s32.totalorder %v4228, 0
      %v4265 = vsub.s32 0, %v4228
      %v4266 = vsel %vm4264, %v4265, %v4228
      %v4267 = vmul.u32.u64.compose %v4266, 3817748708
      %v4268 = vextract.low.u32 %v4267
      %v4269 = vextract.high.u32 %v4267
      %v4270 = vshrl.u32 %v4269, 4
      %v4271 = vmul.u32 %v4270, 18
      %v4272 = vsub.s32 %v4266, %v4271
      %v4273 = vsub.s32 0, %v4272
      %v4274 = vsel %vm4264, %v4273, %v4272
      %vm4275 = vcmp.lt.s32.totalorder %v4229, 0
      %v4276 = vsub.s32 0, %v4229
      %v4277 = vsel %vm4275, %v4276, %v4229
      %v4278 = vmul.u32.u64.compose %v4277, 3817748708
      %v4279 = vextract.low.u32 %v4278
      %v4280 = vextract.high.u32 %v4278
      %v4281 = vshrl.u32 %v4280, 4
      %v4282 = vmul.u32 %v4281, 18
      %v4283 = vsub.s32 %v4277, %v4282
      %v4284 = vsub.s32 0, %v4283
      %v4285 = vsel %vm4275, %v4284, %v4283
      %vm4286 = vcmp.lt.s32.totalorder %v4230, 0
      %v4287 = vsub.s32 0, %v4230
      %v4288 = vsel %vm4286, %v4287, %v4230
      %v4289 = vmul.u32.u64.compose %v4288, 3817748708
      %v4290 = vextract.low.u32 %v4289
      %v4291 = vextract.high.u32 %v4289
      %v4292 = vshrl.u32 %v4291, 4
      %v4293 = vmul.u32 %v4292, 18
      %v4294 = vsub.s32 %v4288, %v4293
      %v4295 = vsub.s32 0, %v4294
      %v4296 = vsel %vm4286, %v4295, %v4294
      %vm4297 = vcmp.lt.s32.totalorder %v4231, 0
      %v4298 = vsub.s32 0, %v4231
      %v4299 = vsel %vm4297, %v4298, %v4231
      %v4300 = vmul.u32.u64.compose %v4299, 3817748708
      %v4301 = vextract.low.u32 %v4300
      %v4302 = vextract.high.u32 %v4300
      %v4303 = vshrl.u32 %v4302, 4
      %v4304 = vmul.u32 %v4303, 18
      %v4305 = vsub.s32 %v4299, %v4304
      %v4306 = vsub.s32 0, %v4305
      %v4307 = vsel %vm4297, %v4306, %v4305
      %vm4308 = vcmp.lt.s32.totalorder %v4232, 0
      %v4309 = vsub.s32 0, %v4232
      %v4310 = vsel %vm4308, %v4309, %v4232
      %v4311 = vmul.u32.u64.compose %v4310, 3817748708
      %v4312 = vextract.low.u32 %v4311
      %v4313 = vextract.high.u32 %v4311
      %v4314 = vshrl.u32 %v4313, 4
      %v4315 = vmul.u32 %v4314, 18
      %v4316 = vsub.s32 %v4310, %v4315
      %v4317 = vsub.s32 0, %v4316
      %v4318 = vsel %vm4308, %v4317, %v4316
      %vm4319 = vcmp.lt.s32.totalorder %v4233, 0
      %v4320 = vsub.s32 0, %v4233
      %v4321 = vsel %vm4319, %v4320, %v4233
      %v4322 = vmul.u32.u64.compose %v4321, 3817748708
      %v4323 = vextract.low.u32 %v4322
      %v4324 = vextract.high.u32 %v4322
      %v4325 = vshrl.u32 %v4324, 4
      %v4326 = vmul.u32 %v4325, 18
      %v4327 = vsub.s32 %v4321, %v4326
      %v4328 = vsub.s32 0, %v4327
      %v4329 = vsel %vm4319, %v4328, %v4327
      %vm4330 = vcmp.lt.s32.totalorder %v4234, 0
      %v4331 = vsub.s32 0, %v4234
      %v4332 = vsel %vm4330, %v4331, %v4234
      %v4333 = vmul.u32.u64.compose %v4332, 3817748708
      %v4334 = vextract.low.u32 %v4333
      %v4335 = vextract.high.u32 %v4333
      %v4336 = vshrl.u32 %v4335, 4
      %v4337 = vmul.u32 %v4336, 18
      %v4338 = vsub.s32 %v4332, %v4337
      %v4339 = vsub.s32 0, %v4338
      %v4340 = vsel %vm4330, %v4339, %v4338
      %vm4341 = vcmp.lt.s32.totalorder %v4235, 0
      %v4342 = vsub.s32 0, %v4235
      %v4343 = vsel %vm4341, %v4342, %v4235
      %v4344 = vmul.u32.u64.compose %v4343, 3817748708
      %v4345 = vextract.low.u32 %v4344
      %v4346 = vextract.high.u32 %v4344
      %v4347 = vshrl.u32 %v4346, 4
      %v4348 = vmul.u32 %v4347, 18
      %v4349 = vsub.s32 %v4343, %v4348
      %v4350 = vsub.s32 0, %v4349
      %v4351 = vsel %vm4341, %v4350, %v4349
      %vm4352 = vcmp.lt.s32.totalorder %v4236, 0
      %v4353 = vsub.s32 0, %v4236
      %v4354 = vsel %vm4352, %v4353, %v4236
      %v4355 = vmul.u32.u64.compose %v4354, 3817748708
      %v4356 = vextract.low.u32 %v4355
      %v4357 = vextract.high.u32 %v4355
      %v4358 = vshrl.u32 %v4357, 4
      %v4359 = vmul.u32 %v4358, 18
      %v4360 = vsub.s32 %v4354, %v4359
      %v4361 = vsub.s32 0, %v4360
      %v4362 = vsel %vm4352, %v4361, %v4360
      %vm4363 = vcmp.lt.s32.totalorder %v4237, 0
      %v4364 = vsub.s32 0, %v4237
      %v4365 = vsel %vm4363, %v4364, %v4237
      %v4366 = vmul.u32.u64.compose %v4365, 3817748708
      %v4367 = vextract.low.u32 %v4366
      %v4368 = vextract.high.u32 %v4366
      %v4369 = vshrl.u32 %v4368, 4
      %v4370 = vmul.u32 %v4369, 18
      %v4371 = vsub.s32 %v4365, %v4370
      %v4372 = vsub.s32 0, %v4371
      %v4373 = vsel %vm4363, %v4372, %v4371
      %vm4374 = vcmp.lt.s32.totalorder %v4238, 0
      %v4375 = vsub.s32 0, %v4238
      %v4376 = vsel %vm4374, %v4375, %v4238
      %v4377 = vmul.u32.u64.compose %v4376, 3817748708
      %v4378 = vextract.low.u32 %v4377
      %v4379 = vextract.high.u32 %v4377
      %v4380 = vshrl.u32 %v4379, 4
      %v4381 = vmul.u32 %v4380, 18
      %v4382 = vsub.s32 %v4376, %v4381
      %v4383 = vsub.s32 0, %v4382
      %v4384 = vsel %vm4374, %v4383, %v4382
      %vm4385 = vcmp.lt.s32.totalorder %v4239, 0
      %v4386 = vsub.s32 0, %v4239
      %v4387 = vsel %vm4385, %v4386, %v4239
      %v4388 = vmul.u32.u64.compose %v4387, 3817748708
      %v4389 = vextract.low.u32 %v4388
      %v4390 = vextract.high.u32 %v4388
      %v4391 = vshrl.u32 %v4390, 4
      %v4392 = vmul.u32 %v4391, 18
      %v4393 = vsub.s32 %v4387, %v4392
      %v4394 = vsub.s32 0, %v4393
      %v4395 = vsel %vm4385, %v4394, %v4393
      %vm4396 = vcmp.lt.s32.totalorder %v4240, 0
      %v4397 = vsub.s32 0, %v4240
      %v4398 = vsel %vm4396, %v4397, %v4240
      %v4399 = vmul.u32.u64.compose %v4398, 3817748708
      %v4400 = vextract.low.u32 %v4399
      %v4401 = vextract.high.u32 %v4399
      %v4402 = vshrl.u32 %v4401, 4
      %v4403 = vmul.u32 %v4402, 18
      %v4404 = vsub.s32 %v4398, %v4403
      %v4405 = vsub.s32 0, %v4404
      %v4406 = vsel %vm4396, %v4405, %v4404
      %vm4407 = vcmp.lt.s32.totalorder %v4241, 0
      %v4408 = vsub.s32 0, %v4241
      %v4409 = vsel %vm4407, %v4408, %v4241
      %v4410 = vmul.u32.u64.compose %v4409, 3817748708
      %v4411 = vextract.low.u32 %v4410
      %v4412 = vextract.high.u32 %v4410
      %v4413 = vshrl.u32 %v4412, 4
      %v4414 = vmul.u32 %v4413, 18
      %v4415 = vsub.s32 %v4409, %v4414
      %v4416 = vsub.s32 0, %v4415
      %v4417 = vsel %vm4407, %v4416, %v4415
      %vm4418 = vcmp.lt.s32.totalorder %v4242, 0
      %v4419 = vsub.s32 0, %v4242
      %v4420 = vsel %vm4418, %v4419, %v4242
      %v4421 = vmul.u32.u64.compose %v4420, 3817748708
      %v4422 = vextract.low.u32 %v4421
      %v4423 = vextract.high.u32 %v4421
      %v4424 = vshrl.u32 %v4423, 4
      %v4425 = vmul.u32 %v4424, 18
      %v4426 = vsub.s32 %v4420, %v4425
      %v4427 = vsub.s32 0, %v4426
      %v4428 = vsel %vm4418, %v4427, %v4426
      %vm4429 = vcmp.lt.s32.totalorder %v4243, 0
      %v4430 = vsub.s32 0, %v4243
      %v4431 = vsel %vm4429, %v4430, %v4243
      %v4432 = vmul.u32.u64.compose %v4431, 3817748708
      %v4433 = vextract.low.u32 %v4432
      %v4434 = vextract.high.u32 %v4432
      %v4435 = vshrl.u32 %v4434, 4
      %v4436 = vmul.u32 %v4435, 18
      %v4437 = vsub.s32 %v4431, %v4436
      %v4438 = vsub.s32 0, %v4437
      %v4439 = vsel %vm4429, %v4438, %v4437
      %vm4440 = vcmp.lt.s32.totalorder %v4244, 0
      %v4441 = vsub.s32 0, %v4244
      %v4442 = vsel %vm4440, %v4441, %v4244
      %v4443 = vmul.u32.u64.compose %v4442, 3817748708
      %v4444 = vextract.low.u32 %v4443
      %v4445 = vextract.high.u32 %v4443
      %v4446 = vshrl.u32 %v4445, 4
      %v4447 = vmul.u32 %v4446, 18
      %v4448 = vsub.s32 %v4442, %v4447
      %v4449 = vsub.s32 0, %v4448
      %v4450 = vsel %vm4440, %v4449, %v4448
      %vm4451 = vcmp.lt.s32.totalorder %v4245, 0
      %v4452 = vsub.s32 0, %v4245
      %v4453 = vsel %vm4451, %v4452, %v4245
      %v4454 = vmul.u32.u64.compose %v4453, 3817748708
      %v4455 = vextract.low.u32 %v4454
      %v4456 = vextract.high.u32 %v4454
      %v4457 = vshrl.u32 %v4456, 4
      %v4458 = vmul.u32 %v4457, 18
      %v4459 = vsub.s32 %v4453, %v4458
      %v4460 = vsub.s32 0, %v4459
      %v4461 = vsel %vm4451, %v4460, %v4459
      %vm4462 = vcmp.lt.s32.totalorder %v4246, 0
      %v4463 = vsub.s32 0, %v4246
      %v4464 = vsel %vm4462, %v4463, %v4246
      %v4465 = vmul.u32.u64.compose %v4464, 3817748708
      %v4466 = vextract.low.u32 %v4465
      %v4467 = vextract.high.u32 %v4465
      %v4468 = vshrl.u32 %v4467, 4
      %v4469 = vmul.u32 %v4468, 18
      %v4470 = vsub.s32 %v4464, %v4469
      %v4471 = vsub.s32 0, %v4470
      %v4472 = vsel %vm4462, %v4471, %v4470
      %vm4473 = vcmp.lt.s32.totalorder %v4247, 0
      %v4474 = vsub.s32 0, %v4247
      %v4475 = vsel %vm4473, %v4474, %v4247
      %v4476 = vmul.u32.u64.compose %v4475, 3817748708
      %v4477 = vextract.low.u32 %v4476
      %v4478 = vextract.high.u32 %v4476
      %v4479 = vshrl.u32 %v4478, 4
      %v4480 = vmul.u32 %v4479, 18
      %v4481 = vsub.s32 %v4475, %v4480
      %v4482 = vsub.s32 0, %v4481
      %v4483 = vsel %vm4473, %v4482, %v4481
      %vm4484 = vcmp.lt.s32.totalorder %v4248, 0
      %v4485 = vsub.s32 0, %v4248
      %v4486 = vsel %vm4484, %v4485, %v4248
      %v4487 = vmul.u32.u64.compose %v4486, 3817748708
      %v4488 = vextract.low.u32 %v4487
      %v4489 = vextract.high.u32 %v4487
      %v4490 = vshrl.u32 %v4489, 4
      %v4491 = vmul.u32 %v4490, 18
      %v4492 = vsub.s32 %v4486, %v4491
      %v4493 = vsub.s32 0, %v4492
      %v4494 = vsel %vm4484, %v4493, %v4492
      %vm4495 = vcmp.lt.s32.totalorder %v4249, 0
      %v4496 = vsub.s32 0, %v4249
      %v4497 = vsel %vm4495, %v4496, %v4249
      %v4498 = vmul.u32.u64.compose %v4497, 3817748708
      %v4499 = vextract.low.u32 %v4498
      %v4500 = vextract.high.u32 %v4498
      %v4501 = vshrl.u32 %v4500, 4
      %v4502 = vmul.u32 %v4501, 18
      %v4503 = vsub.s32 %v4497, %v4502
      %v4504 = vsub.s32 0, %v4503
      %v4505 = vsel %vm4495, %v4504, %v4503
      %vm4506 = vcmp.lt.s32.totalorder %v4250, 0
      %v4507 = vsub.s32 0, %v4250
      %v4508 = vsel %vm4506, %v4507, %v4250
      %v4509 = vmul.u32.u64.compose %v4508, 3817748708
      %v4510 = vextract.low.u32 %v4509
      %v4511 = vextract.high.u32 %v4509
      %v4512 = vshrl.u32 %v4511, 4
      %v4513 = vmul.u32 %v4512, 18
      %v4514 = vsub.s32 %v4508, %v4513
      %v4515 = vsub.s32 0, %v4514
      %v4516 = vsel %vm4506, %v4515, %v4514
      %vm4517 = vcmp.lt.s32.totalorder %v4251, 0
      %v4518 = vsub.s32 0, %v4251
      %v4519 = vsel %vm4517, %v4518, %v4251
      %v4520 = vmul.u32.u64.compose %v4519, 3817748708
      %v4521 = vextract.low.u32 %v4520
      %v4522 = vextract.high.u32 %v4520
      %v4523 = vshrl.u32 %v4522, 4
      %v4524 = vmul.u32 %v4523, 18
      %v4525 = vsub.s32 %v4519, %v4524
      %v4526 = vsub.s32 0, %v4525
      %v4527 = vsel %vm4517, %v4526, %v4525
      %vm4528 = vcmp.lt.s32.totalorder %v4252, 0
      %v4529 = vsub.s32 0, %v4252
      %v4530 = vsel %vm4528, %v4529, %v4252
      %v4531 = vmul.u32.u64.compose %v4530, 3817748708
      %v4532 = vextract.low.u32 %v4531
      %v4533 = vextract.high.u32 %v4531
      %v4534 = vshrl.u32 %v4533, 4
      %v4535 = vmul.u32 %v4534, 18
      %v4536 = vsub.s32 %v4530, %v4535
      %v4537 = vsub.s32 0, %v4536
      %v4538 = vsel %vm4528, %v4537, %v4536
      %vm4539 = vcmp.lt.s32.totalorder %v4253, 0
      %v4540 = vsub.s32 0, %v4253
      %v4541 = vsel %vm4539, %v4540, %v4253
      %v4542 = vmul.u32.u64.compose %v4541, 3817748708
      %v4543 = vextract.low.u32 %v4542
      %v4544 = vextract.high.u32 %v4542
      %v4545 = vshrl.u32 %v4544, 4
      %v4546 = vmul.u32 %v4545, 18
      %v4547 = vsub.s32 %v4541, %v4546
      %v4548 = vsub.s32 0, %v4547
      %v4549 = vsel %vm4539, %v4548, %v4547
      %vm4550 = vcmp.lt.s32.totalorder %v4254, 0
      %v4551 = vsub.s32 0, %v4254
      %v4552 = vsel %vm4550, %v4551, %v4254
      %v4553 = vmul.u32.u64.compose %v4552, 3817748708
      %v4554 = vextract.low.u32 %v4553
      %v4555 = vextract.high.u32 %v4553
      %v4556 = vshrl.u32 %v4555, 4
      %v4557 = vmul.u32 %v4556, 18
      %v4558 = vsub.s32 %v4552, %v4557
      %v4559 = vsub.s32 0, %v4558
      %v4560 = vsel %vm4550, %v4559, %v4558
      %vm4561 = vcmp.lt.s32.totalorder %v4255, 0
      %v4562 = vsub.s32 0, %v4255
      %v4563 = vsel %vm4561, %v4562, %v4255
      %v4564 = vmul.u32.u64.compose %v4563, 3817748708
      %v4565 = vextract.low.u32 %v4564
      %v4566 = vextract.high.u32 %v4564
      %v4567 = vshrl.u32 %v4566, 4
      %v4568 = vmul.u32 %v4567, 18
      %v4569 = vsub.s32 %v4563, %v4568
      %v4570 = vsub.s32 0, %v4569
      %v4571 = vsel %vm4561, %v4570, %v4569
      %vm4572 = vcmp.lt.s32.totalorder %v4256, 0
      %v4573 = vsub.s32 0, %v4256
      %v4574 = vsel %vm4572, %v4573, %v4256
      %v4575 = vmul.u32.u64.compose %v4574, 3817748708
      %v4576 = vextract.low.u32 %v4575
      %v4577 = vextract.high.u32 %v4575
      %v4578 = vshrl.u32 %v4577, 4
      %v4579 = vmul.u32 %v4578, 18
      %v4580 = vsub.s32 %v4574, %v4579
      %v4581 = vsub.s32 0, %v4580
      %v4582 = vsel %vm4572, %v4581, %v4580
      %vm4583 = vcmp.lt.s32.totalorder %v4257, 0
      %v4584 = vsub.s32 0, %v4257
      %v4585 = vsel %vm4583, %v4584, %v4257
      %v4586 = vmul.u32.u64.compose %v4585, 3817748708
      %v4587 = vextract.low.u32 %v4586
      %v4588 = vextract.high.u32 %v4586
      %v4589 = vshrl.u32 %v4588, 4
      %v4590 = vmul.u32 %v4589, 18
      %v4591 = vsub.s32 %v4585, %v4590
      %v4592 = vsub.s32 0, %v4591
      %v4593 = vsel %vm4583, %v4592, %v4591
      %vm4594 = vcmp.lt.s32.totalorder %v4258, 0
      %v4595 = vsub.s32 0, %v4258
      %v4596 = vsel %vm4594, %v4595, %v4258
      %v4597 = vmul.u32.u64.compose %v4596, 3817748708
      %v4598 = vextract.low.u32 %v4597
      %v4599 = vextract.high.u32 %v4597
      %v4600 = vshrl.u32 %v4599, 4
      %v4601 = vmul.u32 %v4600, 18
      %v4602 = vsub.s32 %v4596, %v4601
      %v4603 = vsub.s32 0, %v4602
      %v4604 = vsel %vm4594, %v4603, %v4602
      %vm4605 = vcmp.lt.s32.totalorder %v4259, 0
      %v4606 = vsub.s32 0, %v4259
      %v4607 = vsel %vm4605, %v4606, %v4259
      %v4608 = vmul.u32.u64.compose %v4607, 3817748708
      %v4609 = vextract.low.u32 %v4608
      %v4610 = vextract.high.u32 %v4608
      %v4611 = vshrl.u32 %v4610, 4
      %v4612 = vmul.u32 %v4611, 18
      %v4613 = vsub.s32 %v4607, %v4612
      %v4614 = vsub.s32 0, %v4613
      %v4615 = vsel %vm4605, %v4614, %v4613
      %vm4616 = vcmp.lt.s32.totalorder %v4260, 0
      %v4617 = vsub.s32 0, %v4260
      %v4618 = vsel %vm4616, %v4617, %v4260
      %v4619 = vmul.u32.u64.compose %v4618, 3817748708
      %v4620 = vextract.low.u32 %v4619
      %v4621 = vextract.high.u32 %v4619
      %v4622 = vshrl.u32 %v4621, 4
      %v4623 = vmul.u32 %v4622, 18
      %v4624 = vsub.s32 %v4618, %v4623
      %v4625 = vsub.s32 0, %v4624
      %v4626 = vsel %vm4616, %v4625, %v4624
      %vm4627 = vcmp.lt.s32.totalorder %v4261, 0
      %v4628 = vsub.s32 0, %v4261
      %v4629 = vsel %vm4627, %v4628, %v4261
      %v4630 = vmul.u32.u64.compose %v4629, 3817748708
      %v4631 = vextract.low.u32 %v4630
      %v4632 = vextract.high.u32 %v4630
      %v4633 = vshrl.u32 %v4632, 4
      %v4634 = vmul.u32 %v4633, 18
      %v4635 = vsub.s32 %v4629, %v4634
      %v4636 = vsub.s32 0, %v4635
      %v4637 = vsel %vm4627, %v4636, %v4635
      %vm4638 = vcmp.lt.s32.totalorder %v4262, 0
      %v4639 = vsub.s32 0, %v4262
      %v4640 = vsel %vm4638, %v4639, %v4262
      %v4641 = vmul.u32.u64.compose %v4640, 3817748708
      %v4642 = vextract.low.u32 %v4641
      %v4643 = vextract.high.u32 %v4641
      %v4644 = vshrl.u32 %v4643, 4
      %v4645 = vmul.u32 %v4644, 18
      %v4646 = vsub.s32 %v4640, %v4645
      %v4647 = vsub.s32 0, %v4646
      %v4648 = vsel %vm4638, %v4647, %v4646
      %vm4649 = vcmp.lt.s32.totalorder %v4263, 0
      %v4650 = vsub.s32 0, %v4263
      %v4651 = vsel %vm4649, %v4650, %v4263
      %v4652 = vmul.u32.u64.compose %v4651, 3817748708
      %v4653 = vextract.low.u32 %v4652
      %v4654 = vextract.high.u32 %v4652
      %v4655 = vshrl.u32 %v4654, 4
      %v4656 = vmul.u32 %v4655, 18
      %v4657 = vsub.s32 %v4651, %v4656
      %v4658 = vsub.s32 0, %v4657
      %v4659 = vsel %vm4649, %v4658, %v4657
      %vm4660 = vcmp.ne.s32.totalorder %v4274, 0
      %vm4661 = vcmp.ne.s32.totalorder %v4285, 0
      %vm4662 = vcmp.ne.s32.totalorder %v4296, 0
      %vm4663 = vcmp.ne.s32.totalorder %v4307, 0
      %vm4664 = vcmp.ne.s32.totalorder %v4318, 0
      %vm4665 = vcmp.ne.s32.totalorder %v4329, 0
      %vm4666 = vcmp.ne.s32.totalorder %v4340, 0
      %vm4667 = vcmp.ne.s32.totalorder %v4351, 0
      %vm4668 = vcmp.ne.s32.totalorder %v4362, 0
      %vm4669 = vcmp.ne.s32.totalorder %v4373, 0
      %vm4670 = vcmp.ne.s32.totalorder %v4384, 0
      %vm4671 = vcmp.ne.s32.totalorder %v4395, 0
      %vm4672 = vcmp.ne.s32.totalorder %v4406, 0
      %vm4673 = vcmp.ne.s32.totalorder %v4417, 0
      %vm4674 = vcmp.ne.s32.totalorder %v4428, 0
      %vm4675 = vcmp.ne.s32.totalorder %v4439, 0
      %vm4676 = vcmp.ne.s32.totalorder %v4450, 0
      %vm4677 = vcmp.ne.s32.totalorder %v4461, 0
      %vm4678 = vcmp.ne.s32.totalorder %v4472, 0
      %vm4679 = vcmp.ne.s32.totalorder %v4483, 0
      %vm4680 = vcmp.ne.s32.totalorder %v4494, 0
      %vm4681 = vcmp.ne.s32.totalorder %v4505, 0
      %vm4682 = vcmp.ne.s32.totalorder %v4516, 0
      %vm4683 = vcmp.ne.s32.totalorder %v4527, 0
      %vm4684 = vcmp.ne.s32.totalorder %v4538, 0
      %vm4685 = vcmp.ne.s32.totalorder %v4549, 0
      %vm4686 = vcmp.ne.s32.totalorder %v4560, 0
      %vm4687 = vcmp.ne.s32.totalorder %v4571, 0
      %vm4688 = vcmp.ne.s32.totalorder %v4582, 0
      %vm4689 = vcmp.ne.s32.totalorder %v4593, 0
      %vm4690 = vcmp.ne.s32.totalorder %v4604, 0
      %vm4691 = vcmp.ne.s32.totalorder %v4615, 0
      %vm4692 = vcmp.ne.s32.totalorder %v4626, 0
      %vm4693 = vcmp.ne.s32.totalorder %v4637, 0
      %vm4694 = vcmp.ne.s32.totalorder %v4648, 0
      %vm4695 = vcmp.ne.s32.totalorder %v4659, 0
      %vm4696 = vcmp.lt.s32.totalorder %v4274, 0
      %vm4697 = vcmp.lt.s32.totalorder %v4285, 0
      %vm4698 = vcmp.lt.s32.totalorder %v4296, 0
      %vm4699 = vcmp.lt.s32.totalorder %v4307, 0
      %vm4700 = vcmp.lt.s32.totalorder %v4318, 0
      %vm4701 = vcmp.lt.s32.totalorder %v4329, 0
      %vm4702 = vcmp.lt.s32.totalorder %v4340, 0
      %vm4703 = vcmp.lt.s32.totalorder %v4351, 0
      %vm4704 = vcmp.lt.s32.totalorder %v4362, 0
      %vm4705 = vcmp.lt.s32.totalorder %v4373, 0
      %vm4706 = vcmp.lt.s32.totalorder %v4384, 0
      %vm4707 = vcmp.lt.s32.totalorder %v4395, 0
      %vm4708 = vcmp.lt.s32.totalorder %v4406, 0
      %vm4709 = vcmp.lt.s32.totalorder %v4417, 0
      %vm4710 = vcmp.lt.s32.totalorder %v4428, 0
      %vm4711 = vcmp.lt.s32.totalorder %v4439, 0
      %vm4712 = vcmp.lt.s32.totalorder %v4450, 0
      %vm4713 = vcmp.lt.s32.totalorder %v4461, 0
      %vm4714 = vcmp.lt.s32.totalorder %v4472, 0
      %vm4715 = vcmp.lt.s32.totalorder %v4483, 0
      %vm4716 = vcmp.lt.s32.totalorder %v4494, 0
      %vm4717 = vcmp.lt.s32.totalorder %v4505, 0
      %vm4718 = vcmp.lt.s32.totalorder %v4516, 0
      %vm4719 = vcmp.lt.s32.totalorder %v4527, 0
      %vm4720 = vcmp.lt.s32.totalorder %v4538, 0
      %vm4721 = vcmp.lt.s32.totalorder %v4549, 0
      %vm4722 = vcmp.lt.s32.totalorder %v4560, 0
      %vm4723 = vcmp.lt.s32.totalorder %v4571, 0
      %vm4724 = vcmp.lt.s32.totalorder %v4582, 0
      %vm4725 = vcmp.lt.s32.totalorder %v4593, 0
      %vm4726 = vcmp.lt.s32.totalorder %v4604, 0
      %vm4727 = vcmp.lt.s32.totalorder %v4615, 0
      %vm4728 = vcmp.lt.s32.totalorder %v4626, 0
      %vm4729 = vcmp.lt.s32.totalorder %v4637, 0
      %vm4730 = vcmp.lt.s32.totalorder %v4648, 0
      %vm4731 = vcmp.lt.s32.totalorder %v4659, 0
      %vm4732 = vmand %vm4696, %vm4660
      %vm4733 = vmand %vm4697, %vm4661
      %vm4734 = vmand %vm4698, %vm4662
      %vm4735 = vmand %vm4699, %vm4663
      %vm4736 = vmand %vm4700, %vm4664
      %vm4737 = vmand %vm4701, %vm4665
      %vm4738 = vmand %vm4702, %vm4666
      %vm4739 = vmand %vm4703, %vm4667
      %vm4740 = vmand %vm4704, %vm4668
      %vm4741 = vmand %vm4705, %vm4669
      %vm4742 = vmand %vm4706, %vm4670
      %vm4743 = vmand %vm4707, %vm4671
      %vm4744 = vmand %vm4708, %vm4672
      %vm4745 = vmand %vm4709, %vm4673
      %vm4746 = vmand %vm4710, %vm4674
      %vm4747 = vmand %vm4711, %vm4675
      %vm4748 = vmand %vm4712, %vm4676
      %vm4749 = vmand %vm4713, %vm4677
      %vm4750 = vmand %vm4714, %vm4678
      %vm4751 = vmand %vm4715, %vm4679
      %vm4752 = vmand %vm4716, %vm4680
      %vm4753 = vmand %vm4717, %vm4681
      %vm4754 = vmand %vm4718, %vm4682
      %vm4755 = vmand %vm4719, %vm4683
      %vm4756 = vmand %vm4720, %vm4684
      %vm4757 = vmand %vm4721, %vm4685
      %vm4758 = vmand %vm4722, %vm4686
      %vm4759 = vmand %vm4723, %vm4687
      %vm4760 = vmand %vm4724, %vm4688
      %vm4761 = vmand %vm4725, %vm4689
      %vm4762 = vmand %vm4726, %vm4690
      %vm4763 = vmand %vm4727, %vm4691
      %vm4764 = vmand %vm4728, %vm4692
      %vm4765 = vmand %vm4729, %vm4693
      %vm4766 = vmand %vm4730, %vm4694
      %vm4767 = vmand %vm4731, %vm4695
      %v4768 = vadd.s32 %v4274, 18
      %v4769 = vadd.s32 %v4285, 18
      %v4770 = vadd.s32 %v4296, 18
      %v4771 = vadd.s32 %v4307, 18
      %v4772 = vadd.s32 %v4318, 18
      %v4773 = vadd.s32 %v4329, 18
      %v4774 = vadd.s32 %v4340, 18
      %v4775 = vadd.s32 %v4351, 18
      %v4776 = vadd.s32 %v4362, 18
      %v4777 = vadd.s32 %v4373, 18
      %v4778 = vadd.s32 %v4384, 18
      %v4779 = vadd.s32 %v4395, 18
      %v4780 = vadd.s32 %v4406, 18
      %v4781 = vadd.s32 %v4417, 18
      %v4782 = vadd.s32 %v4428, 18
      %v4783 = vadd.s32 %v4439, 18
      %v4784 = vadd.s32 %v4450, 18
      %v4785 = vadd.s32 %v4461, 18
      %v4786 = vadd.s32 %v4472, 18
      %v4787 = vadd.s32 %v4483, 18
      %v4788 = vadd.s32 %v4494, 18
      %v4789 = vadd.s32 %v4505, 18
      %v4790 = vadd.s32 %v4516, 18
      %v4791 = vadd.s32 %v4527, 18
      %v4792 = vadd.s32 %v4538, 18
      %v4793 = vadd.s32 %v4549, 18
      %v4794 = vadd.s32 %v4560, 18
      %v4795 = vadd.s32 %v4571, 18
      %v4796 = vadd.s32 %v4582, 18
      %v4797 = vadd.s32 %v4593, 18
      %v4798 = vadd.s32 %v4604, 18
      %v4799 = vadd.s32 %v4615, 18
      %v4800 = vadd.s32 %v4626, 18
      %v4801 = vadd.s32 %v4637, 18
      %v4802 = vadd.s32 %v4648, 18
      %v4803 = vadd.s32 %v4659, 18
      %v4804 = vsel %vm4732, %v4768, %v4274
      %v4805 = vsel %vm4733, %v4769, %v4285
      %v4806 = vsel %vm4734, %v4770, %v4296
      %v4807 = vsel %vm4735, %v4771, %v4307
      %v4808 = vsel %vm4736, %v4772, %v4318
      %v4809 = vsel %vm4737, %v4773, %v4329
      %v4810 = vsel %vm4738, %v4774, %v4340
      %v4811 = vsel %vm4739, %v4775, %v4351
      %v4812 = vsel %vm4740, %v4776, %v4362
      %v4813 = vsel %vm4741, %v4777, %v4373
      %v4814 = vsel %vm4742, %v4778, %v4384
      %v4815 = vsel %vm4743, %v4779, %v4395
      %v4816 = vsel %vm4744, %v4780, %v4406
      %v4817 = vsel %vm4745, %v4781, %v4417
      %v4818 = vsel %vm4746, %v4782, %v4428
      %v4819 = vsel %vm4747, %v4783, %v4439
      %v4820 = vsel %vm4748, %v4784, %v4450
      %v4821 = vsel %vm4749, %v4785, %v4461
      %v4822 = vsel %vm4750, %v4786, %v4472
      %v4823 = vsel %vm4751, %v4787, %v4483
      %v4824 = vsel %vm4752, %v4788, %v4494
      %v4825 = vsel %vm4753, %v4789, %v4505
      %v4826 = vsel %vm4754, %v4790, %v4516
      %v4827 = vsel %vm4755, %v4791, %v4527
      %v4828 = vsel %vm4756, %v4792, %v4538
      %v4829 = vsel %vm4757, %v4793, %v4549
      %v4830 = vsel %vm4758, %v4794, %v4560
      %v4831 = vsel %vm4759, %v4795, %v4571
      %v4832 = vsel %vm4760, %v4796, %v4582
      %v4833 = vsel %vm4761, %v4797, %v4593
      %v4834 = vsel %vm4762, %v4798, %v4604
      %v4835 = vsel %vm4763, %v4799, %v4615
      %v4836 = vsel %vm4764, %v4800, %v4626
      %v4837 = vsel %vm4765, %v4801, %v4637
      %v4838 = vsel %vm4766, %v4802, %v4648
      %v4839 = vsel %vm4767, %v4803, %v4659
      %vm4840 = vcmp.lt.s32.totalorder %v4804, 16
      %vm4841 = vcmp.lt.s32.totalorder %v4805, 16
      %vm4842 = vcmp.lt.s32.totalorder %v4806, 16
      %vm4843 = vcmp.lt.s32.totalorder %v4807, 16
      %vm4844 = vcmp.lt.s32.totalorder %v4808, 16
      %vm4845 = vcmp.lt.s32.totalorder %v4809, 16
      %vm4846 = vcmp.lt.s32.totalorder %v4810, 16
      %vm4847 = vcmp.lt.s32.totalorder %v4811, 16
      %vm4848 = vcmp.lt.s32.totalorder %v4812, 16
      %vm4849 = vcmp.lt.s32.totalorder %v4813, 16
      %vm4850 = vcmp.lt.s32.totalorder %v4814, 16
      %vm4851 = vcmp.lt.s32.totalorder %v4815, 16
      %vm4852 = vcmp.lt.s32.totalorder %v4816, 16
      %vm4853 = vcmp.lt.s32.totalorder %v4817, 16
      %vm4854 = vcmp.lt.s32.totalorder %v4818, 16
      %vm4855 = vcmp.lt.s32.totalorder %v4819, 16
      %vm4856 = vcmp.lt.s32.totalorder %v4820, 16
      %vm4857 = vcmp.lt.s32.totalorder %v4821, 16
      %vm4858 = vcmp.lt.s32.totalorder %v4822, 16
      %vm4859 = vcmp.lt.s32.totalorder %v4823, 16
      %vm4860 = vcmp.lt.s32.totalorder %v4824, 16
      %vm4861 = vcmp.lt.s32.totalorder %v4825, 16
      %vm4862 = vcmp.lt.s32.totalorder %v4826, 16
      %vm4863 = vcmp.lt.s32.totalorder %v4827, 16
      %vm4864 = vcmp.lt.s32.totalorder %v4828, 16
      %vm4865 = vcmp.lt.s32.totalorder %v4829, 16
      %vm4866 = vcmp.lt.s32.totalorder %v4830, 16
      %vm4867 = vcmp.lt.s32.totalorder %v4831, 16
      %vm4868 = vcmp.lt.s32.totalorder %v4832, 16
      %vm4869 = vcmp.lt.s32.totalorder %v4833, 16
      %vm4870 = vcmp.lt.s32.totalorder %v4834, 16
      %vm4871 = vcmp.lt.s32.totalorder %v4835, 16
      %vm4872 = vcmp.lt.s32.totalorder %v4836, 16
      %vm4873 = vcmp.lt.s32.totalorder %v4837, 16
      %vm4874 = vcmp.lt.s32.totalorder %v4838, 16
      %vm4875 = vcmp.lt.s32.totalorder %v4839, 16
      %v4876 = vsel %vm4840, 1, 0
      %v4877 = vsel %vm4841, 1, 0
      %v4878 = vsel %vm4842, 1, 0
      %v4879 = vsel %vm4843, 1, 0
      %v4880 = vsel %vm4844, 1, 0
      %v4881 = vsel %vm4845, 1, 0
      %v4882 = vsel %vm4846, 1, 0
      %v4883 = vsel %vm4847, 1, 0
      %v4884 = vsel %vm4848, 1, 0
      %v4885 = vsel %vm4849, 1, 0
      %v4886 = vsel %vm4850, 1, 0
      %v4887 = vsel %vm4851, 1, 0
      %v4888 = vsel %vm4852, 1, 0
      %v4889 = vsel %vm4853, 1, 0
      %v4890 = vsel %vm4854, 1, 0
      %v4891 = vsel %vm4855, 1, 0
      %v4892 = vsel %vm4856, 1, 0
      %v4893 = vsel %vm4857, 1, 0
      %v4894 = vsel %vm4858, 1, 0
      %v4895 = vsel %vm4859, 1, 0
      %v4896 = vsel %vm4860, 1, 0
      %v4897 = vsel %vm4861, 1, 0
      %v4898 = vsel %vm4862, 1, 0
      %v4899 = vsel %vm4863, 1, 0
      %v4900 = vsel %vm4864, 1, 0
      %v4901 = vsel %vm4865, 1, 0
      %v4902 = vsel %vm4866, 1, 0
      %v4903 = vsel %vm4867, 1, 0
      %v4904 = vsel %vm4868, 1, 0
      %v4905 = vsel %vm4869, 1, 0
      %v4906 = vsel %vm4870, 1, 0
      %v4907 = vsel %vm4871, 1, 0
      %v4908 = vsel %vm4872, 1, 0
      %v4909 = vsel %vm4873, 1, 0
      %v4910 = vsel %vm4874, 1, 0
      %v4911 = vsel %vm4875, 1, 0
      %v4912 = vcvt.s32.f32 %v4876
      %v4913 = vcvt.s32.f32 %v4877
      %v4914 = vcvt.s32.f32 %v4878
      %v4915 = vcvt.s32.f32 %v4879
      %v4916 = vcvt.s32.f32 %v4880
      %v4917 = vcvt.s32.f32 %v4881
      %v4918 = vcvt.s32.f32 %v4882
      %v4919 = vcvt.s32.f32 %v4883
      %v4920 = vcvt.s32.f32 %v4884
      %v4921 = vcvt.s32.f32 %v4885
      %v4922 = vcvt.s32.f32 %v4886
      %v4923 = vcvt.s32.f32 %v4887
      %v4924 = vcvt.s32.f32 %v4888
      %v4925 = vcvt.s32.f32 %v4889
      %v4926 = vcvt.s32.f32 %v4890
      %v4927 = vcvt.s32.f32 %v4891
      %v4928 = vcvt.s32.f32 %v4892
      %v4929 = vcvt.s32.f32 %v4893
      %v4930 = vcvt.s32.f32 %v4894
      %v4931 = vcvt.s32.f32 %v4895
      %v4932 = vcvt.s32.f32 %v4896
      %v4933 = vcvt.s32.f32 %v4897
      %v4934 = vcvt.s32.f32 %v4898
      %v4935 = vcvt.s32.f32 %v4899
      %v4936 = vcvt.s32.f32 %v4900
      %v4937 = vcvt.s32.f32 %v4901
      %v4938 = vcvt.s32.f32 %v4902
      %v4939 = vcvt.s32.f32 %v4903
      %v4940 = vcvt.s32.f32 %v4904
      %v4941 = vcvt.s32.f32 %v4905
      %v4942 = vcvt.s32.f32 %v4906
      %v4943 = vcvt.s32.f32 %v4907
      %v4944 = vcvt.s32.f32 %v4908
      %v4945 = vcvt.s32.f32 %v4909
      %v4946 = vcvt.s32.f32 %v4910
      %v4947 = vcvt.s32.f32 %v4911
      %v4948 = vmul.f32 %v4191, %v4912
      %v4949 = vmul.f32 %v4192, %v4913
      %v4950 = vmul.f32 %v4193, %v4914
      %v4951 = vmul.f32 %v4194, %v4915
      %v4952 = vmul.f32 %v4195, %v4916
      %v4953 = vmul.f32 %v4196, %v4917
      %v4954 = vmul.f32 %v4197, %v4918
      %v4955 = vmul.f32 %v4198, %v4919
      %v4956 = vmul.f32 %v4199, %v4920
      %v4957 = vmul.f32 %v4200, %v4921
      %v4958 = vmul.f32 %v4201, %v4922
      %v4959 = vmul.f32 %v4202, %v4923
      %v4960 = vmul.f32 %v4203, %v4924
      %v4961 = vmul.f32 %v4204, %v4925
      %v4962 = vmul.f32 %v4205, %v4926
      %v4963 = vmul.f32 %v4206, %v4927
      %v4964 = vmul.f32 %v4207, %v4928
      %v4965 = vmul.f32 %v4208, %v4929
      %v4966 = vmul.f32 %v4209, %v4930
      %v4967 = vmul.f32 %v4210, %v4931
      %v4968 = vmul.f32 %v4211, %v4932
      %v4969 = vmul.f32 %v4212, %v4933
      %v4970 = vmul.f32 %v4213, %v4934
      %v4971 = vmul.f32 %v4214, %v4935
      %v4972 = vmul.f32 %v4215, %v4936
      %v4973 = vmul.f32 %v4216, %v4937
      %v4974 = vmul.f32 %v4217, %v4938
      %v4975 = vmul.f32 %v4218, %v4939
      %v4976 = vmul.f32 %v4219, %v4940
      %v4977 = vmul.f32 %v4220, %v4941
      %v4978 = vmul.f32 %v4221, %v4942
      %v4979 = vmul.f32 %v4222, %v4943
      %v4980 = vmul.f32 %v4223, %v4944
      %v4981 = vmul.f32 %v4224, %v4945
      %v4982 = vmul.f32 %v4225, %v4946
      %v4983 = vmul.f32 %v4226, %v4947
      %v4984 = vadd.f32 %v4948, %v4949
      %v4985 = vadd.f32 %v4984, %v4950
      %v4986 = vadd.f32 %v4985, %v4951
      %v4987 = vadd.f32 %v4986, %v4952
      %v4988 = vadd.f32 %v4987, %v4953
      %v4989 = vadd.f32 %v4988, %v4954
      %v4990 = vadd.f32 %v4989, %v4955
      %v4991 = vadd.f32 %v4990, %v4956
      %v4992 = vadd.f32 %v4991, %v4957
      %v4993 = vadd.f32 %v4992, %v4958
      %v4994 = vadd.f32 %v4993, %v4959
      %v4995 = vadd.f32 %v4994, %v4960
      %v4996 = vadd.f32 %v4995, %v4961
      %v4997 = vadd.f32 %v4996, %v4962
      %v4998 = vadd.f32 %v4997, %v4963
      %v4999 = vadd.f32 %v4998, %v4964
      %v5000 = vadd.f32 %v4999, %v4965
      %v5001 = vadd.f32 %v5000, %v4966
      %v5002 = vadd.f32 %v5001, %v4967
      %v5003 = vadd.f32 %v5002, %v4968
      %v5004 = vadd.f32 %v5003, %v4969
      %v5005 = vadd.f32 %v5004, %v4970
      %v5006 = vadd.f32 %v5005, %v4971
      %v5007 = vadd.f32 %v5006, %v4972
      %v5008 = vadd.f32 %v5007, %v4973
      %v5009 = vadd.f32 %v5008, %v4974
      %v5010 = vadd.f32 %v5009, %v4975
      %v5011 = vadd.f32 %v5010, %v4976
      %v5012 = vadd.f32 %v5011, %v4977
      %v5013 = vadd.f32 %v5012, %v4978
      %v5014 = vadd.f32 %v5013, %v4979
      %v5015 = vadd.f32 %v5014, %v4980
      %v5016 = vadd.f32 %v5015, %v4981
      %v5017 = vadd.f32 %v5016, %v4982
      %v5018 = vadd.f32 %v5017, %v4983
      %v5019 = vrot.slane %v5018, 4
      %v5020 = vadd.f32 %v5018, %v5019
      %v5021 = vrot.slane %v5020, 2
      %v5022 = vadd.f32 %v5020, %v5021
      %v5023 = vrot.slane %v5022, 1
      %v5024 = vadd.f32 %v5022, %v5023
      %5025 = vst [vmem:[%s262] sm:$0x1] %v5024
      %v5026 = vmul.f32 %v4948, %v4191
      %v5027 = vmul.f32 %v4949, %v4192
      %v5028 = vmul.f32 %v4950, %v4193
      %v5029 = vmul.f32 %v4951, %v4194
      %v5030 = vmul.f32 %v4952, %v4195
      %v5031 = vmul.f32 %v4953, %v4196
      %v5032 = vmul.f32 %v4954, %v4197
      %v5033 = vmul.f32 %v4955, %v4198
      %v5034 = vmul.f32 %v4956, %v4199
      %v5035 = vmul.f32 %v4957, %v4200
      %v5036 = vmul.f32 %v4958, %v4201
      %v5037 = vmul.f32 %v4959, %v4202
      %v5038 = vmul.f32 %v4960, %v4203
      %v5039 = vmul.f32 %v4961, %v4204
      %v5040 = vmul.f32 %v4962, %v4205
      %v5041 = vmul.f32 %v4963, %v4206
      %v5042 = vmul.f32 %v4964, %v4207
      %v5043 = vmul.f32 %v4965, %v4208
      %v5044 = vmul.f32 %v4966, %v4209
      %v5045 = vmul.f32 %v4967, %v4210
      %v5046 = vmul.f32 %v4968, %v4211
      %v5047 = vmul.f32 %v4969, %v4212
      %v5048 = vmul.f32 %v4970, %v4213
      %v5049 = vmul.f32 %v4971, %v4214
      %v5050 = vmul.f32 %v4972, %v4215
      %v5051 = vmul.f32 %v4973, %v4216
      %v5052 = vmul.f32 %v4974, %v4217
      %v5053 = vmul.f32 %v4975, %v4218
      %v5054 = vmul.f32 %v4976, %v4219
      %v5055 = vmul.f32 %v4977, %v4220
      %v5056 = vmul.f32 %v4978, %v4221
      %v5057 = vmul.f32 %v4979, %v4222
      %v5058 = vmul.f32 %v4980, %v4223
      %v5059 = vmul.f32 %v4981, %v4224
      %v5060 = vmul.f32 %v4982, %v4225
      %v5061 = vmul.f32 %v4983, %v4226
      %v5062 = vadd.f32 %v5026, %v5027
      %v5063 = vadd.f32 %v5062, %v5028
      %v5064 = vadd.f32 %v5063, %v5029
      %v5065 = vadd.f32 %v5064, %v5030
      %v5066 = vadd.f32 %v5065, %v5031
      %v5067 = vadd.f32 %v5066, %v5032
      %v5068 = vadd.f32 %v5067, %v5033
      %v5069 = vadd.f32 %v5068, %v5034
      %v5070 = vadd.f32 %v5069, %v5035
      %v5071 = vadd.f32 %v5070, %v5036
      %v5072 = vadd.f32 %v5071, %v5037
      %v5073 = vadd.f32 %v5072, %v5038
      %v5074 = vadd.f32 %v5073, %v5039
      %v5075 = vadd.f32 %v5074, %v5040
      %v5076 = vadd.f32 %v5075, %v5041
      %v5077 = vadd.f32 %v5076, %v5042
      %v5078 = vadd.f32 %v5077, %v5043
      %v5079 = vadd.f32 %v5078, %v5044
      %v5080 = vadd.f32 %v5079, %v5045
      %v5081 = vadd.f32 %v5080, %v5046
      %v5082 = vadd.f32 %v5081, %v5047
      %v5083 = vadd.f32 %v5082, %v5048
      %v5084 = vadd.f32 %v5083, %v5049
      %v5085 = vadd.f32 %v5084, %v5050
      %v5086 = vadd.f32 %v5085, %v5051
      %v5087 = vadd.f32 %v5086, %v5052
      %v5088 = vadd.f32 %v5087, %v5053
      %v5089 = vadd.f32 %v5088, %v5054
      %v5090 = vadd.f32 %v5089, %v5055
      %v5091 = vadd.f32 %v5090, %v5056
      %v5092 = vadd.f32 %v5091, %v5057
      %v5093 = vadd.f32 %v5092, %v5058
      %v5094 = vadd.f32 %v5093, %v5059
      %v5095 = vadd.f32 %v5094, %v5060
      %v5096 = vadd.f32 %v5095, %v5061
      %v5097 = vrot.slane %v5096, 4
      %v5098 = vadd.f32 %v5096, %v5097
      %v5099 = vrot.slane %v5098, 2
      %v5100 = vadd.f32 %v5098, %v5099
      %v5101 = vrot.slane %v5100, 1
      %v5102 = vadd.f32 %v5100, %v5101
      %5103 = vst [vmem:[%s262 + $0x1] sm:$0x1] %v5102
      %v5104 = vpack.c.bf16 %v4192, %v4191
      %v5105 = vpack.c.bf16 %v4194, %v4193
      %v5106 = vpack.c.bf16 %v4196, %v4195
      %v5107 = vpack.c.bf16 %v4198, %v4197
      %v5108 = vpack.c.bf16 %v4200, %v4199
      %v5109 = vpack.c.bf16 %v4202, %v4201
      %v5110 = vpack.c.bf16 %v4204, %v4203
      %v5111 = vpack.c.bf16 %v4206, %v4205
      %v5112 = vpack.c.bf16 %v4208, %v4207
      %v5113 = vpack.c.bf16 %v4210, %v4209
      %v5114 = vpack.c.bf16 %v4212, %v4211
      %v5115 = vpack.c.bf16 %v4214, %v4213
      %v5116 = vpack.c.bf16 %v4216, %v4215
      %v5117 = vpack.c.bf16 %v4218, %v4217
      %v5118 = vpack.c.bf16 %v4220, %v4219
      %v5119 = vpack.c.bf16 %v4222, %v4221
      %v5120 = vpack.c.bf16 %v4224, %v4223
      %v5121 = vpack.c.bf16 %v4226, %v4225
      %v5140 = vunpack.c.l.b16 %v5104
      %v5141 = vunpack.c.h.b16 %v5104
      %v5142 = vunpack.c.l.b16 %v5105
      %v5143 = vunpack.c.h.b16 %v5105
      %v5144 = vunpack.c.l.b16 %v5106
      %v5145 = vunpack.c.h.b16 %v5106
      %v5146 = vunpack.c.l.b16 %v5107
      %v5147 = vunpack.c.h.b16 %v5107
      %v5148 = vunpack.c.l.b16 %v5108
      %v5149 = vunpack.c.h.b16 %v5108
      %v5150 = vunpack.c.l.b16 %v5109
      %v5151 = vunpack.c.h.b16 %v5109
      %v5152 = vunpack.c.l.b16 %v5110
      %v5153 = vunpack.c.h.b16 %v5110
      %v5154 = vunpack.c.l.b16 %v5111
      %v5155 = vunpack.c.h.b16 %v5111
      %v5156 = vunpack.c.l.b16 %v5112
      %v5157 = vunpack.c.h.b16 %v5112
      %v5158 = vunpack.c.l.b16 %v5113
      %v5159 = vunpack.c.h.b16 %v5113
      %v5160 = vunpack.c.l.b16 %v5114
      %v5161 = vunpack.c.h.b16 %v5114
      %v5162 = vunpack.c.l.b16 %v5115
      %v5163 = vunpack.c.h.b16 %v5115
      %v5164 = vunpack.c.l.b16 %v5116
      %v5165 = vunpack.c.h.b16 %v5116
      %v5166 = vunpack.c.l.b16 %v5117
      %v5167 = vunpack.c.h.b16 %v5117
      %v5168 = vunpack.c.l.b16 %v5118
      %v5169 = vunpack.c.h.b16 %v5118
      %v5170 = vunpack.c.l.b16 %v5119
      %v5171 = vunpack.c.h.b16 %v5119
      %v5172 = vunpack.c.l.b16 %v5120
      %v5173 = vunpack.c.h.b16 %v5120
      %v5174 = vunpack.c.l.b16 %v5121
      %v5175 = vunpack.c.h.b16 %v5121
      %v5176 = vpack.c.b16 %v5140, %v5140
      %v5177 = vpack.c.b16 %v5141, %v5141
      %v5178 = vpack.c.b16 %v5142, %v5142
      %v5179 = vpack.c.b16 %v5143, %v5143
      %v5180 = vpack.c.b16 %v5144, %v5144
      %v5181 = vpack.c.b16 %v5145, %v5145
      %v5182 = vpack.c.b16 %v5146, %v5146
      %v5183 = vpack.c.b16 %v5147, %v5147
      %v5184 = vpack.c.b16 %v5148, %v5148
      %v5185 = vpack.c.b16 %v5149, %v5149
      %v5186 = vpack.c.b16 %v5150, %v5150
      %v5187 = vpack.c.b16 %v5151, %v5151
      %v5188 = vpack.c.b16 %v5152, %v5152
      %v5189 = vpack.c.b16 %v5153, %v5153
      %v5190 = vpack.c.b16 %v5154, %v5154
      %v5191 = vpack.c.b16 %v5155, %v5155
      %v5192 = vpack.c.b16 %v5156, %v5156
      %v5193 = vpack.c.b16 %v5157, %v5157
      %v5194 = vpack.c.b16 %v5158, %v5158
      %v5195 = vpack.c.b16 %v5159, %v5159
      %v5196 = vpack.c.b16 %v5160, %v5160
      %v5197 = vpack.c.b16 %v5161, %v5161
      %v5198 = vpack.c.b16 %v5162, %v5162
      %v5199 = vpack.c.b16 %v5163, %v5163
      %v5200 = vpack.c.b16 %v5164, %v5164
      %v5201 = vpack.c.b16 %v5165, %v5165
      %v5202 = vpack.c.b16 %v5166, %v5166
      %v5203 = vpack.c.b16 %v5167, %v5167
      %v5204 = vpack.c.b16 %v5168, %v5168
      %v5205 = vpack.c.b16 %v5169, %v5169
      %v5206 = vpack.c.b16 %v5170, %v5170
      %v5207 = vpack.c.b16 %v5171, %v5171
      %v5208 = vpack.c.b16 %v5172, %v5172
      %v5209 = vpack.c.b16 %v5173, %v5173
      %v5210 = vpack.c.b16 %v5174, %v5174
      %v5211 = vpack.c.b16 %v5175, %v5175
      %5248 = vst [vmem:[%s258] sm:$0xf] %v5176
      %5249 = vst [vmem:[%s258 + $0x4] sm:$0xf] %v5177
      %5250 = vst [vmem:[%s258 + $0x8] sm:$0xf] %v5178
      %5251 = vst [vmem:[%s258 + $0xc] sm:$0xf] %v5179
      %5252 = vst [vmem:[%s258 + $0x10] sm:$0xf] %v5180
      %5253 = vst [vmem:[%s258 + $0x14] sm:$0xf] %v5181
      %5254 = vst [vmem:[%s258 + $0x18] sm:$0xf] %v5182
      %5255 = vst [vmem:[%s258 + $0x1c] sm:$0xf] %v5183
      %5256 = vst [vmem:[%s258 + $0x20] sm:$0xf] %v5184
      %5257 = vst [vmem:[%s258 + $0x24] sm:$0xf] %v5185
      %5258 = vst [vmem:[%s258 + $0x28] sm:$0xf] %v5186
      %5259 = vst [vmem:[%s258 + $0x2c] sm:$0xf] %v5187
      %5260 = vst [vmem:[%s258 + $0x30] sm:$0xf] %v5188
      %5261 = vst [vmem:[%s258 + $0x34] sm:$0xf] %v5189
      %5262 = vst [vmem:[%s258 + $0x38] sm:$0xf] %v5190
      %5263 = vst [vmem:[%s258 + $0x3c] sm:$0xf] %v5191
      %5264 = vst [vmem:[%s258 + $0x40] sm:$0xf] %v5192
      %5265 = vst [vmem:[%s258 + $0x44] sm:$0xf] %v5193
      %5266 = vst [vmem:[%s258 + $0x48] sm:$0xf] %v5194
      %5267 = vst [vmem:[%s258 + $0x4c] sm:$0xf] %v5195
      %5268 = vst [vmem:[%s258 + $0x50] sm:$0xf] %v5196
      %5269 = vst [vmem:[%s258 + $0x54] sm:$0xf] %v5197
      %5270 = vst [vmem:[%s258 + $0x58] sm:$0xf] %v5198
      %5271 = vst [vmem:[%s258 + $0x5c] sm:$0xf] %v5199
      %5272 = vst [vmem:[%s258 + $0x60] sm:$0xf] %v5200
      %5273 = vst [vmem:[%s258 + $0x64] sm:$0xf] %v5201
      %5274 = vst [vmem:[%s258 + $0x68] sm:$0xf] %v5202
      %5275 = vst [vmem:[%s258 + $0x6c] sm:$0xf] %v5203
      %5276 = vst [vmem:[%s258 + $0x70] sm:$0xf] %v5204
      %5277 = vst [vmem:[%s258 + $0x74] sm:$0xf] %v5205
      %5278 = vst [vmem:[%s258 + $0x78] sm:$0xf] %v5206
      %5279 = vst [vmem:[%s258 + $0x7c] sm:$0xf] %v5207
      %5280 = vst [vmem:[%s258 + $0x80] sm:$0xf] %v5208
      %5281 = vst [vmem:[%s258 + $0x84] sm:$0xf] %v5209
      %5282 = vst [vmem:[%s258 + $0x88] sm:$0xf] %v5210
      %5283 = vst [vmem:[%s258 + $0x8c] sm:$0xf] %v5211
      %p5284 = scmp.lt.s32.totalorder %s18, 1
      %s5285 = scalar_select %p5284, %s18, 1
      %s5286 = smul.addr %s5285, 36
      %s5287 = smul.addr %s5286, 4
      %s5288 = scalar_lea.vmem %s5, %s5287
      %p5289 = scmp.lt.s32.totalorder %s18, 1
      %s5290 = scalar_select %p5289, %s18, 1
      %s5291 = smul.addr %s5290, 2
      %s5292 = scalar_lea.vmem %s6, %s5291
      // Predicated region
      $region41: #{_lambda_.5} parent=39 // pred_check
        %p5293 = pneg %p146
      $region42: #{_lambda_.5} parent=39 // pred_check_branch
        %5295 = sbr.rel (%p5293) target = $region44
      $region43: #{_lambda_.5} parent=39 // pred_region
        _
      $region44: #{_lambda_.5} parent=39 // pred_fallthru
        _
      // Predicated region
      $region45: #{_lambda_.5} parent=39 // pred_check
        %p5296 = pneg %p172
      $region46: #{_lambda_.5} parent=39 // pred_check_branch
        %5298 = sbr.rel (%p5296) target = $region48
      $region47: #{_lambda_.5} parent=39 // pred_region
        _
      $region48: #{_lambda_.5} parent=39 // pred_fallthru
        _
    $region40: #{_lambda_.5} parent=5 // pred_fallthru
      _
    %p5299 = scmp.le.s32.totalorder 2, %s13
    // Predicated region
    $region49: #{_lambda_.5} parent=5 // pred_check
      %p5300 = pneg %p5299
    $region50: #{_lambda_.5} parent=5 // pred_check_branch
      %5302 = sbr.rel (%p5300) target = $region52
    $region51: #{_lambda_.5} parent=5 // pred_region
      %s5303 = ssub.s32 %s13, 2
      // Predicated region
      $region53: #{_lambda_.5} parent=51 // pred_check
        %p5304 = pneg %p152
      $region54: #{_lambda_.5} parent=51 // pred_check_branch
        %5306 = sbr.rel (%p5304) target = $region56
      $region55: #{_lambda_.5} parent=51 // pred_region
        %p5307 = scmp.lt.s32.totalorder %s19, 1
        %s5308 = scalar_select %p5307, %s19, 1
        %s5309 = smul.addr %s5308, 36
        %s5310 = smul.addr %s5309, 4
        %s5311 = scalar_lea.vmem %s5, %s5310
      $region56: #{_lambda_.5} parent=51 // pred_fallthru
        _
      // Predicated region
      $region57: #{_lambda_.5} parent=51 // pred_check
        %p5312 = pneg %p178
      $region58: #{_lambda_.5} parent=51 // pred_check_branch
        %5314 = sbr.rel (%p5312) target = $region60
      $region59: #{_lambda_.5} parent=51 // pred_region
        %p5315 = scmp.lt.s32.totalorder %s19, 1
        %s5316 = scalar_select %p5315, %s19, 1
        %s5317 = smul.addr %s5316, 2
        %s5318 = scalar_lea.vmem %s6, %s5317
      $region60: #{_lambda_.5} parent=51 // pred_fallthru
        _
    $region52: #{_lambda_.5} parent=5 // pred_fallthru
      _
  $region6: #{_lambda_.5} parent=0 // loop_footer
    %s17 = sadd.s32 1, %s13
  $region7: #{_lambda_.5} parent=0 // loop_footer_branch
    %12 = sbr.rel target = $region3
  $region8: #{_lambda_.5} parent=0 // loop_exit
    _

</llo_original>
